<compile_context>
chip_gen: v6e
topology: v6e:2x2x1
jax: 0.10.0
libtpu: 0.0.40
codegen_flags: <defaults>
</compile_context>

<pallas_src>
import functools

import jax
import jax.numpy as jnp
from jax.experimental import pallas as pl
from jax.experimental.pallas import tpu as pltpu


# --------------------------------------------------------------------------- #
# Kernel
# --------------------------------------------------------------------------- #
def _attn_kernel(x_ref, mrow_ref, mcol_ref, wqkv_ref, wo_ref, o_ref, *,
                 heads, dim_head, true_n, compute_dtype):
    # x_ref:    (BT, N, DIM)
    # mrow_ref: (BT, 1, N) f32 keep-mask (1.0 keep / 0.0 masked), key oriented
    # mcol_ref: (BT, N, 1) f32 keep-mask, query oriented
    # wqkv_ref: (DIM, 3*inner)  columns = [q_h0..q_hH | k_h0.. | v_h0..],
    #           softmax scale pre-folded into the q columns
    # wo_ref:   (inner, DIM)
    # o_ref:    (BT, N, DIM)
    bt, n, dim = x_ref.shape
    inner = heads * dim_head
    m = bt * n
    mask_value = float(-jnp.finfo(jnp.float32).max)   # same sentinel as torch

    # Flattened rows for the projections (N padded to a multiple of 8 in the
    # wrapper, so these reshapes are zero-cost views).
    x2 = x_ref[...].reshape(m, dim).astype(compute_dtype)

    # One fused, lane-dense projection for Q, K and V of every head.
    qkv = jnp.dot(x2, wqkv_ref[...])                   # (m, 3*inner) compute_dtype

    # Pairwise keep mask for the whole batch block, built once, shared by heads.
    keep = (mcol_ref[...] * mrow_ref[...]) > 0.5       # (bt, n, n) bool

    # Fill value for masked logits.  Padded key columns (>= true_n) get -inf so
    # rows whose every *real* key is masked still softmax to uniform over the
    # real keys only -- exactly the reference masked_fill behaviour.
    if n == true_n:
        fill = mask_value
    else:
        col_ids = jax.lax.broadcasted_iota(jnp.int32, (1, 1, n), 2)
        fill = jnp.where(col_ids < true_n, mask_value, -jnp.inf)

    ctx_heads = []
    for h in range(heads):
        lo = h * dim_head
        q = qkv[:, lo:lo + dim_head].reshape(bt, n, dim_head)
        k = qkv[:, inner + lo:inner + lo + dim_head].reshape(bt, n, dim_head)
        v = qkv[:, 2 * inner + lo:2 * inner + lo + dim_head].reshape(
            bt, n, dim_head)

        # dots[b, i, j] = sum_d q[b,i,d] * k[b,j,d]  (scale pre-folded into wq).
        dots = jax.lax.dot_general(
            q, k, (((2,), (2,)), ((0,), (0,))),
            preferred_element_type=jnp.float32)        # (bt, n, n) f32
        dots = jnp.where(keep, dots, fill)

        # Softmax over keys (f32 math; EUP approximate reciprocal).
        dmax = jnp.max(dots, axis=-1, keepdims=True)
        p = jnp.exp(dots - dmax)
        denom = jnp.sum(p, axis=-1, keepdims=True)
        attn = p * pl.reciprocal(denom, approx=True)

        # attn @ v with f32 accumulation; cast only for the next matmul.
        ctx = jax.lax.dot_general(
            attn.astype(compute_dtype), v, (((2,), (1,)), ((0,), (0,))),
            preferred_element_type=jnp.float32)        # (bt, n, dim_head) f32
        ctx_heads.append(ctx.reshape(m, dim_head).astype(compute_dtype))

    # Single fused output projection: (m, inner) @ (inner, dim), full K fill.
    ctx_all = jnp.concatenate(ctx_heads, axis=-1)      # (m, inner)
    out = jnp.dot(ctx_all, wo_ref[...],
                  preferred_element_type=jnp.float32)  # (m, dim) f32
    o_ref[...] = out.reshape(bt, n, dim).astype(o_ref.dtype)


# --------------------------------------------------------------------------- #
# Weight preparation (cache this across forward calls)
# --------------------------------------------------------------------------- #
def prepare_attention_weights(w_qkv, w_out, *, heads, dim_head,
                              compute_dtype=jnp.bfloat16):
    """Fold the softmax scale into the Q columns and cast to the MXU dtype.

    Do this once and reuse the result across forwards -- it reads/writes the
    full weight set in HBM, which would otherwise be repeated every call."""
    dim = w_qkv.shape[0]
    inner = heads * dim_head
    assert w_qkv.shape == (dim, 3 * inner)
    assert w_out.shape == (inner, dim)
    scale = dim_head ** -0.5
    wqkv = jnp.concatenate(
        [w_qkv[:, :inner] * scale, w_qkv[:, inner:]], axis=-1
    ).astype(compute_dtype)                            # (DIM, 3*inner)
    wo = w_out.astype(compute_dtype)                   # (inner, DIM)
    return wqkv, wo


# --------------------------------------------------------------------------- #
# VMEM budgeting / block sizing
# --------------------------------------------------------------------------- #
def _physical_vmem_bytes():
    try:
        return int(pltpu.get_tpu_info().vmem_capacity_bytes)
    except Exception:
        return 64 * 1024 * 1024      # v7x per-TensorCore VMEM (smallest current)


def _lane(v):
    return -(-v // 128) * 128


def _estimate_vmem_bytes(block_b, n, dim, inner, x_bytes, out_bytes, cd_bytes,
                         weight_bufs):
    """Rough per-grid-step VMEM footprint: pipeline blocks + weights + temps."""
    m = block_b * n
    pipeline = 2 * m * _lane(dim) * (x_bytes + out_bytes)   # x/out, 2x buffered
    pipeline += 4 * block_b * _lane(n) * 4                  # mask row/col blocks
    weights = weight_bufs * (dim * _lane(3 * inner)
                             + inner * _lane(dim)) * cd_bytes
    temps = m * _lane(3 * inner) * max(cd_bytes, 2)         # fused qkv
    temps += 2 * m * _lane(inner) * 4                       # per-head ctx/concat
    temps += 4 * block_b * n * _lane(n) * 4                 # keep/dots/p/attn
    temps += m * _lane(dim) * 4                             # f32 out
    return int(1.5 * (pipeline + weights + temps))


def _pick_block_b(b, n, dim, inner, x_bytes, out_bytes, cd_bytes, weight_bufs,
                  budget):
    desired = max(1, -(-256 // n))          # ~256 M-rows per projection matmul
    cap = max(1, b // 2) if b >= 2 else 1   # keep the parallel grid axis >= 2
    divisors = [d for d in range(1, b + 1) if b % d == 0]
    cands = [d for d in divisors if d <= min(desired, cap)] or [1]
    even = [d for d in cands if (b // d) % 2 == 0]   # dual-TC load balance
    blk = max(even or cands)
    while blk > 1 and _estimate_vmem_bytes(
            blk, n, dim, inner, x_bytes, out_bytes, cd_bytes,
            weight_bufs) > budget:
        smaller = [d for d in cands if d < blk]
        blk = max(smaller) if smaller else 1
    return blk


# --------------------------------------------------------------------------- #
# Public wrapper
# --------------------------------------------------------------------------- #
def attention_with_mask(x, w_qkv=None, w_out=None, mask=None, *, heads,
                        dim_head, block_b=None, compute_dtype=jnp.bfloat16,
                        prepared_weights=None):
    """x: (B, N, DIM); w_qkv: (DIM, 3*inner); w_out: (inner, DIM);
    mask: (B, N-1) bool or None; returns (B, N, DIM)."""
    b, n, dim = x.shape
    inner = heads * dim_head

    if prepared_weights is None:
        prepared_weights = prepare_attention_weights(
            w_qkv, w_out, heads=heads, dim_head=dim_head,
            compute_dtype=compute_dtype)
    wqkv, wo = prepared_weights
    compute_dtype = wqkv.dtype
    assert wqkv.shape == (dim, 3 * inner) and wo.shape == (inner, dim)

    # Glue: replicate `F.pad(mask.flatten(1), (1, 0), value=True)`.
    if mask is None:
        mk = jnp.ones((b, n), dtype=jnp.float32)
    else:
        mk = jnp.concatenate(
            [jnp.ones((b, 1), dtype=jnp.float32),
             mask.reshape(b, -1).astype(jnp.float32)], axis=-1)
        assert mk.shape[-1] == n, 'mask has incorrect dimensions'

    # Pad N to a sublane multiple so in-kernel reshapes are free; padded keys
    # are masked out and padded query rows are sliced off below.
    n_pad = -(-n // 8) * 8
    if n_pad != n:
        x = jnp.pad(x, ((0, 0), (0, n_pad - n), (0, 0)))
        mk = jnp.pad(mk, ((0, 0), (0, n_pad - n)))
    mask_row = mk.reshape(b, 1, n_pad)
    mask_col = mk.reshape(b, n_pad, 1)

    x_bytes = jnp.dtype(x.dtype).itemsize
    cd_bytes = jnp.dtype(compute_dtype).itemsize
    phys = _physical_vmem_bytes()
    if block_b is None:
        block_b = _pick_block_b(b, n_pad, dim, inner, x_bytes, x_bytes,
                                cd_bytes, 1, phys // 2)
    assert b % block_b == 0, 'batch must be divisible by block_b'

    est = _estimate_vmem_bytes(block_b, n_pad, dim, inner, x_bytes, x_bytes,
                               cd_bytes, 1)
    vmem_limit = int(min(max(32 * 1024 * 1024, 2 * est),
                         max(32 * 1024 * 1024, phys - 16 * 1024 * 1024)))

    kernel = functools.partial(_attn_kernel, heads=heads, dim_head=dim_head,
                               true_n=n, compute_dtype=compute_dtype)

    def build(weight_bufs):
        wkw = {} if weight_bufs is None else dict(
            pipeline_mode=pl.Buffered(weight_bufs))
        return pl.pallas_call(
            kernel,
            out_shape=jax.ShapeDtypeStruct((b, n_pad, dim), x.dtype),
            grid_spec=pltpu.PrefetchScalarGridSpec(
                num_scalar_prefetch=0,
                grid=(b // block_b,),
                in_specs=[
                    pl.BlockSpec((block_b, n_pad, dim), lambda i: (i, 0, 0)),
                    pl.BlockSpec((block_b, 1, n_pad), lambda i: (i, 0, 0)),
                    pl.BlockSpec((block_b, n_pad, 1), lambda i: (i, 0, 0)),
                    pl.BlockSpec((dim, 3 * inner), lambda i: (0, 0), **wkw),
                    pl.BlockSpec((inner, dim), lambda i: (0, 0), **wkw),
                ],
                out_specs=pl.BlockSpec((block_b, n_pad, dim),
                                       lambda i: (i, 0, 0)),
            ),
            compiler_params=pltpu.CompilerParams(
                dimension_semantics=("parallel",),
                vmem_limit_bytes=vmem_limit),
        )

    args = (x, mask_row, mask_col, wqkv, wo)
    try:
        # Grid-invariant weight blocks: single buffer (don't double-buffer
        # constants -- halves their VMEM footprint).
        out = build(1)(*args)
    except Exception:
        # Fallback if this JAX build rejects Buffered(1) for constant blocks.
        out = build(None)(*args)

    return out[:, :n, :] if n_pad != n else out


# --------------------------------------------------------------------------- #
# Pure-JAX reference mirroring the PyTorch forward (f32)
# --------------------------------------------------------------------------- #
def _reference(x, w_qkv, w_out, mask, heads, dim_head):
    b, n, dim = x.shape
    inner = heads * dim_head
    scale = dim_head ** -0.5
    qkv = x @ w_qkv                                       # (B, N, 3*inner)
    q, k, v = jnp.split(qkv, 3, axis=-1)

    def to_heads(t):
        return t.reshape(b, n, heads, dim_head).transpose(0, 2, 1, 3)

    q, k, v = map(to_heads, (q, k, v))                    # (B, H, N, D)
    dots = jnp.einsum('bhid,bhjd->bhij', q, k) * scale
    mask_value = -jnp.finfo(dots.dtype).max
    m = jnp.concatenate(
        [jnp.ones((b, 1), dtype=bool), mask.reshape(b, -1)], axis=-1)
    m2 = m[:, None, :] & m[:, :, None]                    # (B, N, N)
    dots = jnp.where(m2[:, None, :, :], dots, mask_value)
    attn = jax.nn.softmax(dots, axis=-1)
    out = jnp.einsum('bhij,bhjd->bhid', attn, v)
    out = out.transpose(0, 2, 1, 3).reshape(b, n, inner)
    return out @ w_out


if __name__ == "__main__":
    # Small ViT-like shapes: DIM lane-dense (128), N a sublane multiple, enough
    # batch that block_b*N gives the MXU a reasonable M per grid step.
    B, N, DIM = 8, 16, 128
    HEADS, DIM_HEAD = 4, 32
    INNER = HEADS * DIM_HEAD

    key = jax.random.PRNGKey(0)
    kx, kq, ko, km = jax.random.split(key, 4)

    x = jax.random.normal(kx, (B, N, DIM), dtype=jnp.float32)
    # Bias-free linear weights stored as (in, out)  (== PyTorch weight.T).
    w_qkv = jax.random.normal(kq, (DIM, 3 * INNER), dtype=jnp.float32) * 0.02
    w_out = jax.random.normal(ko, (INNER, DIM), dtype=jnp.float32) * 0.02
    # Patch mask over N-1 tokens (CLS slot padded with True in the wrapper).
    mask = jax.random.bernoulli(km, 0.7, (B, N - 1))

    ref = _reference(x, w_qkv, w_out, mask, HEADS, DIM_HEAD)

    # f32 compute path (tight tolerance; approx reciprocal is the only deviation).
    prep_f32 = prepare_attention_weights(
        w_qkv, w_out, heads=HEADS, dim_head=DIM_HEAD, compute_dtype=jnp.float32)
    out_f32 = attention_with_mask(
        x, mask=mask, heads=HEADS, dim_head=DIM_HEAD, prepared_weights=prep_f32)
    out_f32 = jax.block_until_ready(out_f32)
    assert out_f32.shape == (B, N, DIM)
    assert jnp.allclose(out_f32, ref, atol=5e-3, rtol=5e-3), "f32 mismatch"

    # Default bf16-MXU path (weights prepared once and reused -- cached prep).
    prep_bf16 = prepare_attention_weights(
        w_qkv, w_out, heads=HEADS, dim_head=DIM_HEAD, compute_dtype=jnp.bfloat16)
    out_bf16 = attention_with_mask(
        x, mask=mask, heads=HEADS, dim_head=DIM_HEAD, prepared_weights=prep_bf16)
    out_bf16 = jax.block_until_ready(out_bf16)
    assert out_bf16.shape == (B, N, DIM)
    assert jnp.allclose(out_bf16, ref, atol=5e-2, rtol=5e-2), "bf16 mismatch"

    print("KERNEL_OK")
</pallas_src>

<mosaic_0001>
module attributes {stable_mosaic.version = 11 : i64} {
  func.func @_attn_kernel(%arg0: i32, %arg1: memref<4x16x128xf32, #tpu.memory_space<vmem>>, %arg2: memref<4x1x16xf32, #tpu.memory_space<vmem>>, %arg3: memref<4x16x1xf32, #tpu.memory_space<vmem>>, %arg4: memref<128x384xf32, #tpu.memory_space<vmem>>, %arg5: memref<128x128xf32, #tpu.memory_space<vmem>>, %arg6: memref<4x16x128xf32, #tpu.memory_space<vmem>>) attributes {dimension_semantics = [#tpu.dimension_semantics<parallel>], iteration_bounds = array<i64: 2>, scalar_prefetch = 0 : i64, scratch_operands = 0 : i64, tpu.core_type = #tpu.core_type<tc>, window_params = [{transform_indices = @transform_0, window_bounds = array<i64: 4, 16, 128>}, {transform_indices = @transform_1, window_bounds = array<i64: 4, 1, 16>}, {transform_indices = @transform_2, window_bounds = array<i64: 4, 16, 1>}, {pipeline_mode = #tpu.pipeline_mode<synchronous>, transform_indices = @transform_3, window_bounds = array<i64: 128, 384>}, {pipeline_mode = #tpu.pipeline_mode<synchronous>, transform_indices = @transform_4, window_bounds = array<i64: 128, 128>}, {transform_indices = @transform_5, window_bounds = array<i64: 4, 16, 128>}]} {
    %c0 = arith.constant 0 : index
    %c0_0 = arith.constant 0 : index
    %c0_1 = arith.constant 0 : index
    %0 = vector.load %arg1[%c0, %c0_0, %c0_1] : memref<4x16x128xf32, #tpu.memory_space<vmem>>, vector<4x16x128xf32>
    %1 = vector.shape_cast %0 : vector<4x16x128xf32> to vector<64x128xf32>
    %c0_2 = arith.constant 0 : index
    %c0_3 = arith.constant 0 : index
    %2 = vector.load %arg4[%c0_2, %c0_3] : memref<128x384xf32, #tpu.memory_space<vmem>>, vector<128x384xf32>
    %cst = arith.constant dense<0.000000e+00> : vector<64x384xf32>
    %3 = tpu.matmul %1, %2, %cst {dimension_numbers = #tpu.dot_dimension_numbers<[1], [0], [0], [1], [0, 0, 1, 1], [], []>} : vector<64x128xf32>, vector<128x384xf32>, vector<64x384xf32> -> vector<64x384xf32>
    %c0_4 = arith.constant 0 : index
    %c0_5 = arith.constant 0 : index
    %c0_6 = arith.constant 0 : index
    %4 = vector.load %arg3[%c0_4, %c0_5, %c0_6] : memref<4x16x1xf32, #tpu.memory_space<vmem>>, vector<4x16x1xf32>
    %c0_7 = arith.constant 0 : index
    %c0_8 = arith.constant 0 : index
    %c0_9 = arith.constant 0 : index
    %5 = vector.load %arg2[%c0_7, %c0_8, %c0_9] : memref<4x1x16xf32, #tpu.memory_space<vmem>>, vector<4x1x16xf32>
    %6 = vector.broadcast %4 : vector<4x16x1xf32> to vector<4x16x16xf32>
    %7 = vector.broadcast %5 : vector<4x1x16xf32> to vector<4x16x16xf32>
    %8 = arith.mulf %6, %7 : vector<4x16x16xf32>
    %cst_10 = arith.constant 5.000000e-01 : f32
    %9 = vector.broadcast %cst_10 : f32 to vector<4x16x16xf32>
    %10 = arith.cmpf ogt, %8, %9 : vector<4x16x16xf32>
    %11 = vector.extract_strided_slice %3 {offsets = [0, 0], sizes = [64, 32], strides = [1, 1]} : vector<64x384xf32> to vector<64x32xf32>
    %12 = vector.shape_cast %11 : vector<64x32xf32> to vector<4x16x32xf32>
    %13 = vector.extract_strided_slice %3 {offsets = [0, 128], sizes = [64, 32], strides = [1, 1]} : vector<64x384xf32> to vector<64x32xf32>
    %14 = vector.shape_cast %13 : vector<64x32xf32> to vector<4x16x32xf32>
    %15 = vector.extract_strided_slice %3 {offsets = [0, 256], sizes = [64, 32], strides = [1, 1]} : vector<64x384xf32> to vector<64x32xf32>
    %16 = vector.shape_cast %15 : vector<64x32xf32> to vector<4x16x32xf32>
    %cst_11 = arith.constant dense<0.000000e+00> : vector<4x16x16xf32>
    %17 = tpu.matmul %12, %14, %cst_11 {dimension_numbers = #tpu.dot_dimension_numbers<[2], [2], [1], [1], [0, 0, 0, 1, 1, 1], [0], [0]>} : vector<4x16x32xf32>, vector<4x16x32xf32>, vector<4x16x16xf32> -> vector<4x16x16xf32>
    %cst_12 = arith.constant -3.40282347E+38 : f32
    %18 = vector.broadcast %cst_12 : f32 to vector<4x16x16xf32>
    %19 = arith.select %10, %17, %18 : vector<4x16x16xi1>, vector<4x16x16xf32>
    %cst_13 = arith.constant dense<0xFF800000> : vector<4x16xf32>
    %20 = vector.multi_reduction <maximumf>, %19, %cst_13 [2] : vector<4x16x16xf32> to vector<4x16xf32>
    %21 = vector.shape_cast %20 : vector<4x16xf32> to vector<4x16x1xf32>
    %22 = vector.broadcast %21 : vector<4x16x1xf32> to vector<4x16x16xf32>
    %23 = arith.subf %19, %22 : vector<4x16x16xf32>
    %24 = math.exp %23 : vector<4x16x16xf32>
    %cst_14 = arith.constant dense<0.000000e+00> : vector<4x16xf32>
    %25 = vector.multi_reduction <add>, %24, %cst_14 [2] : vector<4x16x16xf32> to vector<4x16xf32>
    %26 = vector.shape_cast %25 : vector<4x16xf32> to vector<4x16x1xf32>
    %27 = tpu.reciprocal %26 {approx = true} : vector<4x16x1xf32> -> vector<4x16x1xf32>
    %28 = vector.broadcast %27 : vector<4x16x1xf32> to vector<4x16x16xf32>
    %29 = arith.mulf %24, %28 : vector<4x16x16xf32>
    %cst_15 = arith.constant dense<0.000000e+00> : vector<4x16x32xf32>
    %30 = tpu.matmul %29, %16, %cst_15 {dimension_numbers = #tpu.dot_dimension_numbers<[2], [1], [1], [2], [0, 0, 0, 1, 1, 2], [0], [0]>} : vector<4x16x16xf32>, vector<4x16x32xf32>, vector<4x16x32xf32> -> vector<4x16x32xf32>
    %31 = vector.shape_cast %30 : vector<4x16x32xf32> to vector<64x32xf32>
    %32 = vector.extract_strided_slice %3 {offsets = [0, 32], sizes = [64, 32], strides = [1, 1]} : vector<64x384xf32> to vector<64x32xf32>
    %33 = vector.shape_cast %32 : vector<64x32xf32> to vector<4x16x32xf32>
    %34 = vector.extract_strided_slice %3 {offsets = [0, 160], sizes = [64, 32], strides = [1, 1]} : vector<64x384xf32> to vector<64x32xf32>
    %35 = vector.shape_cast %34 : vector<64x32xf32> to vector<4x16x32xf32>
    %36 = vector.extract_strided_slice %3 {offsets = [0, 288], sizes = [64, 32], strides = [1, 1]} : vector<64x384xf32> to vector<64x32xf32>
    %37 = vector.shape_cast %36 : vector<64x32xf32> to vector<4x16x32xf32>
    %cst_16 = arith.constant dense<0.000000e+00> : vector<4x16x16xf32>
    %38 = tpu.matmul %33, %35, %cst_16 {dimension_numbers = #tpu.dot_dimension_numbers<[2], [2], [1], [1], [0, 0, 0, 1, 1, 1], [0], [0]>} : vector<4x16x32xf32>, vector<4x16x32xf32>, vector<4x16x16xf32> -> vector<4x16x16xf32>
    %cst_17 = arith.constant -3.40282347E+38 : f32
    %39 = vector.broadcast %cst_17 : f32 to vector<4x16x16xf32>
    %40 = arith.select %10, %38, %39 : vector<4x16x16xi1>, vector<4x16x16xf32>
    %cst_18 = arith.constant dense<0xFF800000> : vector<4x16xf32>
    %41 = vector.multi_reduction <maximumf>, %40, %cst_18 [2] : vector<4x16x16xf32> to vector<4x16xf32>
    %42 = vector.shape_cast %41 : vector<4x16xf32> to vector<4x16x1xf32>
    %43 = vector.broadcast %42 : vector<4x16x1xf32> to vector<4x16x16xf32>
    %44 = arith.subf %40, %43 : vector<4x16x16xf32>
    %45 = math.exp %44 : vector<4x16x16xf32>
    %cst_19 = arith.constant dense<0.000000e+00> : vector<4x16xf32>
    %46 = vector.multi_reduction <add>, %45, %cst_19 [2] : vector<4x16x16xf32> to vector<4x16xf32>
    %47 = vector.shape_cast %46 : vector<4x16xf32> to vector<4x16x1xf32>
    %48 = tpu.reciprocal %47 {approx = true} : vector<4x16x1xf32> -> vector<4x16x1xf32>
    %49 = vector.broadcast %48 : vector<4x16x1xf32> to vector<4x16x16xf32>
    %50 = arith.mulf %45, %49 : vector<4x16x16xf32>
    %cst_20 = arith.constant dense<0.000000e+00> : vector<4x16x32xf32>
    %51 = tpu.matmul %50, %37, %cst_20 {dimension_numbers = #tpu.dot_dimension_numbers<[2], [1], [1], [2], [0, 0, 0, 1, 1, 2], [0], [0]>} : vector<4x16x16xf32>, vector<4x16x32xf32>, vector<4x16x32xf32> -> vector<4x16x32xf32>
    %52 = vector.shape_cast %51 : vector<4x16x32xf32> to vector<64x32xf32>
    %53 = vector.extract_strided_slice %3 {offsets = [0, 64], sizes = [64, 32], strides = [1, 1]} : vector<64x384xf32> to vector<64x32xf32>
    %54 = vector.shape_cast %53 : vector<64x32xf32> to vector<4x16x32xf32>
    %55 = vector.extract_strided_slice %3 {offsets = [0, 192], sizes = [64, 32], strides = [1, 1]} : vector<64x384xf32> to vector<64x32xf32>
    %56 = vector.shape_cast %55 : vector<64x32xf32> to vector<4x16x32xf32>
    %57 = vector.extract_strided_slice %3 {offsets = [0, 320], sizes = [64, 32], strides = [1, 1]} : vector<64x384xf32> to vector<64x32xf32>
    %58 = vector.shape_cast %57 : vector<64x32xf32> to vector<4x16x32xf32>
    %cst_21 = arith.constant dense<0.000000e+00> : vector<4x16x16xf32>
    %59 = tpu.matmul %54, %56, %cst_21 {dimension_numbers = #tpu.dot_dimension_numbers<[2], [2], [1], [1], [0, 0, 0, 1, 1, 1], [0], [0]>} : vector<4x16x32xf32>, vector<4x16x32xf32>, vector<4x16x16xf32> -> vector<4x16x16xf32>
    %cst_22 = arith.constant -3.40282347E+38 : f32
    %60 = vector.broadcast %cst_22 : f32 to vector<4x16x16xf32>
    %61 = arith.select %10, %59, %60 : vector<4x16x16xi1>, vector<4x16x16xf32>
    %cst_23 = arith.constant dense<0xFF800000> : vector<4x16xf32>
    %62 = vector.multi_reduction <maximumf>, %61, %cst_23 [2] : vector<4x16x16xf32> to vector<4x16xf32>
    %63 = vector.shape_cast %62 : vector<4x16xf32> to vector<4x16x1xf32>
    %64 = vector.broadcast %63 : vector<4x16x1xf32> to vector<4x16x16xf32>
    %65 = arith.subf %61, %64 : vector<4x16x16xf32>
    %66 = math.exp %65 : vector<4x16x16xf32>
    %cst_24 = arith.constant dense<0.000000e+00> : vector<4x16xf32>
    %67 = vector.multi_reduction <add>, %66, %cst_24 [2] : vector<4x16x16xf32> to vector<4x16xf32>
    %68 = vector.shape_cast %67 : vector<4x16xf32> to vector<4x16x1xf32>
    %69 = tpu.reciprocal %68 {approx = true} : vector<4x16x1xf32> -> vector<4x16x1xf32>
    %70 = vector.broadcast %69 : vector<4x16x1xf32> to vector<4x16x16xf32>
    %71 = arith.mulf %66, %70 : vector<4x16x16xf32>
    %cst_25 = arith.constant dense<0.000000e+00> : vector<4x16x32xf32>
    %72 = tpu.matmul %71, %58, %cst_25 {dimension_numbers = #tpu.dot_dimension_numbers<[2], [1], [1], [2], [0, 0, 0, 1, 1, 2], [0], [0]>} : vector<4x16x16xf32>, vector<4x16x32xf32>, vector<4x16x32xf32> -> vector<4x16x32xf32>
    %73 = vector.shape_cast %72 : vector<4x16x32xf32> to vector<64x32xf32>
    %74 = vector.extract_strided_slice %3 {offsets = [0, 96], sizes = [64, 32], strides = [1, 1]} : vector<64x384xf32> to vector<64x32xf32>
    %75 = vector.shape_cast %74 : vector<64x32xf32> to vector<4x16x32xf32>
    %76 = vector.extract_strided_slice %3 {offsets = [0, 224], sizes = [64, 32], strides = [1, 1]} : vector<64x384xf32> to vector<64x32xf32>
    %77 = vector.shape_cast %76 : vector<64x32xf32> to vector<4x16x32xf32>
    %78 = vector.extract_strided_slice %3 {offsets = [0, 352], sizes = [64, 32], strides = [1, 1]} : vector<64x384xf32> to vector<64x32xf32>
    %79 = vector.shape_cast %78 : vector<64x32xf32> to vector<4x16x32xf32>
    %cst_26 = arith.constant dense<0.000000e+00> : vector<4x16x16xf32>
    %80 = tpu.matmul %75, %77, %cst_26 {dimension_numbers = #tpu.dot_dimension_numbers<[2], [2], [1], [1], [0, 0, 0, 1, 1, 1], [0], [0]>} : vector<4x16x32xf32>, vector<4x16x32xf32>, vector<4x16x16xf32> -> vector<4x16x16xf32>
    %cst_27 = arith.constant -3.40282347E+38 : f32
    %81 = vector.broadcast %cst_27 : f32 to vector<4x16x16xf32>
    %82 = arith.select %10, %80, %81 : vector<4x16x16xi1>, vector<4x16x16xf32>
    %cst_28 = arith.constant dense<0xFF800000> : vector<4x16xf32>
    %83 = vector.multi_reduction <maximumf>, %82, %cst_28 [2] : vector<4x16x16xf32> to vector<4x16xf32>
    %84 = vector.shape_cast %83 : vector<4x16xf32> to vector<4x16x1xf32>
    %85 = vector.broadcast %84 : vector<4x16x1xf32> to vector<4x16x16xf32>
    %86 = arith.subf %82, %85 : vector<4x16x16xf32>
    %87 = math.exp %86 : vector<4x16x16xf32>
    %cst_29 = arith.constant dense<0.000000e+00> : vector<4x16xf32>
    %88 = vector.multi_reduction <add>, %87, %cst_29 [2] : vector<4x16x16xf32> to vector<4x16xf32>
    %89 = vector.shape_cast %88 : vector<4x16xf32> to vector<4x16x1xf32>
    %90 = tpu.reciprocal %89 {approx = true} : vector<4x16x1xf32> -> vector<4x16x1xf32>
    %91 = vector.broadcast %90 : vector<4x16x1xf32> to vector<4x16x16xf32>
    %92 = arith.mulf %87, %91 : vector<4x16x16xf32>
    %cst_30 = arith.constant dense<0.000000e+00> : vector<4x16x32xf32>
    %93 = tpu.matmul %92, %79, %cst_30 {dimension_numbers = #tpu.dot_dimension_numbers<[2], [1], [1], [2], [0, 0, 0, 1, 1, 2], [0], [0]>} : vector<4x16x16xf32>, vector<4x16x32xf32>, vector<4x16x32xf32> -> vector<4x16x32xf32>
    %94 = vector.shape_cast %93 : vector<4x16x32xf32> to vector<64x32xf32>
    %95 = tpu.concatenate %31, %52, %73, %94 in 1 : vector<64x32xf32>, vector<64x32xf32>, vector<64x32xf32>, vector<64x32xf32> -> vector<64x128xf32>
    %c0_31 = arith.constant 0 : index
    %c0_32 = arith.constant 0 : index
    %96 = vector.load %arg5[%c0_31, %c0_32] : memref<128x128xf32, #tpu.memory_space<vmem>>, vector<128x128xf32>
    %cst_33 = arith.constant dense<0.000000e+00> : vector<64x128xf32>
    %97 = tpu.matmul %95, %96, %cst_33 {dimension_numbers = #tpu.dot_dimension_numbers<[1], [0], [0], [1], [0, 0, 1, 1], [], []>} : vector<64x128xf32>, vector<128x128xf32>, vector<64x128xf32> -> vector<64x128xf32>
    %98 = vector.shape_cast %97 : vector<64x128xf32> to vector<4x16x128xf32>
    %c0_34 = arith.constant 0 : index
    %c0_35 = arith.constant 0 : index
    %c0_36 = arith.constant 0 : index
    %99 = vector.load %arg6[%c0_34, %c0_35, %c0_36] : memref<4x16x128xf32, #tpu.memory_space<vmem>>, vector<4x16x128xf32>
    tpu.vector_store %arg6[%c0_34, %c0_35, %c0_36], %98 {strides = array<i32>} : memref<4x16x128xf32, #tpu.memory_space<vmem>>, vector<4x16x128xf32>,
    return
  }
  func.func @transform_0(%arg0: i32) -> (i32, i32, i32) {
    %c0_i32 = arith.constant 0 : i32
    %c0_i32_0 = arith.constant 0 : i32
    %c0_i32_1 = arith.constant 0 : i32
    return %arg0, %c0_i32, %c0_i32_0 : i32, i32, i32
  }
  func.func @transform_1(%arg0: i32) -> (i32, i32, i32) {
    %c0_i32 = arith.constant 0 : i32
    %c0_i32_0 = arith.constant 0 : i32
    %c0_i32_1 = arith.constant 0 : i32
    return %arg0, %c0_i32, %c0_i32_0 : i32, i32, i32
  }
  func.func @transform_2(%arg0: i32) -> (i32, i32, i32) {
    %c0_i32 = arith.constant 0 : i32
    %c0_i32_0 = arith.constant 0 : i32
    %c0_i32_1 = arith.constant 0 : i32
    return %arg0, %c0_i32, %c0_i32_0 : i32, i32, i32
  }
  func.func @transform_3(%arg0: i32) -> (i32, i32) {
    %c0_i32 = arith.constant 0 : i32
    %c0_i32_0 = arith.constant 0 : i32
    %c0_i32_1 = arith.constant 0 : i32
    return %c0_i32, %c0_i32_0 : i32, i32
  }
  func.func @transform_4(%arg0: i32) -> (i32, i32) {
    %c0_i32 = arith.constant 0 : i32
    %c0_i32_0 = arith.constant 0 : i32
    %c0_i32_1 = arith.constant 0 : i32
    return %c0_i32, %c0_i32_0 : i32, i32
  }
  func.func @transform_5(%arg0: i32) -> (i32, i32, i32) {
    %c0_i32 = arith.constant 0 : i32
    %c0_i32_0 = arith.constant 0 : i32
    %c0_i32_1 = arith.constant 0 : i32
    return %arg0, %c0_i32, %c0_i32_0 : i32, i32, i32
  }
}

module attributes {stable_mosaic.version = 11 : i64} {
  func.func @_attn_kernel(%arg0: i32, %arg1: memref<4x16x128xf32, #tpu.memory_space<vmem>>, %arg2: memref<4x1x16xf32, #tpu.memory_space<vmem>>, %arg3: memref<4x16x1xf32, #tpu.memory_space<vmem>>, %arg4: memref<128x384xf32, #tpu.memory_space<vmem>>, %arg5: memref<128x128xf32, #tpu.memory_space<vmem>>, %arg6: memref<4x16x128xf32, #tpu.memory_space<vmem>>) attributes {dimension_semantics = [#tpu.dimension_semantics<parallel>], iteration_bounds = array<i64: 2>, scalar_prefetch = 0 : i64, scratch_operands = 0 : i64, tpu.core_type = #tpu.core_type<tc>, window_params = [{transform_indices = @transform_0, window_bounds = array<i64: 4, 16, 128>}, {transform_indices = @transform_1, window_bounds = array<i64: 4, 1, 16>}, {transform_indices = @transform_2, window_bounds = array<i64: 4, 16, 1>}, {pipeline_mode = #tpu.pipeline_mode<synchronous>, transform_indices = @transform_3, window_bounds = array<i64: 128, 384>}, {pipeline_mode = #tpu.pipeline_mode<synchronous>, transform_indices = @transform_4, window_bounds = array<i64: 128, 128>}, {transform_indices = @transform_5, window_bounds = array<i64: 4, 16, 128>}]} {
    %c0 = arith.constant 0 : index
    %c0_0 = arith.constant 0 : index
    %c0_1 = arith.constant 0 : index
    %0 = vector.load %arg1[%c0, %c0_0, %c0_1] : memref<4x16x128xf32, #tpu.memory_space<vmem>>, vector<4x16x128xf32>
    %1 = vector.shape_cast %0 : vector<4x16x128xf32> to vector<64x128xf32>
    %c0_2 = arith.constant 0 : index
    %c0_3 = arith.constant 0 : index
    %2 = vector.load %arg4[%c0_2, %c0_3] : memref<128x384xf32, #tpu.memory_space<vmem>>, vector<128x384xf32>
    %cst = arith.constant dense<0.000000e+00> : vector<64x384xf32>
    %3 = tpu.matmul %1, %2, %cst {dimension_numbers = #tpu.dot_dimension_numbers<[1], [0], [0], [1], [0, 0, 1, 1], [], []>} : vector<64x128xf32>, vector<128x384xf32>, vector<64x384xf32> -> vector<64x384xf32>
    %c0_4 = arith.constant 0 : index
    %c0_5 = arith.constant 0 : index
    %c0_6 = arith.constant 0 : index
    %4 = vector.load %arg3[%c0_4, %c0_5, %c0_6] : memref<4x16x1xf32, #tpu.memory_space<vmem>>, vector<4x16x1xf32>
    %c0_7 = arith.constant 0 : index
    %c0_8 = arith.constant 0 : index
    %c0_9 = arith.constant 0 : index
    %5 = vector.load %arg2[%c0_7, %c0_8, %c0_9] : memref<4x1x16xf32, #tpu.memory_space<vmem>>, vector<4x1x16xf32>
    %6 = vector.broadcast %4 : vector<4x16x1xf32> to vector<4x16x16xf32>
    %7 = vector.broadcast %5 : vector<4x1x16xf32> to vector<4x16x16xf32>
    %8 = arith.mulf %6, %7 : vector<4x16x16xf32>
    %cst_10 = arith.constant 5.000000e-01 : f32
    %9 = vector.broadcast %cst_10 : f32 to vector<4x16x16xf32>
    %10 = arith.cmpf ogt, %8, %9 : vector<4x16x16xf32>
    %11 = vector.extract_strided_slice %3 {offsets = [0, 0], sizes = [64, 32], strides = [1, 1]} : vector<64x384xf32> to vector<64x32xf32>
    %12 = vector.shape_cast %11 : vector<64x32xf32> to vector<4x16x32xf32>
    %13 = vector.extract_strided_slice %3 {offsets = [0, 128], sizes = [64, 32], strides = [1, 1]} : vector<64x384xf32> to vector<64x32xf32>
    %14 = vector.shape_cast %13 : vector<64x32xf32> to vector<4x16x32xf32>
    %15 = vector.extract_strided_slice %3 {offsets = [0, 256], sizes = [64, 32], strides = [1, 1]} : vector<64x384xf32> to vector<64x32xf32>
    %16 = vector.shape_cast %15 : vector<64x32xf32> to vector<4x16x32xf32>
    %cst_11 = arith.constant dense<0.000000e+00> : vector<4x16x16xf32>
    %17 = tpu.matmul %12, %14, %cst_11 {dimension_numbers = #tpu.dot_dimension_numbers<[2], [2], [1], [1], [0, 0, 0, 1, 1, 1], [0], [0]>} : vector<4x16x32xf32>, vector<4x16x32xf32>, vector<4x16x16xf32> -> vector<4x16x16xf32>
    %cst_12 = arith.constant -3.40282347E+38 : f32
    %18 = vector.broadcast %cst_12 : f32 to vector<4x16x16xf32>
    %19 = arith.select %10, %17, %18 : vector<4x16x16xi1>, vector<4x16x16xf32>
    %cst_13 = arith.constant dense<0xFF800000> : vector<4x16xf32>
    %20 = vector.multi_reduction <maximumf>, %19, %cst_13 [2] : vector<4x16x16xf32> to vector<4x16xf32>
    %21 = vector.shape_cast %20 : vector<4x16xf32> to vector<4x16x1xf32>
    %22 = vector.broadcast %21 : vector<4x16x1xf32> to vector<4x16x16xf32>
    %23 = arith.subf %19, %22 : vector<4x16x16xf32>
    %24 = math.exp %23 : vector<4x16x16xf32>
    %cst_14 = arith.constant dense<0.000000e+00> : vector<4x16xf32>
    %25 = vector.multi_reduction <add>, %24, %cst_14 [2] : vector<4x16x16xf32> to vector<4x16xf32>
    %26 = vector.shape_cast %25 : vector<4x16xf32> to vector<4x16x1xf32>
    %27 = tpu.reciprocal %26 {approx = true} : vector<4x16x1xf32> -> vector<4x16x1xf32>
    %28 = vector.broadcast %27 : vector<4x16x1xf32> to vector<4x16x16xf32>
    %29 = arith.mulf %24, %28 : vector<4x16x16xf32>
    %cst_15 = arith.constant dense<0.000000e+00> : vector<4x16x32xf32>
    %30 = tpu.matmul %29, %16, %cst_15 {dimension_numbers = #tpu.dot_dimension_numbers<[2], [1], [1], [2], [0, 0, 0, 1, 1, 2], [0], [0]>} : vector<4x16x16xf32>, vector<4x16x32xf32>, vector<4x16x32xf32> -> vector<4x16x32xf32>
    %31 = vector.shape_cast %30 : vector<4x16x32xf32> to vector<64x32xf32>
    %32 = vector.extract_strided_slice %3 {offsets = [0, 32], sizes = [64, 32], strides = [1, 1]} : vector<64x384xf32> to vector<64x32xf32>
    %33 = vector.shape_cast %32 : vector<64x32xf32> to vector<4x16x32xf32>
    %34 = vector.extract_strided_slice %3 {offsets = [0, 160], sizes = [64, 32], strides = [1, 1]} : vector<64x384xf32> to vector<64x32xf32>
    %35 = vector.shape_cast %34 : vector<64x32xf32> to vector<4x16x32xf32>
    %36 = vector.extract_strided_slice %3 {offsets = [0, 288], sizes = [64, 32], strides = [1, 1]} : vector<64x384xf32> to vector<64x32xf32>
    %37 = vector.shape_cast %36 : vector<64x32xf32> to vector<4x16x32xf32>
    %cst_16 = arith.constant dense<0.000000e+00> : vector<4x16x16xf32>
    %38 = tpu.matmul %33, %35, %cst_16 {dimension_numbers = #tpu.dot_dimension_numbers<[2], [2], [1], [1], [0, 0, 0, 1, 1, 1], [0], [0]>} : vector<4x16x32xf32>, vector<4x16x32xf32>, vector<4x16x16xf32> -> vector<4x16x16xf32>
    %cst_17 = arith.constant -3.40282347E+38 : f32
    %39 = vector.broadcast %cst_17 : f32 to vector<4x16x16xf32>
    %40 = arith.select %10, %38, %39 : vector<4x16x16xi1>, vector<4x16x16xf32>
    %cst_18 = arith.constant dense<0xFF800000> : vector<4x16xf32>
    %41 = vector.multi_reduction <maximumf>, %40, %cst_18 [2] : vector<4x16x16xf32> to vector<4x16xf32>
    %42 = vector.shape_cast %41 : vector<4x16xf32> to vector<4x16x1xf32>
    %43 = vector.broadcast %42 : vector<4x16x1xf32> to vector<4x16x16xf32>
    %44 = arith.subf %40, %43 : vector<4x16x16xf32>
    %45 = math.exp %44 : vector<4x16x16xf32>
    %cst_19 = arith.constant dense<0.000000e+00> : vector<4x16xf32>
    %46 = vector.multi_reduction <add>, %45, %cst_19 [2] : vector<4x16x16xf32> to vector<4x16xf32>
    %47 = vector.shape_cast %46 : vector<4x16xf32> to vector<4x16x1xf32>
    %48 = tpu.reciprocal %47 {approx = true} : vector<4x16x1xf32> -> vector<4x16x1xf32>
    %49 = vector.broadcast %48 : vector<4x16x1xf32> to vector<4x16x16xf32>
    %50 = arith.mulf %45, %49 : vector<4x16x16xf32>
    %cst_20 = arith.constant dense<0.000000e+00> : vector<4x16x32xf32>
    %51 = tpu.matmul %50, %37, %cst_20 {dimension_numbers = #tpu.dot_dimension_numbers<[2], [1], [1], [2], [0, 0, 0, 1, 1, 2], [0], [0]>} : vector<4x16x16xf32>, vector<4x16x32xf32>, vector<4x16x32xf32> -> vector<4x16x32xf32>
    %52 = vector.shape_cast %51 : vector<4x16x32xf32> to vector<64x32xf32>
    %53 = vector.extract_strided_slice %3 {offsets = [0, 64], sizes = [64, 32], strides = [1, 1]} : vector<64x384xf32> to vector<64x32xf32>
    %54 = vector.shape_cast %53 : vector<64x32xf32> to vector<4x16x32xf32>
    %55 = vector.extract_strided_slice %3 {offsets = [0, 192], sizes = [64, 32], strides = [1, 1]} : vector<64x384xf32> to vector<64x32xf32>
    %56 = vector.shape_cast %55 : vector<64x32xf32> to vector<4x16x32xf32>
    %57 = vector.extract_strided_slice %3 {offsets = [0, 320], sizes = [64, 32], strides = [1, 1]} : vector<64x384xf32> to vector<64x32xf32>
    %58 = vector.shape_cast %57 : vector<64x32xf32> to vector<4x16x32xf32>
    %cst_21 = arith.constant dense<0.000000e+00> : vector<4x16x16xf32>
    %59 = tpu.matmul %54, %56, %cst_21 {dimension_numbers = #tpu.dot_dimension_numbers<[2], [2], [1], [1], [0, 0, 0, 1, 1, 1], [0], [0]>} : vector<4x16x32xf32>, vector<4x16x32xf32>, vector<4x16x16xf32> -> vector<4x16x16xf32>
    %cst_22 = arith.constant -3.40282347E+38 : f32
    %60 = vector.broadcast %cst_22 : f32 to vector<4x16x16xf32>
    %61 = arith.select %10, %59, %60 : vector<4x16x16xi1>, vector<4x16x16xf32>
    %cst_23 = arith.constant dense<0xFF800000> : vector<4x16xf32>
    %62 = vector.multi_reduction <maximumf>, %61, %cst_23 [2] : vector<4x16x16xf32> to vector<4x16xf32>
    %63 = vector.shape_cast %62 : vector<4x16xf32> to vector<4x16x1xf32>
    %64 = vector.broadcast %63 : vector<4x16x1xf32> to vector<4x16x16xf32>
    %65 = arith.subf %61, %64 : vector<4x16x16xf32>
    %66 = math.exp %65 : vector<4x16x16xf32>
    %cst_24 = arith.constant dense<0.000000e+00> : vector<4x16xf32>
    %67 = vector.multi_reduction <add>, %66, %cst_24 [2] : vector<4x16x16xf32> to vector<4x16xf32>
    %68 = vector.shape_cast %67 : vector<4x16xf32> to vector<4x16x1xf32>
    %69 = tpu.reciprocal %68 {approx = true} : vector<4x16x1xf32> -> vector<4x16x1xf32>
    %70 = vector.broadcast %69 : vector<4x16x1xf32> to vector<4x16x16xf32>
    %71 = arith.mulf %66, %70 : vector<4x16x16xf32>
    %cst_25 = arith.constant dense<0.000000e+00> : vector<4x16x32xf32>
    %72 = tpu.matmul %71, %58, %cst_25 {dimension_numbers = #tpu.dot_dimension_numbers<[2], [1], [1], [2], [0, 0, 0, 1, 1, 2], [0], [0]>} : vector<4x16x16xf32>, vector<4x16x32xf32>, vector<4x16x32xf32> -> vector<4x16x32xf32>
    %73 = vector.shape_cast %72 : vector<4x16x32xf32> to vector<64x32xf32>
    %74 = vector.extract_strided_slice %3 {offsets = [0, 96], sizes = [64, 32], strides = [1, 1]} : vector<64x384xf32> to vector<64x32xf32>
    %75 = vector.shape_cast %74 : vector<64x32xf32> to vector<4x16x32xf32>
    %76 = vector.extract_strided_slice %3 {offsets = [0, 224], sizes = [64, 32], strides = [1, 1]} : vector<64x384xf32> to vector<64x32xf32>
    %77 = vector.shape_cast %76 : vector<64x32xf32> to vector<4x16x32xf32>
    %78 = vector.extract_strided_slice %3 {offsets = [0, 352], sizes = [64, 32], strides = [1, 1]} : vector<64x384xf32> to vector<64x32xf32>
    %79 = vector.shape_cast %78 : vector<64x32xf32> to vector<4x16x32xf32>
    %cst_26 = arith.constant dense<0.000000e+00> : vector<4x16x16xf32>
    %80 = tpu.matmul %75, %77, %cst_26 {dimension_numbers = #tpu.dot_dimension_numbers<[2], [2], [1], [1], [0, 0, 0, 1, 1, 1], [0], [0]>} : vector<4x16x32xf32>, vector<4x16x32xf32>, vector<4x16x16xf32> -> vector<4x16x16xf32>
    %cst_27 = arith.constant -3.40282347E+38 : f32
    %81 = vector.broadcast %cst_27 : f32 to vector<4x16x16xf32>
    %82 = arith.select %10, %80, %81 : vector<4x16x16xi1>, vector<4x16x16xf32>
    %cst_28 = arith.constant dense<0xFF800000> : vector<4x16xf32>
    %83 = vector.multi_reduction <maximumf>, %82, %cst_28 [2] : vector<4x16x16xf32> to vector<4x16xf32>
    %84 = vector.shape_cast %83 : vector<4x16xf32> to vector<4x16x1xf32>
    %85 = vector.broadcast %84 : vector<4x16x1xf32> to vector<4x16x16xf32>
    %86 = arith.subf %82, %85 : vector<4x16x16xf32>
    %87 = math.exp %86 : vector<4x16x16xf32>
    %cst_29 = arith.constant dense<0.000000e+00> : vector<4x16xf32>
    %88 = vector.multi_reduction <add>, %87, %cst_29 [2] : vector<4x16x16xf32> to vector<4x16xf32>
    %89 = vector.shape_cast %88 : vector<4x16xf32> to vector<4x16x1xf32>
    %90 = tpu.reciprocal %89 {approx = true} : vector<4x16x1xf32> -> vector<4x16x1xf32>
    %91 = vector.broadcast %90 : vector<4x16x1xf32> to vector<4x16x16xf32>
    %92 = arith.mulf %87, %91 : vector<4x16x16xf32>
    %cst_30 = arith.constant dense<0.000000e+00> : vector<4x16x32xf32>
    %93 = tpu.matmul %92, %79, %cst_30 {dimension_numbers = #tpu.dot_dimension_numbers<[2], [1], [1], [2], [0, 0, 0, 1, 1, 2], [0], [0]>} : vector<4x16x16xf32>, vector<4x16x32xf32>, vector<4x16x32xf32> -> vector<4x16x32xf32>
    %94 = vector.shape_cast %93 : vector<4x16x32xf32> to vector<64x32xf32>
    %95 = tpu.concatenate %31, %52, %73, %94 in 1 : vector<64x32xf32>, vector<64x32xf32>, vector<64x32xf32>, vector<64x32xf32> -> vector<64x128xf32>
    %c0_31 = arith.constant 0 : index
    %c0_32 = arith.constant 0 : index
    %96 = vector.load %arg5[%c0_31, %c0_32] : memref<128x128xf32, #tpu.memory_space<vmem>>, vector<128x128xf32>
    %cst_33 = arith.constant dense<0.000000e+00> : vector<64x128xf32>
    %97 = tpu.matmul %95, %96, %cst_33 {dimension_numbers = #tpu.dot_dimension_numbers<[1], [0], [0], [1], [0, 0, 1, 1], [], []>} : vector<64x128xf32>, vector<128x128xf32>, vector<64x128xf32> -> vector<64x128xf32>
    %98 = vector.shape_cast %97 : vector<64x128xf32> to vector<4x16x128xf32>
    %c0_34 = arith.constant 0 : index
    %c0_35 = arith.constant 0 : index
    %c0_36 = arith.constant 0 : index
    %99 = vector.load %arg6[%c0_34, %c0_35, %c0_36] : memref<4x16x128xf32, #tpu.memory_space<vmem>>, vector<4x16x128xf32>
    tpu.vector_store %arg6[%c0_34, %c0_35, %c0_36], %98 {strides = array<i32>} : memref<4x16x128xf32, #tpu.memory_space<vmem>>, vector<4x16x128xf32>,
    return
  }
  func.func @transform_0(%arg0: i32) -> (i32, i32, i32) {
    %c0_i32 = arith.constant 0 : i32
    %c0_i32_0 = arith.constant 0 : i32
    %c0_i32_1 = arith.constant 0 : i32
    return %arg0, %c0_i32, %c0_i32_0 : i32, i32, i32
  }
  func.func @transform_1(%arg0: i32) -> (i32, i32, i32) {
    %c0_i32 = arith.constant 0 : i32
    %c0_i32_0 = arith.constant 0 : i32
    %c0_i32_1 = arith.constant 0 : i32
    return %arg0, %c0_i32, %c0_i32_0 : i32, i32, i32
  }
  func.func @transform_2(%arg0: i32) -> (i32, i32, i32) {
    %c0_i32 = arith.constant 0 : i32
    %c0_i32_0 = arith.constant 0 : i32
    %c0_i32_1 = arith.constant 0 : i32
    return %arg0, %c0_i32, %c0_i32_0 : i32, i32, i32
  }
  func.func @transform_3(%arg0: i32) -> (i32, i32) {
    %c0_i32 = arith.constant 0 : i32
    %c0_i32_0 = arith.constant 0 : i32
    %c0_i32_1 = arith.constant 0 : i32
    return %c0_i32, %c0_i32_0 : i32, i32
  }
  func.func @transform_4(%arg0: i32) -> (i32, i32) {
    %c0_i32 = arith.constant 0 : i32
    %c0_i32_0 = arith.constant 0 : i32
    %c0_i32_1 = arith.constant 0 : i32
    return %c0_i32, %c0_i32_0 : i32, i32
  }
  func.func @transform_5(%arg0: i32) -> (i32, i32, i32) {
    %c0_i32 = arith.constant 0 : i32
    %c0_i32_0 = arith.constant 0 : i32
    %c0_i32_1 = arith.constant 0 : i32
    return %arg0, %c0_i32, %c0_i32_0 : i32, i32, i32
  }
}

</mosaic_0001>

<llo_original>
// kernel: tpu_custom_call.1
$region0: #{tpu_custom_call.1}
  #allocation0 [shape = 'u32[]', space=smem, size = 0x4, offset = 0x4, fixed_abs, tag = 'smem constant byte address 0x4 - core index']
  #allocation1 [shape = 'u32[144,128]{1,0:T(1,128)}', space=vmem, size = 0x12000, scoped, tag = 'internal scratch']
  %s0 = inlined_call_operand.vmem [shape: f32[8,16,128], index: 0, kind: input, shape index: {}]
  %s1 = inlined_call_operand.vmem [shape: f32[8,1,16], index: 1, kind: input, shape index: {}]
  %s2 = inlined_call_operand.vmem [shape: f32[8,16,1], index: 2, kind: input, shape index: {}]
  %s3 = inlined_call_operand.hbm [shape: f32[128,384], index: 3, kind: input, shape index: {}]
  %s4 = inlined_call_operand.hbm [shape: f32[128,128], index: 4, kind: input, shape index: {}]
  %s5 = inlined_call_operand.hbm [shape: f32[8,16,128], index: 5, kind: output, shape index: {}]
  %s6 = sld [smem:[#allocation0]]
  $region61: #{tpu_custom_call.1} parent=0
    _
  %s8 = ssub.s32 1, %s6
  %s9 = scalar_select 0, %s8, %s6
  $region1: #{tpu_custom_call.1} parent=0
    #allocation2 [shape = 'u8[196608]{0}', space=vmem, size = 0x30000, scoped, tag = 'input window, operand 3, single buffered']
    #allocation3 [shape = 's32[2]{0}', space=sflag, size = 0x8, scoped, tag = 'scoped memory for tpu_custom_call.1']
    #allocation4 [shape = 's32[2]{0}', space=sflag, size = 0x8, scoped, tag = 'scoped memory for tpu_custom_call.1']
    #allocation5 [shape = 'u8[65536]{0}', space=vmem, size = 0x10000, scoped, tag = 'input window, operand 4, single buffered']
    #allocation6 [shape = 's32[1]{0}', space=sflag, size = 0x4, scoped, tag = 'scoped memory for tpu_custom_call.1']
    #allocation7 [shape = 'u8[65536]{0}', space=vmem, size = 0x10000, scoped, tag = 'output window, operand 0']
    %10 = vsyncpa [#allocation3], 0
    %11 = vsyncpa [#allocation6], 0
    %12 = vsyncpa [#allocation4], 0
    %s13 = scalar_lea.sflag [#allocation4], 1
    %14 = vsyncpa %s13, 0
    loop: start=0, step=1, limit=4
    $region2: #{tpu_custom_call.1} parent=1 // loop_pre_header
      _
    $region3: #{tpu_custom_call.1} parent=1 // loop_header
      %s16 = sphi 0, %s20
      %p17 = scmp.ge.s32.totalorder %s16, 4
      %s26 = sphi 0, %s28
      %s29 = sphi 0, %s26
      %s30 = sphi 0, %s29
      %s46 = sphi 0, %s30
      %s52 = sphi 0, %s54
      %s55 = sphi 0, %s52
      %s56 = sphi 0, %s55
      %s72 = sphi 0, %s56
      %s78 = sphi 0, %s80
      %s81 = sphi 0, %s78
      %s82 = sphi 0, %s81
      %s98 = sphi 0, %s82
      %s102 = sphi 0, %s102
      %s104 = sphi 0, %s102
      %s105 = sphi 0, %s104
      %s119 = sphi 0, %s105
      %s123 = sphi 0, %s123
      %s125 = sphi 0, %s123
      %s126 = sphi 0, %s125
      %s140 = sphi 0, %s126
      %s146 = sphi 0, %s148
      %s149 = sphi 0, %s146
      %s150 = sphi 0, %s149
      %s166 = sphi 0, %s150
    $region4: #{tpu_custom_call.1} parent=1 // loop_header_branch
      %19 = sbr.rel (%p17) target = $region8
    $region5: #{tpu_custom_call.1} parent=1 // loop_body
      %s21 = ssub.s32 %s16, 1
      %s22 = ssub.s32 %s16, 2
      %s23 = sadd.s32 %s16, 1
      %s24 = ssub.s32 %s16, %s23
      %p25 = scmp.eq.s32.totalorder %s24, 0
      %s27 = sadd.s32 %s26, 1
      %s28 = scalar_select %p25, %s26, %s27
      %p31 = pneg %p25
      %p32 = scmp.eq.s32.totalorder %s16, 1
      %p33 = por %p31, %p32
      %p34 = scmp.ne.s32.totalorder %s26, %s29
      %p35 = scmp.eq.s32.totalorder %s16, 0
      %p36 = por %p34, %p35
      %p37 = scmp.ne.s32.totalorder %s26, %s29
      %p38 = scmp.eq.s32.totalorder %s21, 1
      %p39 = por %p37, %p38
      %p40 = scmp.ne.s32.totalorder %s29, %s30
      %p41 = scmp.eq.s32.totalorder %s21, 0
      %p42 = por %p40, %p41
      %p43 = scmp.ne.s32.totalorder %s29, %s30
      %p44 = scmp.eq.s32.totalorder %s22, 1
      %p45 = por %p43, %p44
      %p47 = scmp.ne.s32.totalorder %s30, %s46
      %p48 = scmp.eq.s32.totalorder %s22, 0
      %p49 = por %p47, %p48
      %s50 = ssub.s32 %s16, %s23
      %p51 = scmp.eq.s32.totalorder %s50, 0
      %s53 = sadd.s32 %s52, 1
      %s54 = scalar_select %p51, %s52, %s53
      %p57 = pneg %p51
      %p58 = scmp.eq.s32.totalorder %s16, 1
      %p59 = por %p57, %p58
      %p60 = scmp.ne.s32.totalorder %s52, %s55
      %p61 = scmp.eq.s32.totalorder %s16, 0
      %p62 = por %p60, %p61
      %p63 = scmp.ne.s32.totalorder %s52, %s55
      %p64 = scmp.eq.s32.totalorder %s21, 1
      %p65 = por %p63, %p64
      %p66 = scmp.ne.s32.totalorder %s55, %s56
      %p67 = scmp.eq.s32.totalorder %s21, 0
      %p68 = por %p66, %p67
      %p69 = scmp.ne.s32.totalorder %s55, %s56
      %p70 = scmp.eq.s32.totalorder %s22, 1
      %p71 = por %p69, %p70
      %p73 = scmp.ne.s32.totalorder %s56, %s72
      %p74 = scmp.eq.s32.totalorder %s22, 0
      %p75 = por %p73, %p74
      %s76 = ssub.s32 %s16, %s23
      %p77 = scmp.eq.s32.totalorder %s76, 0
      %s79 = sadd.s32 %s78, 1
      %s80 = scalar_select %p77, %s78, %s79
      %p83 = pneg %p77
      %p84 = scmp.eq.s32.totalorder %s16, 1
      %p85 = por %p83, %p84
      %p86 = scmp.ne.s32.totalorder %s78, %s81
      %p87 = scmp.eq.s32.totalorder %s16, 0
      %p88 = por %p86, %p87
      %p89 = scmp.ne.s32.totalorder %s78, %s81
      %p90 = scmp.eq.s32.totalorder %s21, 1
      %p91 = por %p89, %p90
      %p92 = scmp.ne.s32.totalorder %s81, %s82
      %p93 = scmp.eq.s32.totalorder %s21, 0
      %p94 = por %p92, %p93
      %p95 = scmp.ne.s32.totalorder %s81, %s82
      %p96 = scmp.eq.s32.totalorder %s22, 1
      %p97 = por %p95, %p96
      %p99 = scmp.ne.s32.totalorder %s82, %s98
      %p100 = scmp.eq.s32.totalorder %s22, 0
      %p101 = por %p99, %p100
      %s103 = sadd.s32 %s102, 1
      %p106 = scmp.eq.s32.totalorder %s16, 1
      %p107 = scmp.ne.s32.totalorder %s102, %s104
      %p108 = scmp.eq.s32.totalorder %s16, 0
      %p109 = por %p107, %p108
      %p110 = scmp.ne.s32.totalorder %s102, %s104
      %p111 = scmp.eq.s32.totalorder %s21, 1
      %p112 = por %p110, %p111
      %p113 = scmp.ne.s32.totalorder %s104, %s105
      %p114 = scmp.eq.s32.totalorder %s21, 0
      %p115 = por %p113, %p114
      %p116 = scmp.ne.s32.totalorder %s104, %s105
      %p117 = scmp.eq.s32.totalorder %s22, 1
      %p118 = por %p116, %p117
      %p120 = scmp.ne.s32.totalorder %s105, %s119
      %p121 = scmp.eq.s32.totalorder %s22, 0
      %p122 = por %p120, %p121
      %s124 = sadd.s32 %s123, 1
      %p127 = scmp.eq.s32.totalorder %s16, 1
      %p128 = scmp.ne.s32.totalorder %s123, %s125
      %p129 = scmp.eq.s32.totalorder %s16, 0
      %p130 = por %p128, %p129
      %p131 = scmp.ne.s32.totalorder %s123, %s125
      %p132 = scmp.eq.s32.totalorder %s21, 1
      %p133 = por %p131, %p132
      %p134 = scmp.ne.s32.totalorder %s125, %s126
      %p135 = scmp.eq.s32.totalorder %s21, 0
      %p136 = por %p134, %p135
      %p137 = scmp.ne.s32.totalorder %s125, %s126
      %p138 = scmp.eq.s32.totalorder %s22, 1
      %p139 = por %p137, %p138
      %p141 = scmp.ne.s32.totalorder %s126, %s140
      %p142 = scmp.eq.s32.totalorder %s22, 0
      %p143 = por %p141, %p142
      %s144 = ssub.s32 %s16, %s23
      %p145 = scmp.eq.s32.totalorder %s144, 0
      %s147 = sadd.s32 %s146, 1
      %s148 = scalar_select %p145, %s146, %s147
      %p151 = pneg %p145
      %p152 = scmp.eq.s32.totalorder %s16, 1
      %p153 = por %p151, %p152
      %p154 = scmp.ne.s32.totalorder %s146, %s149
      %p155 = scmp.eq.s32.totalorder %s16, 0
      %p156 = por %p154, %p155
      %p157 = scmp.ne.s32.totalorder %s146, %s149
      %p158 = scmp.eq.s32.totalorder %s21, 1
      %p159 = por %p157, %p158
      %p160 = scmp.ne.s32.totalorder %s149, %s150
      %p161 = scmp.eq.s32.totalorder %s21, 0
      %p162 = por %p160, %p161
      %p163 = scmp.ne.s32.totalorder %s149, %s150
      %p164 = scmp.eq.s32.totalorder %s22, 1
      %p165 = por %p163, %p164
      %p167 = scmp.ne.s32.totalorder %s150, %s166
      %p168 = scmp.eq.s32.totalorder %s22, 0
      %p169 = por %p167, %p168
      %p170 = scmp.le.s32.totalorder 1, %s16
      %p171 = scmp.lt.s32.totalorder %s16, 3
      %p172 = pnand %p170, %p171
      %p173 = pneg %p172
      // Predicated region
      $region9: #{tpu_custom_call.1} parent=5 // pred_check
        _
      $region10: #{tpu_custom_call.1} parent=5 // pred_check_branch
        %175 = sbr.rel (%p172) target = $region12
      $region11: #{tpu_custom_call.1} parent=5 // pred_region
        %s176 = ssub.s32 %s16, 1
        // Predicated region
        $region13: #{tpu_custom_call.1} parent=11 // pred_check
          %p177 = pneg %p115
        $region14: #{tpu_custom_call.1} parent=11 // pred_check_branch
          %179 = sbr.rel (%p177) target = $region16
        $region15: #{tpu_custom_call.1} parent=11 // pred_region
          %s181 = ssub.s32 6144, 6144
          %182 = vsyncadd [#allocation3], %s181
          %s183 = sshll.u32 [#allocation2], 4
          %s184 = int_to_ptr.vmem [resolvable:$true] %s183
          %189 = dma.hbm_to_vmem [thread:$0]  %s3, 6144, %s184, [#allocation3], 384, 384, 24
        $region16: #{tpu_custom_call.1} parent=11 // pred_fallthru
          _
        // Predicated region
        $region17: #{tpu_custom_call.1} parent=11 // pred_check
          %p190 = pneg %p136
        $region18: #{tpu_custom_call.1} parent=11 // pred_check_branch
          %192 = sbr.rel (%p190) target = $region20
        $region19: #{tpu_custom_call.1} parent=11 // pred_region
          %s194 = ssub.s32 2048, 2048
          %195 = vsyncadd [#allocation6], %s194
          %s196 = sshll.u32 [#allocation5], 4
          %s197 = int_to_ptr.vmem [resolvable:$true] %s196
          %202 = dma.hbm_to_vmem [thread:$0]  %s4, 2048, %s197, [#allocation6], 128, 128, 8
        $region20: #{tpu_custom_call.1} parent=11 // pred_fallthru
          _
      $region12: #{tpu_custom_call.1} parent=5 // pred_fallthru
        _
      %p203 = scmp.lt.s32.totalorder %s16, 2
      // Predicated region
      $region21: #{tpu_custom_call.1} parent=5 // pred_check
        %p204 = pneg %p203
      $region22: #{tpu_custom_call.1} parent=5 // pred_check_branch
        %206 = sbr.rel (%p204) target = $region24
      $region23: #{tpu_custom_call.1} parent=5 // pred_region
        // Predicated region
        $region25: #{tpu_custom_call.1} parent=23 // pred_check
          %p207 = pneg %p36
        $region26: #{tpu_custom_call.1} parent=23 // pred_check_branch
          %209 = sbr.rel (%p207) target = $region28
        $region27: #{tpu_custom_call.1} parent=23 // pred_region
          %s210 = smul.u32 4, %s16
          %p211 = scmp.lt.s32.totalorder %s210, 7
          %s212 = scalar_select %p211, %s210, 7
          %s213 = smul.addr %s212, 2
          %s214 = smul.addr %s213, 8
          %s215 = scalar_lea.vmem %s0, %s214
          %s216 = smul.u32 4, %s16
        $region28: #{tpu_custom_call.1} parent=23 // pred_fallthru
          _
        // Predicated region
        $region29: #{tpu_custom_call.1} parent=23 // pred_check
          %p217 = pneg %p62
        $region30: #{tpu_custom_call.1} parent=23 // pred_check_branch
          %219 = sbr.rel (%p217) target = $region32
        $region31: #{tpu_custom_call.1} parent=23 // pred_region
          %s220 = smul.u32 4, %s16
          %p221 = scmp.lt.s32.totalorder %s220, 7
          %s222 = scalar_select %p221, %s220, 7
          %s223 = scalar_lea.vmem %s1, %s222
          %s224 = smul.u32 4, %s16
        $region32: #{tpu_custom_call.1} parent=23 // pred_fallthru
          _
        // Predicated region
        $region33: #{tpu_custom_call.1} parent=23 // pred_check
          %p225 = pneg %p88
        $region34: #{tpu_custom_call.1} parent=23 // pred_check_branch
          %227 = sbr.rel (%p225) target = $region36
        $region35: #{tpu_custom_call.1} parent=23 // pred_region
          %s228 = smul.u32 4, %s16
          %p229 = scmp.lt.s32.totalorder %s228, 7
          %s230 = scalar_select %p229, %s228, 7
          %s231 = smul.addr %s230, 2
          %s232 = smul.addr %s231, 8
          %s233 = scalar_lea.vmem %s2, %s232
          %s234 = smul.u32 4, %s16
        $region36: #{tpu_custom_call.1} parent=23 // pred_fallthru
          _
      $region24: #{tpu_custom_call.1} parent=5 // pred_fallthru
        _
      %p235 = scmp.le.s32.totalorder 1, %s16
      %p236 = scmp.lt.s32.totalorder %s16, 3
      %p237 = pnand %p235, %p236
      %p238 = pneg %p237
      // Predicated region
      $region37: #{tpu_custom_call.1} parent=5 // pred_check
        _
      $region38: #{tpu_custom_call.1} parent=5 // pred_check_branch
        %240 = sbr.rel (%p237) target = $region40
      $region39: #{tpu_custom_call.1} parent=5 // pred_region
        %s241 = ssub.s32 %s16, 1
        // Predicated region
        $region41: #{tpu_custom_call.1} parent=39 // pred_check
          %p242 = pneg %p115
        $region42: #{tpu_custom_call.1} parent=39 // pred_check_branch
          %244 = sbr.rel (%p242) target = $region44
        $region43: #{tpu_custom_call.1} parent=39 // pred_region
          %245 = dma.done [#allocation3], 6144
        $region44: #{tpu_custom_call.1} parent=39 // pred_fallthru
          _
        // Predicated region
        $region45: #{tpu_custom_call.1} parent=39 // pred_check
          %p246 = pneg %p136
        $region46: #{tpu_custom_call.1} parent=39 // pred_check_branch
          %248 = sbr.rel (%p246) target = $region48
        $region47: #{tpu_custom_call.1} parent=39 // pred_region
          %249 = dma.done [#allocation6], 2048
        $region48: #{tpu_custom_call.1} parent=39 // pred_fallthru
          _
        %s250 = smul.u32 4, %s21
        %p251 = scmp.lt.s32.totalorder %s250, 7
        %s252 = scalar_select %p251, %s250, 7
        %s253 = smul.addr %s252, 2
        %s254 = smul.addr %s253, 8
        %s255 = scalar_lea.vmem %s0, %s254
        %p256 = pneg %p42
        %p257 = pneg %p39
        %s258 = smul.u32 4, %s21
        %p259 = scmp.lt.s32.totalorder %s258, 7
        %s260 = scalar_select %p259, %s258, 7
        %s261 = scalar_lea.vmem %s1, %s260
        %p262 = pneg %p68
        %p263 = pneg %p65
        %s264 = smul.u32 4, %s21
        %p265 = scmp.lt.s32.totalorder %s264, 7
        %s266 = scalar_select %p265, %s264, 7
        %s267 = smul.addr %s266, 2
        %s268 = smul.addr %s267, 8
        %s269 = scalar_lea.vmem %s2, %s268
        %p270 = pneg %p94
        %p271 = pneg %p91
        %p272 = pneg %p115
        %p273 = pneg %p112
        %p274 = pneg %p136
        %p275 = pneg %p133
        %p276 = pneg %p162
        %p277 = pneg %p159
        %s278 = sand.u32 %s149, 1
        %s279 = scalar_lea.sflag [#allocation4], %s278
        %s280 = sand.u32 %s149, 1
        %s281 = smul.addr %s280, 64
        %s282 = scalar_lea.vmem [#allocation7], %s281
        %s283 = smul.u32 4, %s21
        %p284 = scmp.lt.s32.totalorder %s283, 7
        %s285 = scalar_select %p284, %s283, 7
        %s286 = smul.addr %s285, 2
        %s287 = smul.addr %s286, 8
        %s288 = scalar_lea.vmem %s0, %s287
        %s289 = smul.u32 4, %s21
        %s290 = smul.u32 4, %s21
        %p291 = scmp.lt.s32.totalorder %s290, 7
        %s292 = scalar_select %p291, %s290, 7
        %s293 = scalar_lea.vmem %s1, %s292
        %s294 = smul.u32 4, %s21
        %s295 = smul.u32 4, %s21
        %p296 = scmp.lt.s32.totalorder %s295, 7
        %s297 = scalar_select %p296, %s295, 7
        %s298 = smul.addr %s297, 2
        %s299 = smul.addr %s298, 8
        %s300 = scalar_lea.vmem %s2, %s299
        %s301 = smul.u32 4, %s21
        %s302 = smul.u32 4, %s21
        %v303 = vld [vmem:[%s288] sm:$0xff]
        %v304 = vld [vmem:[%s288 + $0x8] sm:$0xff]
        %v305 = vld [vmem:[%s288 + $0x10] sm:$0xff]
        %v306 = vld [vmem:[%s288 + $0x18] sm:$0xff]
        %v307 = vld [vmem:[%s288 + $0x20] sm:$0xff]
        %v308 = vld [vmem:[%s288 + $0x28] sm:$0xff]
        %v309 = vld [vmem:[%s288 + $0x30] sm:$0xff]
        %v310 = vld [vmem:[%s288 + $0x38] sm:$0xff]
        %v311 = vld [vmem:[#allocation2] sm:$0xff]
        %v312 = vld [vmem:[#allocation2 + $0x8] sm:$0xff]
        %v313 = vld [vmem:[#allocation2 + $0x10] sm:$0xff]
        %v314 = vld [vmem:[#allocation2 + $0x18] sm:$0xff]
        %v315 = vld [vmem:[#allocation2 + $0x20] sm:$0xff]
        %v316 = vld [vmem:[#allocation2 + $0x28] sm:$0xff]
        %v317 = vld [vmem:[#allocation2 + $0x30] sm:$0xff]
        %v318 = vld [vmem:[#allocation2 + $0x38] sm:$0xff]
        %v319 = vld [vmem:[#allocation2 + $0x40] sm:$0xff]
        %v320 = vld [vmem:[#allocation2 + $0x48] sm:$0xff]
        %v321 = vld [vmem:[#allocation2 + $0x50] sm:$0xff]
        %v322 = vld [vmem:[#allocation2 + $0x58] sm:$0xff]
        %v323 = vld [vmem:[#allocation2 + $0x60] sm:$0xff]
        %v324 = vld [vmem:[#allocation2 + $0x68] sm:$0xff]
        %v325 = vld [vmem:[#allocation2 + $0x70] sm:$0xff]
        %v326 = vld [vmem:[#allocation2 + $0x78] sm:$0xff]
        %v327 = vld [vmem:[#allocation2 + $0x80] sm:$0xff]
        %v328 = vld [vmem:[#allocation2 + $0x88] sm:$0xff]
        %v329 = vld [vmem:[#allocation2 + $0x90] sm:$0xff]
        %v330 = vld [vmem:[#allocation2 + $0x98] sm:$0xff]
        %v331 = vld [vmem:[#allocation2 + $0xa0] sm:$0xff]
        %v332 = vld [vmem:[#allocation2 + $0xa8] sm:$0xff]
        %v333 = vld [vmem:[#allocation2 + $0xb0] sm:$0xff]
        %v334 = vld [vmem:[#allocation2 + $0xb8] sm:$0xff]
        %v335 = vld [vmem:[#allocation2 + $0xc0] sm:$0xff]
        %v336 = vld [vmem:[#allocation2 + $0xc8] sm:$0xff]
        %v337 = vld [vmem:[#allocation2 + $0xd0] sm:$0xff]
        %v338 = vld [vmem:[#allocation2 + $0xd8] sm:$0xff]
        %v339 = vld [vmem:[#allocation2 + $0xe0] sm:$0xff]
        %v340 = vld [vmem:[#allocation2 + $0xe8] sm:$0xff]
        %v341 = vld [vmem:[#allocation2 + $0xf0] sm:$0xff]
        %v342 = vld [vmem:[#allocation2 + $0xf8] sm:$0xff]
        %v343 = vld [vmem:[#allocation2 + $0x100] sm:$0xff]
        %v344 = vld [vmem:[#allocation2 + $0x108] sm:$0xff]
        %v345 = vld [vmem:[#allocation2 + $0x110] sm:$0xff]
        %v346 = vld [vmem:[#allocation2 + $0x118] sm:$0xff]
        %v347 = vld [vmem:[#allocation2 + $0x120] sm:$0xff]
        %v348 = vld [vmem:[#allocation2 + $0x128] sm:$0xff]
        %v349 = vld [vmem:[#allocation2 + $0x130] sm:$0xff]
        %v350 = vld [vmem:[#allocation2 + $0x138] sm:$0xff]
        %v351 = vld [vmem:[#allocation2 + $0x140] sm:$0xff]
        %v352 = vld [vmem:[#allocation2 + $0x148] sm:$0xff]
        %v353 = vld [vmem:[#allocation2 + $0x150] sm:$0xff]
        %v354 = vld [vmem:[#allocation2 + $0x158] sm:$0xff]
        %v355 = vld [vmem:[#allocation2 + $0x160] sm:$0xff]
        %v356 = vld [vmem:[#allocation2 + $0x168] sm:$0xff]
        %v357 = vld [vmem:[#allocation2 + $0x170] sm:$0xff]
        %v358 = vld [vmem:[#allocation2 + $0x178] sm:$0xff]
        %359 = vmatprep.subr.mxu0 %v357
        %360 = vmatpush1.msra.mxu0 %v356
        %361 = vmatprep.subr.mxu0 %v354
        %362 = vmatpush1.msra.mxu0 %v353
        %363 = vmatprep.subr.mxu0 %v351
        %364 = vmatpush1.msra.mxu0 %v350
        %365 = vmatprep.subr.mxu0 %v348
        %366 = vmatpush1.msra.mxu0 %v347
        %367 = vmatprep.subr.mxu0 %v345
        %368 = vmatpush1.msra.mxu0 %v344
        %369 = vmatprep.subr.mxu0 %v342
        %370 = vmatpush1.msra.mxu0 %v341
        %371 = vmatprep.subr.mxu0 %v339
        %372 = vmatpush1.msra.mxu0 %v338
        %373 = vmatprep.subr.mxu0 %v336
        %374 = vmatpush1.msra.mxu0 %v335
        %375 = vmatprep.subr.mxu0 %v333
        %376 = vmatpush1.msra.mxu0 %v332
        %377 = vmatprep.subr.mxu0 %v330
        %378 = vmatpush1.msra.mxu0 %v329
        %379 = vmatprep.subr.mxu0 %v327
        %380 = vmatpush1.msra.mxu0 %v326
        %381 = vmatprep.subr.mxu0 %v324
        %382 = vmatpush1.msra.mxu0 %v323
        %383 = vmatprep.subr.mxu0 %v321
        %384 = vmatpush1.msra.mxu0 %v320
        %385 = vmatprep.subr.mxu0 %v318
        %386 = vmatpush1.msra.mxu0 %v317
        %387 = vmatprep.subr.mxu0 %v315
        %388 = vmatpush1.msra.mxu0 %v314
        %389 = vmatprep.subr.mxu0 %v312
        %390 = vmatpush1.msra.mxu0 %v311
        %391 = vmatprep.subr.mxu0 0.0
        %392 = vmatpush2.msra.mxu0 0.0
        %393 = vmatprep.subr.mxu0 0.0
        %394 = vmatpush2.msra.mxu0 0.0
        %395 = vmatprep.subr.mxu0 0.0
        %396 = vmatpush2.msra.mxu0 0.0
        %397 = vmatprep.subr.mxu0 0.0
        %398 = vmatpush2.msra.mxu0 0.0
        %399 = vmatprep.subr.mxu0 0.0
        %400 = vmatpush2.msra.mxu0 0.0
        %401 = vmatprep.subr.mxu0 0.0
        %402 = vmatpush2.msra.mxu0 0.0
        %403 = vmatprep.subr.mxu0 0.0
        %404 = vmatpush2.msra.mxu0 0.0
        %405 = vmatprep.subr.mxu0 0.0
        %406 = vmatpush2.msra.mxu0 0.0
        %407 = vmatprep.subr.mxu0 0.0
        %408 = vmatpush2.msra.mxu0 0.0
        %409 = vmatprep.subr.mxu0 0.0
        %410 = vmatpush2.msra.mxu0 0.0
        %411 = vmatprep.subr.mxu0 0.0
        %412 = vmatpush2.msra.mxu0 0.0
        %413 = vmatprep.subr.mxu0 0.0
        %414 = vmatpush2.msra.mxu0 0.0
        %415 = vmatprep.subr.mxu0 0.0
        %416 = vmatpush2.msra.mxu0 0.0
        %417 = vmatprep.subr.mxu0 0.0
        %418 = vmatpush2.msra.mxu0 0.0
        %419 = vmatprep.subr.mxu0 0.0
        %420 = vmatpush2.msra.mxu0 0.0
        %421 = vmatprep.subr.mxu0 0.0
        %422 = vmatpush2.msra.mxu0 0.0
        %423 = vmatprep.mubr.f32.mxu0 0.0
        %424 = vmatmul.mubr.f32.gmra.mxu0 %v303
        %v425 = vpop.f32.mrf.mxu0
        %v426 = vadd.f32 0.0, %v425
        %v427 = vpop.f32.mrf.mxu0
        %v428 = vadd.f32 0.0, %v427
        %429 = vmatprep.mubr.f32.mxu0 0.0
        %430 = vmatmul.mubr.f32.gmra.mxu0 %v304
        %v431 = vpop.f32.mrf.mxu0
        %v432 = vadd.f32 0.0, %v431
        %v433 = vpop.f32.mrf.mxu0
        %v434 = vadd.f32 0.0, %v433
        %435 = vmatprep.mubr.f32.mxu0 0.0
        %436 = vmatmul.mubr.f32.gmra.mxu0 %v305
        %v437 = vpop.f32.mrf.mxu0
        %v438 = vadd.f32 0.0, %v437
        %v439 = vpop.f32.mrf.mxu0
        %v440 = vadd.f32 0.0, %v439
        %441 = vmatprep.mubr.f32.mxu0 0.0
        %442 = vmatmul.mubr.f32.gmra.mxu0 %v306
        %v443 = vpop.f32.mrf.mxu0
        %v444 = vadd.f32 0.0, %v443
        %v445 = vpop.f32.mrf.mxu0
        %v446 = vadd.f32 0.0, %v445
        %447 = vmatprep.mubr.f32.mxu0 0.0
        %448 = vmatmul.mubr.f32.gmra.mxu0 %v307
        %v449 = vpop.f32.mrf.mxu0
        %v450 = vadd.f32 0.0, %v449
        %v451 = vpop.f32.mrf.mxu0
        %v452 = vadd.f32 0.0, %v451
        %453 = vmatprep.mubr.f32.mxu0 0.0
        %454 = vmatmul.mubr.f32.gmra.mxu0 %v308
        %v455 = vpop.f32.mrf.mxu0
        %v456 = vadd.f32 0.0, %v455
        %v457 = vpop.f32.mrf.mxu0
        %v458 = vadd.f32 0.0, %v457
        %459 = vmatprep.mubr.f32.mxu0 0.0
        %460 = vmatmul.mubr.f32.gmra.mxu0 %v309
        %v461 = vpop.f32.mrf.mxu0
        %v462 = vadd.f32 0.0, %v461
        %v463 = vpop.f32.mrf.mxu0
        %v464 = vadd.f32 0.0, %v463
        %465 = vmatprep.mubr.f32.mxu0 0.0
        %466 = vmatmul.mubr.f32.gmra.mxu0 %v310
        %v467 = vpop.f32.mrf.mxu0
        %v468 = vadd.f32 0.0, %v467
        %v469 = vpop.f32.mrf.mxu0
        %v470 = vadd.f32 0.0, %v469
        %471 = vdwg.mxu0
        %472 = vmatprep.subr.mxu0 0.0
        %473 = vmatpush1.msra.mxu0 %v358
        %474 = vmatprep.subr.mxu0 0.0
        %475 = vmatpush1.msra.mxu0 %v355
        %476 = vmatprep.subr.mxu0 0.0
        %477 = vmatpush1.msra.mxu0 %v352
        %478 = vmatprep.subr.mxu0 0.0
        %479 = vmatpush1.msra.mxu0 %v349
        %480 = vmatprep.subr.mxu0 0.0
        %481 = vmatpush1.msra.mxu0 %v346
        %482 = vmatprep.subr.mxu0 0.0
        %483 = vmatpush1.msra.mxu0 %v343
        %484 = vmatprep.subr.mxu0 0.0
        %485 = vmatpush1.msra.mxu0 %v340
        %486 = vmatprep.subr.mxu0 0.0
        %487 = vmatpush1.msra.mxu0 %v337
        %488 = vmatprep.subr.mxu0 0.0
        %489 = vmatpush1.msra.mxu0 %v334
        %490 = vmatprep.subr.mxu0 0.0
        %491 = vmatpush1.msra.mxu0 %v331
        %492 = vmatprep.subr.mxu0 0.0
        %493 = vmatpush1.msra.mxu0 %v328
        %494 = vmatprep.subr.mxu0 0.0
        %495 = vmatpush1.msra.mxu0 %v325
        %496 = vmatprep.subr.mxu0 0.0
        %497 = vmatpush1.msra.mxu0 %v322
        %498 = vmatprep.subr.mxu0 0.0
        %499 = vmatpush1.msra.mxu0 %v319
        %500 = vmatprep.subr.mxu0 0.0
        %501 = vmatpush1.msra.mxu0 %v316
        %502 = vmatprep.subr.mxu0 0.0
        %503 = vmatpush1.msra.mxu0 %v313
        %504 = vmatprep.subr.mxu0 0.0
        %505 = vmatpush2.msra.mxu0 0.0
        %506 = vmatprep.subr.mxu0 0.0
        %507 = vmatpush2.msra.mxu0 0.0
        %508 = vmatprep.subr.mxu0 0.0
        %509 = vmatpush2.msra.mxu0 0.0
        %510 = vmatprep.subr.mxu0 0.0
        %511 = vmatpush2.msra.mxu0 0.0
        %512 = vmatprep.subr.mxu0 0.0
        %513 = vmatpush2.msra.mxu0 0.0
        %514 = vmatprep.subr.mxu0 0.0
        %515 = vmatpush2.msra.mxu0 0.0
        %516 = vmatprep.subr.mxu0 0.0
        %517 = vmatpush2.msra.mxu0 0.0
        %518 = vmatprep.subr.mxu0 0.0
        %519 = vmatpush2.msra.mxu0 0.0
        %520 = vmatprep.subr.mxu0 0.0
        %521 = vmatpush2.msra.mxu0 0.0
        %522 = vmatprep.subr.mxu0 0.0
        %523 = vmatpush2.msra.mxu0 0.0
        %524 = vmatprep.subr.mxu0 0.0
        %525 = vmatpush2.msra.mxu0 0.0
        %526 = vmatprep.subr.mxu0 0.0
        %527 = vmatpush2.msra.mxu0 0.0
        %528 = vmatprep.subr.mxu0 0.0
        %529 = vmatpush2.msra.mxu0 0.0
        %530 = vmatprep.subr.mxu0 0.0
        %531 = vmatpush2.msra.mxu0 0.0
        %532 = vmatprep.subr.mxu0 0.0
        %533 = vmatpush2.msra.mxu0 0.0
        %534 = vmatprep.subr.mxu0 0.0
        %535 = vmatpush2.msra.mxu0 0.0
        %536 = vmatprep.mubr.f32.mxu0 0.0
        %537 = vmatmul.mubr.f32.gmra.mxu0 %v303
        %v538 = vpop.f32.mrf.mxu0
        %v539 = vadd.f32 0.0, %v538
        %v540 = vpop.f32.mrf.mxu0
        %541 = vmatprep.mubr.f32.mxu0 0.0
        %542 = vmatmul.mubr.f32.gmra.mxu0 %v304
        %v543 = vpop.f32.mrf.mxu0
        %v544 = vadd.f32 0.0, %v543
        %v545 = vpop.f32.mrf.mxu0
        %546 = vmatprep.mubr.f32.mxu0 0.0
        %547 = vmatmul.mubr.f32.gmra.mxu0 %v305
        %v548 = vpop.f32.mrf.mxu0
        %v549 = vadd.f32 0.0, %v548
        %v550 = vpop.f32.mrf.mxu0
        %551 = vmatprep.mubr.f32.mxu0 0.0
        %552 = vmatmul.mubr.f32.gmra.mxu0 %v306
        %v553 = vpop.f32.mrf.mxu0
        %v554 = vadd.f32 0.0, %v553
        %v555 = vpop.f32.mrf.mxu0
        %556 = vmatprep.mubr.f32.mxu0 0.0
        %557 = vmatmul.mubr.f32.gmra.mxu0 %v307
        %v558 = vpop.f32.mrf.mxu0
        %v559 = vadd.f32 0.0, %v558
        %v560 = vpop.f32.mrf.mxu0
        %561 = vmatprep.mubr.f32.mxu0 0.0
        %562 = vmatmul.mubr.f32.gmra.mxu0 %v308
        %v563 = vpop.f32.mrf.mxu0
        %v564 = vadd.f32 0.0, %v563
        %v565 = vpop.f32.mrf.mxu0
        %566 = vmatprep.mubr.f32.mxu0 0.0
        %567 = vmatmul.mubr.f32.gmra.mxu0 %v309
        %v568 = vpop.f32.mrf.mxu0
        %v569 = vadd.f32 0.0, %v568
        %v570 = vpop.f32.mrf.mxu0
        %571 = vmatprep.mubr.f32.mxu0 0.0
        %572 = vmatmul.mubr.f32.gmra.mxu0 %v310
        %v573 = vpop.f32.mrf.mxu0
        %v574 = vadd.f32 0.0, %v573
        %v575 = vpop.f32.mrf.mxu0
        %576 = vdwg.mxu0
        %v577 = vld [vmem:[%s300] sm:$0xff]
        %v578 = vld [vmem:[%s300 + $0x8] sm:$0xff]
        %v579 = vld [vmem:[%s300 + $0x10] sm:$0xff]
        %v580 = vld [vmem:[%s300 + $0x18] sm:$0xff]
        %v581 = vld [vmem:[%s300 + $0x20] sm:$0xff]
        %v582 = vld [vmem:[%s300 + $0x28] sm:$0xff]
        %v583 = vld [vmem:[%s300 + $0x30] sm:$0xff]
        %v584 = vld [vmem:[%s300 + $0x38] sm:$0xff]
        %v585 = vld [vmem:[%s293] sm:$0x1]
        %v586 = vld [vmem:[%s293 + $0x1] sm:$0x1]
        %v587 = vld [vmem:[%s293 + $0x2] sm:$0x1]
        %v588 = vld [vmem:[%s293 + $0x3] sm:$0x1]
        %590 = vset.pattern.permute.xlu0 0
        %591 = vperm.xlu0 %590, %v577
        %v592 = vpop.permute.xlu0 %591
        %595 = vset.pattern.permute.xlu0 0
        %596 = vperm.xlu0 %595, %v578
        %v597 = vpop.permute.xlu0 %596
        %600 = vset.pattern.permute.xlu0 0
        %601 = vperm.xlu0 %600, %v579
        %v602 = vpop.permute.xlu0 %601
        %605 = vset.pattern.permute.xlu0 0
        %606 = vperm.xlu0 %605, %v580
        %v607 = vpop.permute.xlu0 %606
        %610 = vset.pattern.permute.xlu0 0
        %611 = vperm.xlu0 %610, %v581
        %v612 = vpop.permute.xlu0 %611
        %615 = vset.pattern.permute.xlu0 0
        %616 = vperm.xlu0 %615, %v582
        %v617 = vpop.permute.xlu0 %616
        %620 = vset.pattern.permute.xlu0 0
        %621 = vperm.xlu0 %620, %v583
        %v622 = vpop.permute.xlu0 %621
        %625 = vset.pattern.permute.xlu0 0
        %626 = vperm.xlu0 %625, %v584
        %v627 = vpop.permute.xlu0 %626
        %v633 = vlaneseq
        %v634 = vshrl.u32 %v633, 7
        %v635 = vsub.s32 0, %v634
        %v636 = vrot.slane %v585, %v635
        %v637 = vlaneseq
        %v638 = vshrl.u32 %v637, 7
        %v639 = vsub.s32 0, %v638
        %v640 = vrot.slane %v586, %v639
        %v641 = vlaneseq
        %v642 = vshrl.u32 %v641, 7
        %v643 = vsub.s32 0, %v642
        %v644 = vrot.slane %v587, %v643
        %v645 = vlaneseq
        %v646 = vshrl.u32 %v645, 7
        %v647 = vsub.s32 0, %v646
        %v648 = vrot.slane %v588, %v647
        %v653 = vmul.f32 %v592, %v636
        %v654 = vmul.f32 %v597, %v636
        %v655 = vmul.f32 %v602, %v640
        %v656 = vmul.f32 %v607, %v640
        %v657 = vmul.f32 %v612, %v644
        %v658 = vmul.f32 %v617, %v644
        %v659 = vmul.f32 %v622, %v648
        %v660 = vmul.f32 %v627, %v648
        %vm661 = vcmp.gt.f32.partialorder %v653, 0.5
        %vm662 = vcmp.gt.f32.partialorder %v654, 0.5
        %vm663 = vcmp.gt.f32.partialorder %v655, 0.5
        %vm664 = vcmp.gt.f32.partialorder %v656, 0.5
        %vm665 = vcmp.gt.f32.partialorder %v657, 0.5
        %vm666 = vcmp.gt.f32.partialorder %v658, 0.5
        %vm667 = vcmp.gt.f32.partialorder %v659, 0.5
        %vm668 = vcmp.gt.f32.partialorder %v660, 0.5
        %vm669 = vcmask 261120
        %v671 = vsel %vm669, %v426, 0
        %v674 = vsel %vm669, %v432, 0
        %v677 = vsel %vm669, %v428, 0
        %v680 = vsel %vm669, %v434, 0
        %682 = vmatprep.subr.mxu0 0.0
        %683 = vmatpush1.xpose.msra.mxu0 0.0
        %684 = vmatprep.subr.mxu0 0.0
        %685 = vmatpush1.xpose.msra.mxu0 0.0
        %686 = vmatprep.subr.mxu0 0.0
        %687 = vmatpush1.xpose.msra.mxu0 0.0
        %688 = vmatprep.subr.mxu0 0.0
        %689 = vmatpush1.xpose.msra.mxu0 0.0
        %690 = vmatprep.subr.mxu0 0.0
        %691 = vmatpush1.xpose.msra.mxu0 0.0
        %692 = vmatprep.subr.mxu0 0.0
        %693 = vmatpush1.xpose.msra.mxu0 0.0
        %694 = vmatprep.subr.mxu0 0.0
        %695 = vmatpush1.xpose.msra.mxu0 0.0
        %696 = vmatprep.subr.mxu0 0.0
        %697 = vmatpush1.xpose.msra.mxu0 0.0
        %698 = vmatprep.subr.mxu0 0.0
        %699 = vmatpush1.xpose.msra.mxu0 0.0
        %700 = vmatprep.subr.mxu0 0.0
        %701 = vmatpush1.xpose.msra.mxu0 0.0
        %702 = vmatprep.subr.mxu0 0.0
        %703 = vmatpush1.xpose.msra.mxu0 0.0
        %704 = vmatprep.subr.mxu0 0.0
        %705 = vmatpush1.xpose.msra.mxu0 0.0
        %706 = vmatprep.subr.mxu0 0.0
        %707 = vmatpush1.xpose.msra.mxu0 0.0
        %708 = vmatprep.subr.mxu0 0.0
        %709 = vmatpush1.xpose.msra.mxu0 0.0
        %710 = vmatprep.subr.mxu0 0.0
        %711 = vmatpush1.xpose.msra.mxu0 %v680
        %712 = vmatprep.subr.mxu0 0.0
        %713 = vmatpush1.xpose.msra.mxu0 %v677
        %714 = vmatprep.subr.mxu0 0.0
        %715 = vmatpush2.xpose.msra.mxu0 0.0
        %716 = vmatprep.subr.mxu0 0.0
        %717 = vmatpush2.xpose.msra.mxu0 0.0
        %718 = vmatprep.subr.mxu0 0.0
        %719 = vmatpush2.xpose.msra.mxu0 0.0
        %720 = vmatprep.subr.mxu0 0.0
        %721 = vmatpush2.xpose.msra.mxu0 0.0
        %722 = vmatprep.subr.mxu0 0.0
        %723 = vmatpush2.xpose.msra.mxu0 0.0
        %724 = vmatprep.subr.mxu0 0.0
        %725 = vmatpush2.xpose.msra.mxu0 0.0
        %726 = vmatprep.subr.mxu0 0.0
        %727 = vmatpush2.xpose.msra.mxu0 0.0
        %728 = vmatprep.subr.mxu0 0.0
        %729 = vmatpush2.xpose.msra.mxu0 0.0
        %730 = vmatprep.subr.mxu0 0.0
        %731 = vmatpush2.xpose.msra.mxu0 0.0
        %732 = vmatprep.subr.mxu0 0.0
        %733 = vmatpush2.xpose.msra.mxu0 0.0
        %734 = vmatprep.subr.mxu0 0.0
        %735 = vmatpush2.xpose.msra.mxu0 0.0
        %736 = vmatprep.subr.mxu0 0.0
        %737 = vmatpush2.xpose.msra.mxu0 0.0
        %738 = vmatprep.subr.mxu0 0.0
        %739 = vmatpush2.xpose.msra.mxu0 0.0
        %740 = vmatprep.subr.mxu0 0.0
        %741 = vmatpush2.xpose.msra.mxu0 0.0
        %742 = vmatprep.subr.mxu0 0.0
        %743 = vmatpush2.xpose.msra.mxu0 0.0
        %744 = vmatprep.subr.mxu0 0.0
        %745 = vmatpush2.xpose.msra.mxu0 0.0
        %746 = vmatprep.mubr.f32.mxu0 0.0
        %747 = vmatmul.mubr.f32.gmra.mxu0 %v671
        %v748 = vpop.f32.mrf.mxu0
        %v749 = vadd.f32 0.0, %v748
        %v750 = vpop.f32.mrf.mxu0
        %751 = vmatprep.mubr.f32.mxu0 0.0
        %752 = vmatmul.mubr.f32.gmra.mxu0 %v674
        %v753 = vpop.f32.mrf.mxu0
        %v754 = vadd.f32 0.0, %v753
        %v755 = vpop.f32.mrf.mxu0
        %756 = vdwg.mxu0
        %v758 = vsel %vm669, %v438, 0
        %v761 = vsel %vm669, %v444, 0
        %v764 = vsel %vm669, %v440, 0
        %v767 = vsel %vm669, %v446, 0
        %769 = vmatprep.subr.mxu0 0.0
        %770 = vmatpush1.xpose.msra.mxu0 0.0
        %771 = vmatprep.subr.mxu0 0.0
        %772 = vmatpush1.xpose.msra.mxu0 0.0
        %773 = vmatprep.subr.mxu0 0.0
        %774 = vmatpush1.xpose.msra.mxu0 0.0
        %775 = vmatprep.subr.mxu0 0.0
        %776 = vmatpush1.xpose.msra.mxu0 0.0
        %777 = vmatprep.subr.mxu0 0.0
        %778 = vmatpush1.xpose.msra.mxu0 0.0
        %779 = vmatprep.subr.mxu0 0.0
        %780 = vmatpush1.xpose.msra.mxu0 0.0
        %781 = vmatprep.subr.mxu0 0.0
        %782 = vmatpush1.xpose.msra.mxu0 0.0
        %783 = vmatprep.subr.mxu0 0.0
        %784 = vmatpush1.xpose.msra.mxu0 0.0
        %785 = vmatprep.subr.mxu0 0.0
        %786 = vmatpush1.xpose.msra.mxu0 0.0
        %787 = vmatprep.subr.mxu0 0.0
        %788 = vmatpush1.xpose.msra.mxu0 0.0
        %789 = vmatprep.subr.mxu0 0.0
        %790 = vmatpush1.xpose.msra.mxu0 0.0
        %791 = vmatprep.subr.mxu0 0.0
        %792 = vmatpush1.xpose.msra.mxu0 0.0
        %793 = vmatprep.subr.mxu0 0.0
        %794 = vmatpush1.xpose.msra.mxu0 0.0
        %795 = vmatprep.subr.mxu0 0.0
        %796 = vmatpush1.xpose.msra.mxu0 0.0
        %797 = vmatprep.subr.mxu0 0.0
        %798 = vmatpush1.xpose.msra.mxu0 %v767
        %799 = vmatprep.subr.mxu0 0.0
        %800 = vmatpush1.xpose.msra.mxu0 %v764
        %801 = vmatprep.subr.mxu0 0.0
        %802 = vmatpush2.xpose.msra.mxu0 0.0
        %803 = vmatprep.subr.mxu0 0.0
        %804 = vmatpush2.xpose.msra.mxu0 0.0
        %805 = vmatprep.subr.mxu0 0.0
        %806 = vmatpush2.xpose.msra.mxu0 0.0
        %807 = vmatprep.subr.mxu0 0.0
        %808 = vmatpush2.xpose.msra.mxu0 0.0
        %809 = vmatprep.subr.mxu0 0.0
        %810 = vmatpush2.xpose.msra.mxu0 0.0
        %811 = vmatprep.subr.mxu0 0.0
        %812 = vmatpush2.xpose.msra.mxu0 0.0
        %813 = vmatprep.subr.mxu0 0.0
        %814 = vmatpush2.xpose.msra.mxu0 0.0
        %815 = vmatprep.subr.mxu0 0.0
        %816 = vmatpush2.xpose.msra.mxu0 0.0
        %817 = vmatprep.subr.mxu0 0.0
        %818 = vmatpush2.xpose.msra.mxu0 0.0
        %819 = vmatprep.subr.mxu0 0.0
        %820 = vmatpush2.xpose.msra.mxu0 0.0
        %821 = vmatprep.subr.mxu0 0.0
        %822 = vmatpush2.xpose.msra.mxu0 0.0
        %823 = vmatprep.subr.mxu0 0.0
        %824 = vmatpush2.xpose.msra.mxu0 0.0
        %825 = vmatprep.subr.mxu0 0.0
        %826 = vmatpush2.xpose.msra.mxu0 0.0
        %827 = vmatprep.subr.mxu0 0.0
        %828 = vmatpush2.xpose.msra.mxu0 0.0
        %829 = vmatprep.subr.mxu0 0.0
        %830 = vmatpush2.xpose.msra.mxu0 0.0
        %831 = vmatprep.subr.mxu0 0.0
        %832 = vmatpush2.xpose.msra.mxu0 0.0
        %833 = vmatprep.mubr.f32.mxu0 0.0
        %834 = vmatmul.mubr.f32.gmra.mxu0 %v758
        %v835 = vpop.f32.mrf.mxu0
        %v836 = vadd.f32 0.0, %v835
        %v837 = vpop.f32.mrf.mxu0
        %838 = vmatprep.mubr.f32.mxu0 0.0
        %839 = vmatmul.mubr.f32.gmra.mxu0 %v761
        %v840 = vpop.f32.mrf.mxu0
        %v841 = vadd.f32 0.0, %v840
        %v842 = vpop.f32.mrf.mxu0
        %843 = vdwg.mxu0
        %v845 = vsel %vm669, %v450, 0
        %v848 = vsel %vm669, %v456, 0
        %v851 = vsel %vm669, %v452, 0
        %v854 = vsel %vm669, %v458, 0
        %856 = vmatprep.subr.mxu0 0.0
        %857 = vmatpush1.xpose.msra.mxu0 0.0
        %858 = vmatprep.subr.mxu0 0.0
        %859 = vmatpush1.xpose.msra.mxu0 0.0
        %860 = vmatprep.subr.mxu0 0.0
        %861 = vmatpush1.xpose.msra.mxu0 0.0
        %862 = vmatprep.subr.mxu0 0.0
        %863 = vmatpush1.xpose.msra.mxu0 0.0
        %864 = vmatprep.subr.mxu0 0.0
        %865 = vmatpush1.xpose.msra.mxu0 0.0
        %866 = vmatprep.subr.mxu0 0.0
        %867 = vmatpush1.xpose.msra.mxu0 0.0
        %868 = vmatprep.subr.mxu0 0.0
        %869 = vmatpush1.xpose.msra.mxu0 0.0
        %870 = vmatprep.subr.mxu0 0.0
        %871 = vmatpush1.xpose.msra.mxu0 0.0
        %872 = vmatprep.subr.mxu0 0.0
        %873 = vmatpush1.xpose.msra.mxu0 0.0
        %874 = vmatprep.subr.mxu0 0.0
        %875 = vmatpush1.xpose.msra.mxu0 0.0
        %876 = vmatprep.subr.mxu0 0.0
        %877 = vmatpush1.xpose.msra.mxu0 0.0
        %878 = vmatprep.subr.mxu0 0.0
        %879 = vmatpush1.xpose.msra.mxu0 0.0
        %880 = vmatprep.subr.mxu0 0.0
        %881 = vmatpush1.xpose.msra.mxu0 0.0
        %882 = vmatprep.subr.mxu0 0.0
        %883 = vmatpush1.xpose.msra.mxu0 0.0
        %884 = vmatprep.subr.mxu0 0.0
        %885 = vmatpush1.xpose.msra.mxu0 %v854
        %886 = vmatprep.subr.mxu0 0.0
        %887 = vmatpush1.xpose.msra.mxu0 %v851
        %888 = vmatprep.subr.mxu0 0.0
        %889 = vmatpush2.xpose.msra.mxu0 0.0
        %890 = vmatprep.subr.mxu0 0.0
        %891 = vmatpush2.xpose.msra.mxu0 0.0
        %892 = vmatprep.subr.mxu0 0.0
        %893 = vmatpush2.xpose.msra.mxu0 0.0
        %894 = vmatprep.subr.mxu0 0.0
        %895 = vmatpush2.xpose.msra.mxu0 0.0
        %896 = vmatprep.subr.mxu0 0.0
        %897 = vmatpush2.xpose.msra.mxu0 0.0
        %898 = vmatprep.subr.mxu0 0.0
        %899 = vmatpush2.xpose.msra.mxu0 0.0
        %900 = vmatprep.subr.mxu0 0.0
        %901 = vmatpush2.xpose.msra.mxu0 0.0
        %902 = vmatprep.subr.mxu0 0.0
        %903 = vmatpush2.xpose.msra.mxu0 0.0
        %904 = vmatprep.subr.mxu0 0.0
        %905 = vmatpush2.xpose.msra.mxu0 0.0
        %906 = vmatprep.subr.mxu0 0.0
        %907 = vmatpush2.xpose.msra.mxu0 0.0
        %908 = vmatprep.subr.mxu0 0.0
        %909 = vmatpush2.xpose.msra.mxu0 0.0
        %910 = vmatprep.subr.mxu0 0.0
        %911 = vmatpush2.xpose.msra.mxu0 0.0
        %912 = vmatprep.subr.mxu0 0.0
        %913 = vmatpush2.xpose.msra.mxu0 0.0
        %914 = vmatprep.subr.mxu0 0.0
        %915 = vmatpush2.xpose.msra.mxu0 0.0
        %916 = vmatprep.subr.mxu0 0.0
        %917 = vmatpush2.xpose.msra.mxu0 0.0
        %918 = vmatprep.subr.mxu0 0.0
        %919 = vmatpush2.xpose.msra.mxu0 0.0
        %920 = vmatprep.mubr.f32.mxu0 0.0
        %921 = vmatmul.mubr.f32.gmra.mxu0 %v845
        %v922 = vpop.f32.mrf.mxu0
        %v923 = vadd.f32 0.0, %v922
        %v924 = vpop.f32.mrf.mxu0
        %925 = vmatprep.mubr.f32.mxu0 0.0
        %926 = vmatmul.mubr.f32.gmra.mxu0 %v848
        %v927 = vpop.f32.mrf.mxu0
        %v928 = vadd.f32 0.0, %v927
        %v929 = vpop.f32.mrf.mxu0
        %930 = vdwg.mxu0
        %v932 = vsel %vm669, %v462, 0
        %v935 = vsel %vm669, %v468, 0
        %v938 = vsel %vm669, %v464, 0
        %v941 = vsel %vm669, %v470, 0
        %943 = vmatprep.subr.mxu0 0.0
        %944 = vmatpush1.xpose.msra.mxu0 0.0
        %945 = vmatprep.subr.mxu0 0.0
        %946 = vmatpush1.xpose.msra.mxu0 0.0
        %947 = vmatprep.subr.mxu0 0.0
        %948 = vmatpush1.xpose.msra.mxu0 0.0
        %949 = vmatprep.subr.mxu0 0.0
        %950 = vmatpush1.xpose.msra.mxu0 0.0
        %951 = vmatprep.subr.mxu0 0.0
        %952 = vmatpush1.xpose.msra.mxu0 0.0
        %953 = vmatprep.subr.mxu0 0.0
        %954 = vmatpush1.xpose.msra.mxu0 0.0
        %955 = vmatprep.subr.mxu0 0.0
        %956 = vmatpush1.xpose.msra.mxu0 0.0
        %957 = vmatprep.subr.mxu0 0.0
        %958 = vmatpush1.xpose.msra.mxu0 0.0
        %959 = vmatprep.subr.mxu0 0.0
        %960 = vmatpush1.xpose.msra.mxu0 0.0
        %961 = vmatprep.subr.mxu0 0.0
        %962 = vmatpush1.xpose.msra.mxu0 0.0
        %963 = vmatprep.subr.mxu0 0.0
        %964 = vmatpush1.xpose.msra.mxu0 0.0
        %965 = vmatprep.subr.mxu0 0.0
        %966 = vmatpush1.xpose.msra.mxu0 0.0
        %967 = vmatprep.subr.mxu0 0.0
        %968 = vmatpush1.xpose.msra.mxu0 0.0
        %969 = vmatprep.subr.mxu0 0.0
        %970 = vmatpush1.xpose.msra.mxu0 0.0
        %971 = vmatprep.subr.mxu0 0.0
        %972 = vmatpush1.xpose.msra.mxu0 %v941
        %973 = vmatprep.subr.mxu0 0.0
        %974 = vmatpush1.xpose.msra.mxu0 %v938
        %975 = vmatprep.subr.mxu0 0.0
        %976 = vmatpush2.xpose.msra.mxu0 0.0
        %977 = vmatprep.subr.mxu0 0.0
        %978 = vmatpush2.xpose.msra.mxu0 0.0
        %979 = vmatprep.subr.mxu0 0.0
        %980 = vmatpush2.xpose.msra.mxu0 0.0
        %981 = vmatprep.subr.mxu0 0.0
        %982 = vmatpush2.xpose.msra.mxu0 0.0
        %983 = vmatprep.subr.mxu0 0.0
        %984 = vmatpush2.xpose.msra.mxu0 0.0
        %985 = vmatprep.subr.mxu0 0.0
        %986 = vmatpush2.xpose.msra.mxu0 0.0
        %987 = vmatprep.subr.mxu0 0.0
        %988 = vmatpush2.xpose.msra.mxu0 0.0
        %989 = vmatprep.subr.mxu0 0.0
        %990 = vmatpush2.xpose.msra.mxu0 0.0
        %991 = vmatprep.subr.mxu0 0.0
        %992 = vmatpush2.xpose.msra.mxu0 0.0
        %993 = vmatprep.subr.mxu0 0.0
        %994 = vmatpush2.xpose.msra.mxu0 0.0
        %995 = vmatprep.subr.mxu0 0.0
        %996 = vmatpush2.xpose.msra.mxu0 0.0
        %997 = vmatprep.subr.mxu0 0.0
        %998 = vmatpush2.xpose.msra.mxu0 0.0
        %999 = vmatprep.subr.mxu0 0.0
        %1000 = vmatpush2.xpose.msra.mxu0 0.0
        %1001 = vmatprep.subr.mxu0 0.0
        %1002 = vmatpush2.xpose.msra.mxu0 0.0
        %1003 = vmatprep.subr.mxu0 0.0
        %1004 = vmatpush2.xpose.msra.mxu0 0.0
        %1005 = vmatprep.subr.mxu0 0.0
        %1006 = vmatpush2.xpose.msra.mxu0 0.0
        %1007 = vmatprep.mubr.f32.mxu0 0.0
        %1008 = vmatmul.mubr.f32.gmra.mxu0 %v932
        %v1009 = vpop.f32.mrf.mxu0
        %v1010 = vadd.f32 0.0, %v1009
        %v1011 = vpop.f32.mrf.mxu0
        %1012 = vmatprep.mubr.f32.mxu0 0.0
        %1013 = vmatmul.mubr.f32.gmra.mxu0 %v935
        %v1014 = vpop.f32.mrf.mxu0
        %v1015 = vadd.f32 0.0, %v1014
        %v1016 = vpop.f32.mrf.mxu0
        %1017 = vdwg.mxu0
        %v1018 = vsel %vm661, %v749, -3.4028235e+38
        %v1019 = vsel %vm662, %v754, -3.4028235e+38
        %v1020 = vsel %vm663, %v836, -3.4028235e+38
        %v1021 = vsel %vm664, %v841, -3.4028235e+38
        %v1022 = vsel %vm665, %v923, -3.4028235e+38
        %v1023 = vsel %vm666, %v928, -3.4028235e+38
        %v1024 = vsel %vm667, %v1010, -3.4028235e+38
        %v1025 = vsel %vm668, %v1015, -3.4028235e+38
        %vm1026 = vcmask 130048
        %v1027 = vsel %vm1026, %v1018, -inf
        %1028 = vmax.xlane.f32.xlu0 %v1027
        %v1029 = vpop.xlane.xlu0 %1028
        %v1030 = vsel %vm1026, %v1019, -inf
        %1031 = vmax.xlane.f32.xlu0 %v1030
        %v1032 = vpop.xlane.xlu0 %1031
        %v1033 = vsel %vm1026, %v1020, -inf
        %1034 = vmax.xlane.f32.xlu0 %v1033
        %v1035 = vpop.xlane.xlu0 %1034
        %v1036 = vsel %vm1026, %v1021, -inf
        %1037 = vmax.xlane.f32.xlu0 %v1036
        %v1038 = vpop.xlane.xlu0 %1037
        %v1039 = vsel %vm1026, %v1022, -inf
        %1040 = vmax.xlane.f32.xlu0 %v1039
        %v1041 = vpop.xlane.xlu0 %1040
        %v1042 = vsel %vm1026, %v1023, -inf
        %1043 = vmax.xlane.f32.xlu0 %v1042
        %v1044 = vpop.xlane.xlu0 %1043
        %v1045 = vsel %vm1026, %v1024, -inf
        %1046 = vmax.xlane.f32.xlu0 %v1045
        %v1047 = vpop.xlane.xlu0 %1046
        %v1048 = vsel %vm1026, %v1025, -inf
        %1049 = vmax.xlane.f32.xlu0 %v1048
        %v1050 = vpop.xlane.xlu0 %1049
        %v1051 = vsub.f32 %v1018, %v1029
        %v1052 = vsub.f32 %v1019, %v1032
        %v1053 = vsub.f32 %v1020, %v1035
        %v1054 = vsub.f32 %v1021, %v1038
        %v1055 = vsub.f32 %v1022, %v1041
        %v1056 = vsub.f32 %v1023, %v1044
        %v1057 = vsub.f32 %v1024, %v1047
        %v1058 = vsub.f32 %v1025, %v1050
        %v1059 = vmul.f32 %v1051, 1.442695
        %v1060 = vpow.pop %v1059
        %v1061 = vmul.f32 %v1052, 1.442695
        %v1062 = vpow.pop %v1061
        %v1063 = vmul.f32 %v1053, 1.442695
        %v1064 = vpow.pop %v1063
        %v1065 = vmul.f32 %v1054, 1.442695
        %v1066 = vpow.pop %v1065
        %v1067 = vmul.f32 %v1055, 1.442695
        %v1068 = vpow.pop %v1067
        %v1069 = vmul.f32 %v1056, 1.442695
        %v1070 = vpow.pop %v1069
        %v1071 = vmul.f32 %v1057, 1.442695
        %v1072 = vpow.pop %v1071
        %v1073 = vmul.f32 %v1058, 1.442695
        %v1074 = vpow.pop %v1073
        %v1075 = vsel %vm1026, %v1060, 0.0
        %1076 = vadd.xlane.f32.xlu0 %v1075
        %v1077 = vpop.xlane.xlu0 %1076
        %v1078 = vsel %vm1026, %v1062, 0.0
        %1079 = vadd.xlane.f32.xlu0 %v1078
        %v1080 = vpop.xlane.xlu0 %1079
        %v1081 = vsel %vm1026, %v1064, 0.0
        %1082 = vadd.xlane.f32.xlu0 %v1081
        %v1083 = vpop.xlane.xlu0 %1082
        %v1084 = vsel %vm1026, %v1066, 0.0
        %1085 = vadd.xlane.f32.xlu0 %v1084
        %v1086 = vpop.xlane.xlu0 %1085
        %v1087 = vsel %vm1026, %v1068, 0.0
        %1088 = vadd.xlane.f32.xlu0 %v1087
        %v1089 = vpop.xlane.xlu0 %1088
        %v1090 = vsel %vm1026, %v1070, 0.0
        %1091 = vadd.xlane.f32.xlu0 %v1090
        %v1092 = vpop.xlane.xlu0 %1091
        %v1093 = vsel %vm1026, %v1072, 0.0
        %1094 = vadd.xlane.f32.xlu0 %v1093
        %v1095 = vpop.xlane.xlu0 %1094
        %v1096 = vsel %vm1026, %v1074, 0.0
        %1097 = vadd.xlane.f32.xlu0 %v1096
        %v1098 = vpop.xlane.xlu0 %1097
        %v1099 = vrcp.pop %v1077
        %v1100 = vrcp.pop %v1080
        %v1101 = vrcp.pop %v1083
        %v1102 = vrcp.pop %v1086
        %v1103 = vrcp.pop %v1089
        %v1104 = vrcp.pop %v1092
        %v1105 = vrcp.pop %v1095
        %v1106 = vrcp.pop %v1098
        %v1107 = vmul.f32 %v1060, %v1099
        %v1108 = vmul.f32 %v1062, %v1100
        %v1109 = vmul.f32 %v1064, %v1101
        %v1110 = vmul.f32 %v1066, %v1102
        %v1111 = vmul.f32 %v1068, %v1103
        %v1112 = vmul.f32 %v1070, %v1104
        %v1113 = vmul.f32 %v1072, %v1105
        %v1114 = vmul.f32 %v1074, %v1106
        %v1116 = vsel %vm1026, %v1107, 0
        %v1119 = vsel %vm1026, %v1108, 0
        %1121 = vmatprep.subr.mxu0 0.0
        %1122 = vmatpush1.msra.mxu0 0.0
        %1123 = vmatprep.subr.mxu0 0.0
        %1124 = vmatpush1.msra.mxu0 0.0
        %1125 = vmatprep.subr.mxu0 0.0
        %1126 = vmatpush1.msra.mxu0 0.0
        %1127 = vmatprep.subr.mxu0 0.0
        %1128 = vmatpush1.msra.mxu0 0.0
        %1129 = vmatprep.subr.mxu0 0.0
        %1130 = vmatpush1.msra.mxu0 0.0
        %1131 = vmatprep.subr.mxu0 0.0
        %1132 = vmatpush1.msra.mxu0 0.0
        %1133 = vmatprep.subr.mxu0 0.0
        %1134 = vmatpush1.msra.mxu0 0.0
        %1135 = vmatprep.subr.mxu0 0.0
        %1136 = vmatpush1.msra.mxu0 0.0
        %1137 = vmatprep.subr.mxu0 0.0
        %1138 = vmatpush1.msra.mxu0 0.0
        %1139 = vmatprep.subr.mxu0 0.0
        %1140 = vmatpush1.msra.mxu0 0.0
        %1141 = vmatprep.subr.mxu0 0.0
        %1142 = vmatpush1.msra.mxu0 0.0
        %1143 = vmatprep.subr.mxu0 0.0
        %1144 = vmatpush1.msra.mxu0 0.0
        %1145 = vmatprep.subr.mxu0 0.0
        %1146 = vmatpush1.msra.mxu0 0.0
        %1147 = vmatprep.subr.mxu0 0.0
        %1148 = vmatpush1.msra.mxu0 0.0
        %1149 = vmatprep.subr.mxu0 0.0
        %1150 = vmatpush1.msra.mxu0 %v544
        %1151 = vmatprep.subr.mxu0 0.0
        %1152 = vmatpush1.msra.mxu0 %v539
        %1153 = vmatprep.subr.mxu0 0.0
        %1154 = vmatpush2.msra.mxu0 0.0
        %1155 = vmatprep.subr.mxu0 0.0
        %1156 = vmatpush2.msra.mxu0 0.0
        %1157 = vmatprep.subr.mxu0 0.0
        %1158 = vmatpush2.msra.mxu0 0.0
        %1159 = vmatprep.subr.mxu0 0.0
        %1160 = vmatpush2.msra.mxu0 0.0
        %1161 = vmatprep.subr.mxu0 0.0
        %1162 = vmatpush2.msra.mxu0 0.0
        %1163 = vmatprep.subr.mxu0 0.0
        %1164 = vmatpush2.msra.mxu0 0.0
        %1165 = vmatprep.subr.mxu0 0.0
        %1166 = vmatpush2.msra.mxu0 0.0
        %1167 = vmatprep.subr.mxu0 0.0
        %1168 = vmatpush2.msra.mxu0 0.0
        %1169 = vmatprep.subr.mxu0 0.0
        %1170 = vmatpush2.msra.mxu0 0.0
        %1171 = vmatprep.subr.mxu0 0.0
        %1172 = vmatpush2.msra.mxu0 0.0
        %1173 = vmatprep.subr.mxu0 0.0
        %1174 = vmatpush2.msra.mxu0 0.0
        %1175 = vmatprep.subr.mxu0 0.0
        %1176 = vmatpush2.msra.mxu0 0.0
        %1177 = vmatprep.subr.mxu0 0.0
        %1178 = vmatpush2.msra.mxu0 0.0
        %1179 = vmatprep.subr.mxu0 0.0
        %1180 = vmatpush2.msra.mxu0 0.0
        %1181 = vmatprep.subr.mxu0 0.0
        %1182 = vmatpush2.msra.mxu0 0.0
        %1183 = vmatprep.subr.mxu0 0.0
        %1184 = vmatpush2.msra.mxu0 0.0
        %1185 = vmatprep.mubr.f32.mxu0 0.0
        %1186 = vmatmul.mubr.f32.gmra.mxu0 %v1116
        %v1187 = vpop.f32.mrf.mxu0
        %v1188 = vadd.f32 0.0, %v1187
        %v1189 = vpop.f32.mrf.mxu0
        %1190 = vmatprep.mubr.f32.mxu0 0.0
        %1191 = vmatmul.mubr.f32.gmra.mxu0 %v1119
        %v1192 = vpop.f32.mrf.mxu0
        %v1193 = vadd.f32 0.0, %v1192
        %v1194 = vpop.f32.mrf.mxu0
        %1195 = vdwg.mxu0
        %v1197 = vsel %vm1026, %v1109, 0
        %v1200 = vsel %vm1026, %v1110, 0
        %1202 = vmatprep.subr.mxu0 0.0
        %1203 = vmatpush1.msra.mxu0 0.0
        %1204 = vmatprep.subr.mxu0 0.0
        %1205 = vmatpush1.msra.mxu0 0.0
        %1206 = vmatprep.subr.mxu0 0.0
        %1207 = vmatpush1.msra.mxu0 0.0
        %1208 = vmatprep.subr.mxu0 0.0
        %1209 = vmatpush1.msra.mxu0 0.0
        %1210 = vmatprep.subr.mxu0 0.0
        %1211 = vmatpush1.msra.mxu0 0.0
        %1212 = vmatprep.subr.mxu0 0.0
        %1213 = vmatpush1.msra.mxu0 0.0
        %1214 = vmatprep.subr.mxu0 0.0
        %1215 = vmatpush1.msra.mxu0 0.0
        %1216 = vmatprep.subr.mxu0 0.0
        %1217 = vmatpush1.msra.mxu0 0.0
        %1218 = vmatprep.subr.mxu0 0.0
        %1219 = vmatpush1.msra.mxu0 0.0
        %1220 = vmatprep.subr.mxu0 0.0
        %1221 = vmatpush1.msra.mxu0 0.0
        %1222 = vmatprep.subr.mxu0 0.0
        %1223 = vmatpush1.msra.mxu0 0.0
        %1224 = vmatprep.subr.mxu0 0.0
        %1225 = vmatpush1.msra.mxu0 0.0
        %1226 = vmatprep.subr.mxu0 0.0
        %1227 = vmatpush1.msra.mxu0 0.0
        %1228 = vmatprep.subr.mxu0 0.0
        %1229 = vmatpush1.msra.mxu0 0.0
        %1230 = vmatprep.subr.mxu0 0.0
        %1231 = vmatpush1.msra.mxu0 %v554
        %1232 = vmatprep.subr.mxu0 0.0
        %1233 = vmatpush1.msra.mxu0 %v549
        %1234 = vmatprep.subr.mxu0 0.0
        %1235 = vmatpush2.msra.mxu0 0.0
        %1236 = vmatprep.subr.mxu0 0.0
        %1237 = vmatpush2.msra.mxu0 0.0
        %1238 = vmatprep.subr.mxu0 0.0
        %1239 = vmatpush2.msra.mxu0 0.0
        %1240 = vmatprep.subr.mxu0 0.0
        %1241 = vmatpush2.msra.mxu0 0.0
        %1242 = vmatprep.subr.mxu0 0.0
        %1243 = vmatpush2.msra.mxu0 0.0
        %1244 = vmatprep.subr.mxu0 0.0
        %1245 = vmatpush2.msra.mxu0 0.0
        %1246 = vmatprep.subr.mxu0 0.0
        %1247 = vmatpush2.msra.mxu0 0.0
        %1248 = vmatprep.subr.mxu0 0.0
        %1249 = vmatpush2.msra.mxu0 0.0
        %1250 = vmatprep.subr.mxu0 0.0
        %1251 = vmatpush2.msra.mxu0 0.0
        %1252 = vmatprep.subr.mxu0 0.0
        %1253 = vmatpush2.msra.mxu0 0.0
        %1254 = vmatprep.subr.mxu0 0.0
        %1255 = vmatpush2.msra.mxu0 0.0
        %1256 = vmatprep.subr.mxu0 0.0
        %1257 = vmatpush2.msra.mxu0 0.0
        %1258 = vmatprep.subr.mxu0 0.0
        %1259 = vmatpush2.msra.mxu0 0.0
        %1260 = vmatprep.subr.mxu0 0.0
        %1261 = vmatpush2.msra.mxu0 0.0
        %1262 = vmatprep.subr.mxu0 0.0
        %1263 = vmatpush2.msra.mxu0 0.0
        %1264 = vmatprep.subr.mxu0 0.0
        %1265 = vmatpush2.msra.mxu0 0.0
        %1266 = vmatprep.mubr.f32.mxu0 0.0
        %1267 = vmatmul.mubr.f32.gmra.mxu0 %v1197
        %v1268 = vpop.f32.mrf.mxu0
        %v1269 = vadd.f32 0.0, %v1268
        %v1270 = vpop.f32.mrf.mxu0
        %1271 = vmatprep.mubr.f32.mxu0 0.0
        %1272 = vmatmul.mubr.f32.gmra.mxu0 %v1200
        %v1273 = vpop.f32.mrf.mxu0
        %v1274 = vadd.f32 0.0, %v1273
        %v1275 = vpop.f32.mrf.mxu0
        %1276 = vdwg.mxu0
        %v1278 = vsel %vm1026, %v1111, 0
        %v1281 = vsel %vm1026, %v1112, 0
        %1283 = vmatprep.subr.mxu0 0.0
        %1284 = vmatpush1.msra.mxu0 0.0
        %1285 = vmatprep.subr.mxu0 0.0
        %1286 = vmatpush1.msra.mxu0 0.0
        %1287 = vmatprep.subr.mxu0 0.0
        %1288 = vmatpush1.msra.mxu0 0.0
        %1289 = vmatprep.subr.mxu0 0.0
        %1290 = vmatpush1.msra.mxu0 0.0
        %1291 = vmatprep.subr.mxu0 0.0
        %1292 = vmatpush1.msra.mxu0 0.0
        %1293 = vmatprep.subr.mxu0 0.0
        %1294 = vmatpush1.msra.mxu0 0.0
        %1295 = vmatprep.subr.mxu0 0.0
        %1296 = vmatpush1.msra.mxu0 0.0
        %1297 = vmatprep.subr.mxu0 0.0
        %1298 = vmatpush1.msra.mxu0 0.0
        %1299 = vmatprep.subr.mxu0 0.0
        %1300 = vmatpush1.msra.mxu0 0.0
        %1301 = vmatprep.subr.mxu0 0.0
        %1302 = vmatpush1.msra.mxu0 0.0
        %1303 = vmatprep.subr.mxu0 0.0
        %1304 = vmatpush1.msra.mxu0 0.0
        %1305 = vmatprep.subr.mxu0 0.0
        %1306 = vmatpush1.msra.mxu0 0.0
        %1307 = vmatprep.subr.mxu0 0.0
        %1308 = vmatpush1.msra.mxu0 0.0
        %1309 = vmatprep.subr.mxu0 0.0
        %1310 = vmatpush1.msra.mxu0 0.0
        %1311 = vmatprep.subr.mxu0 0.0
        %1312 = vmatpush1.msra.mxu0 %v564
        %1313 = vmatprep.subr.mxu0 0.0
        %1314 = vmatpush1.msra.mxu0 %v559
        %1315 = vmatprep.subr.mxu0 0.0
        %1316 = vmatpush2.msra.mxu0 0.0
        %1317 = vmatprep.subr.mxu0 0.0
        %1318 = vmatpush2.msra.mxu0 0.0
        %1319 = vmatprep.subr.mxu0 0.0
        %1320 = vmatpush2.msra.mxu0 0.0
        %1321 = vmatprep.subr.mxu0 0.0
        %1322 = vmatpush2.msra.mxu0 0.0
        %1323 = vmatprep.subr.mxu0 0.0
        %1324 = vmatpush2.msra.mxu0 0.0
        %1325 = vmatprep.subr.mxu0 0.0
        %1326 = vmatpush2.msra.mxu0 0.0
        %1327 = vmatprep.subr.mxu0 0.0
        %1328 = vmatpush2.msra.mxu0 0.0
        %1329 = vmatprep.subr.mxu0 0.0
        %1330 = vmatpush2.msra.mxu0 0.0
        %1331 = vmatprep.subr.mxu0 0.0
        %1332 = vmatpush2.msra.mxu0 0.0
        %1333 = vmatprep.subr.mxu0 0.0
        %1334 = vmatpush2.msra.mxu0 0.0
        %1335 = vmatprep.subr.mxu0 0.0
        %1336 = vmatpush2.msra.mxu0 0.0
        %1337 = vmatprep.subr.mxu0 0.0
        %1338 = vmatpush2.msra.mxu0 0.0
        %1339 = vmatprep.subr.mxu0 0.0
        %1340 = vmatpush2.msra.mxu0 0.0
        %1341 = vmatprep.subr.mxu0 0.0
        %1342 = vmatpush2.msra.mxu0 0.0
        %1343 = vmatprep.subr.mxu0 0.0
        %1344 = vmatpush2.msra.mxu0 0.0
        %1345 = vmatprep.subr.mxu0 0.0
        %1346 = vmatpush2.msra.mxu0 0.0
        %1347 = vmatprep.mubr.f32.mxu0 0.0
        %1348 = vmatmul.mubr.f32.gmra.mxu0 %v1278
        %v1349 = vpop.f32.mrf.mxu0
        %v1350 = vadd.f32 0.0, %v1349
        %v1351 = vpop.f32.mrf.mxu0
        %1352 = vmatprep.mubr.f32.mxu0 0.0
        %1353 = vmatmul.mubr.f32.gmra.mxu0 %v1281
        %v1354 = vpop.f32.mrf.mxu0
        %v1355 = vadd.f32 0.0, %v1354
        %v1356 = vpop.f32.mrf.mxu0
        %1357 = vdwg.mxu0
        %v1359 = vsel %vm1026, %v1113, 0
        %v1362 = vsel %vm1026, %v1114, 0
        %1364 = vmatprep.subr.mxu0 0.0
        %1365 = vmatpush1.msra.mxu0 0.0
        %1366 = vmatprep.subr.mxu0 0.0
        %1367 = vmatpush1.msra.mxu0 0.0
        %1368 = vmatprep.subr.mxu0 0.0
        %1369 = vmatpush1.msra.mxu0 0.0
        %1370 = vmatprep.subr.mxu0 0.0
        %1371 = vmatpush1.msra.mxu0 0.0
        %1372 = vmatprep.subr.mxu0 0.0
        %1373 = vmatpush1.msra.mxu0 0.0
        %1374 = vmatprep.subr.mxu0 0.0
        %1375 = vmatpush1.msra.mxu0 0.0
        %1376 = vmatprep.subr.mxu0 0.0
        %1377 = vmatpush1.msra.mxu0 0.0
        %1378 = vmatprep.subr.mxu0 0.0
        %1379 = vmatpush1.msra.mxu0 0.0
        %1380 = vmatprep.subr.mxu0 0.0
        %1381 = vmatpush1.msra.mxu0 0.0
        %1382 = vmatprep.subr.mxu0 0.0
        %1383 = vmatpush1.msra.mxu0 0.0
        %1384 = vmatprep.subr.mxu0 0.0
        %1385 = vmatpush1.msra.mxu0 0.0
        %1386 = vmatprep.subr.mxu0 0.0
        %1387 = vmatpush1.msra.mxu0 0.0
        %1388 = vmatprep.subr.mxu0 0.0
        %1389 = vmatpush1.msra.mxu0 0.0
        %1390 = vmatprep.subr.mxu0 0.0
        %1391 = vmatpush1.msra.mxu0 0.0
        %1392 = vmatprep.subr.mxu0 0.0
        %1393 = vmatpush1.msra.mxu0 %v574
        %1394 = vmatprep.subr.mxu0 0.0
        %1395 = vmatpush1.msra.mxu0 %v569
        %1396 = vmatprep.subr.mxu0 0.0
        %1397 = vmatpush2.msra.mxu0 0.0
        %1398 = vmatprep.subr.mxu0 0.0
        %1399 = vmatpush2.msra.mxu0 0.0
        %1400 = vmatprep.subr.mxu0 0.0
        %1401 = vmatpush2.msra.mxu0 0.0
        %1402 = vmatprep.subr.mxu0 0.0
        %1403 = vmatpush2.msra.mxu0 0.0
        %1404 = vmatprep.subr.mxu0 0.0
        %1405 = vmatpush2.msra.mxu0 0.0
        %1406 = vmatprep.subr.mxu0 0.0
        %1407 = vmatpush2.msra.mxu0 0.0
        %1408 = vmatprep.subr.mxu0 0.0
        %1409 = vmatpush2.msra.mxu0 0.0
        %1410 = vmatprep.subr.mxu0 0.0
        %1411 = vmatpush2.msra.mxu0 0.0
        %1412 = vmatprep.subr.mxu0 0.0
        %1413 = vmatpush2.msra.mxu0 0.0
        %1414 = vmatprep.subr.mxu0 0.0
        %1415 = vmatpush2.msra.mxu0 0.0
        %1416 = vmatprep.subr.mxu0 0.0
        %1417 = vmatpush2.msra.mxu0 0.0
        %1418 = vmatprep.subr.mxu0 0.0
        %1419 = vmatpush2.msra.mxu0 0.0
        %1420 = vmatprep.subr.mxu0 0.0
        %1421 = vmatpush2.msra.mxu0 0.0
        %1422 = vmatprep.subr.mxu0 0.0
        %1423 = vmatpush2.msra.mxu0 0.0
        %1424 = vmatprep.subr.mxu0 0.0
        %1425 = vmatpush2.msra.mxu0 0.0
        %1426 = vmatprep.subr.mxu0 0.0
        %1427 = vmatpush2.msra.mxu0 0.0
        %1428 = vmatprep.mubr.f32.mxu0 0.0
        %1429 = vmatmul.mubr.f32.gmra.mxu0 %v1359
        %v1430 = vpop.f32.mrf.mxu0
        %v1431 = vadd.f32 0.0, %v1430
        %v1432 = vpop.f32.mrf.mxu0
        %1433 = vmatprep.mubr.f32.mxu0 0.0
        %1434 = vmatmul.mubr.f32.gmra.mxu0 %v1362
        %v1435 = vpop.f32.mrf.mxu0
        %v1436 = vadd.f32 0.0, %v1435
        %v1437 = vpop.f32.mrf.mxu0
        %1438 = vdwg.mxu0
        %1439 = vrot.lane.b32.xlu0 %v426, 96
        %v1440 = vpop.permute.xlu0 %1439
        %1441 = vrot.lane.b32.xlu0 %v432, 96
        %v1442 = vpop.permute.xlu0 %1441
        %1443 = vrot.lane.b32.xlu0 %v428, 96
        %v1444 = vpop.permute.xlu0 %1443
        %1445 = vrot.lane.b32.xlu0 %v434, 96
        %v1446 = vpop.permute.xlu0 %1445
        %v1447 = vsel %vm669, %v1440, 0
        %v1449 = vsel %vm669, %v1442, 0
        %v1451 = vsel %vm669, %v1444, 0
        %v1453 = vsel %vm669, %v1446, 0
        %1455 = vmatprep.subr.mxu0 0.0
        %1456 = vmatpush1.xpose.msra.mxu0 0.0
        %1457 = vmatprep.subr.mxu0 0.0
        %1458 = vmatpush1.xpose.msra.mxu0 0.0
        %1459 = vmatprep.subr.mxu0 0.0
        %1460 = vmatpush1.xpose.msra.mxu0 0.0
        %1461 = vmatprep.subr.mxu0 0.0
        %1462 = vmatpush1.xpose.msra.mxu0 0.0
        %1463 = vmatprep.subr.mxu0 0.0
        %1464 = vmatpush1.xpose.msra.mxu0 0.0
        %1465 = vmatprep.subr.mxu0 0.0
        %1466 = vmatpush1.xpose.msra.mxu0 0.0
        %1467 = vmatprep.subr.mxu0 0.0
        %1468 = vmatpush1.xpose.msra.mxu0 0.0
        %1469 = vmatprep.subr.mxu0 0.0
        %1470 = vmatpush1.xpose.msra.mxu0 0.0
        %1471 = vmatprep.subr.mxu0 0.0
        %1472 = vmatpush1.xpose.msra.mxu0 0.0
        %1473 = vmatprep.subr.mxu0 0.0
        %1474 = vmatpush1.xpose.msra.mxu0 0.0
        %1475 = vmatprep.subr.mxu0 0.0
        %1476 = vmatpush1.xpose.msra.mxu0 0.0
        %1477 = vmatprep.subr.mxu0 0.0
        %1478 = vmatpush1.xpose.msra.mxu0 0.0
        %1479 = vmatprep.subr.mxu0 0.0
        %1480 = vmatpush1.xpose.msra.mxu0 0.0
        %1481 = vmatprep.subr.mxu0 0.0
        %1482 = vmatpush1.xpose.msra.mxu0 0.0
        %1483 = vmatprep.subr.mxu0 0.0
        %1484 = vmatpush1.xpose.msra.mxu0 %v1453
        %1485 = vmatprep.subr.mxu0 0.0
        %1486 = vmatpush1.xpose.msra.mxu0 %v1451
        %1487 = vmatprep.subr.mxu0 0.0
        %1488 = vmatpush2.xpose.msra.mxu0 0.0
        %1489 = vmatprep.subr.mxu0 0.0
        %1490 = vmatpush2.xpose.msra.mxu0 0.0
        %1491 = vmatprep.subr.mxu0 0.0
        %1492 = vmatpush2.xpose.msra.mxu0 0.0
        %1493 = vmatprep.subr.mxu0 0.0
        %1494 = vmatpush2.xpose.msra.mxu0 0.0
        %1495 = vmatprep.subr.mxu0 0.0
        %1496 = vmatpush2.xpose.msra.mxu0 0.0
        %1497 = vmatprep.subr.mxu0 0.0
        %1498 = vmatpush2.xpose.msra.mxu0 0.0
        %1499 = vmatprep.subr.mxu0 0.0
        %1500 = vmatpush2.xpose.msra.mxu0 0.0
        %1501 = vmatprep.subr.mxu0 0.0
        %1502 = vmatpush2.xpose.msra.mxu0 0.0
        %1503 = vmatprep.subr.mxu0 0.0
        %1504 = vmatpush2.xpose.msra.mxu0 0.0
        %1505 = vmatprep.subr.mxu0 0.0
        %1506 = vmatpush2.xpose.msra.mxu0 0.0
        %1507 = vmatprep.subr.mxu0 0.0
        %1508 = vmatpush2.xpose.msra.mxu0 0.0
        %1509 = vmatprep.subr.mxu0 0.0
        %1510 = vmatpush2.xpose.msra.mxu0 0.0
        %1511 = vmatprep.subr.mxu0 0.0
        %1512 = vmatpush2.xpose.msra.mxu0 0.0
        %1513 = vmatprep.subr.mxu0 0.0
        %1514 = vmatpush2.xpose.msra.mxu0 0.0
        %1515 = vmatprep.subr.mxu0 0.0
        %1516 = vmatpush2.xpose.msra.mxu0 0.0
        %1517 = vmatprep.subr.mxu0 0.0
        %1518 = vmatpush2.xpose.msra.mxu0 0.0
        %1519 = vmatprep.mubr.f32.mxu0 0.0
        %1520 = vmatmul.mubr.f32.gmra.mxu0 %v1447
        %v1521 = vpop.f32.mrf.mxu0
        %v1522 = vadd.f32 0.0, %v1521
        %v1523 = vpop.f32.mrf.mxu0
        %1524 = vmatprep.mubr.f32.mxu0 0.0
        %1525 = vmatmul.mubr.f32.gmra.mxu0 %v1449
        %v1526 = vpop.f32.mrf.mxu0
        %v1527 = vadd.f32 0.0, %v1526
        %v1528 = vpop.f32.mrf.mxu0
        %1529 = vdwg.mxu0
        %1530 = vrot.lane.b32.xlu0 %v438, 96
        %v1531 = vpop.permute.xlu0 %1530
        %1532 = vrot.lane.b32.xlu0 %v444, 96
        %v1533 = vpop.permute.xlu0 %1532
        %1534 = vrot.lane.b32.xlu0 %v440, 96
        %v1535 = vpop.permute.xlu0 %1534
        %1536 = vrot.lane.b32.xlu0 %v446, 96
        %v1537 = vpop.permute.xlu0 %1536
        %v1538 = vsel %vm669, %v1531, 0
        %v1540 = vsel %vm669, %v1533, 0
        %v1542 = vsel %vm669, %v1535, 0
        %v1544 = vsel %vm669, %v1537, 0
        %1546 = vmatprep.subr.mxu0 0.0
        %1547 = vmatpush1.xpose.msra.mxu0 0.0
        %1548 = vmatprep.subr.mxu0 0.0
        %1549 = vmatpush1.xpose.msra.mxu0 0.0
        %1550 = vmatprep.subr.mxu0 0.0
        %1551 = vmatpush1.xpose.msra.mxu0 0.0
        %1552 = vmatprep.subr.mxu0 0.0
        %1553 = vmatpush1.xpose.msra.mxu0 0.0
        %1554 = vmatprep.subr.mxu0 0.0
        %1555 = vmatpush1.xpose.msra.mxu0 0.0
        %1556 = vmatprep.subr.mxu0 0.0
        %1557 = vmatpush1.xpose.msra.mxu0 0.0
        %1558 = vmatprep.subr.mxu0 0.0
        %1559 = vmatpush1.xpose.msra.mxu0 0.0
        %1560 = vmatprep.subr.mxu0 0.0
        %1561 = vmatpush1.xpose.msra.mxu0 0.0
        %1562 = vmatprep.subr.mxu0 0.0
        %1563 = vmatpush1.xpose.msra.mxu0 0.0
        %1564 = vmatprep.subr.mxu0 0.0
        %1565 = vmatpush1.xpose.msra.mxu0 0.0
        %1566 = vmatprep.subr.mxu0 0.0
        %1567 = vmatpush1.xpose.msra.mxu0 0.0
        %1568 = vmatprep.subr.mxu0 0.0
        %1569 = vmatpush1.xpose.msra.mxu0 0.0
        %1570 = vmatprep.subr.mxu0 0.0
        %1571 = vmatpush1.xpose.msra.mxu0 0.0
        %1572 = vmatprep.subr.mxu0 0.0
        %1573 = vmatpush1.xpose.msra.mxu0 0.0
        %1574 = vmatprep.subr.mxu0 0.0
        %1575 = vmatpush1.xpose.msra.mxu0 %v1544
        %1576 = vmatprep.subr.mxu0 0.0
        %1577 = vmatpush1.xpose.msra.mxu0 %v1542
        %1578 = vmatprep.subr.mxu0 0.0
        %1579 = vmatpush2.xpose.msra.mxu0 0.0
        %1580 = vmatprep.subr.mxu0 0.0
        %1581 = vmatpush2.xpose.msra.mxu0 0.0
        %1582 = vmatprep.subr.mxu0 0.0
        %1583 = vmatpush2.xpose.msra.mxu0 0.0
        %1584 = vmatprep.subr.mxu0 0.0
        %1585 = vmatpush2.xpose.msra.mxu0 0.0
        %1586 = vmatprep.subr.mxu0 0.0
        %1587 = vmatpush2.xpose.msra.mxu0 0.0
        %1588 = vmatprep.subr.mxu0 0.0
        %1589 = vmatpush2.xpose.msra.mxu0 0.0
        %1590 = vmatprep.subr.mxu0 0.0
        %1591 = vmatpush2.xpose.msra.mxu0 0.0
        %1592 = vmatprep.subr.mxu0 0.0
        %1593 = vmatpush2.xpose.msra.mxu0 0.0
        %1594 = vmatprep.subr.mxu0 0.0
        %1595 = vmatpush2.xpose.msra.mxu0 0.0
        %1596 = vmatprep.subr.mxu0 0.0
        %1597 = vmatpush2.xpose.msra.mxu0 0.0
        %1598 = vmatprep.subr.mxu0 0.0
        %1599 = vmatpush2.xpose.msra.mxu0 0.0
        %1600 = vmatprep.subr.mxu0 0.0
        %1601 = vmatpush2.xpose.msra.mxu0 0.0
        %1602 = vmatprep.subr.mxu0 0.0
        %1603 = vmatpush2.xpose.msra.mxu0 0.0
        %1604 = vmatprep.subr.mxu0 0.0
        %1605 = vmatpush2.xpose.msra.mxu0 0.0
        %1606 = vmatprep.subr.mxu0 0.0
        %1607 = vmatpush2.xpose.msra.mxu0 0.0
        %1608 = vmatprep.subr.mxu0 0.0
        %1609 = vmatpush2.xpose.msra.mxu0 0.0
        %1610 = vmatprep.mubr.f32.mxu0 0.0
        %1611 = vmatmul.mubr.f32.gmra.mxu0 %v1538
        %v1612 = vpop.f32.mrf.mxu0
        %v1613 = vadd.f32 0.0, %v1612
        %v1614 = vpop.f32.mrf.mxu0
        %1615 = vmatprep.mubr.f32.mxu0 0.0
        %1616 = vmatmul.mubr.f32.gmra.mxu0 %v1540
        %v1617 = vpop.f32.mrf.mxu0
        %v1618 = vadd.f32 0.0, %v1617
        %v1619 = vpop.f32.mrf.mxu0
        %1620 = vdwg.mxu0
        %1621 = vrot.lane.b32.xlu0 %v450, 96
        %v1622 = vpop.permute.xlu0 %1621
        %1623 = vrot.lane.b32.xlu0 %v456, 96
        %v1624 = vpop.permute.xlu0 %1623
        %1625 = vrot.lane.b32.xlu0 %v452, 96
        %v1626 = vpop.permute.xlu0 %1625
        %1627 = vrot.lane.b32.xlu0 %v458, 96
        %v1628 = vpop.permute.xlu0 %1627
        %v1629 = vsel %vm669, %v1622, 0
        %v1631 = vsel %vm669, %v1624, 0
        %v1633 = vsel %vm669, %v1626, 0
        %v1635 = vsel %vm669, %v1628, 0
        %1637 = vmatprep.subr.mxu0 0.0
        %1638 = vmatpush1.xpose.msra.mxu0 0.0
        %1639 = vmatprep.subr.mxu0 0.0
        %1640 = vmatpush1.xpose.msra.mxu0 0.0
        %1641 = vmatprep.subr.mxu0 0.0
        %1642 = vmatpush1.xpose.msra.mxu0 0.0
        %1643 = vmatprep.subr.mxu0 0.0
        %1644 = vmatpush1.xpose.msra.mxu0 0.0
        %1645 = vmatprep.subr.mxu0 0.0
        %1646 = vmatpush1.xpose.msra.mxu0 0.0
        %1647 = vmatprep.subr.mxu0 0.0
        %1648 = vmatpush1.xpose.msra.mxu0 0.0
        %1649 = vmatprep.subr.mxu0 0.0
        %1650 = vmatpush1.xpose.msra.mxu0 0.0
        %1651 = vmatprep.subr.mxu0 0.0
        %1652 = vmatpush1.xpose.msra.mxu0 0.0
        %1653 = vmatprep.subr.mxu0 0.0
        %1654 = vmatpush1.xpose.msra.mxu0 0.0
        %1655 = vmatprep.subr.mxu0 0.0
        %1656 = vmatpush1.xpose.msra.mxu0 0.0
        %1657 = vmatprep.subr.mxu0 0.0
        %1658 = vmatpush1.xpose.msra.mxu0 0.0
        %1659 = vmatprep.subr.mxu0 0.0
        %1660 = vmatpush1.xpose.msra.mxu0 0.0
        %1661 = vmatprep.subr.mxu0 0.0
        %1662 = vmatpush1.xpose.msra.mxu0 0.0
        %1663 = vmatprep.subr.mxu0 0.0
        %1664 = vmatpush1.xpose.msra.mxu0 0.0
        %1665 = vmatprep.subr.mxu0 0.0
        %1666 = vmatpush1.xpose.msra.mxu0 %v1635
        %1667 = vmatprep.subr.mxu0 0.0
        %1668 = vmatpush1.xpose.msra.mxu0 %v1633
        %1669 = vmatprep.subr.mxu0 0.0
        %1670 = vmatpush2.xpose.msra.mxu0 0.0
        %1671 = vmatprep.subr.mxu0 0.0
        %1672 = vmatpush2.xpose.msra.mxu0 0.0
        %1673 = vmatprep.subr.mxu0 0.0
        %1674 = vmatpush2.xpose.msra.mxu0 0.0
        %1675 = vmatprep.subr.mxu0 0.0
        %1676 = vmatpush2.xpose.msra.mxu0 0.0
        %1677 = vmatprep.subr.mxu0 0.0
        %1678 = vmatpush2.xpose.msra.mxu0 0.0
        %1679 = vmatprep.subr.mxu0 0.0
        %1680 = vmatpush2.xpose.msra.mxu0 0.0
        %1681 = vmatprep.subr.mxu0 0.0
        %1682 = vmatpush2.xpose.msra.mxu0 0.0
        %1683 = vmatprep.subr.mxu0 0.0
        %1684 = vmatpush2.xpose.msra.mxu0 0.0
        %1685 = vmatprep.subr.mxu0 0.0
        %1686 = vmatpush2.xpose.msra.mxu0 0.0
        %1687 = vmatprep.subr.mxu0 0.0
        %1688 = vmatpush2.xpose.msra.mxu0 0.0
        %1689 = vmatprep.subr.mxu0 0.0
        %1690 = vmatpush2.xpose.msra.mxu0 0.0
        %1691 = vmatprep.subr.mxu0 0.0
        %1692 = vmatpush2.xpose.msra.mxu0 0.0
        %1693 = vmatprep.subr.mxu0 0.0
        %1694 = vmatpush2.xpose.msra.mxu0 0.0
        %1695 = vmatprep.subr.mxu0 0.0
        %1696 = vmatpush2.xpose.msra.mxu0 0.0
        %1697 = vmatprep.subr.mxu0 0.0
        %1698 = vmatpush2.xpose.msra.mxu0 0.0
        %1699 = vmatprep.subr.mxu0 0.0
        %1700 = vmatpush2.xpose.msra.mxu0 0.0
        %1701 = vmatprep.mubr.f32.mxu0 0.0
        %1702 = vmatmul.mubr.f32.gmra.mxu0 %v1629
        %v1703 = vpop.f32.mrf.mxu0
        %v1704 = vadd.f32 0.0, %v1703
        %v1705 = vpop.f32.mrf.mxu0
        %1706 = vmatprep.mubr.f32.mxu0 0.0
        %1707 = vmatmul.mubr.f32.gmra.mxu0 %v1631
        %v1708 = vpop.f32.mrf.mxu0
        %v1709 = vadd.f32 0.0, %v1708
        %v1710 = vpop.f32.mrf.mxu0
        %1711 = vdwg.mxu0
        %1712 = vrot.lane.b32.xlu0 %v462, 96
        %v1713 = vpop.permute.xlu0 %1712
        %1714 = vrot.lane.b32.xlu0 %v468, 96
        %v1715 = vpop.permute.xlu0 %1714
        %1716 = vrot.lane.b32.xlu0 %v464, 96
        %v1717 = vpop.permute.xlu0 %1716
        %1718 = vrot.lane.b32.xlu0 %v470, 96
        %v1719 = vpop.permute.xlu0 %1718
        %v1720 = vsel %vm669, %v1713, 0
        %v1722 = vsel %vm669, %v1715, 0
        %v1724 = vsel %vm669, %v1717, 0
        %v1726 = vsel %vm669, %v1719, 0
        %1728 = vmatprep.subr.mxu0 0.0
        %1729 = vmatpush1.xpose.msra.mxu0 0.0
        %1730 = vmatprep.subr.mxu0 0.0
        %1731 = vmatpush1.xpose.msra.mxu0 0.0
        %1732 = vmatprep.subr.mxu0 0.0
        %1733 = vmatpush1.xpose.msra.mxu0 0.0
        %1734 = vmatprep.subr.mxu0 0.0
        %1735 = vmatpush1.xpose.msra.mxu0 0.0
        %1736 = vmatprep.subr.mxu0 0.0
        %1737 = vmatpush1.xpose.msra.mxu0 0.0
        %1738 = vmatprep.subr.mxu0 0.0
        %1739 = vmatpush1.xpose.msra.mxu0 0.0
        %1740 = vmatprep.subr.mxu0 0.0
        %1741 = vmatpush1.xpose.msra.mxu0 0.0
        %1742 = vmatprep.subr.mxu0 0.0
        %1743 = vmatpush1.xpose.msra.mxu0 0.0
        %1744 = vmatprep.subr.mxu0 0.0
        %1745 = vmatpush1.xpose.msra.mxu0 0.0
        %1746 = vmatprep.subr.mxu0 0.0
        %1747 = vmatpush1.xpose.msra.mxu0 0.0
        %1748 = vmatprep.subr.mxu0 0.0
        %1749 = vmatpush1.xpose.msra.mxu0 0.0
        %1750 = vmatprep.subr.mxu0 0.0
        %1751 = vmatpush1.xpose.msra.mxu0 0.0
        %1752 = vmatprep.subr.mxu0 0.0
        %1753 = vmatpush1.xpose.msra.mxu0 0.0
        %1754 = vmatprep.subr.mxu0 0.0
        %1755 = vmatpush1.xpose.msra.mxu0 0.0
        %1756 = vmatprep.subr.mxu0 0.0
        %1757 = vmatpush1.xpose.msra.mxu0 %v1726
        %1758 = vmatprep.subr.mxu0 0.0
        %1759 = vmatpush1.xpose.msra.mxu0 %v1724
        %1760 = vmatprep.subr.mxu0 0.0
        %1761 = vmatpush2.xpose.msra.mxu0 0.0
        %1762 = vmatprep.subr.mxu0 0.0
        %1763 = vmatpush2.xpose.msra.mxu0 0.0
        %1764 = vmatprep.subr.mxu0 0.0
        %1765 = vmatpush2.xpose.msra.mxu0 0.0
        %1766 = vmatprep.subr.mxu0 0.0
        %1767 = vmatpush2.xpose.msra.mxu0 0.0
        %1768 = vmatprep.subr.mxu0 0.0
        %1769 = vmatpush2.xpose.msra.mxu0 0.0
        %1770 = vmatprep.subr.mxu0 0.0
        %1771 = vmatpush2.xpose.msra.mxu0 0.0
        %1772 = vmatprep.subr.mxu0 0.0
        %1773 = vmatpush2.xpose.msra.mxu0 0.0
        %1774 = vmatprep.subr.mxu0 0.0
        %1775 = vmatpush2.xpose.msra.mxu0 0.0
        %1776 = vmatprep.subr.mxu0 0.0
        %1777 = vmatpush2.xpose.msra.mxu0 0.0
        %1778 = vmatprep.subr.mxu0 0.0
        %1779 = vmatpush2.xpose.msra.mxu0 0.0
        %1780 = vmatprep.subr.mxu0 0.0
        %1781 = vmatpush2.xpose.msra.mxu0 0.0
        %1782 = vmatprep.subr.mxu0 0.0
        %1783 = vmatpush2.xpose.msra.mxu0 0.0
        %1784 = vmatprep.subr.mxu0 0.0
        %1785 = vmatpush2.xpose.msra.mxu0 0.0
        %1786 = vmatprep.subr.mxu0 0.0
        %1787 = vmatpush2.xpose.msra.mxu0 0.0
        %1788 = vmatprep.subr.mxu0 0.0
        %1789 = vmatpush2.xpose.msra.mxu0 0.0
        %1790 = vmatprep.subr.mxu0 0.0
        %1791 = vmatpush2.xpose.msra.mxu0 0.0
        %1792 = vmatprep.mubr.f32.mxu0 0.0
        %1793 = vmatmul.mubr.f32.gmra.mxu0 %v1720
        %v1794 = vpop.f32.mrf.mxu0
        %v1795 = vadd.f32 0.0, %v1794
        %v1796 = vpop.f32.mrf.mxu0
        %1797 = vmatprep.mubr.f32.mxu0 0.0
        %1798 = vmatmul.mubr.f32.gmra.mxu0 %v1722
        %v1799 = vpop.f32.mrf.mxu0
        %v1800 = vadd.f32 0.0, %v1799
        %v1801 = vpop.f32.mrf.mxu0
        %1802 = vdwg.mxu0
        %v1803 = vsel %vm661, %v1522, -3.4028235e+38
        %v1804 = vsel %vm662, %v1527, -3.4028235e+38
        %v1805 = vsel %vm663, %v1613, -3.4028235e+38
        %v1806 = vsel %vm664, %v1618, -3.4028235e+38
        %v1807 = vsel %vm665, %v1704, -3.4028235e+38
        %v1808 = vsel %vm666, %v1709, -3.4028235e+38
        %v1809 = vsel %vm667, %v1795, -3.4028235e+38
        %v1810 = vsel %vm668, %v1800, -3.4028235e+38
        %v1811 = vsel %vm1026, %v1803, -inf
        %1812 = vmax.xlane.f32.xlu0 %v1811
        %v1813 = vpop.xlane.xlu0 %1812
        %v1814 = vsel %vm1026, %v1804, -inf
        %1815 = vmax.xlane.f32.xlu0 %v1814
        %v1816 = vpop.xlane.xlu0 %1815
        %v1817 = vsel %vm1026, %v1805, -inf
        %1818 = vmax.xlane.f32.xlu0 %v1817
        %v1819 = vpop.xlane.xlu0 %1818
        %v1820 = vsel %vm1026, %v1806, -inf
        %1821 = vmax.xlane.f32.xlu0 %v1820
        %v1822 = vpop.xlane.xlu0 %1821
        %v1823 = vsel %vm1026, %v1807, -inf
        %1824 = vmax.xlane.f32.xlu0 %v1823
        %v1825 = vpop.xlane.xlu0 %1824
        %v1826 = vsel %vm1026, %v1808, -inf
        %1827 = vmax.xlane.f32.xlu0 %v1826
        %v1828 = vpop.xlane.xlu0 %1827
        %v1829 = vsel %vm1026, %v1809, -inf
        %1830 = vmax.xlane.f32.xlu0 %v1829
        %v1831 = vpop.xlane.xlu0 %1830
        %v1832 = vsel %vm1026, %v1810, -inf
        %1833 = vmax.xlane.f32.xlu0 %v1832
        %v1834 = vpop.xlane.xlu0 %1833
        %v1835 = vsub.f32 %v1803, %v1813
        %v1836 = vsub.f32 %v1804, %v1816
        %v1837 = vsub.f32 %v1805, %v1819
        %v1838 = vsub.f32 %v1806, %v1822
        %v1839 = vsub.f32 %v1807, %v1825
        %v1840 = vsub.f32 %v1808, %v1828
        %v1841 = vsub.f32 %v1809, %v1831
        %v1842 = vsub.f32 %v1810, %v1834
        %v1843 = vmul.f32 %v1835, 1.442695
        %v1844 = vpow.pop %v1843
        %v1845 = vmul.f32 %v1836, 1.442695
        %v1846 = vpow.pop %v1845
        %v1847 = vmul.f32 %v1837, 1.442695
        %v1848 = vpow.pop %v1847
        %v1849 = vmul.f32 %v1838, 1.442695
        %v1850 = vpow.pop %v1849
        %v1851 = vmul.f32 %v1839, 1.442695
        %v1852 = vpow.pop %v1851
        %v1853 = vmul.f32 %v1840, 1.442695
        %v1854 = vpow.pop %v1853
        %v1855 = vmul.f32 %v1841, 1.442695
        %v1856 = vpow.pop %v1855
        %v1857 = vmul.f32 %v1842, 1.442695
        %v1858 = vpow.pop %v1857
        %v1859 = vsel %vm1026, %v1844, 0.0
        %1860 = vadd.xlane.f32.xlu0 %v1859
        %v1861 = vpop.xlane.xlu0 %1860
        %v1862 = vsel %vm1026, %v1846, 0.0
        %1863 = vadd.xlane.f32.xlu0 %v1862
        %v1864 = vpop.xlane.xlu0 %1863
        %v1865 = vsel %vm1026, %v1848, 0.0
        %1866 = vadd.xlane.f32.xlu0 %v1865
        %v1867 = vpop.xlane.xlu0 %1866
        %v1868 = vsel %vm1026, %v1850, 0.0
        %1869 = vadd.xlane.f32.xlu0 %v1868
        %v1870 = vpop.xlane.xlu0 %1869
        %v1871 = vsel %vm1026, %v1852, 0.0
        %1872 = vadd.xlane.f32.xlu0 %v1871
        %v1873 = vpop.xlane.xlu0 %1872
        %v1874 = vsel %vm1026, %v1854, 0.0
        %1875 = vadd.xlane.f32.xlu0 %v1874
        %v1876 = vpop.xlane.xlu0 %1875
        %v1877 = vsel %vm1026, %v1856, 0.0
        %1878 = vadd.xlane.f32.xlu0 %v1877
        %v1879 = vpop.xlane.xlu0 %1878
        %v1880 = vsel %vm1026, %v1858, 0.0
        %1881 = vadd.xlane.f32.xlu0 %v1880
        %v1882 = vpop.xlane.xlu0 %1881
        %v1883 = vrcp.pop %v1861
        %v1884 = vrcp.pop %v1864
        %v1885 = vrcp.pop %v1867
        %v1886 = vrcp.pop %v1870
        %v1887 = vrcp.pop %v1873
        %v1888 = vrcp.pop %v1876
        %v1889 = vrcp.pop %v1879
        %v1890 = vrcp.pop %v1882
        %v1891 = vmul.f32 %v1844, %v1883
        %v1892 = vmul.f32 %v1846, %v1884
        %v1893 = vmul.f32 %v1848, %v1885
        %v1894 = vmul.f32 %v1850, %v1886
        %v1895 = vmul.f32 %v1852, %v1887
        %v1896 = vmul.f32 %v1854, %v1888
        %v1897 = vmul.f32 %v1856, %v1889
        %v1898 = vmul.f32 %v1858, %v1890
        %1901 = vrot.lane.b32.xlu0 %v539, 96
        %v1902 = vpop.permute.xlu0 %1901
        %1903 = vrot.lane.b32.xlu0 %v544, 96
        %v1904 = vpop.permute.xlu0 %1903
        %v1908 = vsel %vm1026, %v1891, 0
        %v1911 = vsel %vm1026, %v1892, 0
        %1913 = vmatprep.subr.mxu0 0.0
        %1914 = vmatpush1.msra.mxu0 0.0
        %1915 = vmatprep.subr.mxu0 0.0
        %1916 = vmatpush1.msra.mxu0 0.0
        %1917 = vmatprep.subr.mxu0 0.0
        %1918 = vmatpush1.msra.mxu0 0.0
        %1919 = vmatprep.subr.mxu0 0.0
        %1920 = vmatpush1.msra.mxu0 0.0
        %1921 = vmatprep.subr.mxu0 0.0
        %1922 = vmatpush1.msra.mxu0 0.0
        %1923 = vmatprep.subr.mxu0 0.0
        %1924 = vmatpush1.msra.mxu0 0.0
        %1925 = vmatprep.subr.mxu0 0.0
        %1926 = vmatpush1.msra.mxu0 0.0
        %1927 = vmatprep.subr.mxu0 0.0
        %1928 = vmatpush1.msra.mxu0 0.0
        %1929 = vmatprep.subr.mxu0 0.0
        %1930 = vmatpush1.msra.mxu0 0.0
        %1931 = vmatprep.subr.mxu0 0.0
        %1932 = vmatpush1.msra.mxu0 0.0
        %1933 = vmatprep.subr.mxu0 0.0
        %1934 = vmatpush1.msra.mxu0 0.0
        %1935 = vmatprep.subr.mxu0 0.0
        %1936 = vmatpush1.msra.mxu0 0.0
        %1937 = vmatprep.subr.mxu0 0.0
        %1938 = vmatpush1.msra.mxu0 0.0
        %1939 = vmatprep.subr.mxu0 0.0
        %1940 = vmatpush1.msra.mxu0 0.0
        %1941 = vmatprep.subr.mxu0 0.0
        %1942 = vmatpush1.msra.mxu0 %v1904
        %1943 = vmatprep.subr.mxu0 0.0
        %1944 = vmatpush1.msra.mxu0 %v1902
        %1945 = vmatprep.subr.mxu0 0.0
        %1946 = vmatpush2.msra.mxu0 0.0
        %1947 = vmatprep.subr.mxu0 0.0
        %1948 = vmatpush2.msra.mxu0 0.0
        %1949 = vmatprep.subr.mxu0 0.0
        %1950 = vmatpush2.msra.mxu0 0.0
        %1951 = vmatprep.subr.mxu0 0.0
        %1952 = vmatpush2.msra.mxu0 0.0
        %1953 = vmatprep.subr.mxu0 0.0
        %1954 = vmatpush2.msra.mxu0 0.0
        %1955 = vmatprep.subr.mxu0 0.0
        %1956 = vmatpush2.msra.mxu0 0.0
        %1957 = vmatprep.subr.mxu0 0.0
        %1958 = vmatpush2.msra.mxu0 0.0
        %1959 = vmatprep.subr.mxu0 0.0
        %1960 = vmatpush2.msra.mxu0 0.0
        %1961 = vmatprep.subr.mxu0 0.0
        %1962 = vmatpush2.msra.mxu0 0.0
        %1963 = vmatprep.subr.mxu0 0.0
        %1964 = vmatpush2.msra.mxu0 0.0
        %1965 = vmatprep.subr.mxu0 0.0
        %1966 = vmatpush2.msra.mxu0 0.0
        %1967 = vmatprep.subr.mxu0 0.0
        %1968 = vmatpush2.msra.mxu0 0.0
        %1969 = vmatprep.subr.mxu0 0.0
        %1970 = vmatpush2.msra.mxu0 0.0
        %1971 = vmatprep.subr.mxu0 0.0
        %1972 = vmatpush2.msra.mxu0 0.0
        %1973 = vmatprep.subr.mxu0 0.0
        %1974 = vmatpush2.msra.mxu0 0.0
        %1975 = vmatprep.subr.mxu0 0.0
        %1976 = vmatpush2.msra.mxu0 0.0
        %1977 = vmatprep.mubr.f32.mxu0 0.0
        %1978 = vmatmul.mubr.f32.gmra.mxu0 %v1908
        %v1979 = vpop.f32.mrf.mxu0
        %v1980 = vadd.f32 0.0, %v1979
        %v1981 = vpop.f32.mrf.mxu0
        %1982 = vmatprep.mubr.f32.mxu0 0.0
        %1983 = vmatmul.mubr.f32.gmra.mxu0 %v1911
        %v1984 = vpop.f32.mrf.mxu0
        %v1985 = vadd.f32 0.0, %v1984
        %v1986 = vpop.f32.mrf.mxu0
        %1987 = vdwg.mxu0
        %1990 = vrot.lane.b32.xlu0 %v549, 96
        %v1991 = vpop.permute.xlu0 %1990
        %1992 = vrot.lane.b32.xlu0 %v554, 96
        %v1993 = vpop.permute.xlu0 %1992
        %v1997 = vsel %vm1026, %v1893, 0
        %v2000 = vsel %vm1026, %v1894, 0
        %2002 = vmatprep.subr.mxu0 0.0
        %2003 = vmatpush1.msra.mxu0 0.0
        %2004 = vmatprep.subr.mxu0 0.0
        %2005 = vmatpush1.msra.mxu0 0.0
        %2006 = vmatprep.subr.mxu0 0.0
        %2007 = vmatpush1.msra.mxu0 0.0
        %2008 = vmatprep.subr.mxu0 0.0
        %2009 = vmatpush1.msra.mxu0 0.0
        %2010 = vmatprep.subr.mxu0 0.0
        %2011 = vmatpush1.msra.mxu0 0.0
        %2012 = vmatprep.subr.mxu0 0.0
        %2013 = vmatpush1.msra.mxu0 0.0
        %2014 = vmatprep.subr.mxu0 0.0
        %2015 = vmatpush1.msra.mxu0 0.0
        %2016 = vmatprep.subr.mxu0 0.0
        %2017 = vmatpush1.msra.mxu0 0.0
        %2018 = vmatprep.subr.mxu0 0.0
        %2019 = vmatpush1.msra.mxu0 0.0
        %2020 = vmatprep.subr.mxu0 0.0
        %2021 = vmatpush1.msra.mxu0 0.0
        %2022 = vmatprep.subr.mxu0 0.0
        %2023 = vmatpush1.msra.mxu0 0.0
        %2024 = vmatprep.subr.mxu0 0.0
        %2025 = vmatpush1.msra.mxu0 0.0
        %2026 = vmatprep.subr.mxu0 0.0
        %2027 = vmatpush1.msra.mxu0 0.0
        %2028 = vmatprep.subr.mxu0 0.0
        %2029 = vmatpush1.msra.mxu0 0.0
        %2030 = vmatprep.subr.mxu0 0.0
        %2031 = vmatpush1.msra.mxu0 %v1993
        %2032 = vmatprep.subr.mxu0 0.0
        %2033 = vmatpush1.msra.mxu0 %v1991
        %2034 = vmatprep.subr.mxu0 0.0
        %2035 = vmatpush2.msra.mxu0 0.0
        %2036 = vmatprep.subr.mxu0 0.0
        %2037 = vmatpush2.msra.mxu0 0.0
        %2038 = vmatprep.subr.mxu0 0.0
        %2039 = vmatpush2.msra.mxu0 0.0
        %2040 = vmatprep.subr.mxu0 0.0
        %2041 = vmatpush2.msra.mxu0 0.0
        %2042 = vmatprep.subr.mxu0 0.0
        %2043 = vmatpush2.msra.mxu0 0.0
        %2044 = vmatprep.subr.mxu0 0.0
        %2045 = vmatpush2.msra.mxu0 0.0
        %2046 = vmatprep.subr.mxu0 0.0
        %2047 = vmatpush2.msra.mxu0 0.0
        %2048 = vmatprep.subr.mxu0 0.0
        %2049 = vmatpush2.msra.mxu0 0.0
        %2050 = vmatprep.subr.mxu0 0.0
        %2051 = vmatpush2.msra.mxu0 0.0
        %2052 = vmatprep.subr.mxu0 0.0
        %2053 = vmatpush2.msra.mxu0 0.0
        %2054 = vmatprep.subr.mxu0 0.0
        %2055 = vmatpush2.msra.mxu0 0.0
        %2056 = vmatprep.subr.mxu0 0.0
        %2057 = vmatpush2.msra.mxu0 0.0
        %2058 = vmatprep.subr.mxu0 0.0
        %2059 = vmatpush2.msra.mxu0 0.0
        %2060 = vmatprep.subr.mxu0 0.0
        %2061 = vmatpush2.msra.mxu0 0.0
        %2062 = vmatprep.subr.mxu0 0.0
        %2063 = vmatpush2.msra.mxu0 0.0
        %2064 = vmatprep.subr.mxu0 0.0
        %2065 = vmatpush2.msra.mxu0 0.0
        %2066 = vmatprep.mubr.f32.mxu0 0.0
        %2067 = vmatmul.mubr.f32.gmra.mxu0 %v1997
        %v2068 = vpop.f32.mrf.mxu0
        %v2069 = vadd.f32 0.0, %v2068
        %v2070 = vpop.f32.mrf.mxu0
        %2071 = vmatprep.mubr.f32.mxu0 0.0
        %2072 = vmatmul.mubr.f32.gmra.mxu0 %v2000
        %v2073 = vpop.f32.mrf.mxu0
        %v2074 = vadd.f32 0.0, %v2073
        %v2075 = vpop.f32.mrf.mxu0
        %2076 = vdwg.mxu0
        %2079 = vrot.lane.b32.xlu0 %v559, 96
        %v2080 = vpop.permute.xlu0 %2079
        %2081 = vrot.lane.b32.xlu0 %v564, 96
        %v2082 = vpop.permute.xlu0 %2081
        %v2086 = vsel %vm1026, %v1895, 0
        %v2089 = vsel %vm1026, %v1896, 0
        %2091 = vmatprep.subr.mxu0 0.0
        %2092 = vmatpush1.msra.mxu0 0.0
        %2093 = vmatprep.subr.mxu0 0.0
        %2094 = vmatpush1.msra.mxu0 0.0
        %2095 = vmatprep.subr.mxu0 0.0
        %2096 = vmatpush1.msra.mxu0 0.0
        %2097 = vmatprep.subr.mxu0 0.0
        %2098 = vmatpush1.msra.mxu0 0.0
        %2099 = vmatprep.subr.mxu0 0.0
        %2100 = vmatpush1.msra.mxu0 0.0
        %2101 = vmatprep.subr.mxu0 0.0
        %2102 = vmatpush1.msra.mxu0 0.0
        %2103 = vmatprep.subr.mxu0 0.0
        %2104 = vmatpush1.msra.mxu0 0.0
        %2105 = vmatprep.subr.mxu0 0.0
        %2106 = vmatpush1.msra.mxu0 0.0
        %2107 = vmatprep.subr.mxu0 0.0
        %2108 = vmatpush1.msra.mxu0 0.0
        %2109 = vmatprep.subr.mxu0 0.0
        %2110 = vmatpush1.msra.mxu0 0.0
        %2111 = vmatprep.subr.mxu0 0.0
        %2112 = vmatpush1.msra.mxu0 0.0
        %2113 = vmatprep.subr.mxu0 0.0
        %2114 = vmatpush1.msra.mxu0 0.0
        %2115 = vmatprep.subr.mxu0 0.0
        %2116 = vmatpush1.msra.mxu0 0.0
        %2117 = vmatprep.subr.mxu0 0.0
        %2118 = vmatpush1.msra.mxu0 0.0
        %2119 = vmatprep.subr.mxu0 0.0
        %2120 = vmatpush1.msra.mxu0 %v2082
        %2121 = vmatprep.subr.mxu0 0.0
        %2122 = vmatpush1.msra.mxu0 %v2080
        %2123 = vmatprep.subr.mxu0 0.0
        %2124 = vmatpush2.msra.mxu0 0.0
        %2125 = vmatprep.subr.mxu0 0.0
        %2126 = vmatpush2.msra.mxu0 0.0
        %2127 = vmatprep.subr.mxu0 0.0
        %2128 = vmatpush2.msra.mxu0 0.0
        %2129 = vmatprep.subr.mxu0 0.0
        %2130 = vmatpush2.msra.mxu0 0.0
        %2131 = vmatprep.subr.mxu0 0.0
        %2132 = vmatpush2.msra.mxu0 0.0
        %2133 = vmatprep.subr.mxu0 0.0
        %2134 = vmatpush2.msra.mxu0 0.0
        %2135 = vmatprep.subr.mxu0 0.0
        %2136 = vmatpush2.msra.mxu0 0.0
        %2137 = vmatprep.subr.mxu0 0.0
        %2138 = vmatpush2.msra.mxu0 0.0
        %2139 = vmatprep.subr.mxu0 0.0
        %2140 = vmatpush2.msra.mxu0 0.0
        %2141 = vmatprep.subr.mxu0 0.0
        %2142 = vmatpush2.msra.mxu0 0.0
        %2143 = vmatprep.subr.mxu0 0.0
        %2144 = vmatpush2.msra.mxu0 0.0
        %2145 = vmatprep.subr.mxu0 0.0
        %2146 = vmatpush2.msra.mxu0 0.0
        %2147 = vmatprep.subr.mxu0 0.0
        %2148 = vmatpush2.msra.mxu0 0.0
        %2149 = vmatprep.subr.mxu0 0.0
        %2150 = vmatpush2.msra.mxu0 0.0
        %2151 = vmatprep.subr.mxu0 0.0
        %2152 = vmatpush2.msra.mxu0 0.0
        %2153 = vmatprep.subr.mxu0 0.0
        %2154 = vmatpush2.msra.mxu0 0.0
        %2155 = vmatprep.mubr.f32.mxu0 0.0
        %2156 = vmatmul.mubr.f32.gmra.mxu0 %v2086
        %v2157 = vpop.f32.mrf.mxu0
        %v2158 = vadd.f32 0.0, %v2157
        %v2159 = vpop.f32.mrf.mxu0
        %2160 = vmatprep.mubr.f32.mxu0 0.0
        %2161 = vmatmul.mubr.f32.gmra.mxu0 %v2089
        %v2162 = vpop.f32.mrf.mxu0
        %v2163 = vadd.f32 0.0, %v2162
        %v2164 = vpop.f32.mrf.mxu0
        %2165 = vdwg.mxu0
        %2168 = vrot.lane.b32.xlu0 %v569, 96
        %v2169 = vpop.permute.xlu0 %2168
        %2170 = vrot.lane.b32.xlu0 %v574, 96
        %v2171 = vpop.permute.xlu0 %2170
        %v2175 = vsel %vm1026, %v1897, 0
        %v2178 = vsel %vm1026, %v1898, 0
        %2180 = vmatprep.subr.mxu0 0.0
        %2181 = vmatpush1.msra.mxu0 0.0
        %2182 = vmatprep.subr.mxu0 0.0
        %2183 = vmatpush1.msra.mxu0 0.0
        %2184 = vmatprep.subr.mxu0 0.0
        %2185 = vmatpush1.msra.mxu0 0.0
        %2186 = vmatprep.subr.mxu0 0.0
        %2187 = vmatpush1.msra.mxu0 0.0
        %2188 = vmatprep.subr.mxu0 0.0
        %2189 = vmatpush1.msra.mxu0 0.0
        %2190 = vmatprep.subr.mxu0 0.0
        %2191 = vmatpush1.msra.mxu0 0.0
        %2192 = vmatprep.subr.mxu0 0.0
        %2193 = vmatpush1.msra.mxu0 0.0
        %2194 = vmatprep.subr.mxu0 0.0
        %2195 = vmatpush1.msra.mxu0 0.0
        %2196 = vmatprep.subr.mxu0 0.0
        %2197 = vmatpush1.msra.mxu0 0.0
        %2198 = vmatprep.subr.mxu0 0.0
        %2199 = vmatpush1.msra.mxu0 0.0
        %2200 = vmatprep.subr.mxu0 0.0
        %2201 = vmatpush1.msra.mxu0 0.0
        %2202 = vmatprep.subr.mxu0 0.0
        %2203 = vmatpush1.msra.mxu0 0.0
        %2204 = vmatprep.subr.mxu0 0.0
        %2205 = vmatpush1.msra.mxu0 0.0
        %2206 = vmatprep.subr.mxu0 0.0
        %2207 = vmatpush1.msra.mxu0 0.0
        %2208 = vmatprep.subr.mxu0 0.0
        %2209 = vmatpush1.msra.mxu0 %v2171
        %2210 = vmatprep.subr.mxu0 0.0
        %2211 = vmatpush1.msra.mxu0 %v2169
        %2212 = vmatprep.subr.mxu0 0.0
        %2213 = vmatpush2.msra.mxu0 0.0
        %2214 = vmatprep.subr.mxu0 0.0
        %2215 = vmatpush2.msra.mxu0 0.0
        %2216 = vmatprep.subr.mxu0 0.0
        %2217 = vmatpush2.msra.mxu0 0.0
        %2218 = vmatprep.subr.mxu0 0.0
        %2219 = vmatpush2.msra.mxu0 0.0
        %2220 = vmatprep.subr.mxu0 0.0
        %2221 = vmatpush2.msra.mxu0 0.0
        %2222 = vmatprep.subr.mxu0 0.0
        %2223 = vmatpush2.msra.mxu0 0.0
        %2224 = vmatprep.subr.mxu0 0.0
        %2225 = vmatpush2.msra.mxu0 0.0
        %2226 = vmatprep.subr.mxu0 0.0
        %2227 = vmatpush2.msra.mxu0 0.0
        %2228 = vmatprep.subr.mxu0 0.0
        %2229 = vmatpush2.msra.mxu0 0.0
        %2230 = vmatprep.subr.mxu0 0.0
        %2231 = vmatpush2.msra.mxu0 0.0
        %2232 = vmatprep.subr.mxu0 0.0
        %2233 = vmatpush2.msra.mxu0 0.0
        %2234 = vmatprep.subr.mxu0 0.0
        %2235 = vmatpush2.msra.mxu0 0.0
        %2236 = vmatprep.subr.mxu0 0.0
        %2237 = vmatpush2.msra.mxu0 0.0
        %2238 = vmatprep.subr.mxu0 0.0
        %2239 = vmatpush2.msra.mxu0 0.0
        %2240 = vmatprep.subr.mxu0 0.0
        %2241 = vmatpush2.msra.mxu0 0.0
        %2242 = vmatprep.subr.mxu0 0.0
        %2243 = vmatpush2.msra.mxu0 0.0
        %2244 = vmatprep.mubr.f32.mxu0 0.0
        %2245 = vmatmul.mubr.f32.gmra.mxu0 %v2175
        %v2246 = vpop.f32.mrf.mxu0
        %v2247 = vadd.f32 0.0, %v2246
        %v2248 = vpop.f32.mrf.mxu0
        %2249 = vmatprep.mubr.f32.mxu0 0.0
        %2250 = vmatmul.mubr.f32.gmra.mxu0 %v2178
        %v2251 = vpop.f32.mrf.mxu0
        %v2252 = vadd.f32 0.0, %v2251
        %v2253 = vpop.f32.mrf.mxu0
        %2254 = vdwg.mxu0
        %2255 = vrot.lane.b32.xlu0 %v426, 64
        %v2256 = vpop.permute.xlu0 %2255
        %2257 = vrot.lane.b32.xlu0 %v432, 64
        %v2258 = vpop.permute.xlu0 %2257
        %2259 = vrot.lane.b32.xlu0 %v428, 64
        %v2260 = vpop.permute.xlu0 %2259
        %2261 = vrot.lane.b32.xlu0 %v434, 64
        %v2262 = vpop.permute.xlu0 %2261
        %v2263 = vsel %vm669, %v2256, 0
        %v2265 = vsel %vm669, %v2258, 0
        %v2267 = vsel %vm669, %v2260, 0
        %v2269 = vsel %vm669, %v2262, 0
        %2271 = vmatprep.subr.mxu0 0.0
        %2272 = vmatpush1.xpose.msra.mxu0 0.0
        %2273 = vmatprep.subr.mxu0 0.0
        %2274 = vmatpush1.xpose.msra.mxu0 0.0
        %2275 = vmatprep.subr.mxu0 0.0
        %2276 = vmatpush1.xpose.msra.mxu0 0.0
        %2277 = vmatprep.subr.mxu0 0.0
        %2278 = vmatpush1.xpose.msra.mxu0 0.0
        %2279 = vmatprep.subr.mxu0 0.0
        %2280 = vmatpush1.xpose.msra.mxu0 0.0
        %2281 = vmatprep.subr.mxu0 0.0
        %2282 = vmatpush1.xpose.msra.mxu0 0.0
        %2283 = vmatprep.subr.mxu0 0.0
        %2284 = vmatpush1.xpose.msra.mxu0 0.0
        %2285 = vmatprep.subr.mxu0 0.0
        %2286 = vmatpush1.xpose.msra.mxu0 0.0
        %2287 = vmatprep.subr.mxu0 0.0
        %2288 = vmatpush1.xpose.msra.mxu0 0.0
        %2289 = vmatprep.subr.mxu0 0.0
        %2290 = vmatpush1.xpose.msra.mxu0 0.0
        %2291 = vmatprep.subr.mxu0 0.0
        %2292 = vmatpush1.xpose.msra.mxu0 0.0
        %2293 = vmatprep.subr.mxu0 0.0
        %2294 = vmatpush1.xpose.msra.mxu0 0.0
        %2295 = vmatprep.subr.mxu0 0.0
        %2296 = vmatpush1.xpose.msra.mxu0 0.0
        %2297 = vmatprep.subr.mxu0 0.0
        %2298 = vmatpush1.xpose.msra.mxu0 0.0
        %2299 = vmatprep.subr.mxu0 0.0
        %2300 = vmatpush1.xpose.msra.mxu0 %v2269
        %2301 = vmatprep.subr.mxu0 0.0
        %2302 = vmatpush1.xpose.msra.mxu0 %v2267
        %2303 = vmatprep.subr.mxu0 0.0
        %2304 = vmatpush2.xpose.msra.mxu0 0.0
        %2305 = vmatprep.subr.mxu0 0.0
        %2306 = vmatpush2.xpose.msra.mxu0 0.0
        %2307 = vmatprep.subr.mxu0 0.0
        %2308 = vmatpush2.xpose.msra.mxu0 0.0
        %2309 = vmatprep.subr.mxu0 0.0
        %2310 = vmatpush2.xpose.msra.mxu0 0.0
        %2311 = vmatprep.subr.mxu0 0.0
        %2312 = vmatpush2.xpose.msra.mxu0 0.0
        %2313 = vmatprep.subr.mxu0 0.0
        %2314 = vmatpush2.xpose.msra.mxu0 0.0
        %2315 = vmatprep.subr.mxu0 0.0
        %2316 = vmatpush2.xpose.msra.mxu0 0.0
        %2317 = vmatprep.subr.mxu0 0.0
        %2318 = vmatpush2.xpose.msra.mxu0 0.0
        %2319 = vmatprep.subr.mxu0 0.0
        %2320 = vmatpush2.xpose.msra.mxu0 0.0
        %2321 = vmatprep.subr.mxu0 0.0
        %2322 = vmatpush2.xpose.msra.mxu0 0.0
        %2323 = vmatprep.subr.mxu0 0.0
        %2324 = vmatpush2.xpose.msra.mxu0 0.0
        %2325 = vmatprep.subr.mxu0 0.0
        %2326 = vmatpush2.xpose.msra.mxu0 0.0
        %2327 = vmatprep.subr.mxu0 0.0
        %2328 = vmatpush2.xpose.msra.mxu0 0.0
        %2329 = vmatprep.subr.mxu0 0.0
        %2330 = vmatpush2.xpose.msra.mxu0 0.0
        %2331 = vmatprep.subr.mxu0 0.0
        %2332 = vmatpush2.xpose.msra.mxu0 0.0
        %2333 = vmatprep.subr.mxu0 0.0
        %2334 = vmatpush2.xpose.msra.mxu0 0.0
        %2335 = vmatprep.mubr.f32.mxu0 0.0
        %2336 = vmatmul.mubr.f32.gmra.mxu0 %v2263
        %v2337 = vpop.f32.mrf.mxu0
        %v2338 = vadd.f32 0.0, %v2337
        %v2339 = vpop.f32.mrf.mxu0
        %2340 = vmatprep.mubr.f32.mxu0 0.0
        %2341 = vmatmul.mubr.f32.gmra.mxu0 %v2265
        %v2342 = vpop.f32.mrf.mxu0
        %v2343 = vadd.f32 0.0, %v2342
        %v2344 = vpop.f32.mrf.mxu0
        %2345 = vdwg.mxu0
        %2346 = vrot.lane.b32.xlu0 %v438, 64
        %v2347 = vpop.permute.xlu0 %2346
        %2348 = vrot.lane.b32.xlu0 %v444, 64
        %v2349 = vpop.permute.xlu0 %2348
        %2350 = vrot.lane.b32.xlu0 %v440, 64
        %v2351 = vpop.permute.xlu0 %2350
        %2352 = vrot.lane.b32.xlu0 %v446, 64
        %v2353 = vpop.permute.xlu0 %2352
        %v2354 = vsel %vm669, %v2347, 0
        %v2356 = vsel %vm669, %v2349, 0
        %v2358 = vsel %vm669, %v2351, 0
        %v2360 = vsel %vm669, %v2353, 0
        %2362 = vmatprep.subr.mxu0 0.0
        %2363 = vmatpush1.xpose.msra.mxu0 0.0
        %2364 = vmatprep.subr.mxu0 0.0
        %2365 = vmatpush1.xpose.msra.mxu0 0.0
        %2366 = vmatprep.subr.mxu0 0.0
        %2367 = vmatpush1.xpose.msra.mxu0 0.0
        %2368 = vmatprep.subr.mxu0 0.0
        %2369 = vmatpush1.xpose.msra.mxu0 0.0
        %2370 = vmatprep.subr.mxu0 0.0
        %2371 = vmatpush1.xpose.msra.mxu0 0.0
        %2372 = vmatprep.subr.mxu0 0.0
        %2373 = vmatpush1.xpose.msra.mxu0 0.0
        %2374 = vmatprep.subr.mxu0 0.0
        %2375 = vmatpush1.xpose.msra.mxu0 0.0
        %2376 = vmatprep.subr.mxu0 0.0
        %2377 = vmatpush1.xpose.msra.mxu0 0.0
        %2378 = vmatprep.subr.mxu0 0.0
        %2379 = vmatpush1.xpose.msra.mxu0 0.0
        %2380 = vmatprep.subr.mxu0 0.0
        %2381 = vmatpush1.xpose.msra.mxu0 0.0
        %2382 = vmatprep.subr.mxu0 0.0
        %2383 = vmatpush1.xpose.msra.mxu0 0.0
        %2384 = vmatprep.subr.mxu0 0.0
        %2385 = vmatpush1.xpose.msra.mxu0 0.0
        %2386 = vmatprep.subr.mxu0 0.0
        %2387 = vmatpush1.xpose.msra.mxu0 0.0
        %2388 = vmatprep.subr.mxu0 0.0
        %2389 = vmatpush1.xpose.msra.mxu0 0.0
        %2390 = vmatprep.subr.mxu0 0.0
        %2391 = vmatpush1.xpose.msra.mxu0 %v2360
        %2392 = vmatprep.subr.mxu0 0.0
        %2393 = vmatpush1.xpose.msra.mxu0 %v2358
        %2394 = vmatprep.subr.mxu0 0.0
        %2395 = vmatpush2.xpose.msra.mxu0 0.0
        %2396 = vmatprep.subr.mxu0 0.0
        %2397 = vmatpush2.xpose.msra.mxu0 0.0
        %2398 = vmatprep.subr.mxu0 0.0
        %2399 = vmatpush2.xpose.msra.mxu0 0.0
        %2400 = vmatprep.subr.mxu0 0.0
        %2401 = vmatpush2.xpose.msra.mxu0 0.0
        %2402 = vmatprep.subr.mxu0 0.0
        %2403 = vmatpush2.xpose.msra.mxu0 0.0
        %2404 = vmatprep.subr.mxu0 0.0
        %2405 = vmatpush2.xpose.msra.mxu0 0.0
        %2406 = vmatprep.subr.mxu0 0.0
        %2407 = vmatpush2.xpose.msra.mxu0 0.0
        %2408 = vmatprep.subr.mxu0 0.0
        %2409 = vmatpush2.xpose.msra.mxu0 0.0
        %2410 = vmatprep.subr.mxu0 0.0
        %2411 = vmatpush2.xpose.msra.mxu0 0.0
        %2412 = vmatprep.subr.mxu0 0.0
        %2413 = vmatpush2.xpose.msra.mxu0 0.0
        %2414 = vmatprep.subr.mxu0 0.0
        %2415 = vmatpush2.xpose.msra.mxu0 0.0
        %2416 = vmatprep.subr.mxu0 0.0
        %2417 = vmatpush2.xpose.msra.mxu0 0.0
        %2418 = vmatprep.subr.mxu0 0.0
        %2419 = vmatpush2.xpose.msra.mxu0 0.0
        %2420 = vmatprep.subr.mxu0 0.0
        %2421 = vmatpush2.xpose.msra.mxu0 0.0
        %2422 = vmatprep.subr.mxu0 0.0
        %2423 = vmatpush2.xpose.msra.mxu0 0.0
        %2424 = vmatprep.subr.mxu0 0.0
        %2425 = vmatpush2.xpose.msra.mxu0 0.0
        %2426 = vmatprep.mubr.f32.mxu0 0.0
        %2427 = vmatmul.mubr.f32.gmra.mxu0 %v2354
        %v2428 = vpop.f32.mrf.mxu0
        %v2429 = vadd.f32 0.0, %v2428
        %v2430 = vpop.f32.mrf.mxu0
        %2431 = vmatprep.mubr.f32.mxu0 0.0
        %2432 = vmatmul.mubr.f32.gmra.mxu0 %v2356
        %v2433 = vpop.f32.mrf.mxu0
        %v2434 = vadd.f32 0.0, %v2433
        %v2435 = vpop.f32.mrf.mxu0
        %2436 = vdwg.mxu0
        %2437 = vrot.lane.b32.xlu0 %v450, 64
        %v2438 = vpop.permute.xlu0 %2437
        %2439 = vrot.lane.b32.xlu0 %v456, 64
        %v2440 = vpop.permute.xlu0 %2439
        %2441 = vrot.lane.b32.xlu0 %v452, 64
        %v2442 = vpop.permute.xlu0 %2441
        %2443 = vrot.lane.b32.xlu0 %v458, 64
        %v2444 = vpop.permute.xlu0 %2443
        %v2445 = vsel %vm669, %v2438, 0
        %v2447 = vsel %vm669, %v2440, 0
        %v2449 = vsel %vm669, %v2442, 0
        %v2451 = vsel %vm669, %v2444, 0
        %2453 = vmatprep.subr.mxu0 0.0
        %2454 = vmatpush1.xpose.msra.mxu0 0.0
        %2455 = vmatprep.subr.mxu0 0.0
        %2456 = vmatpush1.xpose.msra.mxu0 0.0
        %2457 = vmatprep.subr.mxu0 0.0
        %2458 = vmatpush1.xpose.msra.mxu0 0.0
        %2459 = vmatprep.subr.mxu0 0.0
        %2460 = vmatpush1.xpose.msra.mxu0 0.0
        %2461 = vmatprep.subr.mxu0 0.0
        %2462 = vmatpush1.xpose.msra.mxu0 0.0
        %2463 = vmatprep.subr.mxu0 0.0
        %2464 = vmatpush1.xpose.msra.mxu0 0.0
        %2465 = vmatprep.subr.mxu0 0.0
        %2466 = vmatpush1.xpose.msra.mxu0 0.0
        %2467 = vmatprep.subr.mxu0 0.0
        %2468 = vmatpush1.xpose.msra.mxu0 0.0
        %2469 = vmatprep.subr.mxu0 0.0
        %2470 = vmatpush1.xpose.msra.mxu0 0.0
        %2471 = vmatprep.subr.mxu0 0.0
        %2472 = vmatpush1.xpose.msra.mxu0 0.0
        %2473 = vmatprep.subr.mxu0 0.0
        %2474 = vmatpush1.xpose.msra.mxu0 0.0
        %2475 = vmatprep.subr.mxu0 0.0
        %2476 = vmatpush1.xpose.msra.mxu0 0.0
        %2477 = vmatprep.subr.mxu0 0.0
        %2478 = vmatpush1.xpose.msra.mxu0 0.0
        %2479 = vmatprep.subr.mxu0 0.0
        %2480 = vmatpush1.xpose.msra.mxu0 0.0
        %2481 = vmatprep.subr.mxu0 0.0
        %2482 = vmatpush1.xpose.msra.mxu0 %v2451
        %2483 = vmatprep.subr.mxu0 0.0
        %2484 = vmatpush1.xpose.msra.mxu0 %v2449
        %2485 = vmatprep.subr.mxu0 0.0
        %2486 = vmatpush2.xpose.msra.mxu0 0.0
        %2487 = vmatprep.subr.mxu0 0.0
        %2488 = vmatpush2.xpose.msra.mxu0 0.0
        %2489 = vmatprep.subr.mxu0 0.0
        %2490 = vmatpush2.xpose.msra.mxu0 0.0
        %2491 = vmatprep.subr.mxu0 0.0
        %2492 = vmatpush2.xpose.msra.mxu0 0.0
        %2493 = vmatprep.subr.mxu0 0.0
        %2494 = vmatpush2.xpose.msra.mxu0 0.0
        %2495 = vmatprep.subr.mxu0 0.0
        %2496 = vmatpush2.xpose.msra.mxu0 0.0
        %2497 = vmatprep.subr.mxu0 0.0
        %2498 = vmatpush2.xpose.msra.mxu0 0.0
        %2499 = vmatprep.subr.mxu0 0.0
        %2500 = vmatpush2.xpose.msra.mxu0 0.0
        %2501 = vmatprep.subr.mxu0 0.0
        %2502 = vmatpush2.xpose.msra.mxu0 0.0
        %2503 = vmatprep.subr.mxu0 0.0
        %2504 = vmatpush2.xpose.msra.mxu0 0.0
        %2505 = vmatprep.subr.mxu0 0.0
        %2506 = vmatpush2.xpose.msra.mxu0 0.0
        %2507 = vmatprep.subr.mxu0 0.0
        %2508 = vmatpush2.xpose.msra.mxu0 0.0
        %2509 = vmatprep.subr.mxu0 0.0
        %2510 = vmatpush2.xpose.msra.mxu0 0.0
        %2511 = vmatprep.subr.mxu0 0.0
        %2512 = vmatpush2.xpose.msra.mxu0 0.0
        %2513 = vmatprep.subr.mxu0 0.0
        %2514 = vmatpush2.xpose.msra.mxu0 0.0
        %2515 = vmatprep.subr.mxu0 0.0
        %2516 = vmatpush2.xpose.msra.mxu0 0.0
        %2517 = vmatprep.mubr.f32.mxu0 0.0
        %2518 = vmatmul.mubr.f32.gmra.mxu0 %v2445
        %v2519 = vpop.f32.mrf.mxu0
        %v2520 = vadd.f32 0.0, %v2519
        %v2521 = vpop.f32.mrf.mxu0
        %2522 = vmatprep.mubr.f32.mxu0 0.0
        %2523 = vmatmul.mubr.f32.gmra.mxu0 %v2447
        %v2524 = vpop.f32.mrf.mxu0
        %v2525 = vadd.f32 0.0, %v2524
        %v2526 = vpop.f32.mrf.mxu0
        %2527 = vdwg.mxu0
        %2528 = vrot.lane.b32.xlu0 %v462, 64
        %v2529 = vpop.permute.xlu0 %2528
        %2530 = vrot.lane.b32.xlu0 %v468, 64
        %v2531 = vpop.permute.xlu0 %2530
        %2532 = vrot.lane.b32.xlu0 %v464, 64
        %v2533 = vpop.permute.xlu0 %2532
        %2534 = vrot.lane.b32.xlu0 %v470, 64
        %v2535 = vpop.permute.xlu0 %2534
        %v2536 = vsel %vm669, %v2529, 0
        %v2538 = vsel %vm669, %v2531, 0
        %v2540 = vsel %vm669, %v2533, 0
        %v2542 = vsel %vm669, %v2535, 0
        %2544 = vmatprep.subr.mxu0 0.0
        %2545 = vmatpush1.xpose.msra.mxu0 0.0
        %2546 = vmatprep.subr.mxu0 0.0
        %2547 = vmatpush1.xpose.msra.mxu0 0.0
        %2548 = vmatprep.subr.mxu0 0.0
        %2549 = vmatpush1.xpose.msra.mxu0 0.0
        %2550 = vmatprep.subr.mxu0 0.0
        %2551 = vmatpush1.xpose.msra.mxu0 0.0
        %2552 = vmatprep.subr.mxu0 0.0
        %2553 = vmatpush1.xpose.msra.mxu0 0.0
        %2554 = vmatprep.subr.mxu0 0.0
        %2555 = vmatpush1.xpose.msra.mxu0 0.0
        %2556 = vmatprep.subr.mxu0 0.0
        %2557 = vmatpush1.xpose.msra.mxu0 0.0
        %2558 = vmatprep.subr.mxu0 0.0
        %2559 = vmatpush1.xpose.msra.mxu0 0.0
        %2560 = vmatprep.subr.mxu0 0.0
        %2561 = vmatpush1.xpose.msra.mxu0 0.0
        %2562 = vmatprep.subr.mxu0 0.0
        %2563 = vmatpush1.xpose.msra.mxu0 0.0
        %2564 = vmatprep.subr.mxu0 0.0
        %2565 = vmatpush1.xpose.msra.mxu0 0.0
        %2566 = vmatprep.subr.mxu0 0.0
        %2567 = vmatpush1.xpose.msra.mxu0 0.0
        %2568 = vmatprep.subr.mxu0 0.0
        %2569 = vmatpush1.xpose.msra.mxu0 0.0
        %2570 = vmatprep.subr.mxu0 0.0
        %2571 = vmatpush1.xpose.msra.mxu0 0.0
        %2572 = vmatprep.subr.mxu0 0.0
        %2573 = vmatpush1.xpose.msra.mxu0 %v2542
        %2574 = vmatprep.subr.mxu0 0.0
        %2575 = vmatpush1.xpose.msra.mxu0 %v2540
        %2576 = vmatprep.subr.mxu0 0.0
        %2577 = vmatpush2.xpose.msra.mxu0 0.0
        %2578 = vmatprep.subr.mxu0 0.0
        %2579 = vmatpush2.xpose.msra.mxu0 0.0
        %2580 = vmatprep.subr.mxu0 0.0
        %2581 = vmatpush2.xpose.msra.mxu0 0.0
        %2582 = vmatprep.subr.mxu0 0.0
        %2583 = vmatpush2.xpose.msra.mxu0 0.0
        %2584 = vmatprep.subr.mxu0 0.0
        %2585 = vmatpush2.xpose.msra.mxu0 0.0
        %2586 = vmatprep.subr.mxu0 0.0
        %2587 = vmatpush2.xpose.msra.mxu0 0.0
        %2588 = vmatprep.subr.mxu0 0.0
        %2589 = vmatpush2.xpose.msra.mxu0 0.0
        %2590 = vmatprep.subr.mxu0 0.0
        %2591 = vmatpush2.xpose.msra.mxu0 0.0
        %2592 = vmatprep.subr.mxu0 0.0
        %2593 = vmatpush2.xpose.msra.mxu0 0.0
        %2594 = vmatprep.subr.mxu0 0.0
        %2595 = vmatpush2.xpose.msra.mxu0 0.0
        %2596 = vmatprep.subr.mxu0 0.0
        %2597 = vmatpush2.xpose.msra.mxu0 0.0
        %2598 = vmatprep.subr.mxu0 0.0
        %2599 = vmatpush2.xpose.msra.mxu0 0.0
        %2600 = vmatprep.subr.mxu0 0.0
        %2601 = vmatpush2.xpose.msra.mxu0 0.0
        %2602 = vmatprep.subr.mxu0 0.0
        %2603 = vmatpush2.xpose.msra.mxu0 0.0
        %2604 = vmatprep.subr.mxu0 0.0
        %2605 = vmatpush2.xpose.msra.mxu0 0.0
        %2606 = vmatprep.subr.mxu0 0.0
        %2607 = vmatpush2.xpose.msra.mxu0 0.0
        %2608 = vmatprep.mubr.f32.mxu0 0.0
        %2609 = vmatmul.mubr.f32.gmra.mxu0 %v2536
        %v2610 = vpop.f32.mrf.mxu0
        %v2611 = vadd.f32 0.0, %v2610
        %v2612 = vpop.f32.mrf.mxu0
        %2613 = vmatprep.mubr.f32.mxu0 0.0
        %2614 = vmatmul.mubr.f32.gmra.mxu0 %v2538
        %v2615 = vpop.f32.mrf.mxu0
        %v2616 = vadd.f32 0.0, %v2615
        %v2617 = vpop.f32.mrf.mxu0
        %2618 = vdwg.mxu0
        %v2619 = vsel %vm661, %v2338, -3.4028235e+38
        %v2620 = vsel %vm662, %v2343, -3.4028235e+38
        %v2621 = vsel %vm663, %v2429, -3.4028235e+38
        %v2622 = vsel %vm664, %v2434, -3.4028235e+38
        %v2623 = vsel %vm665, %v2520, -3.4028235e+38
        %v2624 = vsel %vm666, %v2525, -3.4028235e+38
        %v2625 = vsel %vm667, %v2611, -3.4028235e+38
        %v2626 = vsel %vm668, %v2616, -3.4028235e+38
        %v2627 = vsel %vm1026, %v2619, -inf
        %2628 = vmax.xlane.f32.xlu0 %v2627
        %v2629 = vpop.xlane.xlu0 %2628
        %v2630 = vsel %vm1026, %v2620, -inf
        %2631 = vmax.xlane.f32.xlu0 %v2630
        %v2632 = vpop.xlane.xlu0 %2631
        %v2633 = vsel %vm1026, %v2621, -inf
        %2634 = vmax.xlane.f32.xlu0 %v2633
        %v2635 = vpop.xlane.xlu0 %2634
        %v2636 = vsel %vm1026, %v2622, -inf
        %2637 = vmax.xlane.f32.xlu0 %v2636
        %v2638 = vpop.xlane.xlu0 %2637
        %v2639 = vsel %vm1026, %v2623, -inf
        %2640 = vmax.xlane.f32.xlu0 %v2639
        %v2641 = vpop.xlane.xlu0 %2640
        %v2642 = vsel %vm1026, %v2624, -inf
        %2643 = vmax.xlane.f32.xlu0 %v2642
        %v2644 = vpop.xlane.xlu0 %2643
        %v2645 = vsel %vm1026, %v2625, -inf
        %2646 = vmax.xlane.f32.xlu0 %v2645
        %v2647 = vpop.xlane.xlu0 %2646
        %v2648 = vsel %vm1026, %v2626, -inf
        %2649 = vmax.xlane.f32.xlu0 %v2648
        %v2650 = vpop.xlane.xlu0 %2649
        %v2651 = vsub.f32 %v2619, %v2629
        %v2652 = vsub.f32 %v2620, %v2632
        %v2653 = vsub.f32 %v2621, %v2635
        %v2654 = vsub.f32 %v2622, %v2638
        %v2655 = vsub.f32 %v2623, %v2641
        %v2656 = vsub.f32 %v2624, %v2644
        %v2657 = vsub.f32 %v2625, %v2647
        %v2658 = vsub.f32 %v2626, %v2650
        %v2659 = vmul.f32 %v2651, 1.442695
        %v2660 = vpow.pop %v2659
        %v2661 = vmul.f32 %v2652, 1.442695
        %v2662 = vpow.pop %v2661
        %v2663 = vmul.f32 %v2653, 1.442695
        %v2664 = vpow.pop %v2663
        %v2665 = vmul.f32 %v2654, 1.442695
        %v2666 = vpow.pop %v2665
        %v2667 = vmul.f32 %v2655, 1.442695
        %v2668 = vpow.pop %v2667
        %v2669 = vmul.f32 %v2656, 1.442695
        %v2670 = vpow.pop %v2669
        %v2671 = vmul.f32 %v2657, 1.442695
        %v2672 = vpow.pop %v2671
        %v2673 = vmul.f32 %v2658, 1.442695
        %v2674 = vpow.pop %v2673
        %v2675 = vsel %vm1026, %v2660, 0.0
        %2676 = vadd.xlane.f32.xlu0 %v2675
        %v2677 = vpop.xlane.xlu0 %2676
        %v2678 = vsel %vm1026, %v2662, 0.0
        %2679 = vadd.xlane.f32.xlu0 %v2678
        %v2680 = vpop.xlane.xlu0 %2679
        %v2681 = vsel %vm1026, %v2664, 0.0
        %2682 = vadd.xlane.f32.xlu0 %v2681
        %v2683 = vpop.xlane.xlu0 %2682
        %v2684 = vsel %vm1026, %v2666, 0.0
        %2685 = vadd.xlane.f32.xlu0 %v2684
        %v2686 = vpop.xlane.xlu0 %2685
        %v2687 = vsel %vm1026, %v2668, 0.0
        %2688 = vadd.xlane.f32.xlu0 %v2687
        %v2689 = vpop.xlane.xlu0 %2688
        %v2690 = vsel %vm1026, %v2670, 0.0
        %2691 = vadd.xlane.f32.xlu0 %v2690
        %v2692 = vpop.xlane.xlu0 %2691
        %v2693 = vsel %vm1026, %v2672, 0.0
        %2694 = vadd.xlane.f32.xlu0 %v2693
        %v2695 = vpop.xlane.xlu0 %2694
        %v2696 = vsel %vm1026, %v2674, 0.0
        %2697 = vadd.xlane.f32.xlu0 %v2696
        %v2698 = vpop.xlane.xlu0 %2697
        %v2699 = vrcp.pop %v2677
        %v2700 = vrcp.pop %v2680
        %v2701 = vrcp.pop %v2683
        %v2702 = vrcp.pop %v2686
        %v2703 = vrcp.pop %v2689
        %v2704 = vrcp.pop %v2692
        %v2705 = vrcp.pop %v2695
        %v2706 = vrcp.pop %v2698
        %v2707 = vmul.f32 %v2660, %v2699
        %v2708 = vmul.f32 %v2662, %v2700
        %v2709 = vmul.f32 %v2664, %v2701
        %v2710 = vmul.f32 %v2666, %v2702
        %v2711 = vmul.f32 %v2668, %v2703
        %v2712 = vmul.f32 %v2670, %v2704
        %v2713 = vmul.f32 %v2672, %v2705
        %v2714 = vmul.f32 %v2674, %v2706
        %2715 = vrot.lane.b32.xlu0 %v539, 64
        %v2716 = vpop.permute.xlu0 %2715
        %2717 = vrot.lane.b32.xlu0 %v544, 64
        %v2718 = vpop.permute.xlu0 %2717
        %v2722 = vsel %vm1026, %v2707, 0
        %v2725 = vsel %vm1026, %v2708, 0
        %2727 = vmatprep.subr.mxu0 0.0
        %2728 = vmatpush1.msra.mxu0 0.0
        %2729 = vmatprep.subr.mxu0 0.0
        %2730 = vmatpush1.msra.mxu0 0.0
        %2731 = vmatprep.subr.mxu0 0.0
        %2732 = vmatpush1.msra.mxu0 0.0
        %2733 = vmatprep.subr.mxu0 0.0
        %2734 = vmatpush1.msra.mxu0 0.0
        %2735 = vmatprep.subr.mxu0 0.0
        %2736 = vmatpush1.msra.mxu0 0.0
        %2737 = vmatprep.subr.mxu0 0.0
        %2738 = vmatpush1.msra.mxu0 0.0
        %2739 = vmatprep.subr.mxu0 0.0
        %2740 = vmatpush1.msra.mxu0 0.0
        %2741 = vmatprep.subr.mxu0 0.0
        %2742 = vmatpush1.msra.mxu0 0.0
        %2743 = vmatprep.subr.mxu0 0.0
        %2744 = vmatpush1.msra.mxu0 0.0
        %2745 = vmatprep.subr.mxu0 0.0
        %2746 = vmatpush1.msra.mxu0 0.0
        %2747 = vmatprep.subr.mxu0 0.0
        %2748 = vmatpush1.msra.mxu0 0.0
        %2749 = vmatprep.subr.mxu0 0.0
        %2750 = vmatpush1.msra.mxu0 0.0
        %2751 = vmatprep.subr.mxu0 0.0
        %2752 = vmatpush1.msra.mxu0 0.0
        %2753 = vmatprep.subr.mxu0 0.0
        %2754 = vmatpush1.msra.mxu0 0.0
        %2755 = vmatprep.subr.mxu0 0.0
        %2756 = vmatpush1.msra.mxu0 %v2718
        %2757 = vmatprep.subr.mxu0 0.0
        %2758 = vmatpush1.msra.mxu0 %v2716
        %2759 = vmatprep.subr.mxu0 0.0
        %2760 = vmatpush2.msra.mxu0 0.0
        %2761 = vmatprep.subr.mxu0 0.0
        %2762 = vmatpush2.msra.mxu0 0.0
        %2763 = vmatprep.subr.mxu0 0.0
        %2764 = vmatpush2.msra.mxu0 0.0
        %2765 = vmatprep.subr.mxu0 0.0
        %2766 = vmatpush2.msra.mxu0 0.0
        %2767 = vmatprep.subr.mxu0 0.0
        %2768 = vmatpush2.msra.mxu0 0.0
        %2769 = vmatprep.subr.mxu0 0.0
        %2770 = vmatpush2.msra.mxu0 0.0
        %2771 = vmatprep.subr.mxu0 0.0
        %2772 = vmatpush2.msra.mxu0 0.0
        %2773 = vmatprep.subr.mxu0 0.0
        %2774 = vmatpush2.msra.mxu0 0.0
        %2775 = vmatprep.subr.mxu0 0.0
        %2776 = vmatpush2.msra.mxu0 0.0
        %2777 = vmatprep.subr.mxu0 0.0
        %2778 = vmatpush2.msra.mxu0 0.0
        %2779 = vmatprep.subr.mxu0 0.0
        %2780 = vmatpush2.msra.mxu0 0.0
        %2781 = vmatprep.subr.mxu0 0.0
        %2782 = vmatpush2.msra.mxu0 0.0
        %2783 = vmatprep.subr.mxu0 0.0
        %2784 = vmatpush2.msra.mxu0 0.0
        %2785 = vmatprep.subr.mxu0 0.0
        %2786 = vmatpush2.msra.mxu0 0.0
        %2787 = vmatprep.subr.mxu0 0.0
        %2788 = vmatpush2.msra.mxu0 0.0
        %2789 = vmatprep.subr.mxu0 0.0
        %2790 = vmatpush2.msra.mxu0 0.0
        %2791 = vmatprep.mubr.f32.mxu0 0.0
        %2792 = vmatmul.mubr.f32.gmra.mxu0 %v2722
        %v2793 = vpop.f32.mrf.mxu0
        %v2794 = vadd.f32 0.0, %v2793
        %v2795 = vpop.f32.mrf.mxu0
        %2796 = vmatprep.mubr.f32.mxu0 0.0
        %2797 = vmatmul.mubr.f32.gmra.mxu0 %v2725
        %v2798 = vpop.f32.mrf.mxu0
        %v2799 = vadd.f32 0.0, %v2798
        %v2800 = vpop.f32.mrf.mxu0
        %2801 = vdwg.mxu0
        %2802 = vrot.lane.b32.xlu0 %v549, 64
        %v2803 = vpop.permute.xlu0 %2802
        %2804 = vrot.lane.b32.xlu0 %v554, 64
        %v2805 = vpop.permute.xlu0 %2804
        %v2809 = vsel %vm1026, %v2709, 0
        %v2812 = vsel %vm1026, %v2710, 0
        %2814 = vmatprep.subr.mxu0 0.0
        %2815 = vmatpush1.msra.mxu0 0.0
        %2816 = vmatprep.subr.mxu0 0.0
        %2817 = vmatpush1.msra.mxu0 0.0
        %2818 = vmatprep.subr.mxu0 0.0
        %2819 = vmatpush1.msra.mxu0 0.0
        %2820 = vmatprep.subr.mxu0 0.0
        %2821 = vmatpush1.msra.mxu0 0.0
        %2822 = vmatprep.subr.mxu0 0.0
        %2823 = vmatpush1.msra.mxu0 0.0
        %2824 = vmatprep.subr.mxu0 0.0
        %2825 = vmatpush1.msra.mxu0 0.0
        %2826 = vmatprep.subr.mxu0 0.0
        %2827 = vmatpush1.msra.mxu0 0.0
        %2828 = vmatprep.subr.mxu0 0.0
        %2829 = vmatpush1.msra.mxu0 0.0
        %2830 = vmatprep.subr.mxu0 0.0
        %2831 = vmatpush1.msra.mxu0 0.0
        %2832 = vmatprep.subr.mxu0 0.0
        %2833 = vmatpush1.msra.mxu0 0.0
        %2834 = vmatprep.subr.mxu0 0.0
        %2835 = vmatpush1.msra.mxu0 0.0
        %2836 = vmatprep.subr.mxu0 0.0
        %2837 = vmatpush1.msra.mxu0 0.0
        %2838 = vmatprep.subr.mxu0 0.0
        %2839 = vmatpush1.msra.mxu0 0.0
        %2840 = vmatprep.subr.mxu0 0.0
        %2841 = vmatpush1.msra.mxu0 0.0
        %2842 = vmatprep.subr.mxu0 0.0
        %2843 = vmatpush1.msra.mxu0 %v2805
        %2844 = vmatprep.subr.mxu0 0.0
        %2845 = vmatpush1.msra.mxu0 %v2803
        %2846 = vmatprep.subr.mxu0 0.0
        %2847 = vmatpush2.msra.mxu0 0.0
        %2848 = vmatprep.subr.mxu0 0.0
        %2849 = vmatpush2.msra.mxu0 0.0
        %2850 = vmatprep.subr.mxu0 0.0
        %2851 = vmatpush2.msra.mxu0 0.0
        %2852 = vmatprep.subr.mxu0 0.0
        %2853 = vmatpush2.msra.mxu0 0.0
        %2854 = vmatprep.subr.mxu0 0.0
        %2855 = vmatpush2.msra.mxu0 0.0
        %2856 = vmatprep.subr.mxu0 0.0
        %2857 = vmatpush2.msra.mxu0 0.0
        %2858 = vmatprep.subr.mxu0 0.0
        %2859 = vmatpush2.msra.mxu0 0.0
        %2860 = vmatprep.subr.mxu0 0.0
        %2861 = vmatpush2.msra.mxu0 0.0
        %2862 = vmatprep.subr.mxu0 0.0
        %2863 = vmatpush2.msra.mxu0 0.0
        %2864 = vmatprep.subr.mxu0 0.0
        %2865 = vmatpush2.msra.mxu0 0.0
        %2866 = vmatprep.subr.mxu0 0.0
        %2867 = vmatpush2.msra.mxu0 0.0
        %2868 = vmatprep.subr.mxu0 0.0
        %2869 = vmatpush2.msra.mxu0 0.0
        %2870 = vmatprep.subr.mxu0 0.0
        %2871 = vmatpush2.msra.mxu0 0.0
        %2872 = vmatprep.subr.mxu0 0.0
        %2873 = vmatpush2.msra.mxu0 0.0
        %2874 = vmatprep.subr.mxu0 0.0
        %2875 = vmatpush2.msra.mxu0 0.0
        %2876 = vmatprep.subr.mxu0 0.0
        %2877 = vmatpush2.msra.mxu0 0.0
        %2878 = vmatprep.mubr.f32.mxu0 0.0
        %2879 = vmatmul.mubr.f32.gmra.mxu0 %v2809
        %v2880 = vpop.f32.mrf.mxu0
        %v2881 = vadd.f32 0.0, %v2880
        %v2882 = vpop.f32.mrf.mxu0
        %2883 = vmatprep.mubr.f32.mxu0 0.0
        %2884 = vmatmul.mubr.f32.gmra.mxu0 %v2812
        %v2885 = vpop.f32.mrf.mxu0
        %v2886 = vadd.f32 0.0, %v2885
        %v2887 = vpop.f32.mrf.mxu0
        %2888 = vdwg.mxu0
        %2889 = vrot.lane.b32.xlu0 %v559, 64
        %v2890 = vpop.permute.xlu0 %2889
        %2891 = vrot.lane.b32.xlu0 %v564, 64
        %v2892 = vpop.permute.xlu0 %2891
        %v2896 = vsel %vm1026, %v2711, 0
        %v2899 = vsel %vm1026, %v2712, 0
        %2901 = vmatprep.subr.mxu0 0.0
        %2902 = vmatpush1.msra.mxu0 0.0
        %2903 = vmatprep.subr.mxu0 0.0
        %2904 = vmatpush1.msra.mxu0 0.0
        %2905 = vmatprep.subr.mxu0 0.0
        %2906 = vmatpush1.msra.mxu0 0.0
        %2907 = vmatprep.subr.mxu0 0.0
        %2908 = vmatpush1.msra.mxu0 0.0
        %2909 = vmatprep.subr.mxu0 0.0
        %2910 = vmatpush1.msra.mxu0 0.0
        %2911 = vmatprep.subr.mxu0 0.0
        %2912 = vmatpush1.msra.mxu0 0.0
        %2913 = vmatprep.subr.mxu0 0.0
        %2914 = vmatpush1.msra.mxu0 0.0
        %2915 = vmatprep.subr.mxu0 0.0
        %2916 = vmatpush1.msra.mxu0 0.0
        %2917 = vmatprep.subr.mxu0 0.0
        %2918 = vmatpush1.msra.mxu0 0.0
        %2919 = vmatprep.subr.mxu0 0.0
        %2920 = vmatpush1.msra.mxu0 0.0
        %2921 = vmatprep.subr.mxu0 0.0
        %2922 = vmatpush1.msra.mxu0 0.0
        %2923 = vmatprep.subr.mxu0 0.0
        %2924 = vmatpush1.msra.mxu0 0.0
        %2925 = vmatprep.subr.mxu0 0.0
        %2926 = vmatpush1.msra.mxu0 0.0
        %2927 = vmatprep.subr.mxu0 0.0
        %2928 = vmatpush1.msra.mxu0 0.0
        %2929 = vmatprep.subr.mxu0 0.0
        %2930 = vmatpush1.msra.mxu0 %v2892
        %2931 = vmatprep.subr.mxu0 0.0
        %2932 = vmatpush1.msra.mxu0 %v2890
        %2933 = vmatprep.subr.mxu0 0.0
        %2934 = vmatpush2.msra.mxu0 0.0
        %2935 = vmatprep.subr.mxu0 0.0
        %2936 = vmatpush2.msra.mxu0 0.0
        %2937 = vmatprep.subr.mxu0 0.0
        %2938 = vmatpush2.msra.mxu0 0.0
        %2939 = vmatprep.subr.mxu0 0.0
        %2940 = vmatpush2.msra.mxu0 0.0
        %2941 = vmatprep.subr.mxu0 0.0
        %2942 = vmatpush2.msra.mxu0 0.0
        %2943 = vmatprep.subr.mxu0 0.0
        %2944 = vmatpush2.msra.mxu0 0.0
        %2945 = vmatprep.subr.mxu0 0.0
        %2946 = vmatpush2.msra.mxu0 0.0
        %2947 = vmatprep.subr.mxu0 0.0
        %2948 = vmatpush2.msra.mxu0 0.0
        %2949 = vmatprep.subr.mxu0 0.0
        %2950 = vmatpush2.msra.mxu0 0.0
        %2951 = vmatprep.subr.mxu0 0.0
        %2952 = vmatpush2.msra.mxu0 0.0
        %2953 = vmatprep.subr.mxu0 0.0
        %2954 = vmatpush2.msra.mxu0 0.0
        %2955 = vmatprep.subr.mxu0 0.0
        %2956 = vmatpush2.msra.mxu0 0.0
        %2957 = vmatprep.subr.mxu0 0.0
        %2958 = vmatpush2.msra.mxu0 0.0
        %2959 = vmatprep.subr.mxu0 0.0
        %2960 = vmatpush2.msra.mxu0 0.0
        %2961 = vmatprep.subr.mxu0 0.0
        %2962 = vmatpush2.msra.mxu0 0.0
        %2963 = vmatprep.subr.mxu0 0.0
        %2964 = vmatpush2.msra.mxu0 0.0
        %2965 = vmatprep.mubr.f32.mxu0 0.0
        %2966 = vmatmul.mubr.f32.gmra.mxu0 %v2896
        %v2967 = vpop.f32.mrf.mxu0
        %v2968 = vadd.f32 0.0, %v2967
        %v2969 = vpop.f32.mrf.mxu0
        %2970 = vmatprep.mubr.f32.mxu0 0.0
        %2971 = vmatmul.mubr.f32.gmra.mxu0 %v2899
        %v2972 = vpop.f32.mrf.mxu0
        %v2973 = vadd.f32 0.0, %v2972
        %v2974 = vpop.f32.mrf.mxu0
        %2975 = vdwg.mxu0
        %2976 = vrot.lane.b32.xlu0 %v569, 64
        %v2977 = vpop.permute.xlu0 %2976
        %2978 = vrot.lane.b32.xlu0 %v574, 64
        %v2979 = vpop.permute.xlu0 %2978
        %v2983 = vsel %vm1026, %v2713, 0
        %v2986 = vsel %vm1026, %v2714, 0
        %2988 = vmatprep.subr.mxu0 0.0
        %2989 = vmatpush1.msra.mxu0 0.0
        %2990 = vmatprep.subr.mxu0 0.0
        %2991 = vmatpush1.msra.mxu0 0.0
        %2992 = vmatprep.subr.mxu0 0.0
        %2993 = vmatpush1.msra.mxu0 0.0
        %2994 = vmatprep.subr.mxu0 0.0
        %2995 = vmatpush1.msra.mxu0 0.0
        %2996 = vmatprep.subr.mxu0 0.0
        %2997 = vmatpush1.msra.mxu0 0.0
        %2998 = vmatprep.subr.mxu0 0.0
        %2999 = vmatpush1.msra.mxu0 0.0
        %3000 = vmatprep.subr.mxu0 0.0
        %3001 = vmatpush1.msra.mxu0 0.0
        %3002 = vmatprep.subr.mxu0 0.0
        %3003 = vmatpush1.msra.mxu0 0.0
        %3004 = vmatprep.subr.mxu0 0.0
        %3005 = vmatpush1.msra.mxu0 0.0
        %3006 = vmatprep.subr.mxu0 0.0
        %3007 = vmatpush1.msra.mxu0 0.0
        %3008 = vmatprep.subr.mxu0 0.0
        %3009 = vmatpush1.msra.mxu0 0.0
        %3010 = vmatprep.subr.mxu0 0.0
        %3011 = vmatpush1.msra.mxu0 0.0
        %3012 = vmatprep.subr.mxu0 0.0
        %3013 = vmatpush1.msra.mxu0 0.0
        %3014 = vmatprep.subr.mxu0 0.0
        %3015 = vmatpush1.msra.mxu0 0.0
        %3016 = vmatprep.subr.mxu0 0.0
        %3017 = vmatpush1.msra.mxu0 %v2979
        %3018 = vmatprep.subr.mxu0 0.0
        %3019 = vmatpush1.msra.mxu0 %v2977
        %3020 = vmatprep.subr.mxu0 0.0
        %3021 = vmatpush2.msra.mxu0 0.0
        %3022 = vmatprep.subr.mxu0 0.0
        %3023 = vmatpush2.msra.mxu0 0.0
        %3024 = vmatprep.subr.mxu0 0.0
        %3025 = vmatpush2.msra.mxu0 0.0
        %3026 = vmatprep.subr.mxu0 0.0
        %3027 = vmatpush2.msra.mxu0 0.0
        %3028 = vmatprep.subr.mxu0 0.0
        %3029 = vmatpush2.msra.mxu0 0.0
        %3030 = vmatprep.subr.mxu0 0.0
        %3031 = vmatpush2.msra.mxu0 0.0
        %3032 = vmatprep.subr.mxu0 0.0
        %3033 = vmatpush2.msra.mxu0 0.0
        %3034 = vmatprep.subr.mxu0 0.0
        %3035 = vmatpush2.msra.mxu0 0.0
        %3036 = vmatprep.subr.mxu0 0.0
        %3037 = vmatpush2.msra.mxu0 0.0
        %3038 = vmatprep.subr.mxu0 0.0
        %3039 = vmatpush2.msra.mxu0 0.0
        %3040 = vmatprep.subr.mxu0 0.0
        %3041 = vmatpush2.msra.mxu0 0.0
        %3042 = vmatprep.subr.mxu0 0.0
        %3043 = vmatpush2.msra.mxu0 0.0
        %3044 = vmatprep.subr.mxu0 0.0
        %3045 = vmatpush2.msra.mxu0 0.0
        %3046 = vmatprep.subr.mxu0 0.0
        %3047 = vmatpush2.msra.mxu0 0.0
        %3048 = vmatprep.subr.mxu0 0.0
        %3049 = vmatpush2.msra.mxu0 0.0
        %3050 = vmatprep.subr.mxu0 0.0
        %3051 = vmatpush2.msra.mxu0 0.0
        %3052 = vmatprep.mubr.f32.mxu0 0.0
        %3053 = vmatmul.mubr.f32.gmra.mxu0 %v2983
        %v3054 = vpop.f32.mrf.mxu0
        %v3055 = vadd.f32 0.0, %v3054
        %v3056 = vpop.f32.mrf.mxu0
        %3057 = vmatprep.mubr.f32.mxu0 0.0
        %3058 = vmatmul.mubr.f32.gmra.mxu0 %v2986
        %v3059 = vpop.f32.mrf.mxu0
        %v3060 = vadd.f32 0.0, %v3059
        %v3061 = vpop.f32.mrf.mxu0
        %3062 = vdwg.mxu0
        %3063 = vrot.lane.b32.xlu0 %v426, 32
        %v3064 = vpop.permute.xlu0 %3063
        %3065 = vrot.lane.b32.xlu0 %v432, 32
        %v3066 = vpop.permute.xlu0 %3065
        %3067 = vrot.lane.b32.xlu0 %v428, 32
        %v3068 = vpop.permute.xlu0 %3067
        %3069 = vrot.lane.b32.xlu0 %v434, 32
        %v3070 = vpop.permute.xlu0 %3069
        %v3071 = vsel %vm669, %v3064, 0
        %v3073 = vsel %vm669, %v3066, 0
        %v3075 = vsel %vm669, %v3068, 0
        %v3077 = vsel %vm669, %v3070, 0
        %3079 = vmatprep.subr.mxu0 0.0
        %3080 = vmatpush1.xpose.msra.mxu0 0.0
        %3081 = vmatprep.subr.mxu0 0.0
        %3082 = vmatpush1.xpose.msra.mxu0 0.0
        %3083 = vmatprep.subr.mxu0 0.0
        %3084 = vmatpush1.xpose.msra.mxu0 0.0
        %3085 = vmatprep.subr.mxu0 0.0
        %3086 = vmatpush1.xpose.msra.mxu0 0.0
        %3087 = vmatprep.subr.mxu0 0.0
        %3088 = vmatpush1.xpose.msra.mxu0 0.0
        %3089 = vmatprep.subr.mxu0 0.0
        %3090 = vmatpush1.xpose.msra.mxu0 0.0
        %3091 = vmatprep.subr.mxu0 0.0
        %3092 = vmatpush1.xpose.msra.mxu0 0.0
        %3093 = vmatprep.subr.mxu0 0.0
        %3094 = vmatpush1.xpose.msra.mxu0 0.0
        %3095 = vmatprep.subr.mxu0 0.0
        %3096 = vmatpush1.xpose.msra.mxu0 0.0
        %3097 = vmatprep.subr.mxu0 0.0
        %3098 = vmatpush1.xpose.msra.mxu0 0.0
        %3099 = vmatprep.subr.mxu0 0.0
        %3100 = vmatpush1.xpose.msra.mxu0 0.0
        %3101 = vmatprep.subr.mxu0 0.0
        %3102 = vmatpush1.xpose.msra.mxu0 0.0
        %3103 = vmatprep.subr.mxu0 0.0
        %3104 = vmatpush1.xpose.msra.mxu0 0.0
        %3105 = vmatprep.subr.mxu0 0.0
        %3106 = vmatpush1.xpose.msra.mxu0 0.0
        %3107 = vmatprep.subr.mxu0 0.0
        %3108 = vmatpush1.xpose.msra.mxu0 %v3077
        %3109 = vmatprep.subr.mxu0 0.0
        %3110 = vmatpush1.xpose.msra.mxu0 %v3075
        %3111 = vmatprep.subr.mxu0 0.0
        %3112 = vmatpush2.xpose.msra.mxu0 0.0
        %3113 = vmatprep.subr.mxu0 0.0
        %3114 = vmatpush2.xpose.msra.mxu0 0.0
        %3115 = vmatprep.subr.mxu0 0.0
        %3116 = vmatpush2.xpose.msra.mxu0 0.0
        %3117 = vmatprep.subr.mxu0 0.0
        %3118 = vmatpush2.xpose.msra.mxu0 0.0
        %3119 = vmatprep.subr.mxu0 0.0
        %3120 = vmatpush2.xpose.msra.mxu0 0.0
        %3121 = vmatprep.subr.mxu0 0.0
        %3122 = vmatpush2.xpose.msra.mxu0 0.0
        %3123 = vmatprep.subr.mxu0 0.0
        %3124 = vmatpush2.xpose.msra.mxu0 0.0
        %3125 = vmatprep.subr.mxu0 0.0
        %3126 = vmatpush2.xpose.msra.mxu0 0.0
        %3127 = vmatprep.subr.mxu0 0.0
        %3128 = vmatpush2.xpose.msra.mxu0 0.0
        %3129 = vmatprep.subr.mxu0 0.0
        %3130 = vmatpush2.xpose.msra.mxu0 0.0
        %3131 = vmatprep.subr.mxu0 0.0
        %3132 = vmatpush2.xpose.msra.mxu0 0.0
        %3133 = vmatprep.subr.mxu0 0.0
        %3134 = vmatpush2.xpose.msra.mxu0 0.0
        %3135 = vmatprep.subr.mxu0 0.0
        %3136 = vmatpush2.xpose.msra.mxu0 0.0
        %3137 = vmatprep.subr.mxu0 0.0
        %3138 = vmatpush2.xpose.msra.mxu0 0.0
        %3139 = vmatprep.subr.mxu0 0.0
        %3140 = vmatpush2.xpose.msra.mxu0 0.0
        %3141 = vmatprep.subr.mxu0 0.0
        %3142 = vmatpush2.xpose.msra.mxu0 0.0
        %3143 = vmatprep.mubr.f32.mxu0 0.0
        %3144 = vmatmul.mubr.f32.gmra.mxu0 %v3071
        %v3145 = vpop.f32.mrf.mxu0
        %v3146 = vadd.f32 0.0, %v3145
        %v3147 = vpop.f32.mrf.mxu0
        %3148 = vmatprep.mubr.f32.mxu0 0.0
        %3149 = vmatmul.mubr.f32.gmra.mxu0 %v3073
        %v3150 = vpop.f32.mrf.mxu0
        %v3151 = vadd.f32 0.0, %v3150
        %v3152 = vpop.f32.mrf.mxu0
        %3153 = vdwg.mxu0
        %3154 = vrot.lane.b32.xlu0 %v438, 32
        %v3155 = vpop.permute.xlu0 %3154
        %3156 = vrot.lane.b32.xlu0 %v444, 32
        %v3157 = vpop.permute.xlu0 %3156
        %3158 = vrot.lane.b32.xlu0 %v440, 32
        %v3159 = vpop.permute.xlu0 %3158
        %3160 = vrot.lane.b32.xlu0 %v446, 32
        %v3161 = vpop.permute.xlu0 %3160
        %v3162 = vsel %vm669, %v3155, 0
        %v3164 = vsel %vm669, %v3157, 0
        %v3166 = vsel %vm669, %v3159, 0
        %v3168 = vsel %vm669, %v3161, 0
        %3170 = vmatprep.subr.mxu0 0.0
        %3171 = vmatpush1.xpose.msra.mxu0 0.0
        %3172 = vmatprep.subr.mxu0 0.0
        %3173 = vmatpush1.xpose.msra.mxu0 0.0
        %3174 = vmatprep.subr.mxu0 0.0
        %3175 = vmatpush1.xpose.msra.mxu0 0.0
        %3176 = vmatprep.subr.mxu0 0.0
        %3177 = vmatpush1.xpose.msra.mxu0 0.0
        %3178 = vmatprep.subr.mxu0 0.0
        %3179 = vmatpush1.xpose.msra.mxu0 0.0
        %3180 = vmatprep.subr.mxu0 0.0
        %3181 = vmatpush1.xpose.msra.mxu0 0.0
        %3182 = vmatprep.subr.mxu0 0.0
        %3183 = vmatpush1.xpose.msra.mxu0 0.0
        %3184 = vmatprep.subr.mxu0 0.0
        %3185 = vmatpush1.xpose.msra.mxu0 0.0
        %3186 = vmatprep.subr.mxu0 0.0
        %3187 = vmatpush1.xpose.msra.mxu0 0.0
        %3188 = vmatprep.subr.mxu0 0.0
        %3189 = vmatpush1.xpose.msra.mxu0 0.0
        %3190 = vmatprep.subr.mxu0 0.0
        %3191 = vmatpush1.xpose.msra.mxu0 0.0
        %3192 = vmatprep.subr.mxu0 0.0
        %3193 = vmatpush1.xpose.msra.mxu0 0.0
        %3194 = vmatprep.subr.mxu0 0.0
        %3195 = vmatpush1.xpose.msra.mxu0 0.0
        %3196 = vmatprep.subr.mxu0 0.0
        %3197 = vmatpush1.xpose.msra.mxu0 0.0
        %3198 = vmatprep.subr.mxu0 0.0
        %3199 = vmatpush1.xpose.msra.mxu0 %v3168
        %3200 = vmatprep.subr.mxu0 0.0
        %3201 = vmatpush1.xpose.msra.mxu0 %v3166
        %3202 = vmatprep.subr.mxu0 0.0
        %3203 = vmatpush2.xpose.msra.mxu0 0.0
        %3204 = vmatprep.subr.mxu0 0.0
        %3205 = vmatpush2.xpose.msra.mxu0 0.0
        %3206 = vmatprep.subr.mxu0 0.0
        %3207 = vmatpush2.xpose.msra.mxu0 0.0
        %3208 = vmatprep.subr.mxu0 0.0
        %3209 = vmatpush2.xpose.msra.mxu0 0.0
        %3210 = vmatprep.subr.mxu0 0.0
        %3211 = vmatpush2.xpose.msra.mxu0 0.0
        %3212 = vmatprep.subr.mxu0 0.0
        %3213 = vmatpush2.xpose.msra.mxu0 0.0
        %3214 = vmatprep.subr.mxu0 0.0
        %3215 = vmatpush2.xpose.msra.mxu0 0.0
        %3216 = vmatprep.subr.mxu0 0.0
        %3217 = vmatpush2.xpose.msra.mxu0 0.0
        %3218 = vmatprep.subr.mxu0 0.0
        %3219 = vmatpush2.xpose.msra.mxu0 0.0
        %3220 = vmatprep.subr.mxu0 0.0
        %3221 = vmatpush2.xpose.msra.mxu0 0.0
        %3222 = vmatprep.subr.mxu0 0.0
        %3223 = vmatpush2.xpose.msra.mxu0 0.0
        %3224 = vmatprep.subr.mxu0 0.0
        %3225 = vmatpush2.xpose.msra.mxu0 0.0
        %3226 = vmatprep.subr.mxu0 0.0
        %3227 = vmatpush2.xpose.msra.mxu0 0.0
        %3228 = vmatprep.subr.mxu0 0.0
        %3229 = vmatpush2.xpose.msra.mxu0 0.0
        %3230 = vmatprep.subr.mxu0 0.0
        %3231 = vmatpush2.xpose.msra.mxu0 0.0
        %3232 = vmatprep.subr.mxu0 0.0
        %3233 = vmatpush2.xpose.msra.mxu0 0.0
        %3234 = vmatprep.mubr.f32.mxu0 0.0
        %3235 = vmatmul.mubr.f32.gmra.mxu0 %v3162
        %v3236 = vpop.f32.mrf.mxu0
        %v3237 = vadd.f32 0.0, %v3236
        %v3238 = vpop.f32.mrf.mxu0
        %3239 = vmatprep.mubr.f32.mxu0 0.0
        %3240 = vmatmul.mubr.f32.gmra.mxu0 %v3164
        %v3241 = vpop.f32.mrf.mxu0
        %v3242 = vadd.f32 0.0, %v3241
        %v3243 = vpop.f32.mrf.mxu0
        %3244 = vdwg.mxu0
        %3245 = vrot.lane.b32.xlu0 %v450, 32
        %v3246 = vpop.permute.xlu0 %3245
        %3247 = vrot.lane.b32.xlu0 %v456, 32
        %v3248 = vpop.permute.xlu0 %3247
        %3249 = vrot.lane.b32.xlu0 %v452, 32
        %v3250 = vpop.permute.xlu0 %3249
        %3251 = vrot.lane.b32.xlu0 %v458, 32
        %v3252 = vpop.permute.xlu0 %3251
        %v3253 = vsel %vm669, %v3246, 0
        %v3255 = vsel %vm669, %v3248, 0
        %v3257 = vsel %vm669, %v3250, 0
        %v3259 = vsel %vm669, %v3252, 0
        %3261 = vmatprep.subr.mxu0 0.0
        %3262 = vmatpush1.xpose.msra.mxu0 0.0
        %3263 = vmatprep.subr.mxu0 0.0
        %3264 = vmatpush1.xpose.msra.mxu0 0.0
        %3265 = vmatprep.subr.mxu0 0.0
        %3266 = vmatpush1.xpose.msra.mxu0 0.0
        %3267 = vmatprep.subr.mxu0 0.0
        %3268 = vmatpush1.xpose.msra.mxu0 0.0
        %3269 = vmatprep.subr.mxu0 0.0
        %3270 = vmatpush1.xpose.msra.mxu0 0.0
        %3271 = vmatprep.subr.mxu0 0.0
        %3272 = vmatpush1.xpose.msra.mxu0 0.0
        %3273 = vmatprep.subr.mxu0 0.0
        %3274 = vmatpush1.xpose.msra.mxu0 0.0
        %3275 = vmatprep.subr.mxu0 0.0
        %3276 = vmatpush1.xpose.msra.mxu0 0.0
        %3277 = vmatprep.subr.mxu0 0.0
        %3278 = vmatpush1.xpose.msra.mxu0 0.0
        %3279 = vmatprep.subr.mxu0 0.0
        %3280 = vmatpush1.xpose.msra.mxu0 0.0
        %3281 = vmatprep.subr.mxu0 0.0
        %3282 = vmatpush1.xpose.msra.mxu0 0.0
        %3283 = vmatprep.subr.mxu0 0.0
        %3284 = vmatpush1.xpose.msra.mxu0 0.0
        %3285 = vmatprep.subr.mxu0 0.0
        %3286 = vmatpush1.xpose.msra.mxu0 0.0
        %3287 = vmatprep.subr.mxu0 0.0
        %3288 = vmatpush1.xpose.msra.mxu0 0.0
        %3289 = vmatprep.subr.mxu0 0.0
        %3290 = vmatpush1.xpose.msra.mxu0 %v3259
        %3291 = vmatprep.subr.mxu0 0.0
        %3292 = vmatpush1.xpose.msra.mxu0 %v3257
        %3293 = vmatprep.subr.mxu0 0.0
        %3294 = vmatpush2.xpose.msra.mxu0 0.0
        %3295 = vmatprep.subr.mxu0 0.0
        %3296 = vmatpush2.xpose.msra.mxu0 0.0
        %3297 = vmatprep.subr.mxu0 0.0
        %3298 = vmatpush2.xpose.msra.mxu0 0.0
        %3299 = vmatprep.subr.mxu0 0.0
        %3300 = vmatpush2.xpose.msra.mxu0 0.0
        %3301 = vmatprep.subr.mxu0 0.0
        %3302 = vmatpush2.xpose.msra.mxu0 0.0
        %3303 = vmatprep.subr.mxu0 0.0
        %3304 = vmatpush2.xpose.msra.mxu0 0.0
        %3305 = vmatprep.subr.mxu0 0.0
        %3306 = vmatpush2.xpose.msra.mxu0 0.0
        %3307 = vmatprep.subr.mxu0 0.0
        %3308 = vmatpush2.xpose.msra.mxu0 0.0
        %3309 = vmatprep.subr.mxu0 0.0
        %3310 = vmatpush2.xpose.msra.mxu0 0.0
        %3311 = vmatprep.subr.mxu0 0.0
        %3312 = vmatpush2.xpose.msra.mxu0 0.0
        %3313 = vmatprep.subr.mxu0 0.0
        %3314 = vmatpush2.xpose.msra.mxu0 0.0
        %3315 = vmatprep.subr.mxu0 0.0
        %3316 = vmatpush2.xpose.msra.mxu0 0.0
        %3317 = vmatprep.subr.mxu0 0.0
        %3318 = vmatpush2.xpose.msra.mxu0 0.0
        %3319 = vmatprep.subr.mxu0 0.0
        %3320 = vmatpush2.xpose.msra.mxu0 0.0
        %3321 = vmatprep.subr.mxu0 0.0
        %3322 = vmatpush2.xpose.msra.mxu0 0.0
        %3323 = vmatprep.subr.mxu0 0.0
        %3324 = vmatpush2.xpose.msra.mxu0 0.0
        %3325 = vmatprep.mubr.f32.mxu0 0.0
        %3326 = vmatmul.mubr.f32.gmra.mxu0 %v3253
        %v3327 = vpop.f32.mrf.mxu0
        %v3328 = vadd.f32 0.0, %v3327
        %v3329 = vpop.f32.mrf.mxu0
        %3330 = vmatprep.mubr.f32.mxu0 0.0
        %3331 = vmatmul.mubr.f32.gmra.mxu0 %v3255
        %v3332 = vpop.f32.mrf.mxu0
        %v3333 = vadd.f32 0.0, %v3332
        %v3334 = vpop.f32.mrf.mxu0
        %3335 = vdwg.mxu0
        %3336 = vrot.lane.b32.xlu0 %v462, 32
        %v3337 = vpop.permute.xlu0 %3336
        %3338 = vrot.lane.b32.xlu0 %v468, 32
        %v3339 = vpop.permute.xlu0 %3338
        %3340 = vrot.lane.b32.xlu0 %v464, 32
        %v3341 = vpop.permute.xlu0 %3340
        %3342 = vrot.lane.b32.xlu0 %v470, 32
        %v3343 = vpop.permute.xlu0 %3342
        %v3344 = vsel %vm669, %v3337, 0
        %v3346 = vsel %vm669, %v3339, 0
        %v3348 = vsel %vm669, %v3341, 0
        %v3350 = vsel %vm669, %v3343, 0
        %3352 = vmatprep.subr.mxu0 0.0
        %3353 = vmatpush1.xpose.msra.mxu0 0.0
        %3354 = vmatprep.subr.mxu0 0.0
        %3355 = vmatpush1.xpose.msra.mxu0 0.0
        %3356 = vmatprep.subr.mxu0 0.0
        %3357 = vmatpush1.xpose.msra.mxu0 0.0
        %3358 = vmatprep.subr.mxu0 0.0
        %3359 = vmatpush1.xpose.msra.mxu0 0.0
        %3360 = vmatprep.subr.mxu0 0.0
        %3361 = vmatpush1.xpose.msra.mxu0 0.0
        %3362 = vmatprep.subr.mxu0 0.0
        %3363 = vmatpush1.xpose.msra.mxu0 0.0
        %3364 = vmatprep.subr.mxu0 0.0
        %3365 = vmatpush1.xpose.msra.mxu0 0.0
        %3366 = vmatprep.subr.mxu0 0.0
        %3367 = vmatpush1.xpose.msra.mxu0 0.0
        %3368 = vmatprep.subr.mxu0 0.0
        %3369 = vmatpush1.xpose.msra.mxu0 0.0
        %3370 = vmatprep.subr.mxu0 0.0
        %3371 = vmatpush1.xpose.msra.mxu0 0.0
        %3372 = vmatprep.subr.mxu0 0.0
        %3373 = vmatpush1.xpose.msra.mxu0 0.0
        %3374 = vmatprep.subr.mxu0 0.0
        %3375 = vmatpush1.xpose.msra.mxu0 0.0
        %3376 = vmatprep.subr.mxu0 0.0
        %3377 = vmatpush1.xpose.msra.mxu0 0.0
        %3378 = vmatprep.subr.mxu0 0.0
        %3379 = vmatpush1.xpose.msra.mxu0 0.0
        %3380 = vmatprep.subr.mxu0 0.0
        %3381 = vmatpush1.xpose.msra.mxu0 %v3350
        %3382 = vmatprep.subr.mxu0 0.0
        %3383 = vmatpush1.xpose.msra.mxu0 %v3348
        %3384 = vmatprep.subr.mxu0 0.0
        %3385 = vmatpush2.xpose.msra.mxu0 0.0
        %3386 = vmatprep.subr.mxu0 0.0
        %3387 = vmatpush2.xpose.msra.mxu0 0.0
        %3388 = vmatprep.subr.mxu0 0.0
        %3389 = vmatpush2.xpose.msra.mxu0 0.0
        %3390 = vmatprep.subr.mxu0 0.0
        %3391 = vmatpush2.xpose.msra.mxu0 0.0
        %3392 = vmatprep.subr.mxu0 0.0
        %3393 = vmatpush2.xpose.msra.mxu0 0.0
        %3394 = vmatprep.subr.mxu0 0.0
        %3395 = vmatpush2.xpose.msra.mxu0 0.0
        %3396 = vmatprep.subr.mxu0 0.0
        %3397 = vmatpush2.xpose.msra.mxu0 0.0
        %3398 = vmatprep.subr.mxu0 0.0
        %3399 = vmatpush2.xpose.msra.mxu0 0.0
        %3400 = vmatprep.subr.mxu0 0.0
        %3401 = vmatpush2.xpose.msra.mxu0 0.0
        %3402 = vmatprep.subr.mxu0 0.0
        %3403 = vmatpush2.xpose.msra.mxu0 0.0
        %3404 = vmatprep.subr.mxu0 0.0
        %3405 = vmatpush2.xpose.msra.mxu0 0.0
        %3406 = vmatprep.subr.mxu0 0.0
        %3407 = vmatpush2.xpose.msra.mxu0 0.0
        %3408 = vmatprep.subr.mxu0 0.0
        %3409 = vmatpush2.xpose.msra.mxu0 0.0
        %3410 = vmatprep.subr.mxu0 0.0
        %3411 = vmatpush2.xpose.msra.mxu0 0.0
        %3412 = vmatprep.subr.mxu0 0.0
        %3413 = vmatpush2.xpose.msra.mxu0 0.0
        %3414 = vmatprep.subr.mxu0 0.0
        %3415 = vmatpush2.xpose.msra.mxu0 0.0
        %3416 = vmatprep.mubr.f32.mxu0 0.0
        %3417 = vmatmul.mubr.f32.gmra.mxu0 %v3344
        %v3418 = vpop.f32.mrf.mxu0
        %v3419 = vadd.f32 0.0, %v3418
        %v3420 = vpop.f32.mrf.mxu0
        %3421 = vmatprep.mubr.f32.mxu0 0.0
        %3422 = vmatmul.mubr.f32.gmra.mxu0 %v3346
        %v3423 = vpop.f32.mrf.mxu0
        %v3424 = vadd.f32 0.0, %v3423
        %v3425 = vpop.f32.mrf.mxu0
        %3426 = vdwg.mxu0
        %v3427 = vsel %vm661, %v3146, -3.4028235e+38
        %v3428 = vsel %vm662, %v3151, -3.4028235e+38
        %v3429 = vsel %vm663, %v3237, -3.4028235e+38
        %v3430 = vsel %vm664, %v3242, -3.4028235e+38
        %v3431 = vsel %vm665, %v3328, -3.4028235e+38
        %v3432 = vsel %vm666, %v3333, -3.4028235e+38
        %v3433 = vsel %vm667, %v3419, -3.4028235e+38
        %v3434 = vsel %vm668, %v3424, -3.4028235e+38
        %v3435 = vsel %vm1026, %v3427, -inf
        %3436 = vmax.xlane.f32.xlu0 %v3435
        %v3437 = vpop.xlane.xlu0 %3436
        %v3438 = vsel %vm1026, %v3428, -inf
        %3439 = vmax.xlane.f32.xlu0 %v3438
        %v3440 = vpop.xlane.xlu0 %3439
        %v3441 = vsel %vm1026, %v3429, -inf
        %3442 = vmax.xlane.f32.xlu0 %v3441
        %v3443 = vpop.xlane.xlu0 %3442
        %v3444 = vsel %vm1026, %v3430, -inf
        %3445 = vmax.xlane.f32.xlu0 %v3444
        %v3446 = vpop.xlane.xlu0 %3445
        %v3447 = vsel %vm1026, %v3431, -inf
        %3448 = vmax.xlane.f32.xlu0 %v3447
        %v3449 = vpop.xlane.xlu0 %3448
        %v3450 = vsel %vm1026, %v3432, -inf
        %3451 = vmax.xlane.f32.xlu0 %v3450
        %v3452 = vpop.xlane.xlu0 %3451
        %v3453 = vsel %vm1026, %v3433, -inf
        %3454 = vmax.xlane.f32.xlu0 %v3453
        %v3455 = vpop.xlane.xlu0 %3454
        %v3456 = vsel %vm1026, %v3434, -inf
        %3457 = vmax.xlane.f32.xlu0 %v3456
        %v3458 = vpop.xlane.xlu0 %3457
        %v3459 = vsub.f32 %v3427, %v3437
        %v3460 = vsub.f32 %v3428, %v3440
        %v3461 = vsub.f32 %v3429, %v3443
        %v3462 = vsub.f32 %v3430, %v3446
        %v3463 = vsub.f32 %v3431, %v3449
        %v3464 = vsub.f32 %v3432, %v3452
        %v3465 = vsub.f32 %v3433, %v3455
        %v3466 = vsub.f32 %v3434, %v3458
        %v3467 = vmul.f32 %v3459, 1.442695
        %v3468 = vpow.pop %v3467
        %v3469 = vmul.f32 %v3460, 1.442695
        %v3470 = vpow.pop %v3469
        %v3471 = vmul.f32 %v3461, 1.442695
        %v3472 = vpow.pop %v3471
        %v3473 = vmul.f32 %v3462, 1.442695
        %v3474 = vpow.pop %v3473
        %v3475 = vmul.f32 %v3463, 1.442695
        %v3476 = vpow.pop %v3475
        %v3477 = vmul.f32 %v3464, 1.442695
        %v3478 = vpow.pop %v3477
        %v3479 = vmul.f32 %v3465, 1.442695
        %v3480 = vpow.pop %v3479
        %v3481 = vmul.f32 %v3466, 1.442695
        %v3482 = vpow.pop %v3481
        %v3483 = vsel %vm1026, %v3468, 0.0
        %3484 = vadd.xlane.f32.xlu0 %v3483
        %v3485 = vpop.xlane.xlu0 %3484
        %v3486 = vsel %vm1026, %v3470, 0.0
        %3487 = vadd.xlane.f32.xlu0 %v3486
        %v3488 = vpop.xlane.xlu0 %3487
        %v3489 = vsel %vm1026, %v3472, 0.0
        %3490 = vadd.xlane.f32.xlu0 %v3489
        %v3491 = vpop.xlane.xlu0 %3490
        %v3492 = vsel %vm1026, %v3474, 0.0
        %3493 = vadd.xlane.f32.xlu0 %v3492
        %v3494 = vpop.xlane.xlu0 %3493
        %v3495 = vsel %vm1026, %v3476, 0.0
        %3496 = vadd.xlane.f32.xlu0 %v3495
        %v3497 = vpop.xlane.xlu0 %3496
        %v3498 = vsel %vm1026, %v3478, 0.0
        %3499 = vadd.xlane.f32.xlu0 %v3498
        %v3500 = vpop.xlane.xlu0 %3499
        %v3501 = vsel %vm1026, %v3480, 0.0
        %3502 = vadd.xlane.f32.xlu0 %v3501
        %v3503 = vpop.xlane.xlu0 %3502
        %v3504 = vsel %vm1026, %v3482, 0.0
        %3505 = vadd.xlane.f32.xlu0 %v3504
        %v3506 = vpop.xlane.xlu0 %3505
        %v3507 = vrcp.pop %v3485
        %v3508 = vrcp.pop %v3488
        %v3509 = vrcp.pop %v3491
        %v3510 = vrcp.pop %v3494
        %v3511 = vrcp.pop %v3497
        %v3512 = vrcp.pop %v3500
        %v3513 = vrcp.pop %v3503
        %v3514 = vrcp.pop %v3506
        %v3515 = vmul.f32 %v3468, %v3507
        %v3516 = vmul.f32 %v3470, %v3508
        %v3517 = vmul.f32 %v3472, %v3509
        %v3518 = vmul.f32 %v3474, %v3510
        %v3519 = vmul.f32 %v3476, %v3511
        %v3520 = vmul.f32 %v3478, %v3512
        %v3521 = vmul.f32 %v3480, %v3513
        %v3522 = vmul.f32 %v3482, %v3514
        %3523 = vrot.lane.b32.xlu0 %v539, 32
        %v3524 = vpop.permute.xlu0 %3523
        %3525 = vrot.lane.b32.xlu0 %v544, 32
        %v3526 = vpop.permute.xlu0 %3525
        %v3530 = vsel %vm1026, %v3515, 0
        %v3533 = vsel %vm1026, %v3516, 0
        %3535 = vmatprep.subr.mxu0 0.0
        %3536 = vmatpush1.msra.mxu0 0.0
        %3537 = vmatprep.subr.mxu0 0.0
        %3538 = vmatpush1.msra.mxu0 0.0
        %3539 = vmatprep.subr.mxu0 0.0
        %3540 = vmatpush1.msra.mxu0 0.0
        %3541 = vmatprep.subr.mxu0 0.0
        %3542 = vmatpush1.msra.mxu0 0.0
        %3543 = vmatprep.subr.mxu0 0.0
        %3544 = vmatpush1.msra.mxu0 0.0
        %3545 = vmatprep.subr.mxu0 0.0
        %3546 = vmatpush1.msra.mxu0 0.0
        %3547 = vmatprep.subr.mxu0 0.0
        %3548 = vmatpush1.msra.mxu0 0.0
        %3549 = vmatprep.subr.mxu0 0.0
        %3550 = vmatpush1.msra.mxu0 0.0
        %3551 = vmatprep.subr.mxu0 0.0
        %3552 = vmatpush1.msra.mxu0 0.0
        %3553 = vmatprep.subr.mxu0 0.0
        %3554 = vmatpush1.msra.mxu0 0.0
        %3555 = vmatprep.subr.mxu0 0.0
        %3556 = vmatpush1.msra.mxu0 0.0
        %3557 = vmatprep.subr.mxu0 0.0
        %3558 = vmatpush1.msra.mxu0 0.0
        %3559 = vmatprep.subr.mxu0 0.0
        %3560 = vmatpush1.msra.mxu0 0.0
        %3561 = vmatprep.subr.mxu0 0.0
        %3562 = vmatpush1.msra.mxu0 0.0
        %3563 = vmatprep.subr.mxu0 0.0
        %3564 = vmatpush1.msra.mxu0 %v3526
        %3565 = vmatprep.subr.mxu0 0.0
        %3566 = vmatpush1.msra.mxu0 %v3524
        %3567 = vmatprep.subr.mxu0 0.0
        %3568 = vmatpush2.msra.mxu0 0.0
        %3569 = vmatprep.subr.mxu0 0.0
        %3570 = vmatpush2.msra.mxu0 0.0
        %3571 = vmatprep.subr.mxu0 0.0
        %3572 = vmatpush2.msra.mxu0 0.0
        %3573 = vmatprep.subr.mxu0 0.0
        %3574 = vmatpush2.msra.mxu0 0.0
        %3575 = vmatprep.subr.mxu0 0.0
        %3576 = vmatpush2.msra.mxu0 0.0
        %3577 = vmatprep.subr.mxu0 0.0
        %3578 = vmatpush2.msra.mxu0 0.0
        %3579 = vmatprep.subr.mxu0 0.0
        %3580 = vmatpush2.msra.mxu0 0.0
        %3581 = vmatprep.subr.mxu0 0.0
        %3582 = vmatpush2.msra.mxu0 0.0
        %3583 = vmatprep.subr.mxu0 0.0
        %3584 = vmatpush2.msra.mxu0 0.0
        %3585 = vmatprep.subr.mxu0 0.0
        %3586 = vmatpush2.msra.mxu0 0.0
        %3587 = vmatprep.subr.mxu0 0.0
        %3588 = vmatpush2.msra.mxu0 0.0
        %3589 = vmatprep.subr.mxu0 0.0
        %3590 = vmatpush2.msra.mxu0 0.0
        %3591 = vmatprep.subr.mxu0 0.0
        %3592 = vmatpush2.msra.mxu0 0.0
        %3593 = vmatprep.subr.mxu0 0.0
        %3594 = vmatpush2.msra.mxu0 0.0
        %3595 = vmatprep.subr.mxu0 0.0
        %3596 = vmatpush2.msra.mxu0 0.0
        %3597 = vmatprep.subr.mxu0 0.0
        %3598 = vmatpush2.msra.mxu0 0.0
        %3599 = vmatprep.mubr.f32.mxu0 0.0
        %3600 = vmatmul.mubr.f32.gmra.mxu0 %v3530
        %v3601 = vpop.f32.mrf.mxu0
        %v3602 = vadd.f32 0.0, %v3601
        %v3603 = vpop.f32.mrf.mxu0
        %3604 = vmatprep.mubr.f32.mxu0 0.0
        %3605 = vmatmul.mubr.f32.gmra.mxu0 %v3533
        %v3606 = vpop.f32.mrf.mxu0
        %v3607 = vadd.f32 0.0, %v3606
        %v3608 = vpop.f32.mrf.mxu0
        %3609 = vdwg.mxu0
        %3610 = vrot.lane.b32.xlu0 %v549, 32
        %v3611 = vpop.permute.xlu0 %3610
        %3612 = vrot.lane.b32.xlu0 %v554, 32
        %v3613 = vpop.permute.xlu0 %3612
        %v3617 = vsel %vm1026, %v3517, 0
        %v3620 = vsel %vm1026, %v3518, 0
        %3622 = vmatprep.subr.mxu0 0.0
        %3623 = vmatpush1.msra.mxu0 0.0
        %3624 = vmatprep.subr.mxu0 0.0
        %3625 = vmatpush1.msra.mxu0 0.0
        %3626 = vmatprep.subr.mxu0 0.0
        %3627 = vmatpush1.msra.mxu0 0.0
        %3628 = vmatprep.subr.mxu0 0.0
        %3629 = vmatpush1.msra.mxu0 0.0
        %3630 = vmatprep.subr.mxu0 0.0
        %3631 = vmatpush1.msra.mxu0 0.0
        %3632 = vmatprep.subr.mxu0 0.0
        %3633 = vmatpush1.msra.mxu0 0.0
        %3634 = vmatprep.subr.mxu0 0.0
        %3635 = vmatpush1.msra.mxu0 0.0
        %3636 = vmatprep.subr.mxu0 0.0
        %3637 = vmatpush1.msra.mxu0 0.0
        %3638 = vmatprep.subr.mxu0 0.0
        %3639 = vmatpush1.msra.mxu0 0.0
        %3640 = vmatprep.subr.mxu0 0.0
        %3641 = vmatpush1.msra.mxu0 0.0
        %3642 = vmatprep.subr.mxu0 0.0
        %3643 = vmatpush1.msra.mxu0 0.0
        %3644 = vmatprep.subr.mxu0 0.0
        %3645 = vmatpush1.msra.mxu0 0.0
        %3646 = vmatprep.subr.mxu0 0.0
        %3647 = vmatpush1.msra.mxu0 0.0
        %3648 = vmatprep.subr.mxu0 0.0
        %3649 = vmatpush1.msra.mxu0 0.0
        %3650 = vmatprep.subr.mxu0 0.0
        %3651 = vmatpush1.msra.mxu0 %v3613
        %3652 = vmatprep.subr.mxu0 0.0
        %3653 = vmatpush1.msra.mxu0 %v3611
        %3654 = vmatprep.subr.mxu0 0.0
        %3655 = vmatpush2.msra.mxu0 0.0
        %3656 = vmatprep.subr.mxu0 0.0
        %3657 = vmatpush2.msra.mxu0 0.0
        %3658 = vmatprep.subr.mxu0 0.0
        %3659 = vmatpush2.msra.mxu0 0.0
        %3660 = vmatprep.subr.mxu0 0.0
        %3661 = vmatpush2.msra.mxu0 0.0
        %3662 = vmatprep.subr.mxu0 0.0
        %3663 = vmatpush2.msra.mxu0 0.0
        %3664 = vmatprep.subr.mxu0 0.0
        %3665 = vmatpush2.msra.mxu0 0.0
        %3666 = vmatprep.subr.mxu0 0.0
        %3667 = vmatpush2.msra.mxu0 0.0
        %3668 = vmatprep.subr.mxu0 0.0
        %3669 = vmatpush2.msra.mxu0 0.0
        %3670 = vmatprep.subr.mxu0 0.0
        %3671 = vmatpush2.msra.mxu0 0.0
        %3672 = vmatprep.subr.mxu0 0.0
        %3673 = vmatpush2.msra.mxu0 0.0
        %3674 = vmatprep.subr.mxu0 0.0
        %3675 = vmatpush2.msra.mxu0 0.0
        %3676 = vmatprep.subr.mxu0 0.0
        %3677 = vmatpush2.msra.mxu0 0.0
        %3678 = vmatprep.subr.mxu0 0.0
        %3679 = vmatpush2.msra.mxu0 0.0
        %3680 = vmatprep.subr.mxu0 0.0
        %3681 = vmatpush2.msra.mxu0 0.0
        %3682 = vmatprep.subr.mxu0 0.0
        %3683 = vmatpush2.msra.mxu0 0.0
        %3684 = vmatprep.subr.mxu0 0.0
        %3685 = vmatpush2.msra.mxu0 0.0
        %3686 = vmatprep.mubr.f32.mxu0 0.0
        %3687 = vmatmul.mubr.f32.gmra.mxu0 %v3617
        %v3688 = vpop.f32.mrf.mxu0
        %v3689 = vadd.f32 0.0, %v3688
        %v3690 = vpop.f32.mrf.mxu0
        %3691 = vmatprep.mubr.f32.mxu0 0.0
        %3692 = vmatmul.mubr.f32.gmra.mxu0 %v3620
        %v3693 = vpop.f32.mrf.mxu0
        %v3694 = vadd.f32 0.0, %v3693
        %v3695 = vpop.f32.mrf.mxu0
        %3696 = vdwg.mxu0
        %3697 = vrot.lane.b32.xlu0 %v559, 32
        %v3698 = vpop.permute.xlu0 %3697
        %3699 = vrot.lane.b32.xlu0 %v564, 32
        %v3700 = vpop.permute.xlu0 %3699
        %v3704 = vsel %vm1026, %v3519, 0
        %v3707 = vsel %vm1026, %v3520, 0
        %3709 = vmatprep.subr.mxu0 0.0
        %3710 = vmatpush1.msra.mxu0 0.0
        %3711 = vmatprep.subr.mxu0 0.0
        %3712 = vmatpush1.msra.mxu0 0.0
        %3713 = vmatprep.subr.mxu0 0.0
        %3714 = vmatpush1.msra.mxu0 0.0
        %3715 = vmatprep.subr.mxu0 0.0
        %3716 = vmatpush1.msra.mxu0 0.0
        %3717 = vmatprep.subr.mxu0 0.0
        %3718 = vmatpush1.msra.mxu0 0.0
        %3719 = vmatprep.subr.mxu0 0.0
        %3720 = vmatpush1.msra.mxu0 0.0
        %3721 = vmatprep.subr.mxu0 0.0
        %3722 = vmatpush1.msra.mxu0 0.0
        %3723 = vmatprep.subr.mxu0 0.0
        %3724 = vmatpush1.msra.mxu0 0.0
        %3725 = vmatprep.subr.mxu0 0.0
        %3726 = vmatpush1.msra.mxu0 0.0
        %3727 = vmatprep.subr.mxu0 0.0
        %3728 = vmatpush1.msra.mxu0 0.0
        %3729 = vmatprep.subr.mxu0 0.0
        %3730 = vmatpush1.msra.mxu0 0.0
        %3731 = vmatprep.subr.mxu0 0.0
        %3732 = vmatpush1.msra.mxu0 0.0
        %3733 = vmatprep.subr.mxu0 0.0
        %3734 = vmatpush1.msra.mxu0 0.0
        %3735 = vmatprep.subr.mxu0 0.0
        %3736 = vmatpush1.msra.mxu0 0.0
        %3737 = vmatprep.subr.mxu0 0.0
        %3738 = vmatpush1.msra.mxu0 %v3700
        %3739 = vmatprep.subr.mxu0 0.0
        %3740 = vmatpush1.msra.mxu0 %v3698
        %3741 = vmatprep.subr.mxu0 0.0
        %3742 = vmatpush2.msra.mxu0 0.0
        %3743 = vmatprep.subr.mxu0 0.0
        %3744 = vmatpush2.msra.mxu0 0.0
        %3745 = vmatprep.subr.mxu0 0.0
        %3746 = vmatpush2.msra.mxu0 0.0
        %3747 = vmatprep.subr.mxu0 0.0
        %3748 = vmatpush2.msra.mxu0 0.0
        %3749 = vmatprep.subr.mxu0 0.0
        %3750 = vmatpush2.msra.mxu0 0.0
        %3751 = vmatprep.subr.mxu0 0.0
        %3752 = vmatpush2.msra.mxu0 0.0
        %3753 = vmatprep.subr.mxu0 0.0
        %3754 = vmatpush2.msra.mxu0 0.0
        %3755 = vmatprep.subr.mxu0 0.0
        %3756 = vmatpush2.msra.mxu0 0.0
        %3757 = vmatprep.subr.mxu0 0.0
        %3758 = vmatpush2.msra.mxu0 0.0
        %3759 = vmatprep.subr.mxu0 0.0
        %3760 = vmatpush2.msra.mxu0 0.0
        %3761 = vmatprep.subr.mxu0 0.0
        %3762 = vmatpush2.msra.mxu0 0.0
        %3763 = vmatprep.subr.mxu0 0.0
        %3764 = vmatpush2.msra.mxu0 0.0
        %3765 = vmatprep.subr.mxu0 0.0
        %3766 = vmatpush2.msra.mxu0 0.0
        %3767 = vmatprep.subr.mxu0 0.0
        %3768 = vmatpush2.msra.mxu0 0.0
        %3769 = vmatprep.subr.mxu0 0.0
        %3770 = vmatpush2.msra.mxu0 0.0
        %3771 = vmatprep.subr.mxu0 0.0
        %3772 = vmatpush2.msra.mxu0 0.0
        %3773 = vmatprep.mubr.f32.mxu0 0.0
        %3774 = vmatmul.mubr.f32.gmra.mxu0 %v3704
        %v3775 = vpop.f32.mrf.mxu0
        %v3776 = vadd.f32 0.0, %v3775
        %v3777 = vpop.f32.mrf.mxu0
        %3778 = vmatprep.mubr.f32.mxu0 0.0
        %3779 = vmatmul.mubr.f32.gmra.mxu0 %v3707
        %v3780 = vpop.f32.mrf.mxu0
        %v3781 = vadd.f32 0.0, %v3780
        %v3782 = vpop.f32.mrf.mxu0
        %3783 = vdwg.mxu0
        %3784 = vrot.lane.b32.xlu0 %v569, 32
        %v3785 = vpop.permute.xlu0 %3784
        %3786 = vrot.lane.b32.xlu0 %v574, 32
        %v3787 = vpop.permute.xlu0 %3786
        %v3791 = vsel %vm1026, %v3521, 0
        %v3794 = vsel %vm1026, %v3522, 0
        %3796 = vmatprep.subr.mxu0 0.0
        %3797 = vmatpush1.msra.mxu0 0.0
        %3798 = vmatprep.subr.mxu0 0.0
        %3799 = vmatpush1.msra.mxu0 0.0
        %3800 = vmatprep.subr.mxu0 0.0
        %3801 = vmatpush1.msra.mxu0 0.0
        %3802 = vmatprep.subr.mxu0 0.0
        %3803 = vmatpush1.msra.mxu0 0.0
        %3804 = vmatprep.subr.mxu0 0.0
        %3805 = vmatpush1.msra.mxu0 0.0
        %3806 = vmatprep.subr.mxu0 0.0
        %3807 = vmatpush1.msra.mxu0 0.0
        %3808 = vmatprep.subr.mxu0 0.0
        %3809 = vmatpush1.msra.mxu0 0.0
        %3810 = vmatprep.subr.mxu0 0.0
        %3811 = vmatpush1.msra.mxu0 0.0
        %3812 = vmatprep.subr.mxu0 0.0
        %3813 = vmatpush1.msra.mxu0 0.0
        %3814 = vmatprep.subr.mxu0 0.0
        %3815 = vmatpush1.msra.mxu0 0.0
        %3816 = vmatprep.subr.mxu0 0.0
        %3817 = vmatpush1.msra.mxu0 0.0
        %3818 = vmatprep.subr.mxu0 0.0
        %3819 = vmatpush1.msra.mxu0 0.0
        %3820 = vmatprep.subr.mxu0 0.0
        %3821 = vmatpush1.msra.mxu0 0.0
        %3822 = vmatprep.subr.mxu0 0.0
        %3823 = vmatpush1.msra.mxu0 0.0
        %3824 = vmatprep.subr.mxu0 0.0
        %3825 = vmatpush1.msra.mxu0 %v3787
        %3826 = vmatprep.subr.mxu0 0.0
        %3827 = vmatpush1.msra.mxu0 %v3785
        %3828 = vmatprep.subr.mxu0 0.0
        %3829 = vmatpush2.msra.mxu0 0.0
        %3830 = vmatprep.subr.mxu0 0.0
        %3831 = vmatpush2.msra.mxu0 0.0
        %3832 = vmatprep.subr.mxu0 0.0
        %3833 = vmatpush2.msra.mxu0 0.0
        %3834 = vmatprep.subr.mxu0 0.0
        %3835 = vmatpush2.msra.mxu0 0.0
        %3836 = vmatprep.subr.mxu0 0.0
        %3837 = vmatpush2.msra.mxu0 0.0
        %3838 = vmatprep.subr.mxu0 0.0
        %3839 = vmatpush2.msra.mxu0 0.0
        %3840 = vmatprep.subr.mxu0 0.0
        %3841 = vmatpush2.msra.mxu0 0.0
        %3842 = vmatprep.subr.mxu0 0.0
        %3843 = vmatpush2.msra.mxu0 0.0
        %3844 = vmatprep.subr.mxu0 0.0
        %3845 = vmatpush2.msra.mxu0 0.0
        %3846 = vmatprep.subr.mxu0 0.0
        %3847 = vmatpush2.msra.mxu0 0.0
        %3848 = vmatprep.subr.mxu0 0.0
        %3849 = vmatpush2.msra.mxu0 0.0
        %3850 = vmatprep.subr.mxu0 0.0
        %3851 = vmatpush2.msra.mxu0 0.0
        %3852 = vmatprep.subr.mxu0 0.0
        %3853 = vmatpush2.msra.mxu0 0.0
        %3854 = vmatprep.subr.mxu0 0.0
        %3855 = vmatpush2.msra.mxu0 0.0
        %3856 = vmatprep.subr.mxu0 0.0
        %3857 = vmatpush2.msra.mxu0 0.0
        %3858 = vmatprep.subr.mxu0 0.0
        %3859 = vmatpush2.msra.mxu0 0.0
        %3860 = vmatprep.mubr.f32.mxu0 0.0
        %3861 = vmatmul.mubr.f32.gmra.mxu0 %v3791
        %v3862 = vpop.f32.mrf.mxu0
        %v3863 = vadd.f32 0.0, %v3862
        %v3864 = vpop.f32.mrf.mxu0
        %3865 = vmatprep.mubr.f32.mxu0 0.0
        %3866 = vmatmul.mubr.f32.gmra.mxu0 %v3794
        %v3867 = vpop.f32.mrf.mxu0
        %v3868 = vadd.f32 0.0, %v3867
        %v3869 = vpop.f32.mrf.mxu0
        %3870 = vdwg.mxu0
        %3879 = vrot.lane.b32.xlu0 %v1980, 32
        %v3880 = vpop.permute.xlu0 %3879
        %3881 = vrot.lane.b32.xlu0 %v1985, 32
        %v3882 = vpop.permute.xlu0 %3881
        %3883 = vrot.lane.b32.xlu0 %v2069, 32
        %v3884 = vpop.permute.xlu0 %3883
        %3885 = vrot.lane.b32.xlu0 %v2074, 32
        %v3886 = vpop.permute.xlu0 %3885
        %3887 = vrot.lane.b32.xlu0 %v2158, 32
        %v3888 = vpop.permute.xlu0 %3887
        %3889 = vrot.lane.b32.xlu0 %v2163, 32
        %v3890 = vpop.permute.xlu0 %3889
        %3891 = vrot.lane.b32.xlu0 %v2247, 32
        %v3892 = vpop.permute.xlu0 %3891
        %3893 = vrot.lane.b32.xlu0 %v2252, 32
        %v3894 = vpop.permute.xlu0 %3893
        %3911 = vrot.lane.b32.xlu0 %v2794, 64
        %v3912 = vpop.permute.xlu0 %3911
        %3913 = vrot.lane.b32.xlu0 %v2799, 64
        %v3914 = vpop.permute.xlu0 %3913
        %3915 = vrot.lane.b32.xlu0 %v2881, 64
        %v3916 = vpop.permute.xlu0 %3915
        %3917 = vrot.lane.b32.xlu0 %v2886, 64
        %v3918 = vpop.permute.xlu0 %3917
        %3919 = vrot.lane.b32.xlu0 %v2968, 64
        %v3920 = vpop.permute.xlu0 %3919
        %3921 = vrot.lane.b32.xlu0 %v2973, 64
        %v3922 = vpop.permute.xlu0 %3921
        %3923 = vrot.lane.b32.xlu0 %v3055, 64
        %v3924 = vpop.permute.xlu0 %3923
        %3925 = vrot.lane.b32.xlu0 %v3060, 64
        %v3926 = vpop.permute.xlu0 %3925
        %3943 = vrot.lane.b32.xlu0 %v3602, 96
        %v3944 = vpop.permute.xlu0 %3943
        %3945 = vrot.lane.b32.xlu0 %v3607, 96
        %v3946 = vpop.permute.xlu0 %3945
        %3947 = vrot.lane.b32.xlu0 %v3689, 96
        %v3948 = vpop.permute.xlu0 %3947
        %3949 = vrot.lane.b32.xlu0 %v3694, 96
        %v3950 = vpop.permute.xlu0 %3949
        %3951 = vrot.lane.b32.xlu0 %v3776, 96
        %v3952 = vpop.permute.xlu0 %3951
        %3953 = vrot.lane.b32.xlu0 %v3781, 96
        %v3954 = vpop.permute.xlu0 %3953
        %3955 = vrot.lane.b32.xlu0 %v3863, 96
        %v3956 = vpop.permute.xlu0 %3955
        %3957 = vrot.lane.b32.xlu0 %v3868, 96
        %v3958 = vpop.permute.xlu0 %3957
        %v3967 = vsel %vm669, %v1188, %v3880
        %v3968 = vsel %vm669, %v1193, %v3882
        %v3969 = vsel %vm669, %v1269, %v3884
        %v3970 = vsel %vm669, %v1274, %v3886
        %v3971 = vsel %vm669, %v1350, %v3888
        %v3972 = vsel %vm669, %v1355, %v3890
        %v3973 = vsel %vm669, %v1431, %v3892
        %v3974 = vsel %vm669, %v1436, %v3894
        %vm3975 = vcmask 523264
        %v3976 = vsel %vm3975, %v3967, %v3912
        %v3977 = vsel %vm3975, %v3968, %v3914
        %v3978 = vsel %vm3975, %v3969, %v3916
        %v3979 = vsel %vm3975, %v3970, %v3918
        %v3980 = vsel %vm3975, %v3971, %v3920
        %v3981 = vsel %vm3975, %v3972, %v3922
        %v3982 = vsel %vm3975, %v3973, %v3924
        %v3983 = vsel %vm3975, %v3974, %v3926
        %vm3984 = vcmask 785408
        %v3985 = vsel %vm3984, %v3976, %v3944
        %v3986 = vsel %vm3984, %v3977, %v3946
        %v3987 = vsel %vm3984, %v3978, %v3948
        %v3988 = vsel %vm3984, %v3979, %v3950
        %v3989 = vsel %vm3984, %v3980, %v3952
        %v3990 = vsel %vm3984, %v3981, %v3954
        %v3991 = vsel %vm3984, %v3982, %v3956
        %v3992 = vsel %vm3984, %v3983, %v3958
        %v3993 = vld [vmem:[#allocation5] sm:$0xff]
        %v3994 = vld [vmem:[#allocation5 + $0x8] sm:$0xff]
        %v3995 = vld [vmem:[#allocation5 + $0x10] sm:$0xff]
        %v3996 = vld [vmem:[#allocation5 + $0x18] sm:$0xff]
        %v3997 = vld [vmem:[#allocation5 + $0x20] sm:$0xff]
        %v3998 = vld [vmem:[#allocation5 + $0x28] sm:$0xff]
        %v3999 = vld [vmem:[#allocation5 + $0x30] sm:$0xff]
        %v4000 = vld [vmem:[#allocation5 + $0x38] sm:$0xff]
        %v4001 = vld [vmem:[#allocation5 + $0x40] sm:$0xff]
        %v4002 = vld [vmem:[#allocation5 + $0x48] sm:$0xff]
        %v4003 = vld [vmem:[#allocation5 + $0x50] sm:$0xff]
        %v4004 = vld [vmem:[#allocation5 + $0x58] sm:$0xff]
        %v4005 = vld [vmem:[#allocation5 + $0x60] sm:$0xff]
        %v4006 = vld [vmem:[#allocation5 + $0x68] sm:$0xff]
        %v4007 = vld [vmem:[#allocation5 + $0x70] sm:$0xff]
        %v4008 = vld [vmem:[#allocation5 + $0x78] sm:$0xff]
        %4009 = vmatprep.subr.mxu0 0.0
        %4010 = vmatpush1.msra.mxu0 %v4008
        %4011 = vmatprep.subr.mxu0 0.0
        %4012 = vmatpush1.msra.mxu0 %v4007
        %4013 = vmatprep.subr.mxu0 0.0
        %4014 = vmatpush1.msra.mxu0 %v4006
        %4015 = vmatprep.subr.mxu0 0.0
        %4016 = vmatpush1.msra.mxu0 %v4005
        %4017 = vmatprep.subr.mxu0 0.0
        %4018 = vmatpush1.msra.mxu0 %v4004
        %4019 = vmatprep.subr.mxu0 0.0
        %4020 = vmatpush1.msra.mxu0 %v4003
        %4021 = vmatprep.subr.mxu0 0.0
        %4022 = vmatpush1.msra.mxu0 %v4002
        %4023 = vmatprep.subr.mxu0 0.0
        %4024 = vmatpush1.msra.mxu0 %v4001
        %4025 = vmatprep.subr.mxu0 0.0
        %4026 = vmatpush1.msra.mxu0 %v4000
        %4027 = vmatprep.subr.mxu0 0.0
        %4028 = vmatpush1.msra.mxu0 %v3999
        %4029 = vmatprep.subr.mxu0 0.0
        %4030 = vmatpush1.msra.mxu0 %v3998
        %4031 = vmatprep.subr.mxu0 0.0
        %4032 = vmatpush1.msra.mxu0 %v3997
        %4033 = vmatprep.subr.mxu0 0.0
        %4034 = vmatpush1.msra.mxu0 %v3996
        %4035 = vmatprep.subr.mxu0 0.0
        %4036 = vmatpush1.msra.mxu0 %v3995
        %4037 = vmatprep.subr.mxu0 0.0
        %4038 = vmatpush1.msra.mxu0 %v3994
        %4039 = vmatprep.subr.mxu0 0.0
        %4040 = vmatpush1.msra.mxu0 %v3993
        %4041 = vmatprep.subr.mxu0 0.0
        %4042 = vmatpush2.msra.mxu0 0.0
        %4043 = vmatprep.subr.mxu0 0.0
        %4044 = vmatpush2.msra.mxu0 0.0
        %4045 = vmatprep.subr.mxu0 0.0
        %4046 = vmatpush2.msra.mxu0 0.0
        %4047 = vmatprep.subr.mxu0 0.0
        %4048 = vmatpush2.msra.mxu0 0.0
        %4049 = vmatprep.subr.mxu0 0.0
        %4050 = vmatpush2.msra.mxu0 0.0
        %4051 = vmatprep.subr.mxu0 0.0
        %4052 = vmatpush2.msra.mxu0 0.0
        %4053 = vmatprep.subr.mxu0 0.0
        %4054 = vmatpush2.msra.mxu0 0.0
        %4055 = vmatprep.subr.mxu0 0.0
        %4056 = vmatpush2.msra.mxu0 0.0
        %4057 = vmatprep.subr.mxu0 0.0
        %4058 = vmatpush2.msra.mxu0 0.0
        %4059 = vmatprep.subr.mxu0 0.0
        %4060 = vmatpush2.msra.mxu0 0.0
        %4061 = vmatprep.subr.mxu0 0.0
        %4062 = vmatpush2.msra.mxu0 0.0
        %4063 = vmatprep.subr.mxu0 0.0
        %4064 = vmatpush2.msra.mxu0 0.0
        %4065 = vmatprep.subr.mxu0 0.0
        %4066 = vmatpush2.msra.mxu0 0.0
        %4067 = vmatprep.subr.mxu0 0.0
        %4068 = vmatpush2.msra.mxu0 0.0
        %4069 = vmatprep.subr.mxu0 0.0
        %4070 = vmatpush2.msra.mxu0 0.0
        %4071 = vmatprep.subr.mxu0 0.0
        %4072 = vmatpush2.msra.mxu0 0.0
        %4073 = vmatprep.mubr.f32.mxu0 0.0
        %4074 = vmatmul.mubr.f32.gmra.mxu0 %v3985
        %v4075 = vpop.f32.mrf.mxu0
        %v4076 = vadd.f32 0.0, %v4075
        %v4077 = vpop.f32.mrf.mxu0
        %4078 = vmatprep.mubr.f32.mxu0 0.0
        %4079 = vmatmul.mubr.f32.gmra.mxu0 %v3986
        %v4080 = vpop.f32.mrf.mxu0
        %v4081 = vadd.f32 0.0, %v4080
        %v4082 = vpop.f32.mrf.mxu0
        %4083 = vmatprep.mubr.f32.mxu0 0.0
        %4084 = vmatmul.mubr.f32.gmra.mxu0 %v3987
        %v4085 = vpop.f32.mrf.mxu0
        %v4086 = vadd.f32 0.0, %v4085
        %v4087 = vpop.f32.mrf.mxu0
        %4088 = vmatprep.mubr.f32.mxu0 0.0
        %4089 = vmatmul.mubr.f32.gmra.mxu0 %v3988
        %v4090 = vpop.f32.mrf.mxu0
        %v4091 = vadd.f32 0.0, %v4090
        %v4092 = vpop.f32.mrf.mxu0
        %4093 = vmatprep.mubr.f32.mxu0 0.0
        %4094 = vmatmul.mubr.f32.gmra.mxu0 %v3989
        %v4095 = vpop.f32.mrf.mxu0
        %v4096 = vadd.f32 0.0, %v4095
        %v4097 = vpop.f32.mrf.mxu0
        %4098 = vmatprep.mubr.f32.mxu0 0.0
        %4099 = vmatmul.mubr.f32.gmra.mxu0 %v3990
        %v4100 = vpop.f32.mrf.mxu0
        %v4101 = vadd.f32 0.0, %v4100
        %v4102 = vpop.f32.mrf.mxu0
        %4103 = vmatprep.mubr.f32.mxu0 0.0
        %4104 = vmatmul.mubr.f32.gmra.mxu0 %v3991
        %v4105 = vpop.f32.mrf.mxu0
        %v4106 = vadd.f32 0.0, %v4105
        %v4107 = vpop.f32.mrf.mxu0
        %4108 = vmatprep.mubr.f32.mxu0 0.0
        %4109 = vmatmul.mubr.f32.gmra.mxu0 %v3992
        %v4110 = vpop.f32.mrf.mxu0
        %v4111 = vadd.f32 0.0, %v4110
        %v4112 = vpop.f32.mrf.mxu0
        %4113 = vdwg.mxu0
        %4114 = vst [vmem:[%s282] sm:$0xff] %v4076
        %4115 = vst [vmem:[%s282 + $0x8] sm:$0xff] %v4081
        %4116 = vst [vmem:[%s282 + $0x10] sm:$0xff] %v4086
        %4117 = vst [vmem:[%s282 + $0x18] sm:$0xff] %v4091
        %4118 = vst [vmem:[%s282 + $0x20] sm:$0xff] %v4096
        %4119 = vst [vmem:[%s282 + $0x28] sm:$0xff] %v4101
        %4120 = vst [vmem:[%s282 + $0x30] sm:$0xff] %v4106
        %4121 = vst [vmem:[%s282 + $0x38] sm:$0xff] %v4111
        %s4122 = sand.u32 %s149, 1
        %s4123 = scalar_lea.sflag [#allocation4], %s4122
        %s4124 = sand.u32 %s149, 1
        %s4125 = smul.addr %s4124, 64
        %s4126 = scalar_lea.vmem [#allocation7], %s4125
        // Predicated region
        $region49: #{tpu_custom_call.1} parent=39 // pred_check
          %p4127 = pneg %p159
        $region50: #{tpu_custom_call.1} parent=39 // pred_check_branch
          %4129 = sbr.rel (%p4127) target = $region52
        $region51: #{tpu_custom_call.1} parent=39 // pred_region
          %s4130 = smul.u32 4, %s21
          %s4132 = ssub.s32 1024, 1024
          %4133 = vsyncadd %s4123, %s4132
          %s4134 = smul.addr %s4130, 2
          %s4135 = smul.addr %s4134, 128
          %s4136 = scalar_lea.hbm %s5, %s4135
          %s4137 = sshll.u32 %s4126, 4
          %s4138 = int_to_ptr.vmem [resolvable:$true] %s4137
          %4143 = dma.vmem_to_hbm [thread:$0]  %s4138, 1024, %s4136, %s4123, 128, 128, 8
        $region52: #{tpu_custom_call.1} parent=39 // pred_fallthru
          _
      $region40: #{tpu_custom_call.1} parent=5 // pred_fallthru
        _
      %p4144 = scmp.le.s32.totalorder 2, %s16
      // Predicated region
      $region53: #{tpu_custom_call.1} parent=5 // pred_check
        %p4145 = pneg %p4144
      $region54: #{tpu_custom_call.1} parent=5 // pred_check_branch
        %4147 = sbr.rel (%p4145) target = $region56
      $region55: #{tpu_custom_call.1} parent=5 // pred_region
        %s4148 = ssub.s32 %s16, 2
        // Predicated region
        $region57: #{tpu_custom_call.1} parent=55 // pred_check
          %p4149 = pneg %p165
        $region58: #{tpu_custom_call.1} parent=55 // pred_check_branch
          %4151 = sbr.rel (%p4149) target = $region60
        $region59: #{tpu_custom_call.1} parent=55 // pred_region
          %s4152 = sand.u32 %s150, 1
          %s4153 = scalar_lea.sflag [#allocation4], %s4152
          %s4154 = sand.u32 %s150, 1
          %s4155 = smul.addr %s4154, 64
          %s4156 = scalar_lea.vmem [#allocation7], %s4155
          %4157 = dma.done %s4153, 1024
        $region60: #{tpu_custom_call.1} parent=55 // pred_fallthru
          _
      $region56: #{tpu_custom_call.1} parent=5 // pred_fallthru
        _
    $region6: #{tpu_custom_call.1} parent=1 // loop_footer
      %s20 = sadd.s32 1, %s16
    $region7: #{tpu_custom_call.1} parent=1 // loop_footer_branch
      %15 = sbr.rel target = $region3
    $region8: #{tpu_custom_call.1} parent=1 // loop_exit
      _
    %4158 = vsyncpa [#allocation3], 1
    %s4159 = scalar_lea.sflag [#allocation3], 1
    %4160 = vsyncpa %s4159, 1
    %4161 = vsyncpa [#allocation6], 1
    %4162 = vsyncpa [#allocation4], 1
    %s4163 = scalar_lea.sflag [#allocation4], 1
    %4164 = vsyncpa %s4163, 1

// kernel: tpu_custom_call.1
$region0: #{tpu_custom_call.1}
  #allocation0 [shape = 'u32[]', space=smem, size = 0x4, offset = 0x4, fixed_abs, tag = 'smem constant byte address 0x4 - core index']
  #allocation1 [shape = 'u32[144,128]{1,0:T(1,128)}', space=vmem, size = 0x12000, scoped, tag = 'internal scratch']
  %s0 = inlined_call_operand.vmem [shape: f32[8,16,128], index: 0, kind: input, shape index: {}]
  %s1 = inlined_call_operand.vmem [shape: f32[8,1,16], index: 1, kind: input, shape index: {}]
  %s2 = inlined_call_operand.vmem [shape: f32[8,16,1], index: 2, kind: input, shape index: {}]
  %s3 = inlined_call_operand.hbm [shape: f32[128,384], index: 3, kind: input, shape index: {}]
  %s4 = inlined_call_operand.hbm [shape: f32[128,128], index: 4, kind: input, shape index: {}]
  %s5 = inlined_call_operand.hbm [shape: f32[8,16,128], index: 5, kind: output, shape index: {}]
  %s6 = sld [smem:[#allocation0]]
  $region61: #{tpu_custom_call.1} parent=0
    _
  %s8 = ssub.s32 1, %s6
  %s9 = scalar_select 0, %s8, %s6
  $region1: #{tpu_custom_call.1} parent=0
    #allocation2 [shape = 'u8[196608]{0}', space=vmem, size = 0x30000, scoped, tag = 'input window, operand 3, single buffered']
    #allocation3 [shape = 's32[2]{0}', space=sflag, size = 0x8, scoped, tag = 'scoped memory for tpu_custom_call.1']
    #allocation4 [shape = 's32[2]{0}', space=sflag, size = 0x8, scoped, tag = 'scoped memory for tpu_custom_call.1']
    #allocation5 [shape = 'u8[65536]{0}', space=vmem, size = 0x10000, scoped, tag = 'input window, operand 4, single buffered']
    #allocation6 [shape = 's32[1]{0}', space=sflag, size = 0x4, scoped, tag = 'scoped memory for tpu_custom_call.1']
    #allocation7 [shape = 'u8[65536]{0}', space=vmem, size = 0x10000, scoped, tag = 'output window, operand 0']
    %10 = vsyncpa [#allocation3], 0
    %11 = vsyncpa [#allocation6], 0
    %12 = vsyncpa [#allocation4], 0
    %s13 = scalar_lea.sflag [#allocation4], 1
    %14 = vsyncpa %s13, 0
    loop: start=0, step=1, limit=4
    $region2: #{tpu_custom_call.1} parent=1 // loop_pre_header
      _
    $region3: #{tpu_custom_call.1} parent=1 // loop_header
      %s16 = sphi 0, %s20
      %p17 = scmp.ge.s32.totalorder %s16, 4
      %s26 = sphi 0, %s28
      %s29 = sphi 0, %s26
      %s30 = sphi 0, %s29
      %s46 = sphi 0, %s30
      %s52 = sphi 0, %s54
      %s55 = sphi 0, %s52
      %s56 = sphi 0, %s55
      %s72 = sphi 0, %s56
      %s78 = sphi 0, %s80
      %s81 = sphi 0, %s78
      %s82 = sphi 0, %s81
      %s98 = sphi 0, %s82
      %s102 = sphi 0, %s102
      %s104 = sphi 0, %s102
      %s105 = sphi 0, %s104
      %s119 = sphi 0, %s105
      %s123 = sphi 0, %s123
      %s125 = sphi 0, %s123
      %s126 = sphi 0, %s125
      %s140 = sphi 0, %s126
      %s146 = sphi 0, %s148
      %s149 = sphi 0, %s146
      %s150 = sphi 0, %s149
      %s166 = sphi 0, %s150
    $region4: #{tpu_custom_call.1} parent=1 // loop_header_branch
      %19 = sbr.rel (%p17) target = $region8
    $region5: #{tpu_custom_call.1} parent=1 // loop_body
      %s21 = ssub.s32 %s16, 1
      %s22 = ssub.s32 %s16, 2
      %s23 = sadd.s32 %s16, 1
      %s24 = ssub.s32 %s16, %s23
      %p25 = scmp.eq.s32.totalorder %s24, 0
      %s27 = sadd.s32 %s26, 1
      %s28 = scalar_select %p25, %s26, %s27
      %p31 = pneg %p25
      %p32 = scmp.eq.s32.totalorder %s16, 1
      %p33 = por %p31, %p32
      %p34 = scmp.ne.s32.totalorder %s26, %s29
      %p35 = scmp.eq.s32.totalorder %s16, 0
      %p36 = por %p34, %p35
      %p37 = scmp.ne.s32.totalorder %s26, %s29
      %p38 = scmp.eq.s32.totalorder %s21, 1
      %p39 = por %p37, %p38
      %p40 = scmp.ne.s32.totalorder %s29, %s30
      %p41 = scmp.eq.s32.totalorder %s21, 0
      %p42 = por %p40, %p41
      %p43 = scmp.ne.s32.totalorder %s29, %s30
      %p44 = scmp.eq.s32.totalorder %s22, 1
      %p45 = por %p43, %p44
      %p47 = scmp.ne.s32.totalorder %s30, %s46
      %p48 = scmp.eq.s32.totalorder %s22, 0
      %p49 = por %p47, %p48
      %s50 = ssub.s32 %s16, %s23
      %p51 = scmp.eq.s32.totalorder %s50, 0
      %s53 = sadd.s32 %s52, 1
      %s54 = scalar_select %p51, %s52, %s53
      %p57 = pneg %p51
      %p58 = scmp.eq.s32.totalorder %s16, 1
      %p59 = por %p57, %p58
      %p60 = scmp.ne.s32.totalorder %s52, %s55
      %p61 = scmp.eq.s32.totalorder %s16, 0
      %p62 = por %p60, %p61
      %p63 = scmp.ne.s32.totalorder %s52, %s55
      %p64 = scmp.eq.s32.totalorder %s21, 1
      %p65 = por %p63, %p64
      %p66 = scmp.ne.s32.totalorder %s55, %s56
      %p67 = scmp.eq.s32.totalorder %s21, 0
      %p68 = por %p66, %p67
      %p69 = scmp.ne.s32.totalorder %s55, %s56
      %p70 = scmp.eq.s32.totalorder %s22, 1
      %p71 = por %p69, %p70
      %p73 = scmp.ne.s32.totalorder %s56, %s72
      %p74 = scmp.eq.s32.totalorder %s22, 0
      %p75 = por %p73, %p74
      %s76 = ssub.s32 %s16, %s23
      %p77 = scmp.eq.s32.totalorder %s76, 0
      %s79 = sadd.s32 %s78, 1
      %s80 = scalar_select %p77, %s78, %s79
      %p83 = pneg %p77
      %p84 = scmp.eq.s32.totalorder %s16, 1
      %p85 = por %p83, %p84
      %p86 = scmp.ne.s32.totalorder %s78, %s81
      %p87 = scmp.eq.s32.totalorder %s16, 0
      %p88 = por %p86, %p87
      %p89 = scmp.ne.s32.totalorder %s78, %s81
      %p90 = scmp.eq.s32.totalorder %s21, 1
      %p91 = por %p89, %p90
      %p92 = scmp.ne.s32.totalorder %s81, %s82
      %p93 = scmp.eq.s32.totalorder %s21, 0
      %p94 = por %p92, %p93
      %p95 = scmp.ne.s32.totalorder %s81, %s82
      %p96 = scmp.eq.s32.totalorder %s22, 1
      %p97 = por %p95, %p96
      %p99 = scmp.ne.s32.totalorder %s82, %s98
      %p100 = scmp.eq.s32.totalorder %s22, 0
      %p101 = por %p99, %p100
      %s103 = sadd.s32 %s102, 1
      %p106 = scmp.eq.s32.totalorder %s16, 1
      %p107 = scmp.ne.s32.totalorder %s102, %s104
      %p108 = scmp.eq.s32.totalorder %s16, 0
      %p109 = por %p107, %p108
      %p110 = scmp.ne.s32.totalorder %s102, %s104
      %p111 = scmp.eq.s32.totalorder %s21, 1
      %p112 = por %p110, %p111
      %p113 = scmp.ne.s32.totalorder %s104, %s105
      %p114 = scmp.eq.s32.totalorder %s21, 0
      %p115 = por %p113, %p114
      %p116 = scmp.ne.s32.totalorder %s104, %s105
      %p117 = scmp.eq.s32.totalorder %s22, 1
      %p118 = por %p116, %p117
      %p120 = scmp.ne.s32.totalorder %s105, %s119
      %p121 = scmp.eq.s32.totalorder %s22, 0
      %p122 = por %p120, %p121
      %s124 = sadd.s32 %s123, 1
      %p127 = scmp.eq.s32.totalorder %s16, 1
      %p128 = scmp.ne.s32.totalorder %s123, %s125
      %p129 = scmp.eq.s32.totalorder %s16, 0
      %p130 = por %p128, %p129
      %p131 = scmp.ne.s32.totalorder %s123, %s125
      %p132 = scmp.eq.s32.totalorder %s21, 1
      %p133 = por %p131, %p132
      %p134 = scmp.ne.s32.totalorder %s125, %s126
      %p135 = scmp.eq.s32.totalorder %s21, 0
      %p136 = por %p134, %p135
      %p137 = scmp.ne.s32.totalorder %s125, %s126
      %p138 = scmp.eq.s32.totalorder %s22, 1
      %p139 = por %p137, %p138
      %p141 = scmp.ne.s32.totalorder %s126, %s140
      %p142 = scmp.eq.s32.totalorder %s22, 0
      %p143 = por %p141, %p142
      %s144 = ssub.s32 %s16, %s23
      %p145 = scmp.eq.s32.totalorder %s144, 0
      %s147 = sadd.s32 %s146, 1
      %s148 = scalar_select %p145, %s146, %s147
      %p151 = pneg %p145
      %p152 = scmp.eq.s32.totalorder %s16, 1
      %p153 = por %p151, %p152
      %p154 = scmp.ne.s32.totalorder %s146, %s149
      %p155 = scmp.eq.s32.totalorder %s16, 0
      %p156 = por %p154, %p155
      %p157 = scmp.ne.s32.totalorder %s146, %s149
      %p158 = scmp.eq.s32.totalorder %s21, 1
      %p159 = por %p157, %p158
      %p160 = scmp.ne.s32.totalorder %s149, %s150
      %p161 = scmp.eq.s32.totalorder %s21, 0
      %p162 = por %p160, %p161
      %p163 = scmp.ne.s32.totalorder %s149, %s150
      %p164 = scmp.eq.s32.totalorder %s22, 1
      %p165 = por %p163, %p164
      %p167 = scmp.ne.s32.totalorder %s150, %s166
      %p168 = scmp.eq.s32.totalorder %s22, 0
      %p169 = por %p167, %p168
      %p170 = scmp.le.s32.totalorder 1, %s16
      %p171 = scmp.lt.s32.totalorder %s16, 3
      %p172 = pnand %p170, %p171
      %p173 = pneg %p172
      // Predicated region
      $region9: #{tpu_custom_call.1} parent=5 // pred_check
        _
      $region10: #{tpu_custom_call.1} parent=5 // pred_check_branch
        %175 = sbr.rel (%p172) target = $region12
      $region11: #{tpu_custom_call.1} parent=5 // pred_region
        %s176 = ssub.s32 %s16, 1
        // Predicated region
        $region13: #{tpu_custom_call.1} parent=11 // pred_check
          %p177 = pneg %p115
        $region14: #{tpu_custom_call.1} parent=11 // pred_check_branch
          %179 = sbr.rel (%p177) target = $region16
        $region15: #{tpu_custom_call.1} parent=11 // pred_region
          %s181 = ssub.s32 6144, 6144
          %182 = vsyncadd [#allocation3], %s181
          %s183 = sshll.u32 [#allocation2], 4
          %s184 = int_to_ptr.vmem [resolvable:$true] %s183
          %189 = dma.hbm_to_vmem [thread:$0]  %s3, 6144, %s184, [#allocation3], 384, 384, 24
        $region16: #{tpu_custom_call.1} parent=11 // pred_fallthru
          _
        // Predicated region
        $region17: #{tpu_custom_call.1} parent=11 // pred_check
          %p190 = pneg %p136
        $region18: #{tpu_custom_call.1} parent=11 // pred_check_branch
          %192 = sbr.rel (%p190) target = $region20
        $region19: #{tpu_custom_call.1} parent=11 // pred_region
          %s194 = ssub.s32 2048, 2048
          %195 = vsyncadd [#allocation6], %s194
          %s196 = sshll.u32 [#allocation5], 4
          %s197 = int_to_ptr.vmem [resolvable:$true] %s196
          %202 = dma.hbm_to_vmem [thread:$0]  %s4, 2048, %s197, [#allocation6], 128, 128, 8
        $region20: #{tpu_custom_call.1} parent=11 // pred_fallthru
          _
      $region12: #{tpu_custom_call.1} parent=5 // pred_fallthru
        _
      %p203 = scmp.lt.s32.totalorder %s16, 2
      // Predicated region
      $region21: #{tpu_custom_call.1} parent=5 // pred_check
        %p204 = pneg %p203
      $region22: #{tpu_custom_call.1} parent=5 // pred_check_branch
        %206 = sbr.rel (%p204) target = $region24
      $region23: #{tpu_custom_call.1} parent=5 // pred_region
        // Predicated region
        $region25: #{tpu_custom_call.1} parent=23 // pred_check
          %p207 = pneg %p36
        $region26: #{tpu_custom_call.1} parent=23 // pred_check_branch
          %209 = sbr.rel (%p207) target = $region28
        $region27: #{tpu_custom_call.1} parent=23 // pred_region
          %s210 = smul.u32 4, %s16
          %p211 = scmp.lt.s32.totalorder %s210, 7
          %s212 = scalar_select %p211, %s210, 7
          %s213 = smul.addr %s212, 2
          %s214 = smul.addr %s213, 8
          %s215 = scalar_lea.vmem %s0, %s214
          %s216 = smul.u32 4, %s16
        $region28: #{tpu_custom_call.1} parent=23 // pred_fallthru
          _
        // Predicated region
        $region29: #{tpu_custom_call.1} parent=23 // pred_check
          %p217 = pneg %p62
        $region30: #{tpu_custom_call.1} parent=23 // pred_check_branch
          %219 = sbr.rel (%p217) target = $region32
        $region31: #{tpu_custom_call.1} parent=23 // pred_region
          %s220 = smul.u32 4, %s16
          %p221 = scmp.lt.s32.totalorder %s220, 7
          %s222 = scalar_select %p221, %s220, 7
          %s223 = scalar_lea.vmem %s1, %s222
          %s224 = smul.u32 4, %s16
        $region32: #{tpu_custom_call.1} parent=23 // pred_fallthru
          _
        // Predicated region
        $region33: #{tpu_custom_call.1} parent=23 // pred_check
          %p225 = pneg %p88
        $region34: #{tpu_custom_call.1} parent=23 // pred_check_branch
          %227 = sbr.rel (%p225) target = $region36
        $region35: #{tpu_custom_call.1} parent=23 // pred_region
          %s228 = smul.u32 4, %s16
          %p229 = scmp.lt.s32.totalorder %s228, 7
          %s230 = scalar_select %p229, %s228, 7
          %s231 = smul.addr %s230, 2
          %s232 = smul.addr %s231, 8
          %s233 = scalar_lea.vmem %s2, %s232
          %s234 = smul.u32 4, %s16
        $region36: #{tpu_custom_call.1} parent=23 // pred_fallthru
          _
      $region24: #{tpu_custom_call.1} parent=5 // pred_fallthru
        _
      %p235 = scmp.le.s32.totalorder 1, %s16
      %p236 = scmp.lt.s32.totalorder %s16, 3
      %p237 = pnand %p235, %p236
      %p238 = pneg %p237
      // Predicated region
      $region37: #{tpu_custom_call.1} parent=5 // pred_check
        _
      $region38: #{tpu_custom_call.1} parent=5 // pred_check_branch
        %240 = sbr.rel (%p237) target = $region40
      $region39: #{tpu_custom_call.1} parent=5 // pred_region
        %s241 = ssub.s32 %s16, 1
        // Predicated region
        $region41: #{tpu_custom_call.1} parent=39 // pred_check
          %p242 = pneg %p115
        $region42: #{tpu_custom_call.1} parent=39 // pred_check_branch
          %244 = sbr.rel (%p242) target = $region44
        $region43: #{tpu_custom_call.1} parent=39 // pred_region
          %245 = dma.done [#allocation3], 6144
        $region44: #{tpu_custom_call.1} parent=39 // pred_fallthru
          _
        // Predicated region
        $region45: #{tpu_custom_call.1} parent=39 // pred_check
          %p246 = pneg %p136
        $region46: #{tpu_custom_call.1} parent=39 // pred_check_branch
          %248 = sbr.rel (%p246) target = $region48
        $region47: #{tpu_custom_call.1} parent=39 // pred_region
          %249 = dma.done [#allocation6], 2048
        $region48: #{tpu_custom_call.1} parent=39 // pred_fallthru
          _
        %s250 = smul.u32 4, %s21
        %p251 = scmp.lt.s32.totalorder %s250, 7
        %s252 = scalar_select %p251, %s250, 7
        %s253 = smul.addr %s252, 2
        %s254 = smul.addr %s253, 8
        %s255 = scalar_lea.vmem %s0, %s254
        %p256 = pneg %p42
        %p257 = pneg %p39
        %s258 = smul.u32 4, %s21
        %p259 = scmp.lt.s32.totalorder %s258, 7
        %s260 = scalar_select %p259, %s258, 7
        %s261 = scalar_lea.vmem %s1, %s260
        %p262 = pneg %p68
        %p263 = pneg %p65
        %s264 = smul.u32 4, %s21
        %p265 = scmp.lt.s32.totalorder %s264, 7
        %s266 = scalar_select %p265, %s264, 7
        %s267 = smul.addr %s266, 2
        %s268 = smul.addr %s267, 8
        %s269 = scalar_lea.vmem %s2, %s268
        %p270 = pneg %p94
        %p271 = pneg %p91
        %p272 = pneg %p115
        %p273 = pneg %p112
        %p274 = pneg %p136
        %p275 = pneg %p133
        %p276 = pneg %p162
        %p277 = pneg %p159
        %s278 = sand.u32 %s149, 1
        %s279 = scalar_lea.sflag [#allocation4], %s278
        %s280 = sand.u32 %s149, 1
        %s281 = smul.addr %s280, 64
        %s282 = scalar_lea.vmem [#allocation7], %s281
        %s283 = smul.u32 4, %s21
        %p284 = scmp.lt.s32.totalorder %s283, 7
        %s285 = scalar_select %p284, %s283, 7
        %s286 = smul.addr %s285, 2
        %s287 = smul.addr %s286, 8
        %s288 = scalar_lea.vmem %s0, %s287
        %s289 = smul.u32 4, %s21
        %s290 = smul.u32 4, %s21
        %p291 = scmp.lt.s32.totalorder %s290, 7
        %s292 = scalar_select %p291, %s290, 7
        %s293 = scalar_lea.vmem %s1, %s292
        %s294 = smul.u32 4, %s21
        %s295 = smul.u32 4, %s21
        %p296 = scmp.lt.s32.totalorder %s295, 7
        %s297 = scalar_select %p296, %s295, 7
        %s298 = smul.addr %s297, 2
        %s299 = smul.addr %s298, 8
        %s300 = scalar_lea.vmem %s2, %s299
        %s301 = smul.u32 4, %s21
        %s302 = smul.u32 4, %s21
        %v303 = vld [vmem:[%s288] sm:$0xff]
        %v304 = vld [vmem:[%s288 + $0x8] sm:$0xff]
        %v305 = vld [vmem:[%s288 + $0x10] sm:$0xff]
        %v306 = vld [vmem:[%s288 + $0x18] sm:$0xff]
        %v307 = vld [vmem:[%s288 + $0x20] sm:$0xff]
        %v308 = vld [vmem:[%s288 + $0x28] sm:$0xff]
        %v309 = vld [vmem:[%s288 + $0x30] sm:$0xff]
        %v310 = vld [vmem:[%s288 + $0x38] sm:$0xff]
        %v311 = vld [vmem:[#allocation2] sm:$0xff]
        %v312 = vld [vmem:[#allocation2 + $0x8] sm:$0xff]
        %v313 = vld [vmem:[#allocation2 + $0x10] sm:$0xff]
        %v314 = vld [vmem:[#allocation2 + $0x18] sm:$0xff]
        %v315 = vld [vmem:[#allocation2 + $0x20] sm:$0xff]
        %v316 = vld [vmem:[#allocation2 + $0x28] sm:$0xff]
        %v317 = vld [vmem:[#allocation2 + $0x30] sm:$0xff]
        %v318 = vld [vmem:[#allocation2 + $0x38] sm:$0xff]
        %v319 = vld [vmem:[#allocation2 + $0x40] sm:$0xff]
        %v320 = vld [vmem:[#allocation2 + $0x48] sm:$0xff]
        %v321 = vld [vmem:[#allocation2 + $0x50] sm:$0xff]
        %v322 = vld [vmem:[#allocation2 + $0x58] sm:$0xff]
        %v323 = vld [vmem:[#allocation2 + $0x60] sm:$0xff]
        %v324 = vld [vmem:[#allocation2 + $0x68] sm:$0xff]
        %v325 = vld [vmem:[#allocation2 + $0x70] sm:$0xff]
        %v326 = vld [vmem:[#allocation2 + $0x78] sm:$0xff]
        %v327 = vld [vmem:[#allocation2 + $0x80] sm:$0xff]
        %v328 = vld [vmem:[#allocation2 + $0x88] sm:$0xff]
        %v329 = vld [vmem:[#allocation2 + $0x90] sm:$0xff]
        %v330 = vld [vmem:[#allocation2 + $0x98] sm:$0xff]
        %v331 = vld [vmem:[#allocation2 + $0xa0] sm:$0xff]
        %v332 = vld [vmem:[#allocation2 + $0xa8] sm:$0xff]
        %v333 = vld [vmem:[#allocation2 + $0xb0] sm:$0xff]
        %v334 = vld [vmem:[#allocation2 + $0xb8] sm:$0xff]
        %v335 = vld [vmem:[#allocation2 + $0xc0] sm:$0xff]
        %v336 = vld [vmem:[#allocation2 + $0xc8] sm:$0xff]
        %v337 = vld [vmem:[#allocation2 + $0xd0] sm:$0xff]
        %v338 = vld [vmem:[#allocation2 + $0xd8] sm:$0xff]
        %v339 = vld [vmem:[#allocation2 + $0xe0] sm:$0xff]
        %v340 = vld [vmem:[#allocation2 + $0xe8] sm:$0xff]
        %v341 = vld [vmem:[#allocation2 + $0xf0] sm:$0xff]
        %v342 = vld [vmem:[#allocation2 + $0xf8] sm:$0xff]
        %v343 = vld [vmem:[#allocation2 + $0x100] sm:$0xff]
        %v344 = vld [vmem:[#allocation2 + $0x108] sm:$0xff]
        %v345 = vld [vmem:[#allocation2 + $0x110] sm:$0xff]
        %v346 = vld [vmem:[#allocation2 + $0x118] sm:$0xff]
        %v347 = vld [vmem:[#allocation2 + $0x120] sm:$0xff]
        %v348 = vld [vmem:[#allocation2 + $0x128] sm:$0xff]
        %v349 = vld [vmem:[#allocation2 + $0x130] sm:$0xff]
        %v350 = vld [vmem:[#allocation2 + $0x138] sm:$0xff]
        %v351 = vld [vmem:[#allocation2 + $0x140] sm:$0xff]
        %v352 = vld [vmem:[#allocation2 + $0x148] sm:$0xff]
        %v353 = vld [vmem:[#allocation2 + $0x150] sm:$0xff]
        %v354 = vld [vmem:[#allocation2 + $0x158] sm:$0xff]
        %v355 = vld [vmem:[#allocation2 + $0x160] sm:$0xff]
        %v356 = vld [vmem:[#allocation2 + $0x168] sm:$0xff]
        %v357 = vld [vmem:[#allocation2 + $0x170] sm:$0xff]
        %v358 = vld [vmem:[#allocation2 + $0x178] sm:$0xff]
        %359 = vmatprep.subr.mxu0 %v357
        %360 = vmatpush1.msra.mxu0 %v356
        %361 = vmatprep.subr.mxu0 %v354
        %362 = vmatpush1.msra.mxu0 %v353
        %363 = vmatprep.subr.mxu0 %v351
        %364 = vmatpush1.msra.mxu0 %v350
        %365 = vmatprep.subr.mxu0 %v348
        %366 = vmatpush1.msra.mxu0 %v347
        %367 = vmatprep.subr.mxu0 %v345
        %368 = vmatpush1.msra.mxu0 %v344
        %369 = vmatprep.subr.mxu0 %v342
        %370 = vmatpush1.msra.mxu0 %v341
        %371 = vmatprep.subr.mxu0 %v339
        %372 = vmatpush1.msra.mxu0 %v338
        %373 = vmatprep.subr.mxu0 %v336
        %374 = vmatpush1.msra.mxu0 %v335
        %375 = vmatprep.subr.mxu0 %v333
        %376 = vmatpush1.msra.mxu0 %v332
        %377 = vmatprep.subr.mxu0 %v330
        %378 = vmatpush1.msra.mxu0 %v329
        %379 = vmatprep.subr.mxu0 %v327
        %380 = vmatpush1.msra.mxu0 %v326
        %381 = vmatprep.subr.mxu0 %v324
        %382 = vmatpush1.msra.mxu0 %v323
        %383 = vmatprep.subr.mxu0 %v321
        %384 = vmatpush1.msra.mxu0 %v320
        %385 = vmatprep.subr.mxu0 %v318
        %386 = vmatpush1.msra.mxu0 %v317
        %387 = vmatprep.subr.mxu0 %v315
        %388 = vmatpush1.msra.mxu0 %v314
        %389 = vmatprep.subr.mxu0 %v312
        %390 = vmatpush1.msra.mxu0 %v311
        %391 = vmatprep.subr.mxu0 0.0
        %392 = vmatpush2.msra.mxu0 0.0
        %393 = vmatprep.subr.mxu0 0.0
        %394 = vmatpush2.msra.mxu0 0.0
        %395 = vmatprep.subr.mxu0 0.0
        %396 = vmatpush2.msra.mxu0 0.0
        %397 = vmatprep.subr.mxu0 0.0
        %398 = vmatpush2.msra.mxu0 0.0
        %399 = vmatprep.subr.mxu0 0.0
        %400 = vmatpush2.msra.mxu0 0.0
        %401 = vmatprep.subr.mxu0 0.0
        %402 = vmatpush2.msra.mxu0 0.0
        %403 = vmatprep.subr.mxu0 0.0
        %404 = vmatpush2.msra.mxu0 0.0
        %405 = vmatprep.subr.mxu0 0.0
        %406 = vmatpush2.msra.mxu0 0.0
        %407 = vmatprep.subr.mxu0 0.0
        %408 = vmatpush2.msra.mxu0 0.0
        %409 = vmatprep.subr.mxu0 0.0
        %410 = vmatpush2.msra.mxu0 0.0
        %411 = vmatprep.subr.mxu0 0.0
        %412 = vmatpush2.msra.mxu0 0.0
        %413 = vmatprep.subr.mxu0 0.0
        %414 = vmatpush2.msra.mxu0 0.0
        %415 = vmatprep.subr.mxu0 0.0
        %416 = vmatpush2.msra.mxu0 0.0
        %417 = vmatprep.subr.mxu0 0.0
        %418 = vmatpush2.msra.mxu0 0.0
        %419 = vmatprep.subr.mxu0 0.0
        %420 = vmatpush2.msra.mxu0 0.0
        %421 = vmatprep.subr.mxu0 0.0
        %422 = vmatpush2.msra.mxu0 0.0
        %423 = vmatprep.mubr.f32.mxu0 0.0
        %424 = vmatmul.mubr.f32.gmra.mxu0 %v303
        %v425 = vpop.f32.mrf.mxu0
        %v426 = vadd.f32 0.0, %v425
        %v427 = vpop.f32.mrf.mxu0
        %v428 = vadd.f32 0.0, %v427
        %429 = vmatprep.mubr.f32.mxu0 0.0
        %430 = vmatmul.mubr.f32.gmra.mxu0 %v304
        %v431 = vpop.f32.mrf.mxu0
        %v432 = vadd.f32 0.0, %v431
        %v433 = vpop.f32.mrf.mxu0
        %v434 = vadd.f32 0.0, %v433
        %435 = vmatprep.mubr.f32.mxu0 0.0
        %436 = vmatmul.mubr.f32.gmra.mxu0 %v305
        %v437 = vpop.f32.mrf.mxu0
        %v438 = vadd.f32 0.0, %v437
        %v439 = vpop.f32.mrf.mxu0
        %v440 = vadd.f32 0.0, %v439
        %441 = vmatprep.mubr.f32.mxu0 0.0
        %442 = vmatmul.mubr.f32.gmra.mxu0 %v306
        %v443 = vpop.f32.mrf.mxu0
        %v444 = vadd.f32 0.0, %v443
        %v445 = vpop.f32.mrf.mxu0
        %v446 = vadd.f32 0.0, %v445
        %447 = vmatprep.mubr.f32.mxu0 0.0
        %448 = vmatmul.mubr.f32.gmra.mxu0 %v307
        %v449 = vpop.f32.mrf.mxu0
        %v450 = vadd.f32 0.0, %v449
        %v451 = vpop.f32.mrf.mxu0
        %v452 = vadd.f32 0.0, %v451
        %453 = vmatprep.mubr.f32.mxu0 0.0
        %454 = vmatmul.mubr.f32.gmra.mxu0 %v308
        %v455 = vpop.f32.mrf.mxu0
        %v456 = vadd.f32 0.0, %v455
        %v457 = vpop.f32.mrf.mxu0
        %v458 = vadd.f32 0.0, %v457
        %459 = vmatprep.mubr.f32.mxu0 0.0
        %460 = vmatmul.mubr.f32.gmra.mxu0 %v309
        %v461 = vpop.f32.mrf.mxu0
        %v462 = vadd.f32 0.0, %v461
        %v463 = vpop.f32.mrf.mxu0
        %v464 = vadd.f32 0.0, %v463
        %465 = vmatprep.mubr.f32.mxu0 0.0
        %466 = vmatmul.mubr.f32.gmra.mxu0 %v310
        %v467 = vpop.f32.mrf.mxu0
        %v468 = vadd.f32 0.0, %v467
        %v469 = vpop.f32.mrf.mxu0
        %v470 = vadd.f32 0.0, %v469
        %471 = vdwg.mxu0
        %472 = vmatprep.subr.mxu0 0.0
        %473 = vmatpush1.msra.mxu0 %v358
        %474 = vmatprep.subr.mxu0 0.0
        %475 = vmatpush1.msra.mxu0 %v355
        %476 = vmatprep.subr.mxu0 0.0
        %477 = vmatpush1.msra.mxu0 %v352
        %478 = vmatprep.subr.mxu0 0.0
        %479 = vmatpush1.msra.mxu0 %v349
        %480 = vmatprep.subr.mxu0 0.0
        %481 = vmatpush1.msra.mxu0 %v346
        %482 = vmatprep.subr.mxu0 0.0
        %483 = vmatpush1.msra.mxu0 %v343
        %484 = vmatprep.subr.mxu0 0.0
        %485 = vmatpush1.msra.mxu0 %v340
        %486 = vmatprep.subr.mxu0 0.0
        %487 = vmatpush1.msra.mxu0 %v337
        %488 = vmatprep.subr.mxu0 0.0
        %489 = vmatpush1.msra.mxu0 %v334
        %490 = vmatprep.subr.mxu0 0.0
        %491 = vmatpush1.msra.mxu0 %v331
        %492 = vmatprep.subr.mxu0 0.0
        %493 = vmatpush1.msra.mxu0 %v328
        %494 = vmatprep.subr.mxu0 0.0
        %495 = vmatpush1.msra.mxu0 %v325
        %496 = vmatprep.subr.mxu0 0.0
        %497 = vmatpush1.msra.mxu0 %v322
        %498 = vmatprep.subr.mxu0 0.0
        %499 = vmatpush1.msra.mxu0 %v319
        %500 = vmatprep.subr.mxu0 0.0
        %501 = vmatpush1.msra.mxu0 %v316
        %502 = vmatprep.subr.mxu0 0.0
        %503 = vmatpush1.msra.mxu0 %v313
        %504 = vmatprep.subr.mxu0 0.0
        %505 = vmatpush2.msra.mxu0 0.0
        %506 = vmatprep.subr.mxu0 0.0
        %507 = vmatpush2.msra.mxu0 0.0
        %508 = vmatprep.subr.mxu0 0.0
        %509 = vmatpush2.msra.mxu0 0.0
        %510 = vmatprep.subr.mxu0 0.0
        %511 = vmatpush2.msra.mxu0 0.0
        %512 = vmatprep.subr.mxu0 0.0
        %513 = vmatpush2.msra.mxu0 0.0
        %514 = vmatprep.subr.mxu0 0.0
        %515 = vmatpush2.msra.mxu0 0.0
        %516 = vmatprep.subr.mxu0 0.0
        %517 = vmatpush2.msra.mxu0 0.0
        %518 = vmatprep.subr.mxu0 0.0
        %519 = vmatpush2.msra.mxu0 0.0
        %520 = vmatprep.subr.mxu0 0.0
        %521 = vmatpush2.msra.mxu0 0.0
        %522 = vmatprep.subr.mxu0 0.0
        %523 = vmatpush2.msra.mxu0 0.0
        %524 = vmatprep.subr.mxu0 0.0
        %525 = vmatpush2.msra.mxu0 0.0
        %526 = vmatprep.subr.mxu0 0.0
        %527 = vmatpush2.msra.mxu0 0.0
        %528 = vmatprep.subr.mxu0 0.0
        %529 = vmatpush2.msra.mxu0 0.0
        %530 = vmatprep.subr.mxu0 0.0
        %531 = vmatpush2.msra.mxu0 0.0
        %532 = vmatprep.subr.mxu0 0.0
        %533 = vmatpush2.msra.mxu0 0.0
        %534 = vmatprep.subr.mxu0 0.0
        %535 = vmatpush2.msra.mxu0 0.0
        %536 = vmatprep.mubr.f32.mxu0 0.0
        %537 = vmatmul.mubr.f32.gmra.mxu0 %v303
        %v538 = vpop.f32.mrf.mxu0
        %v539 = vadd.f32 0.0, %v538
        %v540 = vpop.f32.mrf.mxu0
        %541 = vmatprep.mubr.f32.mxu0 0.0
        %542 = vmatmul.mubr.f32.gmra.mxu0 %v304
        %v543 = vpop.f32.mrf.mxu0
        %v544 = vadd.f32 0.0, %v543
        %v545 = vpop.f32.mrf.mxu0
        %546 = vmatprep.mubr.f32.mxu0 0.0
        %547 = vmatmul.mubr.f32.gmra.mxu0 %v305
        %v548 = vpop.f32.mrf.mxu0
        %v549 = vadd.f32 0.0, %v548
        %v550 = vpop.f32.mrf.mxu0
        %551 = vmatprep.mubr.f32.mxu0 0.0
        %552 = vmatmul.mubr.f32.gmra.mxu0 %v306
        %v553 = vpop.f32.mrf.mxu0
        %v554 = vadd.f32 0.0, %v553
        %v555 = vpop.f32.mrf.mxu0
        %556 = vmatprep.mubr.f32.mxu0 0.0
        %557 = vmatmul.mubr.f32.gmra.mxu0 %v307
        %v558 = vpop.f32.mrf.mxu0
        %v559 = vadd.f32 0.0, %v558
        %v560 = vpop.f32.mrf.mxu0
        %561 = vmatprep.mubr.f32.mxu0 0.0
        %562 = vmatmul.mubr.f32.gmra.mxu0 %v308
        %v563 = vpop.f32.mrf.mxu0
        %v564 = vadd.f32 0.0, %v563
        %v565 = vpop.f32.mrf.mxu0
        %566 = vmatprep.mubr.f32.mxu0 0.0
        %567 = vmatmul.mubr.f32.gmra.mxu0 %v309
        %v568 = vpop.f32.mrf.mxu0
        %v569 = vadd.f32 0.0, %v568
        %v570 = vpop.f32.mrf.mxu0
        %571 = vmatprep.mubr.f32.mxu0 0.0
        %572 = vmatmul.mubr.f32.gmra.mxu0 %v310
        %v573 = vpop.f32.mrf.mxu0
        %v574 = vadd.f32 0.0, %v573
        %v575 = vpop.f32.mrf.mxu0
        %576 = vdwg.mxu0
        %v577 = vld [vmem:[%s300] sm:$0xff]
        %v578 = vld [vmem:[%s300 + $0x8] sm:$0xff]
        %v579 = vld [vmem:[%s300 + $0x10] sm:$0xff]
        %v580 = vld [vmem:[%s300 + $0x18] sm:$0xff]
        %v581 = vld [vmem:[%s300 + $0x20] sm:$0xff]
        %v582 = vld [vmem:[%s300 + $0x28] sm:$0xff]
        %v583 = vld [vmem:[%s300 + $0x30] sm:$0xff]
        %v584 = vld [vmem:[%s300 + $0x38] sm:$0xff]
        %v585 = vld [vmem:[%s293] sm:$0x1]
        %v586 = vld [vmem:[%s293 + $0x1] sm:$0x1]
        %v587 = vld [vmem:[%s293 + $0x2] sm:$0x1]
        %v588 = vld [vmem:[%s293 + $0x3] sm:$0x1]
        %590 = vset.pattern.permute.xlu0 0
        %591 = vperm.xlu0 %590, %v577
        %v592 = vpop.permute.xlu0 %591
        %595 = vset.pattern.permute.xlu0 0
        %596 = vperm.xlu0 %595, %v578
        %v597 = vpop.permute.xlu0 %596
        %600 = vset.pattern.permute.xlu0 0
        %601 = vperm.xlu0 %600, %v579
        %v602 = vpop.permute.xlu0 %601
        %605 = vset.pattern.permute.xlu0 0
        %606 = vperm.xlu0 %605, %v580
        %v607 = vpop.permute.xlu0 %606
        %610 = vset.pattern.permute.xlu0 0
        %611 = vperm.xlu0 %610, %v581
        %v612 = vpop.permute.xlu0 %611
        %615 = vset.pattern.permute.xlu0 0
        %616 = vperm.xlu0 %615, %v582
        %v617 = vpop.permute.xlu0 %616
        %620 = vset.pattern.permute.xlu0 0
        %621 = vperm.xlu0 %620, %v583
        %v622 = vpop.permute.xlu0 %621
        %625 = vset.pattern.permute.xlu0 0
        %626 = vperm.xlu0 %625, %v584
        %v627 = vpop.permute.xlu0 %626
        %v633 = vlaneseq
        %v634 = vshrl.u32 %v633, 7
        %v635 = vsub.s32 0, %v634
        %v636 = vrot.slane %v585, %v635
        %v637 = vlaneseq
        %v638 = vshrl.u32 %v637, 7
        %v639 = vsub.s32 0, %v638
        %v640 = vrot.slane %v586, %v639
        %v641 = vlaneseq
        %v642 = vshrl.u32 %v641, 7
        %v643 = vsub.s32 0, %v642
        %v644 = vrot.slane %v587, %v643
        %v645 = vlaneseq
        %v646 = vshrl.u32 %v645, 7
        %v647 = vsub.s32 0, %v646
        %v648 = vrot.slane %v588, %v647
        %v653 = vmul.f32 %v592, %v636
        %v654 = vmul.f32 %v597, %v636
        %v655 = vmul.f32 %v602, %v640
        %v656 = vmul.f32 %v607, %v640
        %v657 = vmul.f32 %v612, %v644
        %v658 = vmul.f32 %v617, %v644
        %v659 = vmul.f32 %v622, %v648
        %v660 = vmul.f32 %v627, %v648
        %vm661 = vcmp.gt.f32.partialorder %v653, 0.5
        %vm662 = vcmp.gt.f32.partialorder %v654, 0.5
        %vm663 = vcmp.gt.f32.partialorder %v655, 0.5
        %vm664 = vcmp.gt.f32.partialorder %v656, 0.5
        %vm665 = vcmp.gt.f32.partialorder %v657, 0.5
        %vm666 = vcmp.gt.f32.partialorder %v658, 0.5
        %vm667 = vcmp.gt.f32.partialorder %v659, 0.5
        %vm668 = vcmp.gt.f32.partialorder %v660, 0.5
        %vm669 = vcmask 261120
        %v671 = vsel %vm669, %v426, 0
        %v674 = vsel %vm669, %v432, 0
        %v677 = vsel %vm669, %v428, 0
        %v680 = vsel %vm669, %v434, 0
        %682 = vmatprep.subr.mxu0 0.0
        %683 = vmatpush1.xpose.msra.mxu0 0.0
        %684 = vmatprep.subr.mxu0 0.0
        %685 = vmatpush1.xpose.msra.mxu0 0.0
        %686 = vmatprep.subr.mxu0 0.0
        %687 = vmatpush1.xpose.msra.mxu0 0.0
        %688 = vmatprep.subr.mxu0 0.0
        %689 = vmatpush1.xpose.msra.mxu0 0.0
        %690 = vmatprep.subr.mxu0 0.0
        %691 = vmatpush1.xpose.msra.mxu0 0.0
        %692 = vmatprep.subr.mxu0 0.0
        %693 = vmatpush1.xpose.msra.mxu0 0.0
        %694 = vmatprep.subr.mxu0 0.0
        %695 = vmatpush1.xpose.msra.mxu0 0.0
        %696 = vmatprep.subr.mxu0 0.0
        %697 = vmatpush1.xpose.msra.mxu0 0.0
        %698 = vmatprep.subr.mxu0 0.0
        %699 = vmatpush1.xpose.msra.mxu0 0.0
        %700 = vmatprep.subr.mxu0 0.0
        %701 = vmatpush1.xpose.msra.mxu0 0.0
        %702 = vmatprep.subr.mxu0 0.0
        %703 = vmatpush1.xpose.msra.mxu0 0.0
        %704 = vmatprep.subr.mxu0 0.0
        %705 = vmatpush1.xpose.msra.mxu0 0.0
        %706 = vmatprep.subr.mxu0 0.0
        %707 = vmatpush1.xpose.msra.mxu0 0.0
        %708 = vmatprep.subr.mxu0 0.0
        %709 = vmatpush1.xpose.msra.mxu0 0.0
        %710 = vmatprep.subr.mxu0 0.0
        %711 = vmatpush1.xpose.msra.mxu0 %v680
        %712 = vmatprep.subr.mxu0 0.0
        %713 = vmatpush1.xpose.msra.mxu0 %v677
        %714 = vmatprep.subr.mxu0 0.0
        %715 = vmatpush2.xpose.msra.mxu0 0.0
        %716 = vmatprep.subr.mxu0 0.0
        %717 = vmatpush2.xpose.msra.mxu0 0.0
        %718 = vmatprep.subr.mxu0 0.0
        %719 = vmatpush2.xpose.msra.mxu0 0.0
        %720 = vmatprep.subr.mxu0 0.0
        %721 = vmatpush2.xpose.msra.mxu0 0.0
        %722 = vmatprep.subr.mxu0 0.0
        %723 = vmatpush2.xpose.msra.mxu0 0.0
        %724 = vmatprep.subr.mxu0 0.0
        %725 = vmatpush2.xpose.msra.mxu0 0.0
        %726 = vmatprep.subr.mxu0 0.0
        %727 = vmatpush2.xpose.msra.mxu0 0.0
        %728 = vmatprep.subr.mxu0 0.0
        %729 = vmatpush2.xpose.msra.mxu0 0.0
        %730 = vmatprep.subr.mxu0 0.0
        %731 = vmatpush2.xpose.msra.mxu0 0.0
        %732 = vmatprep.subr.mxu0 0.0
        %733 = vmatpush2.xpose.msra.mxu0 0.0
        %734 = vmatprep.subr.mxu0 0.0
        %735 = vmatpush2.xpose.msra.mxu0 0.0
        %736 = vmatprep.subr.mxu0 0.0
        %737 = vmatpush2.xpose.msra.mxu0 0.0
        %738 = vmatprep.subr.mxu0 0.0
        %739 = vmatpush2.xpose.msra.mxu0 0.0
        %740 = vmatprep.subr.mxu0 0.0
        %741 = vmatpush2.xpose.msra.mxu0 0.0
        %742 = vmatprep.subr.mxu0 0.0
        %743 = vmatpush2.xpose.msra.mxu0 0.0
        %744 = vmatprep.subr.mxu0 0.0
        %745 = vmatpush2.xpose.msra.mxu0 0.0
        %746 = vmatprep.mubr.f32.mxu0 0.0
        %747 = vmatmul.mubr.f32.gmra.mxu0 %v671
        %v748 = vpop.f32.mrf.mxu0
        %v749 = vadd.f32 0.0, %v748
        %v750 = vpop.f32.mrf.mxu0
        %751 = vmatprep.mubr.f32.mxu0 0.0
        %752 = vmatmul.mubr.f32.gmra.mxu0 %v674
        %v753 = vpop.f32.mrf.mxu0
        %v754 = vadd.f32 0.0, %v753
        %v755 = vpop.f32.mrf.mxu0
        %756 = vdwg.mxu0
        %v758 = vsel %vm669, %v438, 0
        %v761 = vsel %vm669, %v444, 0
        %v764 = vsel %vm669, %v440, 0
        %v767 = vsel %vm669, %v446, 0
        %769 = vmatprep.subr.mxu0 0.0
        %770 = vmatpush1.xpose.msra.mxu0 0.0
        %771 = vmatprep.subr.mxu0 0.0
        %772 = vmatpush1.xpose.msra.mxu0 0.0
        %773 = vmatprep.subr.mxu0 0.0
        %774 = vmatpush1.xpose.msra.mxu0 0.0
        %775 = vmatprep.subr.mxu0 0.0
        %776 = vmatpush1.xpose.msra.mxu0 0.0
        %777 = vmatprep.subr.mxu0 0.0
        %778 = vmatpush1.xpose.msra.mxu0 0.0
        %779 = vmatprep.subr.mxu0 0.0
        %780 = vmatpush1.xpose.msra.mxu0 0.0
        %781 = vmatprep.subr.mxu0 0.0
        %782 = vmatpush1.xpose.msra.mxu0 0.0
        %783 = vmatprep.subr.mxu0 0.0
        %784 = vmatpush1.xpose.msra.mxu0 0.0
        %785 = vmatprep.subr.mxu0 0.0
        %786 = vmatpush1.xpose.msra.mxu0 0.0
        %787 = vmatprep.subr.mxu0 0.0
        %788 = vmatpush1.xpose.msra.mxu0 0.0
        %789 = vmatprep.subr.mxu0 0.0
        %790 = vmatpush1.xpose.msra.mxu0 0.0
        %791 = vmatprep.subr.mxu0 0.0
        %792 = vmatpush1.xpose.msra.mxu0 0.0
        %793 = vmatprep.subr.mxu0 0.0
        %794 = vmatpush1.xpose.msra.mxu0 0.0
        %795 = vmatprep.subr.mxu0 0.0
        %796 = vmatpush1.xpose.msra.mxu0 0.0
        %797 = vmatprep.subr.mxu0 0.0
        %798 = vmatpush1.xpose.msra.mxu0 %v767
        %799 = vmatprep.subr.mxu0 0.0
        %800 = vmatpush1.xpose.msra.mxu0 %v764
        %801 = vmatprep.subr.mxu0 0.0
        %802 = vmatpush2.xpose.msra.mxu0 0.0
        %803 = vmatprep.subr.mxu0 0.0
        %804 = vmatpush2.xpose.msra.mxu0 0.0
        %805 = vmatprep.subr.mxu0 0.0
        %806 = vmatpush2.xpose.msra.mxu0 0.0
        %807 = vmatprep.subr.mxu0 0.0
        %808 = vmatpush2.xpose.msra.mxu0 0.0
        %809 = vmatprep.subr.mxu0 0.0
        %810 = vmatpush2.xpose.msra.mxu0 0.0
        %811 = vmatprep.subr.mxu0 0.0
        %812 = vmatpush2.xpose.msra.mxu0 0.0
        %813 = vmatprep.subr.mxu0 0.0
        %814 = vmatpush2.xpose.msra.mxu0 0.0
        %815 = vmatprep.subr.mxu0 0.0
        %816 = vmatpush2.xpose.msra.mxu0 0.0
        %817 = vmatprep.subr.mxu0 0.0
        %818 = vmatpush2.xpose.msra.mxu0 0.0
        %819 = vmatprep.subr.mxu0 0.0
        %820 = vmatpush2.xpose.msra.mxu0 0.0
        %821 = vmatprep.subr.mxu0 0.0
        %822 = vmatpush2.xpose.msra.mxu0 0.0
        %823 = vmatprep.subr.mxu0 0.0
        %824 = vmatpush2.xpose.msra.mxu0 0.0
        %825 = vmatprep.subr.mxu0 0.0
        %826 = vmatpush2.xpose.msra.mxu0 0.0
        %827 = vmatprep.subr.mxu0 0.0
        %828 = vmatpush2.xpose.msra.mxu0 0.0
        %829 = vmatprep.subr.mxu0 0.0
        %830 = vmatpush2.xpose.msra.mxu0 0.0
        %831 = vmatprep.subr.mxu0 0.0
        %832 = vmatpush2.xpose.msra.mxu0 0.0
        %833 = vmatprep.mubr.f32.mxu0 0.0
        %834 = vmatmul.mubr.f32.gmra.mxu0 %v758
        %v835 = vpop.f32.mrf.mxu0
        %v836 = vadd.f32 0.0, %v835
        %v837 = vpop.f32.mrf.mxu0
        %838 = vmatprep.mubr.f32.mxu0 0.0
        %839 = vmatmul.mubr.f32.gmra.mxu0 %v761
        %v840 = vpop.f32.mrf.mxu0
        %v841 = vadd.f32 0.0, %v840
        %v842 = vpop.f32.mrf.mxu0
        %843 = vdwg.mxu0
        %v845 = vsel %vm669, %v450, 0
        %v848 = vsel %vm669, %v456, 0
        %v851 = vsel %vm669, %v452, 0
        %v854 = vsel %vm669, %v458, 0
        %856 = vmatprep.subr.mxu0 0.0
        %857 = vmatpush1.xpose.msra.mxu0 0.0
        %858 = vmatprep.subr.mxu0 0.0
        %859 = vmatpush1.xpose.msra.mxu0 0.0
        %860 = vmatprep.subr.mxu0 0.0
        %861 = vmatpush1.xpose.msra.mxu0 0.0
        %862 = vmatprep.subr.mxu0 0.0
        %863 = vmatpush1.xpose.msra.mxu0 0.0
        %864 = vmatprep.subr.mxu0 0.0
        %865 = vmatpush1.xpose.msra.mxu0 0.0
        %866 = vmatprep.subr.mxu0 0.0
        %867 = vmatpush1.xpose.msra.mxu0 0.0
        %868 = vmatprep.subr.mxu0 0.0
        %869 = vmatpush1.xpose.msra.mxu0 0.0
        %870 = vmatprep.subr.mxu0 0.0
        %871 = vmatpush1.xpose.msra.mxu0 0.0
        %872 = vmatprep.subr.mxu0 0.0
        %873 = vmatpush1.xpose.msra.mxu0 0.0
        %874 = vmatprep.subr.mxu0 0.0
        %875 = vmatpush1.xpose.msra.mxu0 0.0
        %876 = vmatprep.subr.mxu0 0.0
        %877 = vmatpush1.xpose.msra.mxu0 0.0
        %878 = vmatprep.subr.mxu0 0.0
        %879 = vmatpush1.xpose.msra.mxu0 0.0
        %880 = vmatprep.subr.mxu0 0.0
        %881 = vmatpush1.xpose.msra.mxu0 0.0
        %882 = vmatprep.subr.mxu0 0.0
        %883 = vmatpush1.xpose.msra.mxu0 0.0
        %884 = vmatprep.subr.mxu0 0.0
        %885 = vmatpush1.xpose.msra.mxu0 %v854
        %886 = vmatprep.subr.mxu0 0.0
        %887 = vmatpush1.xpose.msra.mxu0 %v851
        %888 = vmatprep.subr.mxu0 0.0
        %889 = vmatpush2.xpose.msra.mxu0 0.0
        %890 = vmatprep.subr.mxu0 0.0
        %891 = vmatpush2.xpose.msra.mxu0 0.0
        %892 = vmatprep.subr.mxu0 0.0
        %893 = vmatpush2.xpose.msra.mxu0 0.0
        %894 = vmatprep.subr.mxu0 0.0
        %895 = vmatpush2.xpose.msra.mxu0 0.0
        %896 = vmatprep.subr.mxu0 0.0
        %897 = vmatpush2.xpose.msra.mxu0 0.0
        %898 = vmatprep.subr.mxu0 0.0
        %899 = vmatpush2.xpose.msra.mxu0 0.0
        %900 = vmatprep.subr.mxu0 0.0
        %901 = vmatpush2.xpose.msra.mxu0 0.0
        %902 = vmatprep.subr.mxu0 0.0
        %903 = vmatpush2.xpose.msra.mxu0 0.0
        %904 = vmatprep.subr.mxu0 0.0
        %905 = vmatpush2.xpose.msra.mxu0 0.0
        %906 = vmatprep.subr.mxu0 0.0
        %907 = vmatpush2.xpose.msra.mxu0 0.0
        %908 = vmatprep.subr.mxu0 0.0
        %909 = vmatpush2.xpose.msra.mxu0 0.0
        %910 = vmatprep.subr.mxu0 0.0
        %911 = vmatpush2.xpose.msra.mxu0 0.0
        %912 = vmatprep.subr.mxu0 0.0
        %913 = vmatpush2.xpose.msra.mxu0 0.0
        %914 = vmatprep.subr.mxu0 0.0
        %915 = vmatpush2.xpose.msra.mxu0 0.0
        %916 = vmatprep.subr.mxu0 0.0
        %917 = vmatpush2.xpose.msra.mxu0 0.0
        %918 = vmatprep.subr.mxu0 0.0
        %919 = vmatpush2.xpose.msra.mxu0 0.0
        %920 = vmatprep.mubr.f32.mxu0 0.0
        %921 = vmatmul.mubr.f32.gmra.mxu0 %v845
        %v922 = vpop.f32.mrf.mxu0
        %v923 = vadd.f32 0.0, %v922
        %v924 = vpop.f32.mrf.mxu0
        %925 = vmatprep.mubr.f32.mxu0 0.0
        %926 = vmatmul.mubr.f32.gmra.mxu0 %v848
        %v927 = vpop.f32.mrf.mxu0
        %v928 = vadd.f32 0.0, %v927
        %v929 = vpop.f32.mrf.mxu0
        %930 = vdwg.mxu0
        %v932 = vsel %vm669, %v462, 0
        %v935 = vsel %vm669, %v468, 0
        %v938 = vsel %vm669, %v464, 0
        %v941 = vsel %vm669, %v470, 0
        %943 = vmatprep.subr.mxu0 0.0
        %944 = vmatpush1.xpose.msra.mxu0 0.0
        %945 = vmatprep.subr.mxu0 0.0
        %946 = vmatpush1.xpose.msra.mxu0 0.0
        %947 = vmatprep.subr.mxu0 0.0
        %948 = vmatpush1.xpose.msra.mxu0 0.0
        %949 = vmatprep.subr.mxu0 0.0
        %950 = vmatpush1.xpose.msra.mxu0 0.0
        %951 = vmatprep.subr.mxu0 0.0
        %952 = vmatpush1.xpose.msra.mxu0 0.0
        %953 = vmatprep.subr.mxu0 0.0
        %954 = vmatpush1.xpose.msra.mxu0 0.0
        %955 = vmatprep.subr.mxu0 0.0
        %956 = vmatpush1.xpose.msra.mxu0 0.0
        %957 = vmatprep.subr.mxu0 0.0
        %958 = vmatpush1.xpose.msra.mxu0 0.0
        %959 = vmatprep.subr.mxu0 0.0
        %960 = vmatpush1.xpose.msra.mxu0 0.0
        %961 = vmatprep.subr.mxu0 0.0
        %962 = vmatpush1.xpose.msra.mxu0 0.0
        %963 = vmatprep.subr.mxu0 0.0
        %964 = vmatpush1.xpose.msra.mxu0 0.0
        %965 = vmatprep.subr.mxu0 0.0
        %966 = vmatpush1.xpose.msra.mxu0 0.0
        %967 = vmatprep.subr.mxu0 0.0
        %968 = vmatpush1.xpose.msra.mxu0 0.0
        %969 = vmatprep.subr.mxu0 0.0
        %970 = vmatpush1.xpose.msra.mxu0 0.0
        %971 = vmatprep.subr.mxu0 0.0
        %972 = vmatpush1.xpose.msra.mxu0 %v941
        %973 = vmatprep.subr.mxu0 0.0
        %974 = vmatpush1.xpose.msra.mxu0 %v938
        %975 = vmatprep.subr.mxu0 0.0
        %976 = vmatpush2.xpose.msra.mxu0 0.0
        %977 = vmatprep.subr.mxu0 0.0
        %978 = vmatpush2.xpose.msra.mxu0 0.0
        %979 = vmatprep.subr.mxu0 0.0
        %980 = vmatpush2.xpose.msra.mxu0 0.0
        %981 = vmatprep.subr.mxu0 0.0
        %982 = vmatpush2.xpose.msra.mxu0 0.0
        %983 = vmatprep.subr.mxu0 0.0
        %984 = vmatpush2.xpose.msra.mxu0 0.0
        %985 = vmatprep.subr.mxu0 0.0
        %986 = vmatpush2.xpose.msra.mxu0 0.0
        %987 = vmatprep.subr.mxu0 0.0
        %988 = vmatpush2.xpose.msra.mxu0 0.0
        %989 = vmatprep.subr.mxu0 0.0
        %990 = vmatpush2.xpose.msra.mxu0 0.0
        %991 = vmatprep.subr.mxu0 0.0
        %992 = vmatpush2.xpose.msra.mxu0 0.0
        %993 = vmatprep.subr.mxu0 0.0
        %994 = vmatpush2.xpose.msra.mxu0 0.0
        %995 = vmatprep.subr.mxu0 0.0
        %996 = vmatpush2.xpose.msra.mxu0 0.0
        %997 = vmatprep.subr.mxu0 0.0
        %998 = vmatpush2.xpose.msra.mxu0 0.0
        %999 = vmatprep.subr.mxu0 0.0
        %1000 = vmatpush2.xpose.msra.mxu0 0.0
        %1001 = vmatprep.subr.mxu0 0.0
        %1002 = vmatpush2.xpose.msra.mxu0 0.0
        %1003 = vmatprep.subr.mxu0 0.0
        %1004 = vmatpush2.xpose.msra.mxu0 0.0
        %1005 = vmatprep.subr.mxu0 0.0
        %1006 = vmatpush2.xpose.msra.mxu0 0.0
        %1007 = vmatprep.mubr.f32.mxu0 0.0
        %1008 = vmatmul.mubr.f32.gmra.mxu0 %v932
        %v1009 = vpop.f32.mrf.mxu0
        %v1010 = vadd.f32 0.0, %v1009
        %v1011 = vpop.f32.mrf.mxu0
        %1012 = vmatprep.mubr.f32.mxu0 0.0
        %1013 = vmatmul.mubr.f32.gmra.mxu0 %v935
        %v1014 = vpop.f32.mrf.mxu0
        %v1015 = vadd.f32 0.0, %v1014
        %v1016 = vpop.f32.mrf.mxu0
        %1017 = vdwg.mxu0
        %v1018 = vsel %vm661, %v749, -3.4028235e+38
        %v1019 = vsel %vm662, %v754, -3.4028235e+38
        %v1020 = vsel %vm663, %v836, -3.4028235e+38
        %v1021 = vsel %vm664, %v841, -3.4028235e+38
        %v1022 = vsel %vm665, %v923, -3.4028235e+38
        %v1023 = vsel %vm666, %v928, -3.4028235e+38
        %v1024 = vsel %vm667, %v1010, -3.4028235e+38
        %v1025 = vsel %vm668, %v1015, -3.4028235e+38
        %vm1026 = vcmask 130048
        %v1027 = vsel %vm1026, %v1018, -inf
        %1028 = vmax.xlane.f32.xlu0 %v1027
        %v1029 = vpop.xlane.xlu0 %1028
        %v1030 = vsel %vm1026, %v1019, -inf
        %1031 = vmax.xlane.f32.xlu0 %v1030
        %v1032 = vpop.xlane.xlu0 %1031
        %v1033 = vsel %vm1026, %v1020, -inf
        %1034 = vmax.xlane.f32.xlu0 %v1033
        %v1035 = vpop.xlane.xlu0 %1034
        %v1036 = vsel %vm1026, %v1021, -inf
        %1037 = vmax.xlane.f32.xlu0 %v1036
        %v1038 = vpop.xlane.xlu0 %1037
        %v1039 = vsel %vm1026, %v1022, -inf
        %1040 = vmax.xlane.f32.xlu0 %v1039
        %v1041 = vpop.xlane.xlu0 %1040
        %v1042 = vsel %vm1026, %v1023, -inf
        %1043 = vmax.xlane.f32.xlu0 %v1042
        %v1044 = vpop.xlane.xlu0 %1043
        %v1045 = vsel %vm1026, %v1024, -inf
        %1046 = vmax.xlane.f32.xlu0 %v1045
        %v1047 = vpop.xlane.xlu0 %1046
        %v1048 = vsel %vm1026, %v1025, -inf
        %1049 = vmax.xlane.f32.xlu0 %v1048
        %v1050 = vpop.xlane.xlu0 %1049
        %v1051 = vsub.f32 %v1018, %v1029
        %v1052 = vsub.f32 %v1019, %v1032
        %v1053 = vsub.f32 %v1020, %v1035
        %v1054 = vsub.f32 %v1021, %v1038
        %v1055 = vsub.f32 %v1022, %v1041
        %v1056 = vsub.f32 %v1023, %v1044
        %v1057 = vsub.f32 %v1024, %v1047
        %v1058 = vsub.f32 %v1025, %v1050
        %v1059 = vmul.f32 %v1051, 1.442695
        %v1060 = vpow.pop %v1059
        %v1061 = vmul.f32 %v1052, 1.442695
        %v1062 = vpow.pop %v1061
        %v1063 = vmul.f32 %v1053, 1.442695
        %v1064 = vpow.pop %v1063
        %v1065 = vmul.f32 %v1054, 1.442695
        %v1066 = vpow.pop %v1065
        %v1067 = vmul.f32 %v1055, 1.442695
        %v1068 = vpow.pop %v1067
        %v1069 = vmul.f32 %v1056, 1.442695
        %v1070 = vpow.pop %v1069
        %v1071 = vmul.f32 %v1057, 1.442695
        %v1072 = vpow.pop %v1071
        %v1073 = vmul.f32 %v1058, 1.442695
        %v1074 = vpow.pop %v1073
        %v1075 = vsel %vm1026, %v1060, 0.0
        %1076 = vadd.xlane.f32.xlu0 %v1075
        %v1077 = vpop.xlane.xlu0 %1076
        %v1078 = vsel %vm1026, %v1062, 0.0
        %1079 = vadd.xlane.f32.xlu0 %v1078
        %v1080 = vpop.xlane.xlu0 %1079
        %v1081 = vsel %vm1026, %v1064, 0.0
        %1082 = vadd.xlane.f32.xlu0 %v1081
        %v1083 = vpop.xlane.xlu0 %1082
        %v1084 = vsel %vm1026, %v1066, 0.0
        %1085 = vadd.xlane.f32.xlu0 %v1084
        %v1086 = vpop.xlane.xlu0 %1085
        %v1087 = vsel %vm1026, %v1068, 0.0
        %1088 = vadd.xlane.f32.xlu0 %v1087
        %v1089 = vpop.xlane.xlu0 %1088
        %v1090 = vsel %vm1026, %v1070, 0.0
        %1091 = vadd.xlane.f32.xlu0 %v1090
        %v1092 = vpop.xlane.xlu0 %1091
        %v1093 = vsel %vm1026, %v1072, 0.0
        %1094 = vadd.xlane.f32.xlu0 %v1093
        %v1095 = vpop.xlane.xlu0 %1094
        %v1096 = vsel %vm1026, %v1074, 0.0
        %1097 = vadd.xlane.f32.xlu0 %v1096
        %v1098 = vpop.xlane.xlu0 %1097
        %v1099 = vrcp.pop %v1077
        %v1100 = vrcp.pop %v1080
        %v1101 = vrcp.pop %v1083
        %v1102 = vrcp.pop %v1086
        %v1103 = vrcp.pop %v1089
        %v1104 = vrcp.pop %v1092
        %v1105 = vrcp.pop %v1095
        %v1106 = vrcp.pop %v1098
        %v1107 = vmul.f32 %v1060, %v1099
        %v1108 = vmul.f32 %v1062, %v1100
        %v1109 = vmul.f32 %v1064, %v1101
        %v1110 = vmul.f32 %v1066, %v1102
        %v1111 = vmul.f32 %v1068, %v1103
        %v1112 = vmul.f32 %v1070, %v1104
        %v1113 = vmul.f32 %v1072, %v1105
        %v1114 = vmul.f32 %v1074, %v1106
        %v1116 = vsel %vm1026, %v1107, 0
        %v1119 = vsel %vm1026, %v1108, 0
        %1121 = vmatprep.subr.mxu0 0.0
        %1122 = vmatpush1.msra.mxu0 0.0
        %1123 = vmatprep.subr.mxu0 0.0
        %1124 = vmatpush1.msra.mxu0 0.0
        %1125 = vmatprep.subr.mxu0 0.0
        %1126 = vmatpush1.msra.mxu0 0.0
        %1127 = vmatprep.subr.mxu0 0.0
        %1128 = vmatpush1.msra.mxu0 0.0
        %1129 = vmatprep.subr.mxu0 0.0
        %1130 = vmatpush1.msra.mxu0 0.0
        %1131 = vmatprep.subr.mxu0 0.0
        %1132 = vmatpush1.msra.mxu0 0.0
        %1133 = vmatprep.subr.mxu0 0.0
        %1134 = vmatpush1.msra.mxu0 0.0
        %1135 = vmatprep.subr.mxu0 0.0
        %1136 = vmatpush1.msra.mxu0 0.0
        %1137 = vmatprep.subr.mxu0 0.0
        %1138 = vmatpush1.msra.mxu0 0.0
        %1139 = vmatprep.subr.mxu0 0.0
        %1140 = vmatpush1.msra.mxu0 0.0
        %1141 = vmatprep.subr.mxu0 0.0
        %1142 = vmatpush1.msra.mxu0 0.0
        %1143 = vmatprep.subr.mxu0 0.0
        %1144 = vmatpush1.msra.mxu0 0.0
        %1145 = vmatprep.subr.mxu0 0.0
        %1146 = vmatpush1.msra.mxu0 0.0
        %1147 = vmatprep.subr.mxu0 0.0
        %1148 = vmatpush1.msra.mxu0 0.0
        %1149 = vmatprep.subr.mxu0 0.0
        %1150 = vmatpush1.msra.mxu0 %v544
        %1151 = vmatprep.subr.mxu0 0.0
        %1152 = vmatpush1.msra.mxu0 %v539
        %1153 = vmatprep.subr.mxu0 0.0
        %1154 = vmatpush2.msra.mxu0 0.0
        %1155 = vmatprep.subr.mxu0 0.0
        %1156 = vmatpush2.msra.mxu0 0.0
        %1157 = vmatprep.subr.mxu0 0.0
        %1158 = vmatpush2.msra.mxu0 0.0
        %1159 = vmatprep.subr.mxu0 0.0
        %1160 = vmatpush2.msra.mxu0 0.0
        %1161 = vmatprep.subr.mxu0 0.0
        %1162 = vmatpush2.msra.mxu0 0.0
        %1163 = vmatprep.subr.mxu0 0.0
        %1164 = vmatpush2.msra.mxu0 0.0
        %1165 = vmatprep.subr.mxu0 0.0
        %1166 = vmatpush2.msra.mxu0 0.0
        %1167 = vmatprep.subr.mxu0 0.0
        %1168 = vmatpush2.msra.mxu0 0.0
        %1169 = vmatprep.subr.mxu0 0.0
        %1170 = vmatpush2.msra.mxu0 0.0
        %1171 = vmatprep.subr.mxu0 0.0
        %1172 = vmatpush2.msra.mxu0 0.0
        %1173 = vmatprep.subr.mxu0 0.0
        %1174 = vmatpush2.msra.mxu0 0.0
        %1175 = vmatprep.subr.mxu0 0.0
        %1176 = vmatpush2.msra.mxu0 0.0
        %1177 = vmatprep.subr.mxu0 0.0
        %1178 = vmatpush2.msra.mxu0 0.0
        %1179 = vmatprep.subr.mxu0 0.0
        %1180 = vmatpush2.msra.mxu0 0.0
        %1181 = vmatprep.subr.mxu0 0.0
        %1182 = vmatpush2.msra.mxu0 0.0
        %1183 = vmatprep.subr.mxu0 0.0
        %1184 = vmatpush2.msra.mxu0 0.0
        %1185 = vmatprep.mubr.f32.mxu0 0.0
        %1186 = vmatmul.mubr.f32.gmra.mxu0 %v1116
        %v1187 = vpop.f32.mrf.mxu0
        %v1188 = vadd.f32 0.0, %v1187
        %v1189 = vpop.f32.mrf.mxu0
        %1190 = vmatprep.mubr.f32.mxu0 0.0
        %1191 = vmatmul.mubr.f32.gmra.mxu0 %v1119
        %v1192 = vpop.f32.mrf.mxu0
        %v1193 = vadd.f32 0.0, %v1192
        %v1194 = vpop.f32.mrf.mxu0
        %1195 = vdwg.mxu0
        %v1197 = vsel %vm1026, %v1109, 0
        %v1200 = vsel %vm1026, %v1110, 0
        %1202 = vmatprep.subr.mxu0 0.0
        %1203 = vmatpush1.msra.mxu0 0.0
        %1204 = vmatprep.subr.mxu0 0.0
        %1205 = vmatpush1.msra.mxu0 0.0
        %1206 = vmatprep.subr.mxu0 0.0
        %1207 = vmatpush1.msra.mxu0 0.0
        %1208 = vmatprep.subr.mxu0 0.0
        %1209 = vmatpush1.msra.mxu0 0.0
        %1210 = vmatprep.subr.mxu0 0.0
        %1211 = vmatpush1.msra.mxu0 0.0
        %1212 = vmatprep.subr.mxu0 0.0
        %1213 = vmatpush1.msra.mxu0 0.0
        %1214 = vmatprep.subr.mxu0 0.0
        %1215 = vmatpush1.msra.mxu0 0.0
        %1216 = vmatprep.subr.mxu0 0.0
        %1217 = vmatpush1.msra.mxu0 0.0
        %1218 = vmatprep.subr.mxu0 0.0
        %1219 = vmatpush1.msra.mxu0 0.0
        %1220 = vmatprep.subr.mxu0 0.0
        %1221 = vmatpush1.msra.mxu0 0.0
        %1222 = vmatprep.subr.mxu0 0.0
        %1223 = vmatpush1.msra.mxu0 0.0
        %1224 = vmatprep.subr.mxu0 0.0
        %1225 = vmatpush1.msra.mxu0 0.0
        %1226 = vmatprep.subr.mxu0 0.0
        %1227 = vmatpush1.msra.mxu0 0.0
        %1228 = vmatprep.subr.mxu0 0.0
        %1229 = vmatpush1.msra.mxu0 0.0
        %1230 = vmatprep.subr.mxu0 0.0
        %1231 = vmatpush1.msra.mxu0 %v554
        %1232 = vmatprep.subr.mxu0 0.0
        %1233 = vmatpush1.msra.mxu0 %v549
        %1234 = vmatprep.subr.mxu0 0.0
        %1235 = vmatpush2.msra.mxu0 0.0
        %1236 = vmatprep.subr.mxu0 0.0
        %1237 = vmatpush2.msra.mxu0 0.0
        %1238 = vmatprep.subr.mxu0 0.0
        %1239 = vmatpush2.msra.mxu0 0.0
        %1240 = vmatprep.subr.mxu0 0.0
        %1241 = vmatpush2.msra.mxu0 0.0
        %1242 = vmatprep.subr.mxu0 0.0
        %1243 = vmatpush2.msra.mxu0 0.0
        %1244 = vmatprep.subr.mxu0 0.0
        %1245 = vmatpush2.msra.mxu0 0.0
        %1246 = vmatprep.subr.mxu0 0.0
        %1247 = vmatpush2.msra.mxu0 0.0
        %1248 = vmatprep.subr.mxu0 0.0
        %1249 = vmatpush2.msra.mxu0 0.0
        %1250 = vmatprep.subr.mxu0 0.0
        %1251 = vmatpush2.msra.mxu0 0.0
        %1252 = vmatprep.subr.mxu0 0.0
        %1253 = vmatpush2.msra.mxu0 0.0
        %1254 = vmatprep.subr.mxu0 0.0
        %1255 = vmatpush2.msra.mxu0 0.0
        %1256 = vmatprep.subr.mxu0 0.0
        %1257 = vmatpush2.msra.mxu0 0.0
        %1258 = vmatprep.subr.mxu0 0.0
        %1259 = vmatpush2.msra.mxu0 0.0
        %1260 = vmatprep.subr.mxu0 0.0
        %1261 = vmatpush2.msra.mxu0 0.0
        %1262 = vmatprep.subr.mxu0 0.0
        %1263 = vmatpush2.msra.mxu0 0.0
        %1264 = vmatprep.subr.mxu0 0.0
        %1265 = vmatpush2.msra.mxu0 0.0
        %1266 = vmatprep.mubr.f32.mxu0 0.0
        %1267 = vmatmul.mubr.f32.gmra.mxu0 %v1197
        %v1268 = vpop.f32.mrf.mxu0
        %v1269 = vadd.f32 0.0, %v1268
        %v1270 = vpop.f32.mrf.mxu0
        %1271 = vmatprep.mubr.f32.mxu0 0.0
        %1272 = vmatmul.mubr.f32.gmra.mxu0 %v1200
        %v1273 = vpop.f32.mrf.mxu0
        %v1274 = vadd.f32 0.0, %v1273
        %v1275 = vpop.f32.mrf.mxu0
        %1276 = vdwg.mxu0
        %v1278 = vsel %vm1026, %v1111, 0
        %v1281 = vsel %vm1026, %v1112, 0
        %1283 = vmatprep.subr.mxu0 0.0
        %1284 = vmatpush1.msra.mxu0 0.0
        %1285 = vmatprep.subr.mxu0 0.0
        %1286 = vmatpush1.msra.mxu0 0.0
        %1287 = vmatprep.subr.mxu0 0.0
        %1288 = vmatpush1.msra.mxu0 0.0
        %1289 = vmatprep.subr.mxu0 0.0
        %1290 = vmatpush1.msra.mxu0 0.0
        %1291 = vmatprep.subr.mxu0 0.0
        %1292 = vmatpush1.msra.mxu0 0.0
        %1293 = vmatprep.subr.mxu0 0.0
        %1294 = vmatpush1.msra.mxu0 0.0
        %1295 = vmatprep.subr.mxu0 0.0
        %1296 = vmatpush1.msra.mxu0 0.0
        %1297 = vmatprep.subr.mxu0 0.0
        %1298 = vmatpush1.msra.mxu0 0.0
        %1299 = vmatprep.subr.mxu0 0.0
        %1300 = vmatpush1.msra.mxu0 0.0
        %1301 = vmatprep.subr.mxu0 0.0
        %1302 = vmatpush1.msra.mxu0 0.0
        %1303 = vmatprep.subr.mxu0 0.0
        %1304 = vmatpush1.msra.mxu0 0.0
        %1305 = vmatprep.subr.mxu0 0.0
        %1306 = vmatpush1.msra.mxu0 0.0
        %1307 = vmatprep.subr.mxu0 0.0
        %1308 = vmatpush1.msra.mxu0 0.0
        %1309 = vmatprep.subr.mxu0 0.0
        %1310 = vmatpush1.msra.mxu0 0.0
        %1311 = vmatprep.subr.mxu0 0.0
        %1312 = vmatpush1.msra.mxu0 %v564
        %1313 = vmatprep.subr.mxu0 0.0
        %1314 = vmatpush1.msra.mxu0 %v559
        %1315 = vmatprep.subr.mxu0 0.0
        %1316 = vmatpush2.msra.mxu0 0.0
        %1317 = vmatprep.subr.mxu0 0.0
        %1318 = vmatpush2.msra.mxu0 0.0
        %1319 = vmatprep.subr.mxu0 0.0
        %1320 = vmatpush2.msra.mxu0 0.0
        %1321 = vmatprep.subr.mxu0 0.0
        %1322 = vmatpush2.msra.mxu0 0.0
        %1323 = vmatprep.subr.mxu0 0.0
        %1324 = vmatpush2.msra.mxu0 0.0
        %1325 = vmatprep.subr.mxu0 0.0
        %1326 = vmatpush2.msra.mxu0 0.0
        %1327 = vmatprep.subr.mxu0 0.0
        %1328 = vmatpush2.msra.mxu0 0.0
        %1329 = vmatprep.subr.mxu0 0.0
        %1330 = vmatpush2.msra.mxu0 0.0
        %1331 = vmatprep.subr.mxu0 0.0
        %1332 = vmatpush2.msra.mxu0 0.0
        %1333 = vmatprep.subr.mxu0 0.0
        %1334 = vmatpush2.msra.mxu0 0.0
        %1335 = vmatprep.subr.mxu0 0.0
        %1336 = vmatpush2.msra.mxu0 0.0
        %1337 = vmatprep.subr.mxu0 0.0
        %1338 = vmatpush2.msra.mxu0 0.0
        %1339 = vmatprep.subr.mxu0 0.0
        %1340 = vmatpush2.msra.mxu0 0.0
        %1341 = vmatprep.subr.mxu0 0.0
        %1342 = vmatpush2.msra.mxu0 0.0
        %1343 = vmatprep.subr.mxu0 0.0
        %1344 = vmatpush2.msra.mxu0 0.0
        %1345 = vmatprep.subr.mxu0 0.0
        %1346 = vmatpush2.msra.mxu0 0.0
        %1347 = vmatprep.mubr.f32.mxu0 0.0
        %1348 = vmatmul.mubr.f32.gmra.mxu0 %v1278
        %v1349 = vpop.f32.mrf.mxu0
        %v1350 = vadd.f32 0.0, %v1349
        %v1351 = vpop.f32.mrf.mxu0
        %1352 = vmatprep.mubr.f32.mxu0 0.0
        %1353 = vmatmul.mubr.f32.gmra.mxu0 %v1281
        %v1354 = vpop.f32.mrf.mxu0
        %v1355 = vadd.f32 0.0, %v1354
        %v1356 = vpop.f32.mrf.mxu0
        %1357 = vdwg.mxu0
        %v1359 = vsel %vm1026, %v1113, 0
        %v1362 = vsel %vm1026, %v1114, 0
        %1364 = vmatprep.subr.mxu0 0.0
        %1365 = vmatpush1.msra.mxu0 0.0
        %1366 = vmatprep.subr.mxu0 0.0
        %1367 = vmatpush1.msra.mxu0 0.0
        %1368 = vmatprep.subr.mxu0 0.0
        %1369 = vmatpush1.msra.mxu0 0.0
        %1370 = vmatprep.subr.mxu0 0.0
        %1371 = vmatpush1.msra.mxu0 0.0
        %1372 = vmatprep.subr.mxu0 0.0
        %1373 = vmatpush1.msra.mxu0 0.0
        %1374 = vmatprep.subr.mxu0 0.0
        %1375 = vmatpush1.msra.mxu0 0.0
        %1376 = vmatprep.subr.mxu0 0.0
        %1377 = vmatpush1.msra.mxu0 0.0
        %1378 = vmatprep.subr.mxu0 0.0
        %1379 = vmatpush1.msra.mxu0 0.0
        %1380 = vmatprep.subr.mxu0 0.0
        %1381 = vmatpush1.msra.mxu0 0.0
        %1382 = vmatprep.subr.mxu0 0.0
        %1383 = vmatpush1.msra.mxu0 0.0
        %1384 = vmatprep.subr.mxu0 0.0
        %1385 = vmatpush1.msra.mxu0 0.0
        %1386 = vmatprep.subr.mxu0 0.0
        %1387 = vmatpush1.msra.mxu0 0.0
        %1388 = vmatprep.subr.mxu0 0.0
        %1389 = vmatpush1.msra.mxu0 0.0
        %1390 = vmatprep.subr.mxu0 0.0
        %1391 = vmatpush1.msra.mxu0 0.0
        %1392 = vmatprep.subr.mxu0 0.0
        %1393 = vmatpush1.msra.mxu0 %v574
        %1394 = vmatprep.subr.mxu0 0.0
        %1395 = vmatpush1.msra.mxu0 %v569
        %1396 = vmatprep.subr.mxu0 0.0
        %1397 = vmatpush2.msra.mxu0 0.0
        %1398 = vmatprep.subr.mxu0 0.0
        %1399 = vmatpush2.msra.mxu0 0.0
        %1400 = vmatprep.subr.mxu0 0.0
        %1401 = vmatpush2.msra.mxu0 0.0
        %1402 = vmatprep.subr.mxu0 0.0
        %1403 = vmatpush2.msra.mxu0 0.0
        %1404 = vmatprep.subr.mxu0 0.0
        %1405 = vmatpush2.msra.mxu0 0.0
        %1406 = vmatprep.subr.mxu0 0.0
        %1407 = vmatpush2.msra.mxu0 0.0
        %1408 = vmatprep.subr.mxu0 0.0
        %1409 = vmatpush2.msra.mxu0 0.0
        %1410 = vmatprep.subr.mxu0 0.0
        %1411 = vmatpush2.msra.mxu0 0.0
        %1412 = vmatprep.subr.mxu0 0.0
        %1413 = vmatpush2.msra.mxu0 0.0
        %1414 = vmatprep.subr.mxu0 0.0
        %1415 = vmatpush2.msra.mxu0 0.0
        %1416 = vmatprep.subr.mxu0 0.0
        %1417 = vmatpush2.msra.mxu0 0.0
        %1418 = vmatprep.subr.mxu0 0.0
        %1419 = vmatpush2.msra.mxu0 0.0
        %1420 = vmatprep.subr.mxu0 0.0
        %1421 = vmatpush2.msra.mxu0 0.0
        %1422 = vmatprep.subr.mxu0 0.0
        %1423 = vmatpush2.msra.mxu0 0.0
        %1424 = vmatprep.subr.mxu0 0.0
        %1425 = vmatpush2.msra.mxu0 0.0
        %1426 = vmatprep.subr.mxu0 0.0
        %1427 = vmatpush2.msra.mxu0 0.0
        %1428 = vmatprep.mubr.f32.mxu0 0.0
        %1429 = vmatmul.mubr.f32.gmra.mxu0 %v1359
        %v1430 = vpop.f32.mrf.mxu0
        %v1431 = vadd.f32 0.0, %v1430
        %v1432 = vpop.f32.mrf.mxu0
        %1433 = vmatprep.mubr.f32.mxu0 0.0
        %1434 = vmatmul.mubr.f32.gmra.mxu0 %v1362
        %v1435 = vpop.f32.mrf.mxu0
        %v1436 = vadd.f32 0.0, %v1435
        %v1437 = vpop.f32.mrf.mxu0
        %1438 = vdwg.mxu0
        %1439 = vrot.lane.b32.xlu0 %v426, 96
        %v1440 = vpop.permute.xlu0 %1439
        %1441 = vrot.lane.b32.xlu0 %v432, 96
        %v1442 = vpop.permute.xlu0 %1441
        %1443 = vrot.lane.b32.xlu0 %v428, 96
        %v1444 = vpop.permute.xlu0 %1443
        %1445 = vrot.lane.b32.xlu0 %v434, 96
        %v1446 = vpop.permute.xlu0 %1445
        %v1447 = vsel %vm669, %v1440, 0
        %v1449 = vsel %vm669, %v1442, 0
        %v1451 = vsel %vm669, %v1444, 0
        %v1453 = vsel %vm669, %v1446, 0
        %1455 = vmatprep.subr.mxu0 0.0
        %1456 = vmatpush1.xpose.msra.mxu0 0.0
        %1457 = vmatprep.subr.mxu0 0.0
        %1458 = vmatpush1.xpose.msra.mxu0 0.0
        %1459 = vmatprep.subr.mxu0 0.0
        %1460 = vmatpush1.xpose.msra.mxu0 0.0
        %1461 = vmatprep.subr.mxu0 0.0
        %1462 = vmatpush1.xpose.msra.mxu0 0.0
        %1463 = vmatprep.subr.mxu0 0.0
        %1464 = vmatpush1.xpose.msra.mxu0 0.0
        %1465 = vmatprep.subr.mxu0 0.0
        %1466 = vmatpush1.xpose.msra.mxu0 0.0
        %1467 = vmatprep.subr.mxu0 0.0
        %1468 = vmatpush1.xpose.msra.mxu0 0.0
        %1469 = vmatprep.subr.mxu0 0.0
        %1470 = vmatpush1.xpose.msra.mxu0 0.0
        %1471 = vmatprep.subr.mxu0 0.0
        %1472 = vmatpush1.xpose.msra.mxu0 0.0
        %1473 = vmatprep.subr.mxu0 0.0
        %1474 = vmatpush1.xpose.msra.mxu0 0.0
        %1475 = vmatprep.subr.mxu0 0.0
        %1476 = vmatpush1.xpose.msra.mxu0 0.0
        %1477 = vmatprep.subr.mxu0 0.0
        %1478 = vmatpush1.xpose.msra.mxu0 0.0
        %1479 = vmatprep.subr.mxu0 0.0
        %1480 = vmatpush1.xpose.msra.mxu0 0.0
        %1481 = vmatprep.subr.mxu0 0.0
        %1482 = vmatpush1.xpose.msra.mxu0 0.0
        %1483 = vmatprep.subr.mxu0 0.0
        %1484 = vmatpush1.xpose.msra.mxu0 %v1453
        %1485 = vmatprep.subr.mxu0 0.0
        %1486 = vmatpush1.xpose.msra.mxu0 %v1451
        %1487 = vmatprep.subr.mxu0 0.0
        %1488 = vmatpush2.xpose.msra.mxu0 0.0
        %1489 = vmatprep.subr.mxu0 0.0
        %1490 = vmatpush2.xpose.msra.mxu0 0.0
        %1491 = vmatprep.subr.mxu0 0.0
        %1492 = vmatpush2.xpose.msra.mxu0 0.0
        %1493 = vmatprep.subr.mxu0 0.0
        %1494 = vmatpush2.xpose.msra.mxu0 0.0
        %1495 = vmatprep.subr.mxu0 0.0
        %1496 = vmatpush2.xpose.msra.mxu0 0.0
        %1497 = vmatprep.subr.mxu0 0.0
        %1498 = vmatpush2.xpose.msra.mxu0 0.0
        %1499 = vmatprep.subr.mxu0 0.0
        %1500 = vmatpush2.xpose.msra.mxu0 0.0
        %1501 = vmatprep.subr.mxu0 0.0
        %1502 = vmatpush2.xpose.msra.mxu0 0.0
        %1503 = vmatprep.subr.mxu0 0.0
        %1504 = vmatpush2.xpose.msra.mxu0 0.0
        %1505 = vmatprep.subr.mxu0 0.0
        %1506 = vmatpush2.xpose.msra.mxu0 0.0
        %1507 = vmatprep.subr.mxu0 0.0
        %1508 = vmatpush2.xpose.msra.mxu0 0.0
        %1509 = vmatprep.subr.mxu0 0.0
        %1510 = vmatpush2.xpose.msra.mxu0 0.0
        %1511 = vmatprep.subr.mxu0 0.0
        %1512 = vmatpush2.xpose.msra.mxu0 0.0
        %1513 = vmatprep.subr.mxu0 0.0
        %1514 = vmatpush2.xpose.msra.mxu0 0.0
        %1515 = vmatprep.subr.mxu0 0.0
        %1516 = vmatpush2.xpose.msra.mxu0 0.0
        %1517 = vmatprep.subr.mxu0 0.0
        %1518 = vmatpush2.xpose.msra.mxu0 0.0
        %1519 = vmatprep.mubr.f32.mxu0 0.0
        %1520 = vmatmul.mubr.f32.gmra.mxu0 %v1447
        %v1521 = vpop.f32.mrf.mxu0
        %v1522 = vadd.f32 0.0, %v1521
        %v1523 = vpop.f32.mrf.mxu0
        %1524 = vmatprep.mubr.f32.mxu0 0.0
        %1525 = vmatmul.mubr.f32.gmra.mxu0 %v1449
        %v1526 = vpop.f32.mrf.mxu0
        %v1527 = vadd.f32 0.0, %v1526
        %v1528 = vpop.f32.mrf.mxu0
        %1529 = vdwg.mxu0
        %1530 = vrot.lane.b32.xlu0 %v438, 96
        %v1531 = vpop.permute.xlu0 %1530
        %1532 = vrot.lane.b32.xlu0 %v444, 96
        %v1533 = vpop.permute.xlu0 %1532
        %1534 = vrot.lane.b32.xlu0 %v440, 96
        %v1535 = vpop.permute.xlu0 %1534
        %1536 = vrot.lane.b32.xlu0 %v446, 96
        %v1537 = vpop.permute.xlu0 %1536
        %v1538 = vsel %vm669, %v1531, 0
        %v1540 = vsel %vm669, %v1533, 0
        %v1542 = vsel %vm669, %v1535, 0
        %v1544 = vsel %vm669, %v1537, 0
        %1546 = vmatprep.subr.mxu0 0.0
        %1547 = vmatpush1.xpose.msra.mxu0 0.0
        %1548 = vmatprep.subr.mxu0 0.0
        %1549 = vmatpush1.xpose.msra.mxu0 0.0
        %1550 = vmatprep.subr.mxu0 0.0
        %1551 = vmatpush1.xpose.msra.mxu0 0.0
        %1552 = vmatprep.subr.mxu0 0.0
        %1553 = vmatpush1.xpose.msra.mxu0 0.0
        %1554 = vmatprep.subr.mxu0 0.0
        %1555 = vmatpush1.xpose.msra.mxu0 0.0
        %1556 = vmatprep.subr.mxu0 0.0
        %1557 = vmatpush1.xpose.msra.mxu0 0.0
        %1558 = vmatprep.subr.mxu0 0.0
        %1559 = vmatpush1.xpose.msra.mxu0 0.0
        %1560 = vmatprep.subr.mxu0 0.0
        %1561 = vmatpush1.xpose.msra.mxu0 0.0
        %1562 = vmatprep.subr.mxu0 0.0
        %1563 = vmatpush1.xpose.msra.mxu0 0.0
        %1564 = vmatprep.subr.mxu0 0.0
        %1565 = vmatpush1.xpose.msra.mxu0 0.0
        %1566 = vmatprep.subr.mxu0 0.0
        %1567 = vmatpush1.xpose.msra.mxu0 0.0
        %1568 = vmatprep.subr.mxu0 0.0
        %1569 = vmatpush1.xpose.msra.mxu0 0.0
        %1570 = vmatprep.subr.mxu0 0.0
        %1571 = vmatpush1.xpose.msra.mxu0 0.0
        %1572 = vmatprep.subr.mxu0 0.0
        %1573 = vmatpush1.xpose.msra.mxu0 0.0
        %1574 = vmatprep.subr.mxu0 0.0
        %1575 = vmatpush1.xpose.msra.mxu0 %v1544
        %1576 = vmatprep.subr.mxu0 0.0
        %1577 = vmatpush1.xpose.msra.mxu0 %v1542
        %1578 = vmatprep.subr.mxu0 0.0
        %1579 = vmatpush2.xpose.msra.mxu0 0.0
        %1580 = vmatprep.subr.mxu0 0.0
        %1581 = vmatpush2.xpose.msra.mxu0 0.0
        %1582 = vmatprep.subr.mxu0 0.0
        %1583 = vmatpush2.xpose.msra.mxu0 0.0
        %1584 = vmatprep.subr.mxu0 0.0
        %1585 = vmatpush2.xpose.msra.mxu0 0.0
        %1586 = vmatprep.subr.mxu0 0.0
        %1587 = vmatpush2.xpose.msra.mxu0 0.0
        %1588 = vmatprep.subr.mxu0 0.0
        %1589 = vmatpush2.xpose.msra.mxu0 0.0
        %1590 = vmatprep.subr.mxu0 0.0
        %1591 = vmatpush2.xpose.msra.mxu0 0.0
        %1592 = vmatprep.subr.mxu0 0.0
        %1593 = vmatpush2.xpose.msra.mxu0 0.0
        %1594 = vmatprep.subr.mxu0 0.0
        %1595 = vmatpush2.xpose.msra.mxu0 0.0
        %1596 = vmatprep.subr.mxu0 0.0
        %1597 = vmatpush2.xpose.msra.mxu0 0.0
        %1598 = vmatprep.subr.mxu0 0.0
        %1599 = vmatpush2.xpose.msra.mxu0 0.0
        %1600 = vmatprep.subr.mxu0 0.0
        %1601 = vmatpush2.xpose.msra.mxu0 0.0
        %1602 = vmatprep.subr.mxu0 0.0
        %1603 = vmatpush2.xpose.msra.mxu0 0.0
        %1604 = vmatprep.subr.mxu0 0.0
        %1605 = vmatpush2.xpose.msra.mxu0 0.0
        %1606 = vmatprep.subr.mxu0 0.0
        %1607 = vmatpush2.xpose.msra.mxu0 0.0
        %1608 = vmatprep.subr.mxu0 0.0
        %1609 = vmatpush2.xpose.msra.mxu0 0.0
        %1610 = vmatprep.mubr.f32.mxu0 0.0
        %1611 = vmatmul.mubr.f32.gmra.mxu0 %v1538
        %v1612 = vpop.f32.mrf.mxu0
        %v1613 = vadd.f32 0.0, %v1612
        %v1614 = vpop.f32.mrf.mxu0
        %1615 = vmatprep.mubr.f32.mxu0 0.0
        %1616 = vmatmul.mubr.f32.gmra.mxu0 %v1540
        %v1617 = vpop.f32.mrf.mxu0
        %v1618 = vadd.f32 0.0, %v1617
        %v1619 = vpop.f32.mrf.mxu0
        %1620 = vdwg.mxu0
        %1621 = vrot.lane.b32.xlu0 %v450, 96
        %v1622 = vpop.permute.xlu0 %1621
        %1623 = vrot.lane.b32.xlu0 %v456, 96
        %v1624 = vpop.permute.xlu0 %1623
        %1625 = vrot.lane.b32.xlu0 %v452, 96
        %v1626 = vpop.permute.xlu0 %1625
        %1627 = vrot.lane.b32.xlu0 %v458, 96
        %v1628 = vpop.permute.xlu0 %1627
        %v1629 = vsel %vm669, %v1622, 0
        %v1631 = vsel %vm669, %v1624, 0
        %v1633 = vsel %vm669, %v1626, 0
        %v1635 = vsel %vm669, %v1628, 0
        %1637 = vmatprep.subr.mxu0 0.0
        %1638 = vmatpush1.xpose.msra.mxu0 0.0
        %1639 = vmatprep.subr.mxu0 0.0
        %1640 = vmatpush1.xpose.msra.mxu0 0.0
        %1641 = vmatprep.subr.mxu0 0.0
        %1642 = vmatpush1.xpose.msra.mxu0 0.0
        %1643 = vmatprep.subr.mxu0 0.0
        %1644 = vmatpush1.xpose.msra.mxu0 0.0
        %1645 = vmatprep.subr.mxu0 0.0
        %1646 = vmatpush1.xpose.msra.mxu0 0.0
        %1647 = vmatprep.subr.mxu0 0.0
        %1648 = vmatpush1.xpose.msra.mxu0 0.0
        %1649 = vmatprep.subr.mxu0 0.0
        %1650 = vmatpush1.xpose.msra.mxu0 0.0
        %1651 = vmatprep.subr.mxu0 0.0
        %1652 = vmatpush1.xpose.msra.mxu0 0.0
        %1653 = vmatprep.subr.mxu0 0.0
        %1654 = vmatpush1.xpose.msra.mxu0 0.0
        %1655 = vmatprep.subr.mxu0 0.0
        %1656 = vmatpush1.xpose.msra.mxu0 0.0
        %1657 = vmatprep.subr.mxu0 0.0
        %1658 = vmatpush1.xpose.msra.mxu0 0.0
        %1659 = vmatprep.subr.mxu0 0.0
        %1660 = vmatpush1.xpose.msra.mxu0 0.0
        %1661 = vmatprep.subr.mxu0 0.0
        %1662 = vmatpush1.xpose.msra.mxu0 0.0
        %1663 = vmatprep.subr.mxu0 0.0
        %1664 = vmatpush1.xpose.msra.mxu0 0.0
        %1665 = vmatprep.subr.mxu0 0.0
        %1666 = vmatpush1.xpose.msra.mxu0 %v1635
        %1667 = vmatprep.subr.mxu0 0.0
        %1668 = vmatpush1.xpose.msra.mxu0 %v1633
        %1669 = vmatprep.subr.mxu0 0.0
        %1670 = vmatpush2.xpose.msra.mxu0 0.0
        %1671 = vmatprep.subr.mxu0 0.0
        %1672 = vmatpush2.xpose.msra.mxu0 0.0
        %1673 = vmatprep.subr.mxu0 0.0
        %1674 = vmatpush2.xpose.msra.mxu0 0.0
        %1675 = vmatprep.subr.mxu0 0.0
        %1676 = vmatpush2.xpose.msra.mxu0 0.0
        %1677 = vmatprep.subr.mxu0 0.0
        %1678 = vmatpush2.xpose.msra.mxu0 0.0
        %1679 = vmatprep.subr.mxu0 0.0
        %1680 = vmatpush2.xpose.msra.mxu0 0.0
        %1681 = vmatprep.subr.mxu0 0.0
        %1682 = vmatpush2.xpose.msra.mxu0 0.0
        %1683 = vmatprep.subr.mxu0 0.0
        %1684 = vmatpush2.xpose.msra.mxu0 0.0
        %1685 = vmatprep.subr.mxu0 0.0
        %1686 = vmatpush2.xpose.msra.mxu0 0.0
        %1687 = vmatprep.subr.mxu0 0.0
        %1688 = vmatpush2.xpose.msra.mxu0 0.0
        %1689 = vmatprep.subr.mxu0 0.0
        %1690 = vmatpush2.xpose.msra.mxu0 0.0
        %1691 = vmatprep.subr.mxu0 0.0
        %1692 = vmatpush2.xpose.msra.mxu0 0.0
        %1693 = vmatprep.subr.mxu0 0.0
        %1694 = vmatpush2.xpose.msra.mxu0 0.0
        %1695 = vmatprep.subr.mxu0 0.0
        %1696 = vmatpush2.xpose.msra.mxu0 0.0
        %1697 = vmatprep.subr.mxu0 0.0
        %1698 = vmatpush2.xpose.msra.mxu0 0.0
        %1699 = vmatprep.subr.mxu0 0.0
        %1700 = vmatpush2.xpose.msra.mxu0 0.0
        %1701 = vmatprep.mubr.f32.mxu0 0.0
        %1702 = vmatmul.mubr.f32.gmra.mxu0 %v1629
        %v1703 = vpop.f32.mrf.mxu0
        %v1704 = vadd.f32 0.0, %v1703
        %v1705 = vpop.f32.mrf.mxu0
        %1706 = vmatprep.mubr.f32.mxu0 0.0
        %1707 = vmatmul.mubr.f32.gmra.mxu0 %v1631
        %v1708 = vpop.f32.mrf.mxu0
        %v1709 = vadd.f32 0.0, %v1708
        %v1710 = vpop.f32.mrf.mxu0
        %1711 = vdwg.mxu0
        %1712 = vrot.lane.b32.xlu0 %v462, 96
        %v1713 = vpop.permute.xlu0 %1712
        %1714 = vrot.lane.b32.xlu0 %v468, 96
        %v1715 = vpop.permute.xlu0 %1714
        %1716 = vrot.lane.b32.xlu0 %v464, 96
        %v1717 = vpop.permute.xlu0 %1716
        %1718 = vrot.lane.b32.xlu0 %v470, 96
        %v1719 = vpop.permute.xlu0 %1718
        %v1720 = vsel %vm669, %v1713, 0
        %v1722 = vsel %vm669, %v1715, 0
        %v1724 = vsel %vm669, %v1717, 0
        %v1726 = vsel %vm669, %v1719, 0
        %1728 = vmatprep.subr.mxu0 0.0
        %1729 = vmatpush1.xpose.msra.mxu0 0.0
        %1730 = vmatprep.subr.mxu0 0.0
        %1731 = vmatpush1.xpose.msra.mxu0 0.0
        %1732 = vmatprep.subr.mxu0 0.0
        %1733 = vmatpush1.xpose.msra.mxu0 0.0
        %1734 = vmatprep.subr.mxu0 0.0
        %1735 = vmatpush1.xpose.msra.mxu0 0.0
        %1736 = vmatprep.subr.mxu0 0.0
        %1737 = vmatpush1.xpose.msra.mxu0 0.0
        %1738 = vmatprep.subr.mxu0 0.0
        %1739 = vmatpush1.xpose.msra.mxu0 0.0
        %1740 = vmatprep.subr.mxu0 0.0
        %1741 = vmatpush1.xpose.msra.mxu0 0.0
        %1742 = vmatprep.subr.mxu0 0.0
        %1743 = vmatpush1.xpose.msra.mxu0 0.0
        %1744 = vmatprep.subr.mxu0 0.0
        %1745 = vmatpush1.xpose.msra.mxu0 0.0
        %1746 = vmatprep.subr.mxu0 0.0
        %1747 = vmatpush1.xpose.msra.mxu0 0.0
        %1748 = vmatprep.subr.mxu0 0.0
        %1749 = vmatpush1.xpose.msra.mxu0 0.0
        %1750 = vmatprep.subr.mxu0 0.0
        %1751 = vmatpush1.xpose.msra.mxu0 0.0
        %1752 = vmatprep.subr.mxu0 0.0
        %1753 = vmatpush1.xpose.msra.mxu0 0.0
        %1754 = vmatprep.subr.mxu0 0.0
        %1755 = vmatpush1.xpose.msra.mxu0 0.0
        %1756 = vmatprep.subr.mxu0 0.0
        %1757 = vmatpush1.xpose.msra.mxu0 %v1726
        %1758 = vmatprep.subr.mxu0 0.0
        %1759 = vmatpush1.xpose.msra.mxu0 %v1724
        %1760 = vmatprep.subr.mxu0 0.0
        %1761 = vmatpush2.xpose.msra.mxu0 0.0
        %1762 = vmatprep.subr.mxu0 0.0
        %1763 = vmatpush2.xpose.msra.mxu0 0.0
        %1764 = vmatprep.subr.mxu0 0.0
        %1765 = vmatpush2.xpose.msra.mxu0 0.0
        %1766 = vmatprep.subr.mxu0 0.0
        %1767 = vmatpush2.xpose.msra.mxu0 0.0
        %1768 = vmatprep.subr.mxu0 0.0
        %1769 = vmatpush2.xpose.msra.mxu0 0.0
        %1770 = vmatprep.subr.mxu0 0.0
        %1771 = vmatpush2.xpose.msra.mxu0 0.0
        %1772 = vmatprep.subr.mxu0 0.0
        %1773 = vmatpush2.xpose.msra.mxu0 0.0
        %1774 = vmatprep.subr.mxu0 0.0
        %1775 = vmatpush2.xpose.msra.mxu0 0.0
        %1776 = vmatprep.subr.mxu0 0.0
        %1777 = vmatpush2.xpose.msra.mxu0 0.0
        %1778 = vmatprep.subr.mxu0 0.0
        %1779 = vmatpush2.xpose.msra.mxu0 0.0
        %1780 = vmatprep.subr.mxu0 0.0
        %1781 = vmatpush2.xpose.msra.mxu0 0.0
        %1782 = vmatprep.subr.mxu0 0.0
        %1783 = vmatpush2.xpose.msra.mxu0 0.0
        %1784 = vmatprep.subr.mxu0 0.0
        %1785 = vmatpush2.xpose.msra.mxu0 0.0
        %1786 = vmatprep.subr.mxu0 0.0
        %1787 = vmatpush2.xpose.msra.mxu0 0.0
        %1788 = vmatprep.subr.mxu0 0.0
        %1789 = vmatpush2.xpose.msra.mxu0 0.0
        %1790 = vmatprep.subr.mxu0 0.0
        %1791 = vmatpush2.xpose.msra.mxu0 0.0
        %1792 = vmatprep.mubr.f32.mxu0 0.0
        %1793 = vmatmul.mubr.f32.gmra.mxu0 %v1720
        %v1794 = vpop.f32.mrf.mxu0
        %v1795 = vadd.f32 0.0, %v1794
        %v1796 = vpop.f32.mrf.mxu0
        %1797 = vmatprep.mubr.f32.mxu0 0.0
        %1798 = vmatmul.mubr.f32.gmra.mxu0 %v1722
        %v1799 = vpop.f32.mrf.mxu0
        %v1800 = vadd.f32 0.0, %v1799
        %v1801 = vpop.f32.mrf.mxu0
        %1802 = vdwg.mxu0
        %v1803 = vsel %vm661, %v1522, -3.4028235e+38
        %v1804 = vsel %vm662, %v1527, -3.4028235e+38
        %v1805 = vsel %vm663, %v1613, -3.4028235e+38
        %v1806 = vsel %vm664, %v1618, -3.4028235e+38
        %v1807 = vsel %vm665, %v1704, -3.4028235e+38
        %v1808 = vsel %vm666, %v1709, -3.4028235e+38
        %v1809 = vsel %vm667, %v1795, -3.4028235e+38
        %v1810 = vsel %vm668, %v1800, -3.4028235e+38
        %v1811 = vsel %vm1026, %v1803, -inf
        %1812 = vmax.xlane.f32.xlu0 %v1811
        %v1813 = vpop.xlane.xlu0 %1812
        %v1814 = vsel %vm1026, %v1804, -inf
        %1815 = vmax.xlane.f32.xlu0 %v1814
        %v1816 = vpop.xlane.xlu0 %1815
        %v1817 = vsel %vm1026, %v1805, -inf
        %1818 = vmax.xlane.f32.xlu0 %v1817
        %v1819 = vpop.xlane.xlu0 %1818
        %v1820 = vsel %vm1026, %v1806, -inf
        %1821 = vmax.xlane.f32.xlu0 %v1820
        %v1822 = vpop.xlane.xlu0 %1821
        %v1823 = vsel %vm1026, %v1807, -inf
        %1824 = vmax.xlane.f32.xlu0 %v1823
        %v1825 = vpop.xlane.xlu0 %1824
        %v1826 = vsel %vm1026, %v1808, -inf
        %1827 = vmax.xlane.f32.xlu0 %v1826
        %v1828 = vpop.xlane.xlu0 %1827
        %v1829 = vsel %vm1026, %v1809, -inf
        %1830 = vmax.xlane.f32.xlu0 %v1829
        %v1831 = vpop.xlane.xlu0 %1830
        %v1832 = vsel %vm1026, %v1810, -inf
        %1833 = vmax.xlane.f32.xlu0 %v1832
        %v1834 = vpop.xlane.xlu0 %1833
        %v1835 = vsub.f32 %v1803, %v1813
        %v1836 = vsub.f32 %v1804, %v1816
        %v1837 = vsub.f32 %v1805, %v1819
        %v1838 = vsub.f32 %v1806, %v1822
        %v1839 = vsub.f32 %v1807, %v1825
        %v1840 = vsub.f32 %v1808, %v1828
        %v1841 = vsub.f32 %v1809, %v1831
        %v1842 = vsub.f32 %v1810, %v1834
        %v1843 = vmul.f32 %v1835, 1.442695
        %v1844 = vpow.pop %v1843
        %v1845 = vmul.f32 %v1836, 1.442695
        %v1846 = vpow.pop %v1845
        %v1847 = vmul.f32 %v1837, 1.442695
        %v1848 = vpow.pop %v1847
        %v1849 = vmul.f32 %v1838, 1.442695
        %v1850 = vpow.pop %v1849
        %v1851 = vmul.f32 %v1839, 1.442695
        %v1852 = vpow.pop %v1851
        %v1853 = vmul.f32 %v1840, 1.442695
        %v1854 = vpow.pop %v1853
        %v1855 = vmul.f32 %v1841, 1.442695
        %v1856 = vpow.pop %v1855
        %v1857 = vmul.f32 %v1842, 1.442695
        %v1858 = vpow.pop %v1857
        %v1859 = vsel %vm1026, %v1844, 0.0
        %1860 = vadd.xlane.f32.xlu0 %v1859
        %v1861 = vpop.xlane.xlu0 %1860
        %v1862 = vsel %vm1026, %v1846, 0.0
        %1863 = vadd.xlane.f32.xlu0 %v1862
        %v1864 = vpop.xlane.xlu0 %1863
        %v1865 = vsel %vm1026, %v1848, 0.0
        %1866 = vadd.xlane.f32.xlu0 %v1865
        %v1867 = vpop.xlane.xlu0 %1866
        %v1868 = vsel %vm1026, %v1850, 0.0
        %1869 = vadd.xlane.f32.xlu0 %v1868
        %v1870 = vpop.xlane.xlu0 %1869
        %v1871 = vsel %vm1026, %v1852, 0.0
        %1872 = vadd.xlane.f32.xlu0 %v1871
        %v1873 = vpop.xlane.xlu0 %1872
        %v1874 = vsel %vm1026, %v1854, 0.0
        %1875 = vadd.xlane.f32.xlu0 %v1874
        %v1876 = vpop.xlane.xlu0 %1875
        %v1877 = vsel %vm1026, %v1856, 0.0
        %1878 = vadd.xlane.f32.xlu0 %v1877
        %v1879 = vpop.xlane.xlu0 %1878
        %v1880 = vsel %vm1026, %v1858, 0.0
        %1881 = vadd.xlane.f32.xlu0 %v1880
        %v1882 = vpop.xlane.xlu0 %1881
        %v1883 = vrcp.pop %v1861
        %v1884 = vrcp.pop %v1864
        %v1885 = vrcp.pop %v1867
        %v1886 = vrcp.pop %v1870
        %v1887 = vrcp.pop %v1873
        %v1888 = vrcp.pop %v1876
        %v1889 = vrcp.pop %v1879
        %v1890 = vrcp.pop %v1882
        %v1891 = vmul.f32 %v1844, %v1883
        %v1892 = vmul.f32 %v1846, %v1884
        %v1893 = vmul.f32 %v1848, %v1885
        %v1894 = vmul.f32 %v1850, %v1886
        %v1895 = vmul.f32 %v1852, %v1887
        %v1896 = vmul.f32 %v1854, %v1888
        %v1897 = vmul.f32 %v1856, %v1889
        %v1898 = vmul.f32 %v1858, %v1890
        %1901 = vrot.lane.b32.xlu0 %v539, 96
        %v1902 = vpop.permute.xlu0 %1901
        %1903 = vrot.lane.b32.xlu0 %v544, 96
        %v1904 = vpop.permute.xlu0 %1903
        %v1908 = vsel %vm1026, %v1891, 0
        %v1911 = vsel %vm1026, %v1892, 0
        %1913 = vmatprep.subr.mxu0 0.0
        %1914 = vmatpush1.msra.mxu0 0.0
        %1915 = vmatprep.subr.mxu0 0.0
        %1916 = vmatpush1.msra.mxu0 0.0
        %1917 = vmatprep.subr.mxu0 0.0
        %1918 = vmatpush1.msra.mxu0 0.0
        %1919 = vmatprep.subr.mxu0 0.0
        %1920 = vmatpush1.msra.mxu0 0.0
        %1921 = vmatprep.subr.mxu0 0.0
        %1922 = vmatpush1.msra.mxu0 0.0
        %1923 = vmatprep.subr.mxu0 0.0
        %1924 = vmatpush1.msra.mxu0 0.0
        %1925 = vmatprep.subr.mxu0 0.0
        %1926 = vmatpush1.msra.mxu0 0.0
        %1927 = vmatprep.subr.mxu0 0.0
        %1928 = vmatpush1.msra.mxu0 0.0
        %1929 = vmatprep.subr.mxu0 0.0
        %1930 = vmatpush1.msra.mxu0 0.0
        %1931 = vmatprep.subr.mxu0 0.0
        %1932 = vmatpush1.msra.mxu0 0.0
        %1933 = vmatprep.subr.mxu0 0.0
        %1934 = vmatpush1.msra.mxu0 0.0
        %1935 = vmatprep.subr.mxu0 0.0
        %1936 = vmatpush1.msra.mxu0 0.0
        %1937 = vmatprep.subr.mxu0 0.0
        %1938 = vmatpush1.msra.mxu0 0.0
        %1939 = vmatprep.subr.mxu0 0.0
        %1940 = vmatpush1.msra.mxu0 0.0
        %1941 = vmatprep.subr.mxu0 0.0
        %1942 = vmatpush1.msra.mxu0 %v1904
        %1943 = vmatprep.subr.mxu0 0.0
        %1944 = vmatpush1.msra.mxu0 %v1902
        %1945 = vmatprep.subr.mxu0 0.0
        %1946 = vmatpush2.msra.mxu0 0.0
        %1947 = vmatprep.subr.mxu0 0.0
        %1948 = vmatpush2.msra.mxu0 0.0
        %1949 = vmatprep.subr.mxu0 0.0
        %1950 = vmatpush2.msra.mxu0 0.0
        %1951 = vmatprep.subr.mxu0 0.0
        %1952 = vmatpush2.msra.mxu0 0.0
        %1953 = vmatprep.subr.mxu0 0.0
        %1954 = vmatpush2.msra.mxu0 0.0
        %1955 = vmatprep.subr.mxu0 0.0
        %1956 = vmatpush2.msra.mxu0 0.0
        %1957 = vmatprep.subr.mxu0 0.0
        %1958 = vmatpush2.msra.mxu0 0.0
        %1959 = vmatprep.subr.mxu0 0.0
        %1960 = vmatpush2.msra.mxu0 0.0
        %1961 = vmatprep.subr.mxu0 0.0
        %1962 = vmatpush2.msra.mxu0 0.0
        %1963 = vmatprep.subr.mxu0 0.0
        %1964 = vmatpush2.msra.mxu0 0.0
        %1965 = vmatprep.subr.mxu0 0.0
        %1966 = vmatpush2.msra.mxu0 0.0
        %1967 = vmatprep.subr.mxu0 0.0
        %1968 = vmatpush2.msra.mxu0 0.0
        %1969 = vmatprep.subr.mxu0 0.0
        %1970 = vmatpush2.msra.mxu0 0.0
        %1971 = vmatprep.subr.mxu0 0.0
        %1972 = vmatpush2.msra.mxu0 0.0
        %1973 = vmatprep.subr.mxu0 0.0
        %1974 = vmatpush2.msra.mxu0 0.0
        %1975 = vmatprep.subr.mxu0 0.0
        %1976 = vmatpush2.msra.mxu0 0.0
        %1977 = vmatprep.mubr.f32.mxu0 0.0
        %1978 = vmatmul.mubr.f32.gmra.mxu0 %v1908
        %v1979 = vpop.f32.mrf.mxu0
        %v1980 = vadd.f32 0.0, %v1979
        %v1981 = vpop.f32.mrf.mxu0
        %1982 = vmatprep.mubr.f32.mxu0 0.0
        %1983 = vmatmul.mubr.f32.gmra.mxu0 %v1911
        %v1984 = vpop.f32.mrf.mxu0
        %v1985 = vadd.f32 0.0, %v1984
        %v1986 = vpop.f32.mrf.mxu0
        %1987 = vdwg.mxu0
        %1990 = vrot.lane.b32.xlu0 %v549, 96
        %v1991 = vpop.permute.xlu0 %1990
        %1992 = vrot.lane.b32.xlu0 %v554, 96
        %v1993 = vpop.permute.xlu0 %1992
        %v1997 = vsel %vm1026, %v1893, 0
        %v2000 = vsel %vm1026, %v1894, 0
        %2002 = vmatprep.subr.mxu0 0.0
        %2003 = vmatpush1.msra.mxu0 0.0
        %2004 = vmatprep.subr.mxu0 0.0
        %2005 = vmatpush1.msra.mxu0 0.0
        %2006 = vmatprep.subr.mxu0 0.0
        %2007 = vmatpush1.msra.mxu0 0.0
        %2008 = vmatprep.subr.mxu0 0.0
        %2009 = vmatpush1.msra.mxu0 0.0
        %2010 = vmatprep.subr.mxu0 0.0
        %2011 = vmatpush1.msra.mxu0 0.0
        %2012 = vmatprep.subr.mxu0 0.0
        %2013 = vmatpush1.msra.mxu0 0.0
        %2014 = vmatprep.subr.mxu0 0.0
        %2015 = vmatpush1.msra.mxu0 0.0
        %2016 = vmatprep.subr.mxu0 0.0
        %2017 = vmatpush1.msra.mxu0 0.0
        %2018 = vmatprep.subr.mxu0 0.0
        %2019 = vmatpush1.msra.mxu0 0.0
        %2020 = vmatprep.subr.mxu0 0.0
        %2021 = vmatpush1.msra.mxu0 0.0
        %2022 = vmatprep.subr.mxu0 0.0
        %2023 = vmatpush1.msra.mxu0 0.0
        %2024 = vmatprep.subr.mxu0 0.0
        %2025 = vmatpush1.msra.mxu0 0.0
        %2026 = vmatprep.subr.mxu0 0.0
        %2027 = vmatpush1.msra.mxu0 0.0
        %2028 = vmatprep.subr.mxu0 0.0
        %2029 = vmatpush1.msra.mxu0 0.0
        %2030 = vmatprep.subr.mxu0 0.0
        %2031 = vmatpush1.msra.mxu0 %v1993
        %2032 = vmatprep.subr.mxu0 0.0
        %2033 = vmatpush1.msra.mxu0 %v1991
        %2034 = vmatprep.subr.mxu0 0.0
        %2035 = vmatpush2.msra.mxu0 0.0
        %2036 = vmatprep.subr.mxu0 0.0
        %2037 = vmatpush2.msra.mxu0 0.0
        %2038 = vmatprep.subr.mxu0 0.0
        %2039 = vmatpush2.msra.mxu0 0.0
        %2040 = vmatprep.subr.mxu0 0.0
        %2041 = vmatpush2.msra.mxu0 0.0
        %2042 = vmatprep.subr.mxu0 0.0
        %2043 = vmatpush2.msra.mxu0 0.0
        %2044 = vmatprep.subr.mxu0 0.0
        %2045 = vmatpush2.msra.mxu0 0.0
        %2046 = vmatprep.subr.mxu0 0.0
        %2047 = vmatpush2.msra.mxu0 0.0
        %2048 = vmatprep.subr.mxu0 0.0
        %2049 = vmatpush2.msra.mxu0 0.0
        %2050 = vmatprep.subr.mxu0 0.0
        %2051 = vmatpush2.msra.mxu0 0.0
        %2052 = vmatprep.subr.mxu0 0.0
        %2053 = vmatpush2.msra.mxu0 0.0
        %2054 = vmatprep.subr.mxu0 0.0
        %2055 = vmatpush2.msra.mxu0 0.0
        %2056 = vmatprep.subr.mxu0 0.0
        %2057 = vmatpush2.msra.mxu0 0.0
        %2058 = vmatprep.subr.mxu0 0.0
        %2059 = vmatpush2.msra.mxu0 0.0
        %2060 = vmatprep.subr.mxu0 0.0
        %2061 = vmatpush2.msra.mxu0 0.0
        %2062 = vmatprep.subr.mxu0 0.0
        %2063 = vmatpush2.msra.mxu0 0.0
        %2064 = vmatprep.subr.mxu0 0.0
        %2065 = vmatpush2.msra.mxu0 0.0
        %2066 = vmatprep.mubr.f32.mxu0 0.0
        %2067 = vmatmul.mubr.f32.gmra.mxu0 %v1997
        %v2068 = vpop.f32.mrf.mxu0
        %v2069 = vadd.f32 0.0, %v2068
        %v2070 = vpop.f32.mrf.mxu0
        %2071 = vmatprep.mubr.f32.mxu0 0.0
        %2072 = vmatmul.mubr.f32.gmra.mxu0 %v2000
        %v2073 = vpop.f32.mrf.mxu0
        %v2074 = vadd.f32 0.0, %v2073
        %v2075 = vpop.f32.mrf.mxu0
        %2076 = vdwg.mxu0
        %2079 = vrot.lane.b32.xlu0 %v559, 96
        %v2080 = vpop.permute.xlu0 %2079
        %2081 = vrot.lane.b32.xlu0 %v564, 96
        %v2082 = vpop.permute.xlu0 %2081
        %v2086 = vsel %vm1026, %v1895, 0
        %v2089 = vsel %vm1026, %v1896, 0
        %2091 = vmatprep.subr.mxu0 0.0
        %2092 = vmatpush1.msra.mxu0 0.0
        %2093 = vmatprep.subr.mxu0 0.0
        %2094 = vmatpush1.msra.mxu0 0.0
        %2095 = vmatprep.subr.mxu0 0.0
        %2096 = vmatpush1.msra.mxu0 0.0
        %2097 = vmatprep.subr.mxu0 0.0
        %2098 = vmatpush1.msra.mxu0 0.0
        %2099 = vmatprep.subr.mxu0 0.0
        %2100 = vmatpush1.msra.mxu0 0.0
        %2101 = vmatprep.subr.mxu0 0.0
        %2102 = vmatpush1.msra.mxu0 0.0
        %2103 = vmatprep.subr.mxu0 0.0
        %2104 = vmatpush1.msra.mxu0 0.0
        %2105 = vmatprep.subr.mxu0 0.0
        %2106 = vmatpush1.msra.mxu0 0.0
        %2107 = vmatprep.subr.mxu0 0.0
        %2108 = vmatpush1.msra.mxu0 0.0
        %2109 = vmatprep.subr.mxu0 0.0
        %2110 = vmatpush1.msra.mxu0 0.0
        %2111 = vmatprep.subr.mxu0 0.0
        %2112 = vmatpush1.msra.mxu0 0.0
        %2113 = vmatprep.subr.mxu0 0.0
        %2114 = vmatpush1.msra.mxu0 0.0
        %2115 = vmatprep.subr.mxu0 0.0
        %2116 = vmatpush1.msra.mxu0 0.0
        %2117 = vmatprep.subr.mxu0 0.0
        %2118 = vmatpush1.msra.mxu0 0.0
        %2119 = vmatprep.subr.mxu0 0.0
        %2120 = vmatpush1.msra.mxu0 %v2082
        %2121 = vmatprep.subr.mxu0 0.0
        %2122 = vmatpush1.msra.mxu0 %v2080
        %2123 = vmatprep.subr.mxu0 0.0
        %2124 = vmatpush2.msra.mxu0 0.0
        %2125 = vmatprep.subr.mxu0 0.0
        %2126 = vmatpush2.msra.mxu0 0.0
        %2127 = vmatprep.subr.mxu0 0.0
        %2128 = vmatpush2.msra.mxu0 0.0
        %2129 = vmatprep.subr.mxu0 0.0
        %2130 = vmatpush2.msra.mxu0 0.0
        %2131 = vmatprep.subr.mxu0 0.0
        %2132 = vmatpush2.msra.mxu0 0.0
        %2133 = vmatprep.subr.mxu0 0.0
        %2134 = vmatpush2.msra.mxu0 0.0
        %2135 = vmatprep.subr.mxu0 0.0
        %2136 = vmatpush2.msra.mxu0 0.0
        %2137 = vmatprep.subr.mxu0 0.0
        %2138 = vmatpush2.msra.mxu0 0.0
        %2139 = vmatprep.subr.mxu0 0.0
        %2140 = vmatpush2.msra.mxu0 0.0
        %2141 = vmatprep.subr.mxu0 0.0
        %2142 = vmatpush2.msra.mxu0 0.0
        %2143 = vmatprep.subr.mxu0 0.0
        %2144 = vmatpush2.msra.mxu0 0.0
        %2145 = vmatprep.subr.mxu0 0.0
        %2146 = vmatpush2.msra.mxu0 0.0
        %2147 = vmatprep.subr.mxu0 0.0
        %2148 = vmatpush2.msra.mxu0 0.0
        %2149 = vmatprep.subr.mxu0 0.0
        %2150 = vmatpush2.msra.mxu0 0.0
        %2151 = vmatprep.subr.mxu0 0.0
        %2152 = vmatpush2.msra.mxu0 0.0
        %2153 = vmatprep.subr.mxu0 0.0
        %2154 = vmatpush2.msra.mxu0 0.0
        %2155 = vmatprep.mubr.f32.mxu0 0.0
        %2156 = vmatmul.mubr.f32.gmra.mxu0 %v2086
        %v2157 = vpop.f32.mrf.mxu0
        %v2158 = vadd.f32 0.0, %v2157
        %v2159 = vpop.f32.mrf.mxu0
        %2160 = vmatprep.mubr.f32.mxu0 0.0
        %2161 = vmatmul.mubr.f32.gmra.mxu0 %v2089
        %v2162 = vpop.f32.mrf.mxu0
        %v2163 = vadd.f32 0.0, %v2162
        %v2164 = vpop.f32.mrf.mxu0
        %2165 = vdwg.mxu0
        %2168 = vrot.lane.b32.xlu0 %v569, 96
        %v2169 = vpop.permute.xlu0 %2168
        %2170 = vrot.lane.b32.xlu0 %v574, 96
        %v2171 = vpop.permute.xlu0 %2170
        %v2175 = vsel %vm1026, %v1897, 0
        %v2178 = vsel %vm1026, %v1898, 0
        %2180 = vmatprep.subr.mxu0 0.0
        %2181 = vmatpush1.msra.mxu0 0.0
        %2182 = vmatprep.subr.mxu0 0.0
        %2183 = vmatpush1.msra.mxu0 0.0
        %2184 = vmatprep.subr.mxu0 0.0
        %2185 = vmatpush1.msra.mxu0 0.0
        %2186 = vmatprep.subr.mxu0 0.0
        %2187 = vmatpush1.msra.mxu0 0.0
        %2188 = vmatprep.subr.mxu0 0.0
        %2189 = vmatpush1.msra.mxu0 0.0
        %2190 = vmatprep.subr.mxu0 0.0
        %2191 = vmatpush1.msra.mxu0 0.0
        %2192 = vmatprep.subr.mxu0 0.0
        %2193 = vmatpush1.msra.mxu0 0.0
        %2194 = vmatprep.subr.mxu0 0.0
        %2195 = vmatpush1.msra.mxu0 0.0
        %2196 = vmatprep.subr.mxu0 0.0
        %2197 = vmatpush1.msra.mxu0 0.0
        %2198 = vmatprep.subr.mxu0 0.0
        %2199 = vmatpush1.msra.mxu0 0.0
        %2200 = vmatprep.subr.mxu0 0.0
        %2201 = vmatpush1.msra.mxu0 0.0
        %2202 = vmatprep.subr.mxu0 0.0
        %2203 = vmatpush1.msra.mxu0 0.0
        %2204 = vmatprep.subr.mxu0 0.0
        %2205 = vmatpush1.msra.mxu0 0.0
        %2206 = vmatprep.subr.mxu0 0.0
        %2207 = vmatpush1.msra.mxu0 0.0
        %2208 = vmatprep.subr.mxu0 0.0
        %2209 = vmatpush1.msra.mxu0 %v2171
        %2210 = vmatprep.subr.mxu0 0.0
        %2211 = vmatpush1.msra.mxu0 %v2169
        %2212 = vmatprep.subr.mxu0 0.0
        %2213 = vmatpush2.msra.mxu0 0.0
        %2214 = vmatprep.subr.mxu0 0.0
        %2215 = vmatpush2.msra.mxu0 0.0
        %2216 = vmatprep.subr.mxu0 0.0
        %2217 = vmatpush2.msra.mxu0 0.0
        %2218 = vmatprep.subr.mxu0 0.0
        %2219 = vmatpush2.msra.mxu0 0.0
        %2220 = vmatprep.subr.mxu0 0.0
        %2221 = vmatpush2.msra.mxu0 0.0
        %2222 = vmatprep.subr.mxu0 0.0
        %2223 = vmatpush2.msra.mxu0 0.0
        %2224 = vmatprep.subr.mxu0 0.0
        %2225 = vmatpush2.msra.mxu0 0.0
        %2226 = vmatprep.subr.mxu0 0.0
        %2227 = vmatpush2.msra.mxu0 0.0
        %2228 = vmatprep.subr.mxu0 0.0
        %2229 = vmatpush2.msra.mxu0 0.0
        %2230 = vmatprep.subr.mxu0 0.0
        %2231 = vmatpush2.msra.mxu0 0.0
        %2232 = vmatprep.subr.mxu0 0.0
        %2233 = vmatpush2.msra.mxu0 0.0
        %2234 = vmatprep.subr.mxu0 0.0
        %2235 = vmatpush2.msra.mxu0 0.0
        %2236 = vmatprep.subr.mxu0 0.0
        %2237 = vmatpush2.msra.mxu0 0.0
        %2238 = vmatprep.subr.mxu0 0.0
        %2239 = vmatpush2.msra.mxu0 0.0
        %2240 = vmatprep.subr.mxu0 0.0
        %2241 = vmatpush2.msra.mxu0 0.0
        %2242 = vmatprep.subr.mxu0 0.0
        %2243 = vmatpush2.msra.mxu0 0.0
        %2244 = vmatprep.mubr.f32.mxu0 0.0
        %2245 = vmatmul.mubr.f32.gmra.mxu0 %v2175
        %v2246 = vpop.f32.mrf.mxu0
        %v2247 = vadd.f32 0.0, %v2246
        %v2248 = vpop.f32.mrf.mxu0
        %2249 = vmatprep.mubr.f32.mxu0 0.0
        %2250 = vmatmul.mubr.f32.gmra.mxu0 %v2178
        %v2251 = vpop.f32.mrf.mxu0
        %v2252 = vadd.f32 0.0, %v2251
        %v2253 = vpop.f32.mrf.mxu0
        %2254 = vdwg.mxu0
        %2255 = vrot.lane.b32.xlu0 %v426, 64
        %v2256 = vpop.permute.xlu0 %2255
        %2257 = vrot.lane.b32.xlu0 %v432, 64
        %v2258 = vpop.permute.xlu0 %2257
        %2259 = vrot.lane.b32.xlu0 %v428, 64
        %v2260 = vpop.permute.xlu0 %2259
        %2261 = vrot.lane.b32.xlu0 %v434, 64
        %v2262 = vpop.permute.xlu0 %2261
        %v2263 = vsel %vm669, %v2256, 0
        %v2265 = vsel %vm669, %v2258, 0
        %v2267 = vsel %vm669, %v2260, 0
        %v2269 = vsel %vm669, %v2262, 0
        %2271 = vmatprep.subr.mxu0 0.0
        %2272 = vmatpush1.xpose.msra.mxu0 0.0
        %2273 = vmatprep.subr.mxu0 0.0
        %2274 = vmatpush1.xpose.msra.mxu0 0.0
        %2275 = vmatprep.subr.mxu0 0.0
        %2276 = vmatpush1.xpose.msra.mxu0 0.0
        %2277 = vmatprep.subr.mxu0 0.0
        %2278 = vmatpush1.xpose.msra.mxu0 0.0
        %2279 = vmatprep.subr.mxu0 0.0
        %2280 = vmatpush1.xpose.msra.mxu0 0.0
        %2281 = vmatprep.subr.mxu0 0.0
        %2282 = vmatpush1.xpose.msra.mxu0 0.0
        %2283 = vmatprep.subr.mxu0 0.0
        %2284 = vmatpush1.xpose.msra.mxu0 0.0
        %2285 = vmatprep.subr.mxu0 0.0
        %2286 = vmatpush1.xpose.msra.mxu0 0.0
        %2287 = vmatprep.subr.mxu0 0.0
        %2288 = vmatpush1.xpose.msra.mxu0 0.0
        %2289 = vmatprep.subr.mxu0 0.0
        %2290 = vmatpush1.xpose.msra.mxu0 0.0
        %2291 = vmatprep.subr.mxu0 0.0
        %2292 = vmatpush1.xpose.msra.mxu0 0.0
        %2293 = vmatprep.subr.mxu0 0.0
        %2294 = vmatpush1.xpose.msra.mxu0 0.0
        %2295 = vmatprep.subr.mxu0 0.0
        %2296 = vmatpush1.xpose.msra.mxu0 0.0
        %2297 = vmatprep.subr.mxu0 0.0
        %2298 = vmatpush1.xpose.msra.mxu0 0.0
        %2299 = vmatprep.subr.mxu0 0.0
        %2300 = vmatpush1.xpose.msra.mxu0 %v2269
        %2301 = vmatprep.subr.mxu0 0.0
        %2302 = vmatpush1.xpose.msra.mxu0 %v2267
        %2303 = vmatprep.subr.mxu0 0.0
        %2304 = vmatpush2.xpose.msra.mxu0 0.0
        %2305 = vmatprep.subr.mxu0 0.0
        %2306 = vmatpush2.xpose.msra.mxu0 0.0
        %2307 = vmatprep.subr.mxu0 0.0
        %2308 = vmatpush2.xpose.msra.mxu0 0.0
        %2309 = vmatprep.subr.mxu0 0.0
        %2310 = vmatpush2.xpose.msra.mxu0 0.0
        %2311 = vmatprep.subr.mxu0 0.0
        %2312 = vmatpush2.xpose.msra.mxu0 0.0
        %2313 = vmatprep.subr.mxu0 0.0
        %2314 = vmatpush2.xpose.msra.mxu0 0.0
        %2315 = vmatprep.subr.mxu0 0.0
        %2316 = vmatpush2.xpose.msra.mxu0 0.0
        %2317 = vmatprep.subr.mxu0 0.0
        %2318 = vmatpush2.xpose.msra.mxu0 0.0
        %2319 = vmatprep.subr.mxu0 0.0
        %2320 = vmatpush2.xpose.msra.mxu0 0.0
        %2321 = vmatprep.subr.mxu0 0.0
        %2322 = vmatpush2.xpose.msra.mxu0 0.0
        %2323 = vmatprep.subr.mxu0 0.0
        %2324 = vmatpush2.xpose.msra.mxu0 0.0
        %2325 = vmatprep.subr.mxu0 0.0
        %2326 = vmatpush2.xpose.msra.mxu0 0.0
        %2327 = vmatprep.subr.mxu0 0.0
        %2328 = vmatpush2.xpose.msra.mxu0 0.0
        %2329 = vmatprep.subr.mxu0 0.0
        %2330 = vmatpush2.xpose.msra.mxu0 0.0
        %2331 = vmatprep.subr.mxu0 0.0
        %2332 = vmatpush2.xpose.msra.mxu0 0.0
        %2333 = vmatprep.subr.mxu0 0.0
        %2334 = vmatpush2.xpose.msra.mxu0 0.0
        %2335 = vmatprep.mubr.f32.mxu0 0.0
        %2336 = vmatmul.mubr.f32.gmra.mxu0 %v2263
        %v2337 = vpop.f32.mrf.mxu0
        %v2338 = vadd.f32 0.0, %v2337
        %v2339 = vpop.f32.mrf.mxu0
        %2340 = vmatprep.mubr.f32.mxu0 0.0
        %2341 = vmatmul.mubr.f32.gmra.mxu0 %v2265
        %v2342 = vpop.f32.mrf.mxu0
        %v2343 = vadd.f32 0.0, %v2342
        %v2344 = vpop.f32.mrf.mxu0
        %2345 = vdwg.mxu0
        %2346 = vrot.lane.b32.xlu0 %v438, 64
        %v2347 = vpop.permute.xlu0 %2346
        %2348 = vrot.lane.b32.xlu0 %v444, 64
        %v2349 = vpop.permute.xlu0 %2348
        %2350 = vrot.lane.b32.xlu0 %v440, 64
        %v2351 = vpop.permute.xlu0 %2350
        %2352 = vrot.lane.b32.xlu0 %v446, 64
        %v2353 = vpop.permute.xlu0 %2352
        %v2354 = vsel %vm669, %v2347, 0
        %v2356 = vsel %vm669, %v2349, 0
        %v2358 = vsel %vm669, %v2351, 0
        %v2360 = vsel %vm669, %v2353, 0
        %2362 = vmatprep.subr.mxu0 0.0
        %2363 = vmatpush1.xpose.msra.mxu0 0.0
        %2364 = vmatprep.subr.mxu0 0.0
        %2365 = vmatpush1.xpose.msra.mxu0 0.0
        %2366 = vmatprep.subr.mxu0 0.0
        %2367 = vmatpush1.xpose.msra.mxu0 0.0
        %2368 = vmatprep.subr.mxu0 0.0
        %2369 = vmatpush1.xpose.msra.mxu0 0.0
        %2370 = vmatprep.subr.mxu0 0.0
        %2371 = vmatpush1.xpose.msra.mxu0 0.0
        %2372 = vmatprep.subr.mxu0 0.0
        %2373 = vmatpush1.xpose.msra.mxu0 0.0
        %2374 = vmatprep.subr.mxu0 0.0
        %2375 = vmatpush1.xpose.msra.mxu0 0.0
        %2376 = vmatprep.subr.mxu0 0.0
        %2377 = vmatpush1.xpose.msra.mxu0 0.0
        %2378 = vmatprep.subr.mxu0 0.0
        %2379 = vmatpush1.xpose.msra.mxu0 0.0
        %2380 = vmatprep.subr.mxu0 0.0
        %2381 = vmatpush1.xpose.msra.mxu0 0.0
        %2382 = vmatprep.subr.mxu0 0.0
        %2383 = vmatpush1.xpose.msra.mxu0 0.0
        %2384 = vmatprep.subr.mxu0 0.0
        %2385 = vmatpush1.xpose.msra.mxu0 0.0
        %2386 = vmatprep.subr.mxu0 0.0
        %2387 = vmatpush1.xpose.msra.mxu0 0.0
        %2388 = vmatprep.subr.mxu0 0.0
        %2389 = vmatpush1.xpose.msra.mxu0 0.0
        %2390 = vmatprep.subr.mxu0 0.0
        %2391 = vmatpush1.xpose.msra.mxu0 %v2360
        %2392 = vmatprep.subr.mxu0 0.0
        %2393 = vmatpush1.xpose.msra.mxu0 %v2358
        %2394 = vmatprep.subr.mxu0 0.0
        %2395 = vmatpush2.xpose.msra.mxu0 0.0
        %2396 = vmatprep.subr.mxu0 0.0
        %2397 = vmatpush2.xpose.msra.mxu0 0.0
        %2398 = vmatprep.subr.mxu0 0.0
        %2399 = vmatpush2.xpose.msra.mxu0 0.0
        %2400 = vmatprep.subr.mxu0 0.0
        %2401 = vmatpush2.xpose.msra.mxu0 0.0
        %2402 = vmatprep.subr.mxu0 0.0
        %2403 = vmatpush2.xpose.msra.mxu0 0.0
        %2404 = vmatprep.subr.mxu0 0.0
        %2405 = vmatpush2.xpose.msra.mxu0 0.0
        %2406 = vmatprep.subr.mxu0 0.0
        %2407 = vmatpush2.xpose.msra.mxu0 0.0
        %2408 = vmatprep.subr.mxu0 0.0
        %2409 = vmatpush2.xpose.msra.mxu0 0.0
        %2410 = vmatprep.subr.mxu0 0.0
        %2411 = vmatpush2.xpose.msra.mxu0 0.0
        %2412 = vmatprep.subr.mxu0 0.0
        %2413 = vmatpush2.xpose.msra.mxu0 0.0
        %2414 = vmatprep.subr.mxu0 0.0
        %2415 = vmatpush2.xpose.msra.mxu0 0.0
        %2416 = vmatprep.subr.mxu0 0.0
        %2417 = vmatpush2.xpose.msra.mxu0 0.0
        %2418 = vmatprep.subr.mxu0 0.0
        %2419 = vmatpush2.xpose.msra.mxu0 0.0
        %2420 = vmatprep.subr.mxu0 0.0
        %2421 = vmatpush2.xpose.msra.mxu0 0.0
        %2422 = vmatprep.subr.mxu0 0.0
        %2423 = vmatpush2.xpose.msra.mxu0 0.0
        %2424 = vmatprep.subr.mxu0 0.0
        %2425 = vmatpush2.xpose.msra.mxu0 0.0
        %2426 = vmatprep.mubr.f32.mxu0 0.0
        %2427 = vmatmul.mubr.f32.gmra.mxu0 %v2354
        %v2428 = vpop.f32.mrf.mxu0
        %v2429 = vadd.f32 0.0, %v2428
        %v2430 = vpop.f32.mrf.mxu0
        %2431 = vmatprep.mubr.f32.mxu0 0.0
        %2432 = vmatmul.mubr.f32.gmra.mxu0 %v2356
        %v2433 = vpop.f32.mrf.mxu0
        %v2434 = vadd.f32 0.0, %v2433
        %v2435 = vpop.f32.mrf.mxu0
        %2436 = vdwg.mxu0
        %2437 = vrot.lane.b32.xlu0 %v450, 64
        %v2438 = vpop.permute.xlu0 %2437
        %2439 = vrot.lane.b32.xlu0 %v456, 64
        %v2440 = vpop.permute.xlu0 %2439
        %2441 = vrot.lane.b32.xlu0 %v452, 64
        %v2442 = vpop.permute.xlu0 %2441
        %2443 = vrot.lane.b32.xlu0 %v458, 64
        %v2444 = vpop.permute.xlu0 %2443
        %v2445 = vsel %vm669, %v2438, 0
        %v2447 = vsel %vm669, %v2440, 0
        %v2449 = vsel %vm669, %v2442, 0
        %v2451 = vsel %vm669, %v2444, 0
        %2453 = vmatprep.subr.mxu0 0.0
        %2454 = vmatpush1.xpose.msra.mxu0 0.0
        %2455 = vmatprep.subr.mxu0 0.0
        %2456 = vmatpush1.xpose.msra.mxu0 0.0
        %2457 = vmatprep.subr.mxu0 0.0
        %2458 = vmatpush1.xpose.msra.mxu0 0.0
        %2459 = vmatprep.subr.mxu0 0.0
        %2460 = vmatpush1.xpose.msra.mxu0 0.0
        %2461 = vmatprep.subr.mxu0 0.0
        %2462 = vmatpush1.xpose.msra.mxu0 0.0
        %2463 = vmatprep.subr.mxu0 0.0
        %2464 = vmatpush1.xpose.msra.mxu0 0.0
        %2465 = vmatprep.subr.mxu0 0.0
        %2466 = vmatpush1.xpose.msra.mxu0 0.0
        %2467 = vmatprep.subr.mxu0 0.0
        %2468 = vmatpush1.xpose.msra.mxu0 0.0
        %2469 = vmatprep.subr.mxu0 0.0
        %2470 = vmatpush1.xpose.msra.mxu0 0.0
        %2471 = vmatprep.subr.mxu0 0.0
        %2472 = vmatpush1.xpose.msra.mxu0 0.0
        %2473 = vmatprep.subr.mxu0 0.0
        %2474 = vmatpush1.xpose.msra.mxu0 0.0
        %2475 = vmatprep.subr.mxu0 0.0
        %2476 = vmatpush1.xpose.msra.mxu0 0.0
        %2477 = vmatprep.subr.mxu0 0.0
        %2478 = vmatpush1.xpose.msra.mxu0 0.0
        %2479 = vmatprep.subr.mxu0 0.0
        %2480 = vmatpush1.xpose.msra.mxu0 0.0
        %2481 = vmatprep.subr.mxu0 0.0
        %2482 = vmatpush1.xpose.msra.mxu0 %v2451
        %2483 = vmatprep.subr.mxu0 0.0
        %2484 = vmatpush1.xpose.msra.mxu0 %v2449
        %2485 = vmatprep.subr.mxu0 0.0
        %2486 = vmatpush2.xpose.msra.mxu0 0.0
        %2487 = vmatprep.subr.mxu0 0.0
        %2488 = vmatpush2.xpose.msra.mxu0 0.0
        %2489 = vmatprep.subr.mxu0 0.0
        %2490 = vmatpush2.xpose.msra.mxu0 0.0
        %2491 = vmatprep.subr.mxu0 0.0
        %2492 = vmatpush2.xpose.msra.mxu0 0.0
        %2493 = vmatprep.subr.mxu0 0.0
        %2494 = vmatpush2.xpose.msra.mxu0 0.0
        %2495 = vmatprep.subr.mxu0 0.0
        %2496 = vmatpush2.xpose.msra.mxu0 0.0
        %2497 = vmatprep.subr.mxu0 0.0
        %2498 = vmatpush2.xpose.msra.mxu0 0.0
        %2499 = vmatprep.subr.mxu0 0.0
        %2500 = vmatpush2.xpose.msra.mxu0 0.0
        %2501 = vmatprep.subr.mxu0 0.0
        %2502 = vmatpush2.xpose.msra.mxu0 0.0
        %2503 = vmatprep.subr.mxu0 0.0
        %2504 = vmatpush2.xpose.msra.mxu0 0.0
        %2505 = vmatprep.subr.mxu0 0.0
        %2506 = vmatpush2.xpose.msra.mxu0 0.0
        %2507 = vmatprep.subr.mxu0 0.0
        %2508 = vmatpush2.xpose.msra.mxu0 0.0
        %2509 = vmatprep.subr.mxu0 0.0
        %2510 = vmatpush2.xpose.msra.mxu0 0.0
        %2511 = vmatprep.subr.mxu0 0.0
        %2512 = vmatpush2.xpose.msra.mxu0 0.0
        %2513 = vmatprep.subr.mxu0 0.0
        %2514 = vmatpush2.xpose.msra.mxu0 0.0
        %2515 = vmatprep.subr.mxu0 0.0
        %2516 = vmatpush2.xpose.msra.mxu0 0.0
        %2517 = vmatprep.mubr.f32.mxu0 0.0
        %2518 = vmatmul.mubr.f32.gmra.mxu0 %v2445
        %v2519 = vpop.f32.mrf.mxu0
        %v2520 = vadd.f32 0.0, %v2519
        %v2521 = vpop.f32.mrf.mxu0
        %2522 = vmatprep.mubr.f32.mxu0 0.0
        %2523 = vmatmul.mubr.f32.gmra.mxu0 %v2447
        %v2524 = vpop.f32.mrf.mxu0
        %v2525 = vadd.f32 0.0, %v2524
        %v2526 = vpop.f32.mrf.mxu0
        %2527 = vdwg.mxu0
        %2528 = vrot.lane.b32.xlu0 %v462, 64
        %v2529 = vpop.permute.xlu0 %2528
        %2530 = vrot.lane.b32.xlu0 %v468, 64
        %v2531 = vpop.permute.xlu0 %2530
        %2532 = vrot.lane.b32.xlu0 %v464, 64
        %v2533 = vpop.permute.xlu0 %2532
        %2534 = vrot.lane.b32.xlu0 %v470, 64
        %v2535 = vpop.permute.xlu0 %2534
        %v2536 = vsel %vm669, %v2529, 0
        %v2538 = vsel %vm669, %v2531, 0
        %v2540 = vsel %vm669, %v2533, 0
        %v2542 = vsel %vm669, %v2535, 0
        %2544 = vmatprep.subr.mxu0 0.0
        %2545 = vmatpush1.xpose.msra.mxu0 0.0
        %2546 = vmatprep.subr.mxu0 0.0
        %2547 = vmatpush1.xpose.msra.mxu0 0.0
        %2548 = vmatprep.subr.mxu0 0.0
        %2549 = vmatpush1.xpose.msra.mxu0 0.0
        %2550 = vmatprep.subr.mxu0 0.0
        %2551 = vmatpush1.xpose.msra.mxu0 0.0
        %2552 = vmatprep.subr.mxu0 0.0
        %2553 = vmatpush1.xpose.msra.mxu0 0.0
        %2554 = vmatprep.subr.mxu0 0.0
        %2555 = vmatpush1.xpose.msra.mxu0 0.0
        %2556 = vmatprep.subr.mxu0 0.0
        %2557 = vmatpush1.xpose.msra.mxu0 0.0
        %2558 = vmatprep.subr.mxu0 0.0
        %2559 = vmatpush1.xpose.msra.mxu0 0.0
        %2560 = vmatprep.subr.mxu0 0.0
        %2561 = vmatpush1.xpose.msra.mxu0 0.0
        %2562 = vmatprep.subr.mxu0 0.0
        %2563 = vmatpush1.xpose.msra.mxu0 0.0
        %2564 = vmatprep.subr.mxu0 0.0
        %2565 = vmatpush1.xpose.msra.mxu0 0.0
        %2566 = vmatprep.subr.mxu0 0.0
        %2567 = vmatpush1.xpose.msra.mxu0 0.0
        %2568 = vmatprep.subr.mxu0 0.0
        %2569 = vmatpush1.xpose.msra.mxu0 0.0
        %2570 = vmatprep.subr.mxu0 0.0
        %2571 = vmatpush1.xpose.msra.mxu0 0.0
        %2572 = vmatprep.subr.mxu0 0.0
        %2573 = vmatpush1.xpose.msra.mxu0 %v2542
        %2574 = vmatprep.subr.mxu0 0.0
        %2575 = vmatpush1.xpose.msra.mxu0 %v2540
        %2576 = vmatprep.subr.mxu0 0.0
        %2577 = vmatpush2.xpose.msra.mxu0 0.0
        %2578 = vmatprep.subr.mxu0 0.0
        %2579 = vmatpush2.xpose.msra.mxu0 0.0
        %2580 = vmatprep.subr.mxu0 0.0
        %2581 = vmatpush2.xpose.msra.mxu0 0.0
        %2582 = vmatprep.subr.mxu0 0.0
        %2583 = vmatpush2.xpose.msra.mxu0 0.0
        %2584 = vmatprep.subr.mxu0 0.0
        %2585 = vmatpush2.xpose.msra.mxu0 0.0
        %2586 = vmatprep.subr.mxu0 0.0
        %2587 = vmatpush2.xpose.msra.mxu0 0.0
        %2588 = vmatprep.subr.mxu0 0.0
        %2589 = vmatpush2.xpose.msra.mxu0 0.0
        %2590 = vmatprep.subr.mxu0 0.0
        %2591 = vmatpush2.xpose.msra.mxu0 0.0
        %2592 = vmatprep.subr.mxu0 0.0
        %2593 = vmatpush2.xpose.msra.mxu0 0.0
        %2594 = vmatprep.subr.mxu0 0.0
        %2595 = vmatpush2.xpose.msra.mxu0 0.0
        %2596 = vmatprep.subr.mxu0 0.0
        %2597 = vmatpush2.xpose.msra.mxu0 0.0
        %2598 = vmatprep.subr.mxu0 0.0
        %2599 = vmatpush2.xpose.msra.mxu0 0.0
        %2600 = vmatprep.subr.mxu0 0.0
        %2601 = vmatpush2.xpose.msra.mxu0 0.0
        %2602 = vmatprep.subr.mxu0 0.0
        %2603 = vmatpush2.xpose.msra.mxu0 0.0
        %2604 = vmatprep.subr.mxu0 0.0
        %2605 = vmatpush2.xpose.msra.mxu0 0.0
        %2606 = vmatprep.subr.mxu0 0.0
        %2607 = vmatpush2.xpose.msra.mxu0 0.0
        %2608 = vmatprep.mubr.f32.mxu0 0.0
        %2609 = vmatmul.mubr.f32.gmra.mxu0 %v2536
        %v2610 = vpop.f32.mrf.mxu0
        %v2611 = vadd.f32 0.0, %v2610
        %v2612 = vpop.f32.mrf.mxu0
        %2613 = vmatprep.mubr.f32.mxu0 0.0
        %2614 = vmatmul.mubr.f32.gmra.mxu0 %v2538
        %v2615 = vpop.f32.mrf.mxu0
        %v2616 = vadd.f32 0.0, %v2615
        %v2617 = vpop.f32.mrf.mxu0
        %2618 = vdwg.mxu0
        %v2619 = vsel %vm661, %v2338, -3.4028235e+38
        %v2620 = vsel %vm662, %v2343, -3.4028235e+38
        %v2621 = vsel %vm663, %v2429, -3.4028235e+38
        %v2622 = vsel %vm664, %v2434, -3.4028235e+38
        %v2623 = vsel %vm665, %v2520, -3.4028235e+38
        %v2624 = vsel %vm666, %v2525, -3.4028235e+38
        %v2625 = vsel %vm667, %v2611, -3.4028235e+38
        %v2626 = vsel %vm668, %v2616, -3.4028235e+38
        %v2627 = vsel %vm1026, %v2619, -inf
        %2628 = vmax.xlane.f32.xlu0 %v2627
        %v2629 = vpop.xlane.xlu0 %2628
        %v2630 = vsel %vm1026, %v2620, -inf
        %2631 = vmax.xlane.f32.xlu0 %v2630
        %v2632 = vpop.xlane.xlu0 %2631
        %v2633 = vsel %vm1026, %v2621, -inf
        %2634 = vmax.xlane.f32.xlu0 %v2633
        %v2635 = vpop.xlane.xlu0 %2634
        %v2636 = vsel %vm1026, %v2622, -inf
        %2637 = vmax.xlane.f32.xlu0 %v2636
        %v2638 = vpop.xlane.xlu0 %2637
        %v2639 = vsel %vm1026, %v2623, -inf
        %2640 = vmax.xlane.f32.xlu0 %v2639
        %v2641 = vpop.xlane.xlu0 %2640
        %v2642 = vsel %vm1026, %v2624, -inf
        %2643 = vmax.xlane.f32.xlu0 %v2642
        %v2644 = vpop.xlane.xlu0 %2643
        %v2645 = vsel %vm1026, %v2625, -inf
        %2646 = vmax.xlane.f32.xlu0 %v2645
        %v2647 = vpop.xlane.xlu0 %2646
        %v2648 = vsel %vm1026, %v2626, -inf
        %2649 = vmax.xlane.f32.xlu0 %v2648
        %v2650 = vpop.xlane.xlu0 %2649
        %v2651 = vsub.f32 %v2619, %v2629
        %v2652 = vsub.f32 %v2620, %v2632
        %v2653 = vsub.f32 %v2621, %v2635
        %v2654 = vsub.f32 %v2622, %v2638
        %v2655 = vsub.f32 %v2623, %v2641
        %v2656 = vsub.f32 %v2624, %v2644
        %v2657 = vsub.f32 %v2625, %v2647
        %v2658 = vsub.f32 %v2626, %v2650
        %v2659 = vmul.f32 %v2651, 1.442695
        %v2660 = vpow.pop %v2659
        %v2661 = vmul.f32 %v2652, 1.442695
        %v2662 = vpow.pop %v2661
        %v2663 = vmul.f32 %v2653, 1.442695
        %v2664 = vpow.pop %v2663
        %v2665 = vmul.f32 %v2654, 1.442695
        %v2666 = vpow.pop %v2665
        %v2667 = vmul.f32 %v2655, 1.442695
        %v2668 = vpow.pop %v2667
        %v2669 = vmul.f32 %v2656, 1.442695
        %v2670 = vpow.pop %v2669
        %v2671 = vmul.f32 %v2657, 1.442695
        %v2672 = vpow.pop %v2671
        %v2673 = vmul.f32 %v2658, 1.442695
        %v2674 = vpow.pop %v2673
        %v2675 = vsel %vm1026, %v2660, 0.0
        %2676 = vadd.xlane.f32.xlu0 %v2675
        %v2677 = vpop.xlane.xlu0 %2676
        %v2678 = vsel %vm1026, %v2662, 0.0
        %2679 = vadd.xlane.f32.xlu0 %v2678
        %v2680 = vpop.xlane.xlu0 %2679
        %v2681 = vsel %vm1026, %v2664, 0.0
        %2682 = vadd.xlane.f32.xlu0 %v2681
        %v2683 = vpop.xlane.xlu0 %2682
        %v2684 = vsel %vm1026, %v2666, 0.0
        %2685 = vadd.xlane.f32.xlu0 %v2684
        %v2686 = vpop.xlane.xlu0 %2685
        %v2687 = vsel %vm1026, %v2668, 0.0
        %2688 = vadd.xlane.f32.xlu0 %v2687
        %v2689 = vpop.xlane.xlu0 %2688
        %v2690 = vsel %vm1026, %v2670, 0.0
        %2691 = vadd.xlane.f32.xlu0 %v2690
        %v2692 = vpop.xlane.xlu0 %2691
        %v2693 = vsel %vm1026, %v2672, 0.0
        %2694 = vadd.xlane.f32.xlu0 %v2693
        %v2695 = vpop.xlane.xlu0 %2694
        %v2696 = vsel %vm1026, %v2674, 0.0
        %2697 = vadd.xlane.f32.xlu0 %v2696
        %v2698 = vpop.xlane.xlu0 %2697
        %v2699 = vrcp.pop %v2677
        %v2700 = vrcp.pop %v2680
        %v2701 = vrcp.pop %v2683
        %v2702 = vrcp.pop %v2686
        %v2703 = vrcp.pop %v2689
        %v2704 = vrcp.pop %v2692
        %v2705 = vrcp.pop %v2695
        %v2706 = vrcp.pop %v2698
        %v2707 = vmul.f32 %v2660, %v2699
        %v2708 = vmul.f32 %v2662, %v2700
        %v2709 = vmul.f32 %v2664, %v2701
        %v2710 = vmul.f32 %v2666, %v2702
        %v2711 = vmul.f32 %v2668, %v2703
        %v2712 = vmul.f32 %v2670, %v2704
        %v2713 = vmul.f32 %v2672, %v2705
        %v2714 = vmul.f32 %v2674, %v2706
        %2715 = vrot.lane.b32.xlu0 %v539, 64
        %v2716 = vpop.permute.xlu0 %2715
        %2717 = vrot.lane.b32.xlu0 %v544, 64
        %v2718 = vpop.permute.xlu0 %2717
        %v2722 = vsel %vm1026, %v2707, 0
        %v2725 = vsel %vm1026, %v2708, 0
        %2727 = vmatprep.subr.mxu0 0.0
        %2728 = vmatpush1.msra.mxu0 0.0
        %2729 = vmatprep.subr.mxu0 0.0
        %2730 = vmatpush1.msra.mxu0 0.0
        %2731 = vmatprep.subr.mxu0 0.0
        %2732 = vmatpush1.msra.mxu0 0.0
        %2733 = vmatprep.subr.mxu0 0.0
        %2734 = vmatpush1.msra.mxu0 0.0
        %2735 = vmatprep.subr.mxu0 0.0
        %2736 = vmatpush1.msra.mxu0 0.0
        %2737 = vmatprep.subr.mxu0 0.0
        %2738 = vmatpush1.msra.mxu0 0.0
        %2739 = vmatprep.subr.mxu0 0.0
        %2740 = vmatpush1.msra.mxu0 0.0
        %2741 = vmatprep.subr.mxu0 0.0
        %2742 = vmatpush1.msra.mxu0 0.0
        %2743 = vmatprep.subr.mxu0 0.0
        %2744 = vmatpush1.msra.mxu0 0.0
        %2745 = vmatprep.subr.mxu0 0.0
        %2746 = vmatpush1.msra.mxu0 0.0
        %2747 = vmatprep.subr.mxu0 0.0
        %2748 = vmatpush1.msra.mxu0 0.0
        %2749 = vmatprep.subr.mxu0 0.0
        %2750 = vmatpush1.msra.mxu0 0.0
        %2751 = vmatprep.subr.mxu0 0.0
        %2752 = vmatpush1.msra.mxu0 0.0
        %2753 = vmatprep.subr.mxu0 0.0
        %2754 = vmatpush1.msra.mxu0 0.0
        %2755 = vmatprep.subr.mxu0 0.0
        %2756 = vmatpush1.msra.mxu0 %v2718
        %2757 = vmatprep.subr.mxu0 0.0
        %2758 = vmatpush1.msra.mxu0 %v2716
        %2759 = vmatprep.subr.mxu0 0.0
        %2760 = vmatpush2.msra.mxu0 0.0
        %2761 = vmatprep.subr.mxu0 0.0
        %2762 = vmatpush2.msra.mxu0 0.0
        %2763 = vmatprep.subr.mxu0 0.0
        %2764 = vmatpush2.msra.mxu0 0.0
        %2765 = vmatprep.subr.mxu0 0.0
        %2766 = vmatpush2.msra.mxu0 0.0
        %2767 = vmatprep.subr.mxu0 0.0
        %2768 = vmatpush2.msra.mxu0 0.0
        %2769 = vmatprep.subr.mxu0 0.0
        %2770 = vmatpush2.msra.mxu0 0.0
        %2771 = vmatprep.subr.mxu0 0.0
        %2772 = vmatpush2.msra.mxu0 0.0
        %2773 = vmatprep.subr.mxu0 0.0
        %2774 = vmatpush2.msra.mxu0 0.0
        %2775 = vmatprep.subr.mxu0 0.0
        %2776 = vmatpush2.msra.mxu0 0.0
        %2777 = vmatprep.subr.mxu0 0.0
        %2778 = vmatpush2.msra.mxu0 0.0
        %2779 = vmatprep.subr.mxu0 0.0
        %2780 = vmatpush2.msra.mxu0 0.0
        %2781 = vmatprep.subr.mxu0 0.0
        %2782 = vmatpush2.msra.mxu0 0.0
        %2783 = vmatprep.subr.mxu0 0.0
        %2784 = vmatpush2.msra.mxu0 0.0
        %2785 = vmatprep.subr.mxu0 0.0
        %2786 = vmatpush2.msra.mxu0 0.0
        %2787 = vmatprep.subr.mxu0 0.0
        %2788 = vmatpush2.msra.mxu0 0.0
        %2789 = vmatprep.subr.mxu0 0.0
        %2790 = vmatpush2.msra.mxu0 0.0
        %2791 = vmatprep.mubr.f32.mxu0 0.0
        %2792 = vmatmul.mubr.f32.gmra.mxu0 %v2722
        %v2793 = vpop.f32.mrf.mxu0
        %v2794 = vadd.f32 0.0, %v2793
        %v2795 = vpop.f32.mrf.mxu0
        %2796 = vmatprep.mubr.f32.mxu0 0.0
        %2797 = vmatmul.mubr.f32.gmra.mxu0 %v2725
        %v2798 = vpop.f32.mrf.mxu0
        %v2799 = vadd.f32 0.0, %v2798
        %v2800 = vpop.f32.mrf.mxu0
        %2801 = vdwg.mxu0
        %2802 = vrot.lane.b32.xlu0 %v549, 64
        %v2803 = vpop.permute.xlu0 %2802
        %2804 = vrot.lane.b32.xlu0 %v554, 64
        %v2805 = vpop.permute.xlu0 %2804
        %v2809 = vsel %vm1026, %v2709, 0
        %v2812 = vsel %vm1026, %v2710, 0
        %2814 = vmatprep.subr.mxu0 0.0
        %2815 = vmatpush1.msra.mxu0 0.0
        %2816 = vmatprep.subr.mxu0 0.0
        %2817 = vmatpush1.msra.mxu0 0.0
        %2818 = vmatprep.subr.mxu0 0.0
        %2819 = vmatpush1.msra.mxu0 0.0
        %2820 = vmatprep.subr.mxu0 0.0
        %2821 = vmatpush1.msra.mxu0 0.0
        %2822 = vmatprep.subr.mxu0 0.0
        %2823 = vmatpush1.msra.mxu0 0.0
        %2824 = vmatprep.subr.mxu0 0.0
        %2825 = vmatpush1.msra.mxu0 0.0
        %2826 = vmatprep.subr.mxu0 0.0
        %2827 = vmatpush1.msra.mxu0 0.0
        %2828 = vmatprep.subr.mxu0 0.0
        %2829 = vmatpush1.msra.mxu0 0.0
        %2830 = vmatprep.subr.mxu0 0.0
        %2831 = vmatpush1.msra.mxu0 0.0
        %2832 = vmatprep.subr.mxu0 0.0
        %2833 = vmatpush1.msra.mxu0 0.0
        %2834 = vmatprep.subr.mxu0 0.0
        %2835 = vmatpush1.msra.mxu0 0.0
        %2836 = vmatprep.subr.mxu0 0.0
        %2837 = vmatpush1.msra.mxu0 0.0
        %2838 = vmatprep.subr.mxu0 0.0
        %2839 = vmatpush1.msra.mxu0 0.0
        %2840 = vmatprep.subr.mxu0 0.0
        %2841 = vmatpush1.msra.mxu0 0.0
        %2842 = vmatprep.subr.mxu0 0.0
        %2843 = vmatpush1.msra.mxu0 %v2805
        %2844 = vmatprep.subr.mxu0 0.0
        %2845 = vmatpush1.msra.mxu0 %v2803
        %2846 = vmatprep.subr.mxu0 0.0
        %2847 = vmatpush2.msra.mxu0 0.0
        %2848 = vmatprep.subr.mxu0 0.0
        %2849 = vmatpush2.msra.mxu0 0.0
        %2850 = vmatprep.subr.mxu0 0.0
        %2851 = vmatpush2.msra.mxu0 0.0
        %2852 = vmatprep.subr.mxu0 0.0
        %2853 = vmatpush2.msra.mxu0 0.0
        %2854 = vmatprep.subr.mxu0 0.0
        %2855 = vmatpush2.msra.mxu0 0.0
        %2856 = vmatprep.subr.mxu0 0.0
        %2857 = vmatpush2.msra.mxu0 0.0
        %2858 = vmatprep.subr.mxu0 0.0
        %2859 = vmatpush2.msra.mxu0 0.0
        %2860 = vmatprep.subr.mxu0 0.0
        %2861 = vmatpush2.msra.mxu0 0.0
        %2862 = vmatprep.subr.mxu0 0.0
        %2863 = vmatpush2.msra.mxu0 0.0
        %2864 = vmatprep.subr.mxu0 0.0
        %2865 = vmatpush2.msra.mxu0 0.0
        %2866 = vmatprep.subr.mxu0 0.0
        %2867 = vmatpush2.msra.mxu0 0.0
        %2868 = vmatprep.subr.mxu0 0.0
        %2869 = vmatpush2.msra.mxu0 0.0
        %2870 = vmatprep.subr.mxu0 0.0
        %2871 = vmatpush2.msra.mxu0 0.0
        %2872 = vmatprep.subr.mxu0 0.0
        %2873 = vmatpush2.msra.mxu0 0.0
        %2874 = vmatprep.subr.mxu0 0.0
        %2875 = vmatpush2.msra.mxu0 0.0
        %2876 = vmatprep.subr.mxu0 0.0
        %2877 = vmatpush2.msra.mxu0 0.0
        %2878 = vmatprep.mubr.f32.mxu0 0.0
        %2879 = vmatmul.mubr.f32.gmra.mxu0 %v2809
        %v2880 = vpop.f32.mrf.mxu0
        %v2881 = vadd.f32 0.0, %v2880
        %v2882 = vpop.f32.mrf.mxu0
        %2883 = vmatprep.mubr.f32.mxu0 0.0
        %2884 = vmatmul.mubr.f32.gmra.mxu0 %v2812
        %v2885 = vpop.f32.mrf.mxu0
        %v2886 = vadd.f32 0.0, %v2885
        %v2887 = vpop.f32.mrf.mxu0
        %2888 = vdwg.mxu0
        %2889 = vrot.lane.b32.xlu0 %v559, 64
        %v2890 = vpop.permute.xlu0 %2889
        %2891 = vrot.lane.b32.xlu0 %v564, 64
        %v2892 = vpop.permute.xlu0 %2891
        %v2896 = vsel %vm1026, %v2711, 0
        %v2899 = vsel %vm1026, %v2712, 0
        %2901 = vmatprep.subr.mxu0 0.0
        %2902 = vmatpush1.msra.mxu0 0.0
        %2903 = vmatprep.subr.mxu0 0.0
        %2904 = vmatpush1.msra.mxu0 0.0
        %2905 = vmatprep.subr.mxu0 0.0
        %2906 = vmatpush1.msra.mxu0 0.0
        %2907 = vmatprep.subr.mxu0 0.0
        %2908 = vmatpush1.msra.mxu0 0.0
        %2909 = vmatprep.subr.mxu0 0.0
        %2910 = vmatpush1.msra.mxu0 0.0
        %2911 = vmatprep.subr.mxu0 0.0
        %2912 = vmatpush1.msra.mxu0 0.0
        %2913 = vmatprep.subr.mxu0 0.0
        %2914 = vmatpush1.msra.mxu0 0.0
        %2915 = vmatprep.subr.mxu0 0.0
        %2916 = vmatpush1.msra.mxu0 0.0
        %2917 = vmatprep.subr.mxu0 0.0
        %2918 = vmatpush1.msra.mxu0 0.0
        %2919 = vmatprep.subr.mxu0 0.0
        %2920 = vmatpush1.msra.mxu0 0.0
        %2921 = vmatprep.subr.mxu0 0.0
        %2922 = vmatpush1.msra.mxu0 0.0
        %2923 = vmatprep.subr.mxu0 0.0
        %2924 = vmatpush1.msra.mxu0 0.0
        %2925 = vmatprep.subr.mxu0 0.0
        %2926 = vmatpush1.msra.mxu0 0.0
        %2927 = vmatprep.subr.mxu0 0.0
        %2928 = vmatpush1.msra.mxu0 0.0
        %2929 = vmatprep.subr.mxu0 0.0
        %2930 = vmatpush1.msra.mxu0 %v2892
        %2931 = vmatprep.subr.mxu0 0.0
        %2932 = vmatpush1.msra.mxu0 %v2890
        %2933 = vmatprep.subr.mxu0 0.0
        %2934 = vmatpush2.msra.mxu0 0.0
        %2935 = vmatprep.subr.mxu0 0.0
        %2936 = vmatpush2.msra.mxu0 0.0
        %2937 = vmatprep.subr.mxu0 0.0
        %2938 = vmatpush2.msra.mxu0 0.0
        %2939 = vmatprep.subr.mxu0 0.0
        %2940 = vmatpush2.msra.mxu0 0.0
        %2941 = vmatprep.subr.mxu0 0.0
        %2942 = vmatpush2.msra.mxu0 0.0
        %2943 = vmatprep.subr.mxu0 0.0
        %2944 = vmatpush2.msra.mxu0 0.0
        %2945 = vmatprep.subr.mxu0 0.0
        %2946 = vmatpush2.msra.mxu0 0.0
        %2947 = vmatprep.subr.mxu0 0.0
        %2948 = vmatpush2.msra.mxu0 0.0
        %2949 = vmatprep.subr.mxu0 0.0
        %2950 = vmatpush2.msra.mxu0 0.0
        %2951 = vmatprep.subr.mxu0 0.0
        %2952 = vmatpush2.msra.mxu0 0.0
        %2953 = vmatprep.subr.mxu0 0.0
        %2954 = vmatpush2.msra.mxu0 0.0
        %2955 = vmatprep.subr.mxu0 0.0
        %2956 = vmatpush2.msra.mxu0 0.0
        %2957 = vmatprep.subr.mxu0 0.0
        %2958 = vmatpush2.msra.mxu0 0.0
        %2959 = vmatprep.subr.mxu0 0.0
        %2960 = vmatpush2.msra.mxu0 0.0
        %2961 = vmatprep.subr.mxu0 0.0
        %2962 = vmatpush2.msra.mxu0 0.0
        %2963 = vmatprep.subr.mxu0 0.0
        %2964 = vmatpush2.msra.mxu0 0.0
        %2965 = vmatprep.mubr.f32.mxu0 0.0
        %2966 = vmatmul.mubr.f32.gmra.mxu0 %v2896
        %v2967 = vpop.f32.mrf.mxu0
        %v2968 = vadd.f32 0.0, %v2967
        %v2969 = vpop.f32.mrf.mxu0
        %2970 = vmatprep.mubr.f32.mxu0 0.0
        %2971 = vmatmul.mubr.f32.gmra.mxu0 %v2899
        %v2972 = vpop.f32.mrf.mxu0
        %v2973 = vadd.f32 0.0, %v2972
        %v2974 = vpop.f32.mrf.mxu0
        %2975 = vdwg.mxu0
        %2976 = vrot.lane.b32.xlu0 %v569, 64
        %v2977 = vpop.permute.xlu0 %2976
        %2978 = vrot.lane.b32.xlu0 %v574, 64
        %v2979 = vpop.permute.xlu0 %2978
        %v2983 = vsel %vm1026, %v2713, 0
        %v2986 = vsel %vm1026, %v2714, 0
        %2988 = vmatprep.subr.mxu0 0.0
        %2989 = vmatpush1.msra.mxu0 0.0
        %2990 = vmatprep.subr.mxu0 0.0
        %2991 = vmatpush1.msra.mxu0 0.0
        %2992 = vmatprep.subr.mxu0 0.0
        %2993 = vmatpush1.msra.mxu0 0.0
        %2994 = vmatprep.subr.mxu0 0.0
        %2995 = vmatpush1.msra.mxu0 0.0
        %2996 = vmatprep.subr.mxu0 0.0
        %2997 = vmatpush1.msra.mxu0 0.0
        %2998 = vmatprep.subr.mxu0 0.0
        %2999 = vmatpush1.msra.mxu0 0.0
        %3000 = vmatprep.subr.mxu0 0.0
        %3001 = vmatpush1.msra.mxu0 0.0
        %3002 = vmatprep.subr.mxu0 0.0
        %3003 = vmatpush1.msra.mxu0 0.0
        %3004 = vmatprep.subr.mxu0 0.0
        %3005 = vmatpush1.msra.mxu0 0.0
        %3006 = vmatprep.subr.mxu0 0.0
        %3007 = vmatpush1.msra.mxu0 0.0
        %3008 = vmatprep.subr.mxu0 0.0
        %3009 = vmatpush1.msra.mxu0 0.0
        %3010 = vmatprep.subr.mxu0 0.0
        %3011 = vmatpush1.msra.mxu0 0.0
        %3012 = vmatprep.subr.mxu0 0.0
        %3013 = vmatpush1.msra.mxu0 0.0
        %3014 = vmatprep.subr.mxu0 0.0
        %3015 = vmatpush1.msra.mxu0 0.0
        %3016 = vmatprep.subr.mxu0 0.0
        %3017 = vmatpush1.msra.mxu0 %v2979
        %3018 = vmatprep.subr.mxu0 0.0
        %3019 = vmatpush1.msra.mxu0 %v2977
        %3020 = vmatprep.subr.mxu0 0.0
        %3021 = vmatpush2.msra.mxu0 0.0
        %3022 = vmatprep.subr.mxu0 0.0
        %3023 = vmatpush2.msra.mxu0 0.0
        %3024 = vmatprep.subr.mxu0 0.0
        %3025 = vmatpush2.msra.mxu0 0.0
        %3026 = vmatprep.subr.mxu0 0.0
        %3027 = vmatpush2.msra.mxu0 0.0
        %3028 = vmatprep.subr.mxu0 0.0
        %3029 = vmatpush2.msra.mxu0 0.0
        %3030 = vmatprep.subr.mxu0 0.0
        %3031 = vmatpush2.msra.mxu0 0.0
        %3032 = vmatprep.subr.mxu0 0.0
        %3033 = vmatpush2.msra.mxu0 0.0
        %3034 = vmatprep.subr.mxu0 0.0
        %3035 = vmatpush2.msra.mxu0 0.0
        %3036 = vmatprep.subr.mxu0 0.0
        %3037 = vmatpush2.msra.mxu0 0.0
        %3038 = vmatprep.subr.mxu0 0.0
        %3039 = vmatpush2.msra.mxu0 0.0
        %3040 = vmatprep.subr.mxu0 0.0
        %3041 = vmatpush2.msra.mxu0 0.0
        %3042 = vmatprep.subr.mxu0 0.0
        %3043 = vmatpush2.msra.mxu0 0.0
        %3044 = vmatprep.subr.mxu0 0.0
        %3045 = vmatpush2.msra.mxu0 0.0
        %3046 = vmatprep.subr.mxu0 0.0
        %3047 = vmatpush2.msra.mxu0 0.0
        %3048 = vmatprep.subr.mxu0 0.0
        %3049 = vmatpush2.msra.mxu0 0.0
        %3050 = vmatprep.subr.mxu0 0.0
        %3051 = vmatpush2.msra.mxu0 0.0
        %3052 = vmatprep.mubr.f32.mxu0 0.0
        %3053 = vmatmul.mubr.f32.gmra.mxu0 %v2983
        %v3054 = vpop.f32.mrf.mxu0
        %v3055 = vadd.f32 0.0, %v3054
        %v3056 = vpop.f32.mrf.mxu0
        %3057 = vmatprep.mubr.f32.mxu0 0.0
        %3058 = vmatmul.mubr.f32.gmra.mxu0 %v2986
        %v3059 = vpop.f32.mrf.mxu0
        %v3060 = vadd.f32 0.0, %v3059
        %v3061 = vpop.f32.mrf.mxu0
        %3062 = vdwg.mxu0
        %3063 = vrot.lane.b32.xlu0 %v426, 32
        %v3064 = vpop.permute.xlu0 %3063
        %3065 = vrot.lane.b32.xlu0 %v432, 32
        %v3066 = vpop.permute.xlu0 %3065
        %3067 = vrot.lane.b32.xlu0 %v428, 32
        %v3068 = vpop.permute.xlu0 %3067
        %3069 = vrot.lane.b32.xlu0 %v434, 32
        %v3070 = vpop.permute.xlu0 %3069
        %v3071 = vsel %vm669, %v3064, 0
        %v3073 = vsel %vm669, %v3066, 0
        %v3075 = vsel %vm669, %v3068, 0
        %v3077 = vsel %vm669, %v3070, 0
        %3079 = vmatprep.subr.mxu0 0.0
        %3080 = vmatpush1.xpose.msra.mxu0 0.0
        %3081 = vmatprep.subr.mxu0 0.0
        %3082 = vmatpush1.xpose.msra.mxu0 0.0
        %3083 = vmatprep.subr.mxu0 0.0
        %3084 = vmatpush1.xpose.msra.mxu0 0.0
        %3085 = vmatprep.subr.mxu0 0.0
        %3086 = vmatpush1.xpose.msra.mxu0 0.0
        %3087 = vmatprep.subr.mxu0 0.0
        %3088 = vmatpush1.xpose.msra.mxu0 0.0
        %3089 = vmatprep.subr.mxu0 0.0
        %3090 = vmatpush1.xpose.msra.mxu0 0.0
        %3091 = vmatprep.subr.mxu0 0.0
        %3092 = vmatpush1.xpose.msra.mxu0 0.0
        %3093 = vmatprep.subr.mxu0 0.0
        %3094 = vmatpush1.xpose.msra.mxu0 0.0
        %3095 = vmatprep.subr.mxu0 0.0
        %3096 = vmatpush1.xpose.msra.mxu0 0.0
        %3097 = vmatprep.subr.mxu0 0.0
        %3098 = vmatpush1.xpose.msra.mxu0 0.0
        %3099 = vmatprep.subr.mxu0 0.0
        %3100 = vmatpush1.xpose.msra.mxu0 0.0
        %3101 = vmatprep.subr.mxu0 0.0
        %3102 = vmatpush1.xpose.msra.mxu0 0.0
        %3103 = vmatprep.subr.mxu0 0.0
        %3104 = vmatpush1.xpose.msra.mxu0 0.0
        %3105 = vmatprep.subr.mxu0 0.0
        %3106 = vmatpush1.xpose.msra.mxu0 0.0
        %3107 = vmatprep.subr.mxu0 0.0
        %3108 = vmatpush1.xpose.msra.mxu0 %v3077
        %3109 = vmatprep.subr.mxu0 0.0
        %3110 = vmatpush1.xpose.msra.mxu0 %v3075
        %3111 = vmatprep.subr.mxu0 0.0
        %3112 = vmatpush2.xpose.msra.mxu0 0.0
        %3113 = vmatprep.subr.mxu0 0.0
        %3114 = vmatpush2.xpose.msra.mxu0 0.0
        %3115 = vmatprep.subr.mxu0 0.0
        %3116 = vmatpush2.xpose.msra.mxu0 0.0
        %3117 = vmatprep.subr.mxu0 0.0
        %3118 = vmatpush2.xpose.msra.mxu0 0.0
        %3119 = vmatprep.subr.mxu0 0.0
        %3120 = vmatpush2.xpose.msra.mxu0 0.0
        %3121 = vmatprep.subr.mxu0 0.0
        %3122 = vmatpush2.xpose.msra.mxu0 0.0
        %3123 = vmatprep.subr.mxu0 0.0
        %3124 = vmatpush2.xpose.msra.mxu0 0.0
        %3125 = vmatprep.subr.mxu0 0.0
        %3126 = vmatpush2.xpose.msra.mxu0 0.0
        %3127 = vmatprep.subr.mxu0 0.0
        %3128 = vmatpush2.xpose.msra.mxu0 0.0
        %3129 = vmatprep.subr.mxu0 0.0
        %3130 = vmatpush2.xpose.msra.mxu0 0.0
        %3131 = vmatprep.subr.mxu0 0.0
        %3132 = vmatpush2.xpose.msra.mxu0 0.0
        %3133 = vmatprep.subr.mxu0 0.0
        %3134 = vmatpush2.xpose.msra.mxu0 0.0
        %3135 = vmatprep.subr.mxu0 0.0
        %3136 = vmatpush2.xpose.msra.mxu0 0.0
        %3137 = vmatprep.subr.mxu0 0.0
        %3138 = vmatpush2.xpose.msra.mxu0 0.0
        %3139 = vmatprep.subr.mxu0 0.0
        %3140 = vmatpush2.xpose.msra.mxu0 0.0
        %3141 = vmatprep.subr.mxu0 0.0
        %3142 = vmatpush2.xpose.msra.mxu0 0.0
        %3143 = vmatprep.mubr.f32.mxu0 0.0
        %3144 = vmatmul.mubr.f32.gmra.mxu0 %v3071
        %v3145 = vpop.f32.mrf.mxu0
        %v3146 = vadd.f32 0.0, %v3145
        %v3147 = vpop.f32.mrf.mxu0
        %3148 = vmatprep.mubr.f32.mxu0 0.0
        %3149 = vmatmul.mubr.f32.gmra.mxu0 %v3073
        %v3150 = vpop.f32.mrf.mxu0
        %v3151 = vadd.f32 0.0, %v3150
        %v3152 = vpop.f32.mrf.mxu0
        %3153 = vdwg.mxu0
        %3154 = vrot.lane.b32.xlu0 %v438, 32
        %v3155 = vpop.permute.xlu0 %3154
        %3156 = vrot.lane.b32.xlu0 %v444, 32
        %v3157 = vpop.permute.xlu0 %3156
        %3158 = vrot.lane.b32.xlu0 %v440, 32
        %v3159 = vpop.permute.xlu0 %3158
        %3160 = vrot.lane.b32.xlu0 %v446, 32
        %v3161 = vpop.permute.xlu0 %3160
        %v3162 = vsel %vm669, %v3155, 0
        %v3164 = vsel %vm669, %v3157, 0
        %v3166 = vsel %vm669, %v3159, 0
        %v3168 = vsel %vm669, %v3161, 0
        %3170 = vmatprep.subr.mxu0 0.0
        %3171 = vmatpush1.xpose.msra.mxu0 0.0
        %3172 = vmatprep.subr.mxu0 0.0
        %3173 = vmatpush1.xpose.msra.mxu0 0.0
        %3174 = vmatprep.subr.mxu0 0.0
        %3175 = vmatpush1.xpose.msra.mxu0 0.0
        %3176 = vmatprep.subr.mxu0 0.0
        %3177 = vmatpush1.xpose.msra.mxu0 0.0
        %3178 = vmatprep.subr.mxu0 0.0
        %3179 = vmatpush1.xpose.msra.mxu0 0.0
        %3180 = vmatprep.subr.mxu0 0.0
        %3181 = vmatpush1.xpose.msra.mxu0 0.0
        %3182 = vmatprep.subr.mxu0 0.0
        %3183 = vmatpush1.xpose.msra.mxu0 0.0
        %3184 = vmatprep.subr.mxu0 0.0
        %3185 = vmatpush1.xpose.msra.mxu0 0.0
        %3186 = vmatprep.subr.mxu0 0.0
        %3187 = vmatpush1.xpose.msra.mxu0 0.0
        %3188 = vmatprep.subr.mxu0 0.0
        %3189 = vmatpush1.xpose.msra.mxu0 0.0
        %3190 = vmatprep.subr.mxu0 0.0
        %3191 = vmatpush1.xpose.msra.mxu0 0.0
        %3192 = vmatprep.subr.mxu0 0.0
        %3193 = vmatpush1.xpose.msra.mxu0 0.0
        %3194 = vmatprep.subr.mxu0 0.0
        %3195 = vmatpush1.xpose.msra.mxu0 0.0
        %3196 = vmatprep.subr.mxu0 0.0
        %3197 = vmatpush1.xpose.msra.mxu0 0.0
        %3198 = vmatprep.subr.mxu0 0.0
        %3199 = vmatpush1.xpose.msra.mxu0 %v3168
        %3200 = vmatprep.subr.mxu0 0.0
        %3201 = vmatpush1.xpose.msra.mxu0 %v3166
        %3202 = vmatprep.subr.mxu0 0.0
        %3203 = vmatpush2.xpose.msra.mxu0 0.0
        %3204 = vmatprep.subr.mxu0 0.0
        %3205 = vmatpush2.xpose.msra.mxu0 0.0
        %3206 = vmatprep.subr.mxu0 0.0
        %3207 = vmatpush2.xpose.msra.mxu0 0.0
        %3208 = vmatprep.subr.mxu0 0.0
        %3209 = vmatpush2.xpose.msra.mxu0 0.0
        %3210 = vmatprep.subr.mxu0 0.0
        %3211 = vmatpush2.xpose.msra.mxu0 0.0
        %3212 = vmatprep.subr.mxu0 0.0
        %3213 = vmatpush2.xpose.msra.mxu0 0.0
        %3214 = vmatprep.subr.mxu0 0.0
        %3215 = vmatpush2.xpose.msra.mxu0 0.0
        %3216 = vmatprep.subr.mxu0 0.0
        %3217 = vmatpush2.xpose.msra.mxu0 0.0
        %3218 = vmatprep.subr.mxu0 0.0
        %3219 = vmatpush2.xpose.msra.mxu0 0.0
        %3220 = vmatprep.subr.mxu0 0.0
        %3221 = vmatpush2.xpose.msra.mxu0 0.0
        %3222 = vmatprep.subr.mxu0 0.0
        %3223 = vmatpush2.xpose.msra.mxu0 0.0
        %3224 = vmatprep.subr.mxu0 0.0
        %3225 = vmatpush2.xpose.msra.mxu0 0.0
        %3226 = vmatprep.subr.mxu0 0.0
        %3227 = vmatpush2.xpose.msra.mxu0 0.0
        %3228 = vmatprep.subr.mxu0 0.0
        %3229 = vmatpush2.xpose.msra.mxu0 0.0
        %3230 = vmatprep.subr.mxu0 0.0
        %3231 = vmatpush2.xpose.msra.mxu0 0.0
        %3232 = vmatprep.subr.mxu0 0.0
        %3233 = vmatpush2.xpose.msra.mxu0 0.0
        %3234 = vmatprep.mubr.f32.mxu0 0.0
        %3235 = vmatmul.mubr.f32.gmra.mxu0 %v3162
        %v3236 = vpop.f32.mrf.mxu0
        %v3237 = vadd.f32 0.0, %v3236
        %v3238 = vpop.f32.mrf.mxu0
        %3239 = vmatprep.mubr.f32.mxu0 0.0
        %3240 = vmatmul.mubr.f32.gmra.mxu0 %v3164
        %v3241 = vpop.f32.mrf.mxu0
        %v3242 = vadd.f32 0.0, %v3241
        %v3243 = vpop.f32.mrf.mxu0
        %3244 = vdwg.mxu0
        %3245 = vrot.lane.b32.xlu0 %v450, 32
        %v3246 = vpop.permute.xlu0 %3245
        %3247 = vrot.lane.b32.xlu0 %v456, 32
        %v3248 = vpop.permute.xlu0 %3247
        %3249 = vrot.lane.b32.xlu0 %v452, 32
        %v3250 = vpop.permute.xlu0 %3249
        %3251 = vrot.lane.b32.xlu0 %v458, 32
        %v3252 = vpop.permute.xlu0 %3251
        %v3253 = vsel %vm669, %v3246, 0
        %v3255 = vsel %vm669, %v3248, 0
        %v3257 = vsel %vm669, %v3250, 0
        %v3259 = vsel %vm669, %v3252, 0
        %3261 = vmatprep.subr.mxu0 0.0
        %3262 = vmatpush1.xpose.msra.mxu0 0.0
        %3263 = vmatprep.subr.mxu0 0.0
        %3264 = vmatpush1.xpose.msra.mxu0 0.0
        %3265 = vmatprep.subr.mxu0 0.0
        %3266 = vmatpush1.xpose.msra.mxu0 0.0
        %3267 = vmatprep.subr.mxu0 0.0
        %3268 = vmatpush1.xpose.msra.mxu0 0.0
        %3269 = vmatprep.subr.mxu0 0.0
        %3270 = vmatpush1.xpose.msra.mxu0 0.0
        %3271 = vmatprep.subr.mxu0 0.0
        %3272 = vmatpush1.xpose.msra.mxu0 0.0
        %3273 = vmatprep.subr.mxu0 0.0
        %3274 = vmatpush1.xpose.msra.mxu0 0.0
        %3275 = vmatprep.subr.mxu0 0.0
        %3276 = vmatpush1.xpose.msra.mxu0 0.0
        %3277 = vmatprep.subr.mxu0 0.0
        %3278 = vmatpush1.xpose.msra.mxu0 0.0
        %3279 = vmatprep.subr.mxu0 0.0
        %3280 = vmatpush1.xpose.msra.mxu0 0.0
        %3281 = vmatprep.subr.mxu0 0.0
        %3282 = vmatpush1.xpose.msra.mxu0 0.0
        %3283 = vmatprep.subr.mxu0 0.0
        %3284 = vmatpush1.xpose.msra.mxu0 0.0
        %3285 = vmatprep.subr.mxu0 0.0
        %3286 = vmatpush1.xpose.msra.mxu0 0.0
        %3287 = vmatprep.subr.mxu0 0.0
        %3288 = vmatpush1.xpose.msra.mxu0 0.0
        %3289 = vmatprep.subr.mxu0 0.0
        %3290 = vmatpush1.xpose.msra.mxu0 %v3259
        %3291 = vmatprep.subr.mxu0 0.0
        %3292 = vmatpush1.xpose.msra.mxu0 %v3257
        %3293 = vmatprep.subr.mxu0 0.0
        %3294 = vmatpush2.xpose.msra.mxu0 0.0
        %3295 = vmatprep.subr.mxu0 0.0
        %3296 = vmatpush2.xpose.msra.mxu0 0.0
        %3297 = vmatprep.subr.mxu0 0.0
        %3298 = vmatpush2.xpose.msra.mxu0 0.0
        %3299 = vmatprep.subr.mxu0 0.0
        %3300 = vmatpush2.xpose.msra.mxu0 0.0
        %3301 = vmatprep.subr.mxu0 0.0
        %3302 = vmatpush2.xpose.msra.mxu0 0.0
        %3303 = vmatprep.subr.mxu0 0.0
        %3304 = vmatpush2.xpose.msra.mxu0 0.0
        %3305 = vmatprep.subr.mxu0 0.0
        %3306 = vmatpush2.xpose.msra.mxu0 0.0
        %3307 = vmatprep.subr.mxu0 0.0
        %3308 = vmatpush2.xpose.msra.mxu0 0.0
        %3309 = vmatprep.subr.mxu0 0.0
        %3310 = vmatpush2.xpose.msra.mxu0 0.0
        %3311 = vmatprep.subr.mxu0 0.0
        %3312 = vmatpush2.xpose.msra.mxu0 0.0
        %3313 = vmatprep.subr.mxu0 0.0
        %3314 = vmatpush2.xpose.msra.mxu0 0.0
        %3315 = vmatprep.subr.mxu0 0.0
        %3316 = vmatpush2.xpose.msra.mxu0 0.0
        %3317 = vmatprep.subr.mxu0 0.0
        %3318 = vmatpush2.xpose.msra.mxu0 0.0
        %3319 = vmatprep.subr.mxu0 0.0
        %3320 = vmatpush2.xpose.msra.mxu0 0.0
        %3321 = vmatprep.subr.mxu0 0.0
        %3322 = vmatpush2.xpose.msra.mxu0 0.0
        %3323 = vmatprep.subr.mxu0 0.0
        %3324 = vmatpush2.xpose.msra.mxu0 0.0
        %3325 = vmatprep.mubr.f32.mxu0 0.0
        %3326 = vmatmul.mubr.f32.gmra.mxu0 %v3253
        %v3327 = vpop.f32.mrf.mxu0
        %v3328 = vadd.f32 0.0, %v3327
        %v3329 = vpop.f32.mrf.mxu0
        %3330 = vmatprep.mubr.f32.mxu0 0.0
        %3331 = vmatmul.mubr.f32.gmra.mxu0 %v3255
        %v3332 = vpop.f32.mrf.mxu0
        %v3333 = vadd.f32 0.0, %v3332
        %v3334 = vpop.f32.mrf.mxu0
        %3335 = vdwg.mxu0
        %3336 = vrot.lane.b32.xlu0 %v462, 32
        %v3337 = vpop.permute.xlu0 %3336
        %3338 = vrot.lane.b32.xlu0 %v468, 32
        %v3339 = vpop.permute.xlu0 %3338
        %3340 = vrot.lane.b32.xlu0 %v464, 32
        %v3341 = vpop.permute.xlu0 %3340
        %3342 = vrot.lane.b32.xlu0 %v470, 32
        %v3343 = vpop.permute.xlu0 %3342
        %v3344 = vsel %vm669, %v3337, 0
        %v3346 = vsel %vm669, %v3339, 0
        %v3348 = vsel %vm669, %v3341, 0
        %v3350 = vsel %vm669, %v3343, 0
        %3352 = vmatprep.subr.mxu0 0.0
        %3353 = vmatpush1.xpose.msra.mxu0 0.0
        %3354 = vmatprep.subr.mxu0 0.0
        %3355 = vmatpush1.xpose.msra.mxu0 0.0
        %3356 = vmatprep.subr.mxu0 0.0
        %3357 = vmatpush1.xpose.msra.mxu0 0.0
        %3358 = vmatprep.subr.mxu0 0.0
        %3359 = vmatpush1.xpose.msra.mxu0 0.0
        %3360 = vmatprep.subr.mxu0 0.0
        %3361 = vmatpush1.xpose.msra.mxu0 0.0
        %3362 = vmatprep.subr.mxu0 0.0
        %3363 = vmatpush1.xpose.msra.mxu0 0.0
        %3364 = vmatprep.subr.mxu0 0.0
        %3365 = vmatpush1.xpose.msra.mxu0 0.0
        %3366 = vmatprep.subr.mxu0 0.0
        %3367 = vmatpush1.xpose.msra.mxu0 0.0
        %3368 = vmatprep.subr.mxu0 0.0
        %3369 = vmatpush1.xpose.msra.mxu0 0.0
        %3370 = vmatprep.subr.mxu0 0.0
        %3371 = vmatpush1.xpose.msra.mxu0 0.0
        %3372 = vmatprep.subr.mxu0 0.0
        %3373 = vmatpush1.xpose.msra.mxu0 0.0
        %3374 = vmatprep.subr.mxu0 0.0
        %3375 = vmatpush1.xpose.msra.mxu0 0.0
        %3376 = vmatprep.subr.mxu0 0.0
        %3377 = vmatpush1.xpose.msra.mxu0 0.0
        %3378 = vmatprep.subr.mxu0 0.0
        %3379 = vmatpush1.xpose.msra.mxu0 0.0
        %3380 = vmatprep.subr.mxu0 0.0
        %3381 = vmatpush1.xpose.msra.mxu0 %v3350
        %3382 = vmatprep.subr.mxu0 0.0
        %3383 = vmatpush1.xpose.msra.mxu0 %v3348
        %3384 = vmatprep.subr.mxu0 0.0
        %3385 = vmatpush2.xpose.msra.mxu0 0.0
        %3386 = vmatprep.subr.mxu0 0.0
        %3387 = vmatpush2.xpose.msra.mxu0 0.0
        %3388 = vmatprep.subr.mxu0 0.0
        %3389 = vmatpush2.xpose.msra.mxu0 0.0
        %3390 = vmatprep.subr.mxu0 0.0
        %3391 = vmatpush2.xpose.msra.mxu0 0.0
        %3392 = vmatprep.subr.mxu0 0.0
        %3393 = vmatpush2.xpose.msra.mxu0 0.0
        %3394 = vmatprep.subr.mxu0 0.0
        %3395 = vmatpush2.xpose.msra.mxu0 0.0
        %3396 = vmatprep.subr.mxu0 0.0
        %3397 = vmatpush2.xpose.msra.mxu0 0.0
        %3398 = vmatprep.subr.mxu0 0.0
        %3399 = vmatpush2.xpose.msra.mxu0 0.0
        %3400 = vmatprep.subr.mxu0 0.0
        %3401 = vmatpush2.xpose.msra.mxu0 0.0
        %3402 = vmatprep.subr.mxu0 0.0
        %3403 = vmatpush2.xpose.msra.mxu0 0.0
        %3404 = vmatprep.subr.mxu0 0.0
        %3405 = vmatpush2.xpose.msra.mxu0 0.0
        %3406 = vmatprep.subr.mxu0 0.0
        %3407 = vmatpush2.xpose.msra.mxu0 0.0
        %3408 = vmatprep.subr.mxu0 0.0
        %3409 = vmatpush2.xpose.msra.mxu0 0.0
        %3410 = vmatprep.subr.mxu0 0.0
        %3411 = vmatpush2.xpose.msra.mxu0 0.0
        %3412 = vmatprep.subr.mxu0 0.0
        %3413 = vmatpush2.xpose.msra.mxu0 0.0
        %3414 = vmatprep.subr.mxu0 0.0
        %3415 = vmatpush2.xpose.msra.mxu0 0.0
        %3416 = vmatprep.mubr.f32.mxu0 0.0
        %3417 = vmatmul.mubr.f32.gmra.mxu0 %v3344
        %v3418 = vpop.f32.mrf.mxu0
        %v3419 = vadd.f32 0.0, %v3418
        %v3420 = vpop.f32.mrf.mxu0
        %3421 = vmatprep.mubr.f32.mxu0 0.0
        %3422 = vmatmul.mubr.f32.gmra.mxu0 %v3346
        %v3423 = vpop.f32.mrf.mxu0
        %v3424 = vadd.f32 0.0, %v3423
        %v3425 = vpop.f32.mrf.mxu0
        %3426 = vdwg.mxu0
        %v3427 = vsel %vm661, %v3146, -3.4028235e+38
        %v3428 = vsel %vm662, %v3151, -3.4028235e+38
        %v3429 = vsel %vm663, %v3237, -3.4028235e+38
        %v3430 = vsel %vm664, %v3242, -3.4028235e+38
        %v3431 = vsel %vm665, %v3328, -3.4028235e+38
        %v3432 = vsel %vm666, %v3333, -3.4028235e+38
        %v3433 = vsel %vm667, %v3419, -3.4028235e+38
        %v3434 = vsel %vm668, %v3424, -3.4028235e+38
        %v3435 = vsel %vm1026, %v3427, -inf
        %3436 = vmax.xlane.f32.xlu0 %v3435
        %v3437 = vpop.xlane.xlu0 %3436
        %v3438 = vsel %vm1026, %v3428, -inf
        %3439 = vmax.xlane.f32.xlu0 %v3438
        %v3440 = vpop.xlane.xlu0 %3439
        %v3441 = vsel %vm1026, %v3429, -inf
        %3442 = vmax.xlane.f32.xlu0 %v3441
        %v3443 = vpop.xlane.xlu0 %3442
        %v3444 = vsel %vm1026, %v3430, -inf
        %3445 = vmax.xlane.f32.xlu0 %v3444
        %v3446 = vpop.xlane.xlu0 %3445
        %v3447 = vsel %vm1026, %v3431, -inf
        %3448 = vmax.xlane.f32.xlu0 %v3447
        %v3449 = vpop.xlane.xlu0 %3448
        %v3450 = vsel %vm1026, %v3432, -inf
        %3451 = vmax.xlane.f32.xlu0 %v3450
        %v3452 = vpop.xlane.xlu0 %3451
        %v3453 = vsel %vm1026, %v3433, -inf
        %3454 = vmax.xlane.f32.xlu0 %v3453
        %v3455 = vpop.xlane.xlu0 %3454
        %v3456 = vsel %vm1026, %v3434, -inf
        %3457 = vmax.xlane.f32.xlu0 %v3456
        %v3458 = vpop.xlane.xlu0 %3457
        %v3459 = vsub.f32 %v3427, %v3437
        %v3460 = vsub.f32 %v3428, %v3440
        %v3461 = vsub.f32 %v3429, %v3443
        %v3462 = vsub.f32 %v3430, %v3446
        %v3463 = vsub.f32 %v3431, %v3449
        %v3464 = vsub.f32 %v3432, %v3452
        %v3465 = vsub.f32 %v3433, %v3455
        %v3466 = vsub.f32 %v3434, %v3458
        %v3467 = vmul.f32 %v3459, 1.442695
        %v3468 = vpow.pop %v3467
        %v3469 = vmul.f32 %v3460, 1.442695
        %v3470 = vpow.pop %v3469
        %v3471 = vmul.f32 %v3461, 1.442695
        %v3472 = vpow.pop %v3471
        %v3473 = vmul.f32 %v3462, 1.442695
        %v3474 = vpow.pop %v3473
        %v3475 = vmul.f32 %v3463, 1.442695
        %v3476 = vpow.pop %v3475
        %v3477 = vmul.f32 %v3464, 1.442695
        %v3478 = vpow.pop %v3477
        %v3479 = vmul.f32 %v3465, 1.442695
        %v3480 = vpow.pop %v3479
        %v3481 = vmul.f32 %v3466, 1.442695
        %v3482 = vpow.pop %v3481
        %v3483 = vsel %vm1026, %v3468, 0.0
        %3484 = vadd.xlane.f32.xlu0 %v3483
        %v3485 = vpop.xlane.xlu0 %3484
        %v3486 = vsel %vm1026, %v3470, 0.0
        %3487 = vadd.xlane.f32.xlu0 %v3486
        %v3488 = vpop.xlane.xlu0 %3487
        %v3489 = vsel %vm1026, %v3472, 0.0
        %3490 = vadd.xlane.f32.xlu0 %v3489
        %v3491 = vpop.xlane.xlu0 %3490
        %v3492 = vsel %vm1026, %v3474, 0.0
        %3493 = vadd.xlane.f32.xlu0 %v3492
        %v3494 = vpop.xlane.xlu0 %3493
        %v3495 = vsel %vm1026, %v3476, 0.0
        %3496 = vadd.xlane.f32.xlu0 %v3495
        %v3497 = vpop.xlane.xlu0 %3496
        %v3498 = vsel %vm1026, %v3478, 0.0
        %3499 = vadd.xlane.f32.xlu0 %v3498
        %v3500 = vpop.xlane.xlu0 %3499
        %v3501 = vsel %vm1026, %v3480, 0.0
        %3502 = vadd.xlane.f32.xlu0 %v3501
        %v3503 = vpop.xlane.xlu0 %3502
        %v3504 = vsel %vm1026, %v3482, 0.0
        %3505 = vadd.xlane.f32.xlu0 %v3504
        %v3506 = vpop.xlane.xlu0 %3505
        %v3507 = vrcp.pop %v3485
        %v3508 = vrcp.pop %v3488
        %v3509 = vrcp.pop %v3491
        %v3510 = vrcp.pop %v3494
        %v3511 = vrcp.pop %v3497
        %v3512 = vrcp.pop %v3500
        %v3513 = vrcp.pop %v3503
        %v3514 = vrcp.pop %v3506
        %v3515 = vmul.f32 %v3468, %v3507
        %v3516 = vmul.f32 %v3470, %v3508
        %v3517 = vmul.f32 %v3472, %v3509
        %v3518 = vmul.f32 %v3474, %v3510
        %v3519 = vmul.f32 %v3476, %v3511
        %v3520 = vmul.f32 %v3478, %v3512
        %v3521 = vmul.f32 %v3480, %v3513
        %v3522 = vmul.f32 %v3482, %v3514
        %3523 = vrot.lane.b32.xlu0 %v539, 32
        %v3524 = vpop.permute.xlu0 %3523
        %3525 = vrot.lane.b32.xlu0 %v544, 32
        %v3526 = vpop.permute.xlu0 %3525
        %v3530 = vsel %vm1026, %v3515, 0
        %v3533 = vsel %vm1026, %v3516, 0
        %3535 = vmatprep.subr.mxu0 0.0
        %3536 = vmatpush1.msra.mxu0 0.0
        %3537 = vmatprep.subr.mxu0 0.0
        %3538 = vmatpush1.msra.mxu0 0.0
        %3539 = vmatprep.subr.mxu0 0.0
        %3540 = vmatpush1.msra.mxu0 0.0
        %3541 = vmatprep.subr.mxu0 0.0
        %3542 = vmatpush1.msra.mxu0 0.0
        %3543 = vmatprep.subr.mxu0 0.0
        %3544 = vmatpush1.msra.mxu0 0.0
        %3545 = vmatprep.subr.mxu0 0.0
        %3546 = vmatpush1.msra.mxu0 0.0
        %3547 = vmatprep.subr.mxu0 0.0
        %3548 = vmatpush1.msra.mxu0 0.0
        %3549 = vmatprep.subr.mxu0 0.0
        %3550 = vmatpush1.msra.mxu0 0.0
        %3551 = vmatprep.subr.mxu0 0.0
        %3552 = vmatpush1.msra.mxu0 0.0
        %3553 = vmatprep.subr.mxu0 0.0
        %3554 = vmatpush1.msra.mxu0 0.0
        %3555 = vmatprep.subr.mxu0 0.0
        %3556 = vmatpush1.msra.mxu0 0.0
        %3557 = vmatprep.subr.mxu0 0.0
        %3558 = vmatpush1.msra.mxu0 0.0
        %3559 = vmatprep.subr.mxu0 0.0
        %3560 = vmatpush1.msra.mxu0 0.0
        %3561 = vmatprep.subr.mxu0 0.0
        %3562 = vmatpush1.msra.mxu0 0.0
        %3563 = vmatprep.subr.mxu0 0.0
        %3564 = vmatpush1.msra.mxu0 %v3526
        %3565 = vmatprep.subr.mxu0 0.0
        %3566 = vmatpush1.msra.mxu0 %v3524
        %3567 = vmatprep.subr.mxu0 0.0
        %3568 = vmatpush2.msra.mxu0 0.0
        %3569 = vmatprep.subr.mxu0 0.0
        %3570 = vmatpush2.msra.mxu0 0.0
        %3571 = vmatprep.subr.mxu0 0.0
        %3572 = vmatpush2.msra.mxu0 0.0
        %3573 = vmatprep.subr.mxu0 0.0
        %3574 = vmatpush2.msra.mxu0 0.0
        %3575 = vmatprep.subr.mxu0 0.0
        %3576 = vmatpush2.msra.mxu0 0.0
        %3577 = vmatprep.subr.mxu0 0.0
        %3578 = vmatpush2.msra.mxu0 0.0
        %3579 = vmatprep.subr.mxu0 0.0
        %3580 = vmatpush2.msra.mxu0 0.0
        %3581 = vmatprep.subr.mxu0 0.0
        %3582 = vmatpush2.msra.mxu0 0.0
        %3583 = vmatprep.subr.mxu0 0.0
        %3584 = vmatpush2.msra.mxu0 0.0
        %3585 = vmatprep.subr.mxu0 0.0
        %3586 = vmatpush2.msra.mxu0 0.0
        %3587 = vmatprep.subr.mxu0 0.0
        %3588 = vmatpush2.msra.mxu0 0.0
        %3589 = vmatprep.subr.mxu0 0.0
        %3590 = vmatpush2.msra.mxu0 0.0
        %3591 = vmatprep.subr.mxu0 0.0
        %3592 = vmatpush2.msra.mxu0 0.0
        %3593 = vmatprep.subr.mxu0 0.0
        %3594 = vmatpush2.msra.mxu0 0.0
        %3595 = vmatprep.subr.mxu0 0.0
        %3596 = vmatpush2.msra.mxu0 0.0
        %3597 = vmatprep.subr.mxu0 0.0
        %3598 = vmatpush2.msra.mxu0 0.0
        %3599 = vmatprep.mubr.f32.mxu0 0.0
        %3600 = vmatmul.mubr.f32.gmra.mxu0 %v3530
        %v3601 = vpop.f32.mrf.mxu0
        %v3602 = vadd.f32 0.0, %v3601
        %v3603 = vpop.f32.mrf.mxu0
        %3604 = vmatprep.mubr.f32.mxu0 0.0
        %3605 = vmatmul.mubr.f32.gmra.mxu0 %v3533
        %v3606 = vpop.f32.mrf.mxu0
        %v3607 = vadd.f32 0.0, %v3606
        %v3608 = vpop.f32.mrf.mxu0
        %3609 = vdwg.mxu0
        %3610 = vrot.lane.b32.xlu0 %v549, 32
        %v3611 = vpop.permute.xlu0 %3610
        %3612 = vrot.lane.b32.xlu0 %v554, 32
        %v3613 = vpop.permute.xlu0 %3612
        %v3617 = vsel %vm1026, %v3517, 0
        %v3620 = vsel %vm1026, %v3518, 0
        %3622 = vmatprep.subr.mxu0 0.0
        %3623 = vmatpush1.msra.mxu0 0.0
        %3624 = vmatprep.subr.mxu0 0.0
        %3625 = vmatpush1.msra.mxu0 0.0
        %3626 = vmatprep.subr.mxu0 0.0
        %3627 = vmatpush1.msra.mxu0 0.0
        %3628 = vmatprep.subr.mxu0 0.0
        %3629 = vmatpush1.msra.mxu0 0.0
        %3630 = vmatprep.subr.mxu0 0.0
        %3631 = vmatpush1.msra.mxu0 0.0
        %3632 = vmatprep.subr.mxu0 0.0
        %3633 = vmatpush1.msra.mxu0 0.0
        %3634 = vmatprep.subr.mxu0 0.0
        %3635 = vmatpush1.msra.mxu0 0.0
        %3636 = vmatprep.subr.mxu0 0.0
        %3637 = vmatpush1.msra.mxu0 0.0
        %3638 = vmatprep.subr.mxu0 0.0
        %3639 = vmatpush1.msra.mxu0 0.0
        %3640 = vmatprep.subr.mxu0 0.0
        %3641 = vmatpush1.msra.mxu0 0.0
        %3642 = vmatprep.subr.mxu0 0.0
        %3643 = vmatpush1.msra.mxu0 0.0
        %3644 = vmatprep.subr.mxu0 0.0
        %3645 = vmatpush1.msra.mxu0 0.0
        %3646 = vmatprep.subr.mxu0 0.0
        %3647 = vmatpush1.msra.mxu0 0.0
        %3648 = vmatprep.subr.mxu0 0.0
        %3649 = vmatpush1.msra.mxu0 0.0
        %3650 = vmatprep.subr.mxu0 0.0
        %3651 = vmatpush1.msra.mxu0 %v3613
        %3652 = vmatprep.subr.mxu0 0.0
        %3653 = vmatpush1.msra.mxu0 %v3611
        %3654 = vmatprep.subr.mxu0 0.0
        %3655 = vmatpush2.msra.mxu0 0.0
        %3656 = vmatprep.subr.mxu0 0.0
        %3657 = vmatpush2.msra.mxu0 0.0
        %3658 = vmatprep.subr.mxu0 0.0
        %3659 = vmatpush2.msra.mxu0 0.0
        %3660 = vmatprep.subr.mxu0 0.0
        %3661 = vmatpush2.msra.mxu0 0.0
        %3662 = vmatprep.subr.mxu0 0.0
        %3663 = vmatpush2.msra.mxu0 0.0
        %3664 = vmatprep.subr.mxu0 0.0
        %3665 = vmatpush2.msra.mxu0 0.0
        %3666 = vmatprep.subr.mxu0 0.0
        %3667 = vmatpush2.msra.mxu0 0.0
        %3668 = vmatprep.subr.mxu0 0.0
        %3669 = vmatpush2.msra.mxu0 0.0
        %3670 = vmatprep.subr.mxu0 0.0
        %3671 = vmatpush2.msra.mxu0 0.0
        %3672 = vmatprep.subr.mxu0 0.0
        %3673 = vmatpush2.msra.mxu0 0.0
        %3674 = vmatprep.subr.mxu0 0.0
        %3675 = vmatpush2.msra.mxu0 0.0
        %3676 = vmatprep.subr.mxu0 0.0
        %3677 = vmatpush2.msra.mxu0 0.0
        %3678 = vmatprep.subr.mxu0 0.0
        %3679 = vmatpush2.msra.mxu0 0.0
        %3680 = vmatprep.subr.mxu0 0.0
        %3681 = vmatpush2.msra.mxu0 0.0
        %3682 = vmatprep.subr.mxu0 0.0
        %3683 = vmatpush2.msra.mxu0 0.0
        %3684 = vmatprep.subr.mxu0 0.0
        %3685 = vmatpush2.msra.mxu0 0.0
        %3686 = vmatprep.mubr.f32.mxu0 0.0
        %3687 = vmatmul.mubr.f32.gmra.mxu0 %v3617
        %v3688 = vpop.f32.mrf.mxu0
        %v3689 = vadd.f32 0.0, %v3688
        %v3690 = vpop.f32.mrf.mxu0
        %3691 = vmatprep.mubr.f32.mxu0 0.0
        %3692 = vmatmul.mubr.f32.gmra.mxu0 %v3620
        %v3693 = vpop.f32.mrf.mxu0
        %v3694 = vadd.f32 0.0, %v3693
        %v3695 = vpop.f32.mrf.mxu0
        %3696 = vdwg.mxu0
        %3697 = vrot.lane.b32.xlu0 %v559, 32
        %v3698 = vpop.permute.xlu0 %3697
        %3699 = vrot.lane.b32.xlu0 %v564, 32
        %v3700 = vpop.permute.xlu0 %3699
        %v3704 = vsel %vm1026, %v3519, 0
        %v3707 = vsel %vm1026, %v3520, 0
        %3709 = vmatprep.subr.mxu0 0.0
        %3710 = vmatpush1.msra.mxu0 0.0
        %3711 = vmatprep.subr.mxu0 0.0
        %3712 = vmatpush1.msra.mxu0 0.0
        %3713 = vmatprep.subr.mxu0 0.0
        %3714 = vmatpush1.msra.mxu0 0.0
        %3715 = vmatprep.subr.mxu0 0.0
        %3716 = vmatpush1.msra.mxu0 0.0
        %3717 = vmatprep.subr.mxu0 0.0
        %3718 = vmatpush1.msra.mxu0 0.0
        %3719 = vmatprep.subr.mxu0 0.0
        %3720 = vmatpush1.msra.mxu0 0.0
        %3721 = vmatprep.subr.mxu0 0.0
        %3722 = vmatpush1.msra.mxu0 0.0
        %3723 = vmatprep.subr.mxu0 0.0
        %3724 = vmatpush1.msra.mxu0 0.0
        %3725 = vmatprep.subr.mxu0 0.0
        %3726 = vmatpush1.msra.mxu0 0.0
        %3727 = vmatprep.subr.mxu0 0.0
        %3728 = vmatpush1.msra.mxu0 0.0
        %3729 = vmatprep.subr.mxu0 0.0
        %3730 = vmatpush1.msra.mxu0 0.0
        %3731 = vmatprep.subr.mxu0 0.0
        %3732 = vmatpush1.msra.mxu0 0.0
        %3733 = vmatprep.subr.mxu0 0.0
        %3734 = vmatpush1.msra.mxu0 0.0
        %3735 = vmatprep.subr.mxu0 0.0
        %3736 = vmatpush1.msra.mxu0 0.0
        %3737 = vmatprep.subr.mxu0 0.0
        %3738 = vmatpush1.msra.mxu0 %v3700
        %3739 = vmatprep.subr.mxu0 0.0
        %3740 = vmatpush1.msra.mxu0 %v3698
        %3741 = vmatprep.subr.mxu0 0.0
        %3742 = vmatpush2.msra.mxu0 0.0
        %3743 = vmatprep.subr.mxu0 0.0
        %3744 = vmatpush2.msra.mxu0 0.0
        %3745 = vmatprep.subr.mxu0 0.0
        %3746 = vmatpush2.msra.mxu0 0.0
        %3747 = vmatprep.subr.mxu0 0.0
        %3748 = vmatpush2.msra.mxu0 0.0
        %3749 = vmatprep.subr.mxu0 0.0
        %3750 = vmatpush2.msra.mxu0 0.0
        %3751 = vmatprep.subr.mxu0 0.0
        %3752 = vmatpush2.msra.mxu0 0.0
        %3753 = vmatprep.subr.mxu0 0.0
        %3754 = vmatpush2.msra.mxu0 0.0
        %3755 = vmatprep.subr.mxu0 0.0
        %3756 = vmatpush2.msra.mxu0 0.0
        %3757 = vmatprep.subr.mxu0 0.0
        %3758 = vmatpush2.msra.mxu0 0.0
        %3759 = vmatprep.subr.mxu0 0.0
        %3760 = vmatpush2.msra.mxu0 0.0
        %3761 = vmatprep.subr.mxu0 0.0
        %3762 = vmatpush2.msra.mxu0 0.0
        %3763 = vmatprep.subr.mxu0 0.0
        %3764 = vmatpush2.msra.mxu0 0.0
        %3765 = vmatprep.subr.mxu0 0.0
        %3766 = vmatpush2.msra.mxu0 0.0
        %3767 = vmatprep.subr.mxu0 0.0
        %3768 = vmatpush2.msra.mxu0 0.0
        %3769 = vmatprep.subr.mxu0 0.0
        %3770 = vmatpush2.msra.mxu0 0.0
        %3771 = vmatprep.subr.mxu0 0.0
        %3772 = vmatpush2.msra.mxu0 0.0
        %3773 = vmatprep.mubr.f32.mxu0 0.0
        %3774 = vmatmul.mubr.f32.gmra.mxu0 %v3704
        %v3775 = vpop.f32.mrf.mxu0
        %v3776 = vadd.f32 0.0, %v3775
        %v3777 = vpop.f32.mrf.mxu0
        %3778 = vmatprep.mubr.f32.mxu0 0.0
        %3779 = vmatmul.mubr.f32.gmra.mxu0 %v3707
        %v3780 = vpop.f32.mrf.mxu0
        %v3781 = vadd.f32 0.0, %v3780
        %v3782 = vpop.f32.mrf.mxu0
        %3783 = vdwg.mxu0
        %3784 = vrot.lane.b32.xlu0 %v569, 32
        %v3785 = vpop.permute.xlu0 %3784
        %3786 = vrot.lane.b32.xlu0 %v574, 32
        %v3787 = vpop.permute.xlu0 %3786
        %v3791 = vsel %vm1026, %v3521, 0
        %v3794 = vsel %vm1026, %v3522, 0
        %3796 = vmatprep.subr.mxu0 0.0
        %3797 = vmatpush1.msra.mxu0 0.0
        %3798 = vmatprep.subr.mxu0 0.0
        %3799 = vmatpush1.msra.mxu0 0.0
        %3800 = vmatprep.subr.mxu0 0.0
        %3801 = vmatpush1.msra.mxu0 0.0
        %3802 = vmatprep.subr.mxu0 0.0
        %3803 = vmatpush1.msra.mxu0 0.0
        %3804 = vmatprep.subr.mxu0 0.0
        %3805 = vmatpush1.msra.mxu0 0.0
        %3806 = vmatprep.subr.mxu0 0.0
        %3807 = vmatpush1.msra.mxu0 0.0
        %3808 = vmatprep.subr.mxu0 0.0
        %3809 = vmatpush1.msra.mxu0 0.0
        %3810 = vmatprep.subr.mxu0 0.0
        %3811 = vmatpush1.msra.mxu0 0.0
        %3812 = vmatprep.subr.mxu0 0.0
        %3813 = vmatpush1.msra.mxu0 0.0
        %3814 = vmatprep.subr.mxu0 0.0
        %3815 = vmatpush1.msra.mxu0 0.0
        %3816 = vmatprep.subr.mxu0 0.0
        %3817 = vmatpush1.msra.mxu0 0.0
        %3818 = vmatprep.subr.mxu0 0.0
        %3819 = vmatpush1.msra.mxu0 0.0
        %3820 = vmatprep.subr.mxu0 0.0
        %3821 = vmatpush1.msra.mxu0 0.0
        %3822 = vmatprep.subr.mxu0 0.0
        %3823 = vmatpush1.msra.mxu0 0.0
        %3824 = vmatprep.subr.mxu0 0.0
        %3825 = vmatpush1.msra.mxu0 %v3787
        %3826 = vmatprep.subr.mxu0 0.0
        %3827 = vmatpush1.msra.mxu0 %v3785
        %3828 = vmatprep.subr.mxu0 0.0
        %3829 = vmatpush2.msra.mxu0 0.0
        %3830 = vmatprep.subr.mxu0 0.0
        %3831 = vmatpush2.msra.mxu0 0.0
        %3832 = vmatprep.subr.mxu0 0.0
        %3833 = vmatpush2.msra.mxu0 0.0
        %3834 = vmatprep.subr.mxu0 0.0
        %3835 = vmatpush2.msra.mxu0 0.0
        %3836 = vmatprep.subr.mxu0 0.0
        %3837 = vmatpush2.msra.mxu0 0.0
        %3838 = vmatprep.subr.mxu0 0.0
        %3839 = vmatpush2.msra.mxu0 0.0
        %3840 = vmatprep.subr.mxu0 0.0
        %3841 = vmatpush2.msra.mxu0 0.0
        %3842 = vmatprep.subr.mxu0 0.0
        %3843 = vmatpush2.msra.mxu0 0.0
        %3844 = vmatprep.subr.mxu0 0.0
        %3845 = vmatpush2.msra.mxu0 0.0
        %3846 = vmatprep.subr.mxu0 0.0
        %3847 = vmatpush2.msra.mxu0 0.0
        %3848 = vmatprep.subr.mxu0 0.0
        %3849 = vmatpush2.msra.mxu0 0.0
        %3850 = vmatprep.subr.mxu0 0.0
        %3851 = vmatpush2.msra.mxu0 0.0
        %3852 = vmatprep.subr.mxu0 0.0
        %3853 = vmatpush2.msra.mxu0 0.0
        %3854 = vmatprep.subr.mxu0 0.0
        %3855 = vmatpush2.msra.mxu0 0.0
        %3856 = vmatprep.subr.mxu0 0.0
        %3857 = vmatpush2.msra.mxu0 0.0
        %3858 = vmatprep.subr.mxu0 0.0
        %3859 = vmatpush2.msra.mxu0 0.0
        %3860 = vmatprep.mubr.f32.mxu0 0.0
        %3861 = vmatmul.mubr.f32.gmra.mxu0 %v3791
        %v3862 = vpop.f32.mrf.mxu0
        %v3863 = vadd.f32 0.0, %v3862
        %v3864 = vpop.f32.mrf.mxu0
        %3865 = vmatprep.mubr.f32.mxu0 0.0
        %3866 = vmatmul.mubr.f32.gmra.mxu0 %v3794
        %v3867 = vpop.f32.mrf.mxu0
        %v3868 = vadd.f32 0.0, %v3867
        %v3869 = vpop.f32.mrf.mxu0
        %3870 = vdwg.mxu0
        %3879 = vrot.lane.b32.xlu0 %v1980, 32
        %v3880 = vpop.permute.xlu0 %3879
        %3881 = vrot.lane.b32.xlu0 %v1985, 32
        %v3882 = vpop.permute.xlu0 %3881
        %3883 = vrot.lane.b32.xlu0 %v2069, 32
        %v3884 = vpop.permute.xlu0 %3883
        %3885 = vrot.lane.b32.xlu0 %v2074, 32
        %v3886 = vpop.permute.xlu0 %3885
        %3887 = vrot.lane.b32.xlu0 %v2158, 32
        %v3888 = vpop.permute.xlu0 %3887
        %3889 = vrot.lane.b32.xlu0 %v2163, 32
        %v3890 = vpop.permute.xlu0 %3889
        %3891 = vrot.lane.b32.xlu0 %v2247, 32
        %v3892 = vpop.permute.xlu0 %3891
        %3893 = vrot.lane.b32.xlu0 %v2252, 32
        %v3894 = vpop.permute.xlu0 %3893
        %3911 = vrot.lane.b32.xlu0 %v2794, 64
        %v3912 = vpop.permute.xlu0 %3911
        %3913 = vrot.lane.b32.xlu0 %v2799, 64
        %v3914 = vpop.permute.xlu0 %3913
        %3915 = vrot.lane.b32.xlu0 %v2881, 64
        %v3916 = vpop.permute.xlu0 %3915
        %3917 = vrot.lane.b32.xlu0 %v2886, 64
        %v3918 = vpop.permute.xlu0 %3917
        %3919 = vrot.lane.b32.xlu0 %v2968, 64
        %v3920 = vpop.permute.xlu0 %3919
        %3921 = vrot.lane.b32.xlu0 %v2973, 64
        %v3922 = vpop.permute.xlu0 %3921
        %3923 = vrot.lane.b32.xlu0 %v3055, 64
        %v3924 = vpop.permute.xlu0 %3923
        %3925 = vrot.lane.b32.xlu0 %v3060, 64
        %v3926 = vpop.permute.xlu0 %3925
        %3943 = vrot.lane.b32.xlu0 %v3602, 96
        %v3944 = vpop.permute.xlu0 %3943
        %3945 = vrot.lane.b32.xlu0 %v3607, 96
        %v3946 = vpop.permute.xlu0 %3945
        %3947 = vrot.lane.b32.xlu0 %v3689, 96
        %v3948 = vpop.permute.xlu0 %3947
        %3949 = vrot.lane.b32.xlu0 %v3694, 96
        %v3950 = vpop.permute.xlu0 %3949
        %3951 = vrot.lane.b32.xlu0 %v3776, 96
        %v3952 = vpop.permute.xlu0 %3951
        %3953 = vrot.lane.b32.xlu0 %v3781, 96
        %v3954 = vpop.permute.xlu0 %3953
        %3955 = vrot.lane.b32.xlu0 %v3863, 96
        %v3956 = vpop.permute.xlu0 %3955
        %3957 = vrot.lane.b32.xlu0 %v3868, 96
        %v3958 = vpop.permute.xlu0 %3957
        %v3967 = vsel %vm669, %v1188, %v3880
        %v3968 = vsel %vm669, %v1193, %v3882
        %v3969 = vsel %vm669, %v1269, %v3884
        %v3970 = vsel %vm669, %v1274, %v3886
        %v3971 = vsel %vm669, %v1350, %v3888
        %v3972 = vsel %vm669, %v1355, %v3890
        %v3973 = vsel %vm669, %v1431, %v3892
        %v3974 = vsel %vm669, %v1436, %v3894
        %vm3975 = vcmask 523264
        %v3976 = vsel %vm3975, %v3967, %v3912
        %v3977 = vsel %vm3975, %v3968, %v3914
        %v3978 = vsel %vm3975, %v3969, %v3916
        %v3979 = vsel %vm3975, %v3970, %v3918
        %v3980 = vsel %vm3975, %v3971, %v3920
        %v3981 = vsel %vm3975, %v3972, %v3922
        %v3982 = vsel %vm3975, %v3973, %v3924
        %v3983 = vsel %vm3975, %v3974, %v3926
        %vm3984 = vcmask 785408
        %v3985 = vsel %vm3984, %v3976, %v3944
        %v3986 = vsel %vm3984, %v3977, %v3946
        %v3987 = vsel %vm3984, %v3978, %v3948
        %v3988 = vsel %vm3984, %v3979, %v3950
        %v3989 = vsel %vm3984, %v3980, %v3952
        %v3990 = vsel %vm3984, %v3981, %v3954
        %v3991 = vsel %vm3984, %v3982, %v3956
        %v3992 = vsel %vm3984, %v3983, %v3958
        %v3993 = vld [vmem:[#allocation5] sm:$0xff]
        %v3994 = vld [vmem:[#allocation5 + $0x8] sm:$0xff]
        %v3995 = vld [vmem:[#allocation5 + $0x10] sm:$0xff]
        %v3996 = vld [vmem:[#allocation5 + $0x18] sm:$0xff]
        %v3997 = vld [vmem:[#allocation5 + $0x20] sm:$0xff]
        %v3998 = vld [vmem:[#allocation5 + $0x28] sm:$0xff]
        %v3999 = vld [vmem:[#allocation5 + $0x30] sm:$0xff]
        %v4000 = vld [vmem:[#allocation5 + $0x38] sm:$0xff]
        %v4001 = vld [vmem:[#allocation5 + $0x40] sm:$0xff]
        %v4002 = vld [vmem:[#allocation5 + $0x48] sm:$0xff]
        %v4003 = vld [vmem:[#allocation5 + $0x50] sm:$0xff]
        %v4004 = vld [vmem:[#allocation5 + $0x58] sm:$0xff]
        %v4005 = vld [vmem:[#allocation5 + $0x60] sm:$0xff]
        %v4006 = vld [vmem:[#allocation5 + $0x68] sm:$0xff]
        %v4007 = vld [vmem:[#allocation5 + $0x70] sm:$0xff]
        %v4008 = vld [vmem:[#allocation5 + $0x78] sm:$0xff]
        %4009 = vmatprep.subr.mxu0 0.0
        %4010 = vmatpush1.msra.mxu0 %v4008
        %4011 = vmatprep.subr.mxu0 0.0
        %4012 = vmatpush1.msra.mxu0 %v4007
        %4013 = vmatprep.subr.mxu0 0.0
        %4014 = vmatpush1.msra.mxu0 %v4006
        %4015 = vmatprep.subr.mxu0 0.0
        %4016 = vmatpush1.msra.mxu0 %v4005
        %4017 = vmatprep.subr.mxu0 0.0
        %4018 = vmatpush1.msra.mxu0 %v4004
        %4019 = vmatprep.subr.mxu0 0.0
        %4020 = vmatpush1.msra.mxu0 %v4003
        %4021 = vmatprep.subr.mxu0 0.0
        %4022 = vmatpush1.msra.mxu0 %v4002
        %4023 = vmatprep.subr.mxu0 0.0
        %4024 = vmatpush1.msra.mxu0 %v4001
        %4025 = vmatprep.subr.mxu0 0.0
        %4026 = vmatpush1.msra.mxu0 %v4000
        %4027 = vmatprep.subr.mxu0 0.0
        %4028 = vmatpush1.msra.mxu0 %v3999
        %4029 = vmatprep.subr.mxu0 0.0
        %4030 = vmatpush1.msra.mxu0 %v3998
        %4031 = vmatprep.subr.mxu0 0.0
        %4032 = vmatpush1.msra.mxu0 %v3997
        %4033 = vmatprep.subr.mxu0 0.0
        %4034 = vmatpush1.msra.mxu0 %v3996
        %4035 = vmatprep.subr.mxu0 0.0
        %4036 = vmatpush1.msra.mxu0 %v3995
        %4037 = vmatprep.subr.mxu0 0.0
        %4038 = vmatpush1.msra.mxu0 %v3994
        %4039 = vmatprep.subr.mxu0 0.0
        %4040 = vmatpush1.msra.mxu0 %v3993
        %4041 = vmatprep.subr.mxu0 0.0
        %4042 = vmatpush2.msra.mxu0 0.0
        %4043 = vmatprep.subr.mxu0 0.0
        %4044 = vmatpush2.msra.mxu0 0.0
        %4045 = vmatprep.subr.mxu0 0.0
        %4046 = vmatpush2.msra.mxu0 0.0
        %4047 = vmatprep.subr.mxu0 0.0
        %4048 = vmatpush2.msra.mxu0 0.0
        %4049 = vmatprep.subr.mxu0 0.0
        %4050 = vmatpush2.msra.mxu0 0.0
        %4051 = vmatprep.subr.mxu0 0.0
        %4052 = vmatpush2.msra.mxu0 0.0
        %4053 = vmatprep.subr.mxu0 0.0
        %4054 = vmatpush2.msra.mxu0 0.0
        %4055 = vmatprep.subr.mxu0 0.0
        %4056 = vmatpush2.msra.mxu0 0.0
        %4057 = vmatprep.subr.mxu0 0.0
        %4058 = vmatpush2.msra.mxu0 0.0
        %4059 = vmatprep.subr.mxu0 0.0
        %4060 = vmatpush2.msra.mxu0 0.0
        %4061 = vmatprep.subr.mxu0 0.0
        %4062 = vmatpush2.msra.mxu0 0.0
        %4063 = vmatprep.subr.mxu0 0.0
        %4064 = vmatpush2.msra.mxu0 0.0
        %4065 = vmatprep.subr.mxu0 0.0
        %4066 = vmatpush2.msra.mxu0 0.0
        %4067 = vmatprep.subr.mxu0 0.0
        %4068 = vmatpush2.msra.mxu0 0.0
        %4069 = vmatprep.subr.mxu0 0.0
        %4070 = vmatpush2.msra.mxu0 0.0
        %4071 = vmatprep.subr.mxu0 0.0
        %4072 = vmatpush2.msra.mxu0 0.0
        %4073 = vmatprep.mubr.f32.mxu0 0.0
        %4074 = vmatmul.mubr.f32.gmra.mxu0 %v3985
        %v4075 = vpop.f32.mrf.mxu0
        %v4076 = vadd.f32 0.0, %v4075
        %v4077 = vpop.f32.mrf.mxu0
        %4078 = vmatprep.mubr.f32.mxu0 0.0
        %4079 = vmatmul.mubr.f32.gmra.mxu0 %v3986
        %v4080 = vpop.f32.mrf.mxu0
        %v4081 = vadd.f32 0.0, %v4080
        %v4082 = vpop.f32.mrf.mxu0
        %4083 = vmatprep.mubr.f32.mxu0 0.0
        %4084 = vmatmul.mubr.f32.gmra.mxu0 %v3987
        %v4085 = vpop.f32.mrf.mxu0
        %v4086 = vadd.f32 0.0, %v4085
        %v4087 = vpop.f32.mrf.mxu0
        %4088 = vmatprep.mubr.f32.mxu0 0.0
        %4089 = vmatmul.mubr.f32.gmra.mxu0 %v3988
        %v4090 = vpop.f32.mrf.mxu0
        %v4091 = vadd.f32 0.0, %v4090
        %v4092 = vpop.f32.mrf.mxu0
        %4093 = vmatprep.mubr.f32.mxu0 0.0
        %4094 = vmatmul.mubr.f32.gmra.mxu0 %v3989
        %v4095 = vpop.f32.mrf.mxu0
        %v4096 = vadd.f32 0.0, %v4095
        %v4097 = vpop.f32.mrf.mxu0
        %4098 = vmatprep.mubr.f32.mxu0 0.0
        %4099 = vmatmul.mubr.f32.gmra.mxu0 %v3990
        %v4100 = vpop.f32.mrf.mxu0
        %v4101 = vadd.f32 0.0, %v4100
        %v4102 = vpop.f32.mrf.mxu0
        %4103 = vmatprep.mubr.f32.mxu0 0.0
        %4104 = vmatmul.mubr.f32.gmra.mxu0 %v3991
        %v4105 = vpop.f32.mrf.mxu0
        %v4106 = vadd.f32 0.0, %v4105
        %v4107 = vpop.f32.mrf.mxu0
        %4108 = vmatprep.mubr.f32.mxu0 0.0
        %4109 = vmatmul.mubr.f32.gmra.mxu0 %v3992
        %v4110 = vpop.f32.mrf.mxu0
        %v4111 = vadd.f32 0.0, %v4110
        %v4112 = vpop.f32.mrf.mxu0
        %4113 = vdwg.mxu0
        %4114 = vst [vmem:[%s282] sm:$0xff] %v4076
        %4115 = vst [vmem:[%s282 + $0x8] sm:$0xff] %v4081
        %4116 = vst [vmem:[%s282 + $0x10] sm:$0xff] %v4086
        %4117 = vst [vmem:[%s282 + $0x18] sm:$0xff] %v4091
        %4118 = vst [vmem:[%s282 + $0x20] sm:$0xff] %v4096
        %4119 = vst [vmem:[%s282 + $0x28] sm:$0xff] %v4101
        %4120 = vst [vmem:[%s282 + $0x30] sm:$0xff] %v4106
        %4121 = vst [vmem:[%s282 + $0x38] sm:$0xff] %v4111
        %s4122 = sand.u32 %s149, 1
        %s4123 = scalar_lea.sflag [#allocation4], %s4122
        %s4124 = sand.u32 %s149, 1
        %s4125 = smul.addr %s4124, 64
        %s4126 = scalar_lea.vmem [#allocation7], %s4125
        // Predicated region
        $region49: #{tpu_custom_call.1} parent=39 // pred_check
          %p4127 = pneg %p159
        $region50: #{tpu_custom_call.1} parent=39 // pred_check_branch
          %4129 = sbr.rel (%p4127) target = $region52
        $region51: #{tpu_custom_call.1} parent=39 // pred_region
          %s4130 = smul.u32 4, %s21
          %s4132 = ssub.s32 1024, 1024
          %4133 = vsyncadd %s4123, %s4132
          %s4134 = smul.addr %s4130, 2
          %s4135 = smul.addr %s4134, 128
          %s4136 = scalar_lea.hbm %s5, %s4135
          %s4137 = sshll.u32 %s4126, 4
          %s4138 = int_to_ptr.vmem [resolvable:$true] %s4137
          %4143 = dma.vmem_to_hbm [thread:$0]  %s4138, 1024, %s4136, %s4123, 128, 128, 8
        $region52: #{tpu_custom_call.1} parent=39 // pred_fallthru
          _
      $region40: #{tpu_custom_call.1} parent=5 // pred_fallthru
        _
      %p4144 = scmp.le.s32.totalorder 2, %s16
      // Predicated region
      $region53: #{tpu_custom_call.1} parent=5 // pred_check
        %p4145 = pneg %p4144
      $region54: #{tpu_custom_call.1} parent=5 // pred_check_branch
        %4147 = sbr.rel (%p4145) target = $region56
      $region55: #{tpu_custom_call.1} parent=5 // pred_region
        %s4148 = ssub.s32 %s16, 2
        // Predicated region
        $region57: #{tpu_custom_call.1} parent=55 // pred_check
          %p4149 = pneg %p165
        $region58: #{tpu_custom_call.1} parent=55 // pred_check_branch
          %4151 = sbr.rel (%p4149) target = $region60
        $region59: #{tpu_custom_call.1} parent=55 // pred_region
          %s4152 = sand.u32 %s150, 1
          %s4153 = scalar_lea.sflag [#allocation4], %s4152
          %s4154 = sand.u32 %s150, 1
          %s4155 = smul.addr %s4154, 64
          %s4156 = scalar_lea.vmem [#allocation7], %s4155
          %4157 = dma.done %s4153, 1024
        $region60: #{tpu_custom_call.1} parent=55 // pred_fallthru
          _
      $region56: #{tpu_custom_call.1} parent=5 // pred_fallthru
        _
    $region6: #{tpu_custom_call.1} parent=1 // loop_footer
      %s20 = sadd.s32 1, %s16
    $region7: #{tpu_custom_call.1} parent=1 // loop_footer_branch
      %15 = sbr.rel target = $region3
    $region8: #{tpu_custom_call.1} parent=1 // loop_exit
      _
    %4158 = vsyncpa [#allocation3], 1
    %s4159 = scalar_lea.sflag [#allocation3], 1
    %4160 = vsyncpa %s4159, 1
    %4161 = vsyncpa [#allocation6], 1
    %4162 = vsyncpa [#allocation4], 1
    %s4163 = scalar_lea.sflag [#allocation4], 1
    %4164 = vsyncpa %s4163, 1

</llo_original>
